<compile_context>
chip_gen: v5e
topology: v5e:2x2
jax: 0.10.0
libtpu: 0.0.40
codegen_flags: <defaults>
</compile_context>

<pallas_src>
import functools

import jax
import jax.numpy as jnp
from jax import lax
from jax.experimental import pallas as pl
from jax.experimental.pallas import tpu as pltpu


# ----------------------------- small helpers --------------------------------
def _pair(v):
    if isinstance(v, (tuple, list)):
        assert len(v) == 2
        return int(v[0]), int(v[1])
    return int(v), int(v)


def _round_up(x, m):
    return (x + m - 1) // m * m


def _phase_geometry(K, s, p, I):
    """Sub-pixel decomposition geometry along one spatial dim of ConvTranspose."""
    O = (I - 1) * s - 2 * p + K
    Km = -(-K // s)                       # taps per phase (ceil(K/s))
    assert O % s == 0, (
        "phase decomposition here assumes output size divisible by stride "
        "(true for the standard GBlock configs, e.g. k=4,s=2,p=1 or s=1)")
    # TODO(synk): support O % s != 0 by masking overshoot rows out of the BN stats.
    M = O // s                            # output rows per phase
    rd = [((q + p) % s, (q + p) // s) for q in range(s)]   # (tap phase r, shift d)
    min_d = min(d for _, d in rd)
    max_d = max(d for _, d in rd)
    lpad = max(0, Km - 1 - min_d)
    rpad = max(0, max_d + M - I)
    starts = [d - (Km - 1) + lpad for _, d in rd]           # slab start per phase
    return O, Km, M, rd, lpad, rpad, starts


def _vmem_capacity_bytes():
    """Generation-aware VMEM capacity (v7x has 64 MiB/TC, v5e/v6e 128 MiB)."""
    try:
        info = pltpu.get_tpu_info()
        cap = int(getattr(info, "vmem_capacity_bytes", 0))
        if cap > 0:
            return cap
    except Exception:
        pass
    try:
        kind = jax.devices()[0].device_kind.lower()
    except Exception:
        kind = ""
    if "v7" in kind or "7x" in kind:
        return 64 << 20
    return 128 << 20


# ------------------------------- kernels -------------------------------------
def _conv_stats_kernel(x_ref, w_ref, y_ref, st_ref, col_ref, *,
                       tap_off, Cin, Cout, MH, MW):
    """Phase-decomposed ConvTranspose for one batch tile (all phases in-kernel).

    x_ref  : (TN, IHp, IWp, Cin)        compute dtype, padded input (resident)
    w_ref  : (P, T*Cin, COUT_P)         compute dtype, per-phase flattened taps
    y_ref  : (P, TN, MH, MW, Cout)      compute dtype, conv activation (real Cout)
    st_ref : (1, 2, COUT_P)             f32 per-tile [sum; sum of squares]
    col_ref: (TN*MH*MW, T*Cin)          compute dtype VMEM im2col scratch
    """
    TN = x_ref.shape[0]
    P = w_ref.shape[0]
    COUT_P = w_ref.shape[2]
    rows = TN * MH * MW

    s1 = jnp.zeros((1, COUT_P), jnp.float32)
    s2 = jnp.zeros((1, COUT_P), jnp.float32)
    for p in range(P):
        # im2col: one relayout per (tile, phase); static slices only.
        for t, (oh, ow) in enumerate(tap_off[p]):
            patch = x_ref[:, oh:oh + MH, ow:ow + MW, :]
            col_ref[:, t * Cin:(t + 1) * Cin] = patch.reshape(rows, Cin)
        # single big-K matmul: (rows, T*Cin) x (T*Cin, COUT_P), f32 accumulation
        acc = jnp.dot(col_ref[...], w_ref[p],
                      preferred_element_type=jnp.float32)
        # per-channel partial sums for the batch-norm statistics (f32)
        s1 = s1 + jnp.sum(acc, axis=0, keepdims=True)
        s2 = s2 + jnp.sum(acc * acc, axis=0, keepdims=True)
        # store at real Cout only (no 128-channel padding in HBM)
        y_ref[p] = acc[:, :Cout].reshape(TN, MH, MW, Cout).astype(y_ref.dtype)
    st_ref[0] = jnp.concatenate([s1, s2], axis=0)


def _bn_act_kernel(y_ref, a_ref, b_ref, o_ref, *, neg_slope):
    """out = leaky_relu(a * y + b); a/b fold mean/var/gamma/beta per (sample, ch),
    pre-packed to the (MW*Cout) lane layout so the kernel is purely elementwise."""
    a = a_ref[...].reshape(a_ref.shape[0], a_ref.shape[1], 1, a_ref.shape[2])
    b = b_ref[...].reshape(b_ref.shape[0], b_ref.shape[1], 1, b_ref.shape[2])
    z = y_ref[...].astype(jnp.float32) * a + b
    o_ref[...] = jnp.where(z >= 0, z, neg_slope * z).astype(o_ref.dtype)


# ------------------------------- wrapper --------------------------------------
def gblock_forward(x_nchw, weight, gamma_emb, beta_emb, classes, *,
                   stride, padding, eps=1e-5, neg_slope=0.2,
                   compute_dtype=jnp.bfloat16):
    """x_nchw : (N, Cin, H, W)  f32
       weight : (Cin, Cout, KH, KW)  ConvTranspose2d weight (PyTorch layout)
       gamma_emb, beta_emb : (num_classes, Cout)
       classes: (N,) int32
       returns (N, Cout, OH, OW) f32 (NCHW, like PyTorch)
    """
    N, Cin, IH, IW = x_nchw.shape
    wCin, Cout, KH, KW = weight.shape
    assert wCin == Cin
    sh, sw = _pair(stride)
    pH, pW = _pair(padding)
    assert pH <= KH - 1 and pW <= KW - 1

    OH, KmH, MH, rdH, lH, rH, startsH = _phase_geometry(KH, sh, pH, IH)
    OW, KmW, MW, rdW, lW, rW, startsW = _phase_geometry(KW, sw, pW, IW)
    P = sh * sw                      # number of output phases
    T = KmH * KmW                    # taps per phase
    TCin = T * Cin                   # big-K matmul contraction
    COUT_P = _round_up(Cout, 128)    # lane-dense matmul output (VMEM only)
    IHp = IH + lH + rH
    IWp = IW + lW + rW
    MWC = MW * Cout

    # ---- glue: NCHW -> NHWC, pad ONCE (no per-phase duplication) --------------
    x_nhwc = jnp.transpose(x_nchw, (0, 2, 3, 1)).astype(compute_dtype)
    x_pad = jnp.pad(x_nhwc, ((0, 0), (lH, rH), (lW, rW), (0, 0)))

    # ---- static per-(phase, tap) element offsets into the padded input --------
    tap_off = []                     # [P][T] of (oh, ow)
    for qh in range(sh):
        for qw in range(sw):
            offs = []
            for jfh in range(KmH):
                for jfw in range(KmW):
                    offs.append((startsH[qh] + jfh, startsW[qw] + jfw))
            tap_off.append(offs)

    # ---- per-phase flattened, spatially-flipped sub-kernels (Cout pad in VMEM) -
    w_f32 = weight.astype(jnp.float32)
    w_flat = jnp.zeros((P, T, Cin, COUT_P), jnp.float32)
    for qh in range(sh):
        r_h = rdH[qh][0]
        for qw in range(sw):
            r_w = rdW[qw][0]
            p = qh * sw + qw
            for jfh in range(KmH):
                kh = r_h + (KmH - 1 - jfh) * sh
                if kh >= KH:
                    continue
                for jfw in range(KmW):
                    kw = r_w + (KmW - 1 - jfw) * sw
                    if kw >= KW:
                        continue
                    w_flat = w_flat.at[p, jfh * KmW + jfw,
                                       :, :Cout].set(w_f32[:, :, kh, kw])
    w_phase = w_flat.reshape(P, TCin, COUT_P).astype(compute_dtype)

    # ---- generation-aware batch tiling / VMEM budget ---------------------------
    itm = jnp.dtype(compute_dtype).itemsize
    cap = _vmem_capacity_bytes()
    tile_budget = min(28 << 20, cap // 4)        # ~28 MiB on v5e/v6e, ~16 MiB on v7x

    def _est_vmem(tn):
        rows = tn * MH * MW
        x_blk = tn * IHp * _round_up(IWp, 8) * _round_up(Cin, 128) * itm
        y_blk = P * tn * MH * _round_up(MW, 8) * _round_up(Cout, 128) * itm
        col = _round_up(rows, 8) * _round_up(TCin, 128) * itm
        acc = _round_up(rows, 8) * COUT_P * 4
        w_blk = P * _round_up(TCin, 8) * COUT_P * itm
        return 2 * (x_blk + y_blk) + col + 2 * acc + w_blk + (1 << 20)

    TN = 1
    for d in range(1, N + 1):
        if N % d == 0 and _est_vmem(d) <= tile_budget:
            TN = d
    NB = N // TN

    vmem_limit = min(100 << 20, (cap * 3) // 4)          # 96 MiB / 48 MiB (v7x)
    vmem_limit = int(max(vmem_limit,
                         min(cap - (8 << 20), 2 * _est_vmem(TN))))

    # ---- pass 1: phase-decomposed conv + partial BN statistics -----------------
    conv_kernel = functools.partial(_conv_stats_kernel, tap_off=tap_off,
                                    Cin=Cin, Cout=Cout, MH=MH, MW=MW)
    y, st = pl.pallas_call(
        conv_kernel,
        grid=(NB,),
        in_specs=[
            # single padded input, resident across all phases of a batch tile
            pl.BlockSpec((TN, IHp, IWp, Cin), lambda nb: (nb, 0, 0, 0)),
            # all phase weights resident for the whole grid
            pl.BlockSpec((P, TCin, COUT_P), lambda nb: (0, 0, 0)),
        ],
        out_specs=(
            pl.BlockSpec((P, TN, MH, MW, Cout), lambda nb: (0, nb, 0, 0, 0)),
            pl.BlockSpec((1, 2, COUT_P), lambda nb: (nb, 0, 0)),
        ),
        out_shape=(
            jax.ShapeDtypeStruct((P, N, MH, MW, Cout), compute_dtype),
            jax.ShapeDtypeStruct((NB, 2, COUT_P), jnp.float32),
        ),
        scratch_shapes=[pltpu.VMEM((TN * MH * MW, TCin), compute_dtype)],
        compiler_params=pltpu.CompilerParams(
            dimension_semantics=("parallel",),
            vmem_limit_bytes=vmem_limit),
    )(x_pad, w_phase)

    # ---- glue: finish BN statistics, fold gamma/beta into per-sample scale/offset
    cnt = float(N * OH * OW)
    tot = jnp.sum(st, axis=0)                               # (2, COUT_P)
    mean = tot[0, :Cout] / cnt
    # TODO(synk): E[x^2]-mean^2 can cancel for large activation means; use a
    # shifted/centered accumulation if tighter parity with PyTorch BN is needed.
    var = jnp.maximum(tot[1, :Cout] / cnt - mean * mean, 0.0)
    inv = lax.rsqrt(var + eps)                              # (Cout,)
    gamma = gamma_emb[classes].astype(jnp.float32)          # (N, Cout)
    beta = beta_emb[classes].astype(jnp.float32)
    a = gamma * inv[None, :]                                # (N, Cout)
    b = beta - gamma * (inv * mean)[None, :]
    # pack a/b to the (MW*Cout) lane layout used by pass 2
    a_p = jnp.tile(a, (1, MW)).reshape(NB, TN, MWC)
    b_p = jnp.tile(b, (1, MW)).reshape(NB, TN, MWC)
    y2 = y.reshape(P, N, MH, MWC)                           # free (bitcast) reshape

    # ---- pass 2: normalize + conditional affine + LeakyReLU (lane-dense) -------
    bn_kernel = functools.partial(_bn_act_kernel, neg_slope=neg_slope)
    out = pl.pallas_call(
        bn_kernel,
        grid=(NB, P),
        in_specs=[
            pl.BlockSpec((1, TN, MH, MWC), lambda nb, ph: (ph, nb, 0, 0)),
            pl.BlockSpec((1, TN, MWC), lambda nb, ph: (nb, 0, 0)),
            pl.BlockSpec((1, TN, MWC), lambda nb, ph: (nb, 0, 0)),
        ],
        out_specs=pl.BlockSpec((1, TN, MH, MWC), lambda nb, ph: (ph, nb, 0, 0)),
        out_shape=jax.ShapeDtypeStruct((P, N, MH, MWC), jnp.float32),
        compiler_params=pltpu.CompilerParams(
            dimension_semantics=("parallel", "parallel"),
            vmem_limit_bytes=vmem_limit),
    )(y2, a_p, b_p)

    # ---- glue: single merged transpose (phase interleave + NHWC->NCHW) ---------
    out = out.reshape(sh, sw, N, MH, MW, Cout)
    out = jnp.transpose(out, (2, 5, 3, 0, 4, 1))            # (N, C, MH, sh, MW, sw)
    return out.reshape(N, Cout, OH, OW)


# ----------------------------- pure-JAX reference ---------------------------
def gblock_reference(x, weight, gamma_emb, beta_emb, classes, *,
                     stride, padding, eps=1e-5, neg_slope=0.2):
    N, Cin, IH, IW = x.shape
    _, Cout, K, _ = weight.shape
    full_h = (IH - 1) * stride + K
    full_w = (IW - 1) * stride + K
    y = jnp.zeros((N, Cout, full_h, full_w), jnp.float32)
    for kh in range(K):
        for kw in range(K):
            tap = jnp.einsum('nchw,cd->ndhw', x, weight[:, :, kh, kw])
            y = y.at[:, :,
                     kh:kh + (IH - 1) * stride + 1:stride,
                     kw:kw + (IW - 1) * stride + 1:stride].add(tap)
    y = y[:, :, padding:full_h - padding, padding:full_w - padding]
    mean = y.mean(axis=(0, 2, 3), keepdims=True)
    var = ((y - mean) ** 2).mean(axis=(0, 2, 3), keepdims=True)
    yn = (y - mean) / jnp.sqrt(var + eps)
    g = gamma_emb[classes][:, :, None, None]
    b = beta_emb[classes][:, :, None, None]
    out = g * yn + b
    return jnp.where(out >= 0, out, neg_slope * out)


if __name__ == "__main__":
    def run_case(key, N, Cin, Cout, K, stride, padding, H, W, num_classes,
                 compute_dtype, rtol, atol):
        k_x, k_w, k_g, k_b, k_c = jax.random.split(key, 5)
        x = jax.random.normal(k_x, (N, Cin, H, W), jnp.float32)
        fan_in, fan_out = Cout * K * K, Cin * K * K
        bound = (6.0 / (fan_in + fan_out)) ** 0.5
        weight = jax.random.uniform(k_w, (Cin, Cout, K, K), jnp.float32,
                                    minval=-bound, maxval=bound)
        gamma_emb = 1.0 + 0.1 * jax.random.normal(k_g, (num_classes, Cout),
                                                  jnp.float32)
        beta_emb = 0.1 * jax.random.normal(k_b, (num_classes, Cout), jnp.float32)
        classes = jax.random.randint(k_c, (N,), 0, num_classes, jnp.int32)

        out = gblock_forward(x, weight, gamma_emb, beta_emb, classes,
                             stride=stride, padding=padding,
                             compute_dtype=compute_dtype)
        out = jax.block_until_ready(out)
        ref = gblock_reference(x, weight, gamma_emb, beta_emb, classes,
                               stride=stride, padding=padding)
        ref = jax.block_until_ready(ref)

        OH = (H - 1) * stride - 2 * padding + K
        OW = (W - 1) * stride - 2 * padding + K
        assert out.shape == (N, Cout, OH, OW), out.shape
        err = jnp.max(jnp.abs(out - ref))
        assert jnp.allclose(out, ref, rtol=rtol, atol=atol), \
            f"max abs err {err} (dtype={compute_dtype})"

    key = jax.random.PRNGKey(0)
    k1, k2, k3 = jax.random.split(key, 3)
    # Standard GBlock upsampling config (k=4, s=2, p=1), f32 path (y kept f32).
    run_case(k1, 2, 4, 8, 4, 2, 1, 16, 16, 10, jnp.float32, 1e-3, 1e-3)
    # Same config with bf16 MXU inputs + bf16 activation storage (f32 stats).
    run_case(k2, 2, 4, 8, 4, 2, 1, 16, 16, 10, jnp.bfloat16, 3e-2, 3e-2)
    # stride-1 config (k=3, s=1, p=1): single phase, f32.
    run_case(k3, 2, 4, 8, 3, 1, 1, 16, 16, 10, jnp.float32, 1e-3, 1e-3)
    print("KERNEL_OK")
</pallas_src>

<mosaic_0001>
module attributes {stable_mosaic.version = 11 : i64} {
  func.func @_conv_stats_kernel(%arg0: i32, %arg1: memref<2x18x18x4xf32, #tpu.memory_space<vmem>>, %arg2: memref<4x16x128xf32, #tpu.memory_space<vmem>>, %arg3: memref<4x2x16x16x8xf32, #tpu.memory_space<vmem>>, %arg4: memref<1x2x128xf32, #tpu.memory_space<vmem>>, %arg5: memref<512x16xf32, #tpu.memory_space<vmem>>) attributes {dimension_semantics = [#tpu.dimension_semantics<parallel>], iteration_bounds = array<i64: 1>, scalar_prefetch = 0 : i64, scratch_operands = 1 : i64, tpu.core_type = #tpu.core_type<tc>, window_params = [{transform_indices = @transform_0, window_bounds = array<i64: 2, 18, 18, 4>}, {pipeline_mode = #tpu.pipeline_mode<synchronous>, transform_indices = @transform_1, window_bounds = array<i64: 4, 16, 128>}, {transform_indices = @transform_2, window_bounds = array<i64: 4, 2, 16, 16, 8>}, {transform_indices = @transform_3, window_bounds = array<i64: 1, 2, 128>}]} {
    %cst = arith.constant 0.000000e+00 : f32
    %0 = vector.broadcast %cst : f32 to vector<1x128xf32>
    %cst_0 = arith.constant 0.000000e+00 : f32
    %1 = vector.broadcast %cst_0 : f32 to vector<1x128xf32>
    %c0 = arith.constant 0 : index
    %c0_1 = arith.constant 0 : index
    %c0_2 = arith.constant 0 : index
    %c0_3 = arith.constant 0 : index
    %2 = vector.load %arg1[%c0, %c0_1, %c0_2, %c0_3] : memref<2x18x18x4xf32, #tpu.memory_space<vmem>>, vector<2x16x16x4xf32>
    %3 = vector.shape_cast %2 : vector<2x16x16x4xf32> to vector<512x4xf32>
    %c0_4 = arith.constant 0 : index
    %c0_5 = arith.constant 0 : index
    %4 = vector.load %arg5[%c0_4, %c0_5] : memref<512x16xf32, #tpu.memory_space<vmem>>, vector<512x4xf32>
    tpu.vector_store %arg5[%c0_4, %c0_5], %3 {strides = array<i32>} : memref<512x16xf32, #tpu.memory_space<vmem>>, vector<512x4xf32>,
    %c0_6 = arith.constant 0 : index
    %c0_7 = arith.constant 0 : index
    %c1 = arith.constant 1 : index
    %c0_8 = arith.constant 0 : index
    %5 = vector.load %arg1[%c0_6, %c0_7, %c1, %c0_8] : memref<2x18x18x4xf32, #tpu.memory_space<vmem>>, vector<2x16x16x4xf32>
    %6 = vector.shape_cast %5 : vector<2x16x16x4xf32> to vector<512x4xf32>
    %c0_9 = arith.constant 0 : index
    %c4 = arith.constant 4 : index
    %7 = vector.load %arg5[%c0_9, %c4] : memref<512x16xf32, #tpu.memory_space<vmem>>, vector<512x4xf32>
    tpu.vector_store %arg5[%c0_9, %c4], %6 {strides = array<i32>} : memref<512x16xf32, #tpu.memory_space<vmem>>, vector<512x4xf32>,
    %c0_10 = arith.constant 0 : index
    %c1_11 = arith.constant 1 : index
    %c0_12 = arith.constant 0 : index
    %c0_13 = arith.constant 0 : index
    %8 = vector.load %arg1[%c0_10, %c1_11, %c0_12, %c0_13] : memref<2x18x18x4xf32, #tpu.memory_space<vmem>>, vector<2x16x16x4xf32>
    %9 = vector.shape_cast %8 : vector<2x16x16x4xf32> to vector<512x4xf32>
    %c0_14 = arith.constant 0 : index
    %c8 = arith.constant 8 : index
    %10 = vector.load %arg5[%c0_14, %c8] : memref<512x16xf32, #tpu.memory_space<vmem>>, vector<512x4xf32>
    tpu.vector_store %arg5[%c0_14, %c8], %9 {strides = array<i32>} : memref<512x16xf32, #tpu.memory_space<vmem>>, vector<512x4xf32>,
    %c0_15 = arith.constant 0 : index
    %c1_16 = arith.constant 1 : index
    %c1_17 = arith.constant 1 : index
    %c0_18 = arith.constant 0 : index
    %11 = vector.load %arg1[%c0_15, %c1_16, %c1_17, %c0_18] : memref<2x18x18x4xf32, #tpu.memory_space<vmem>>, vector<2x16x16x4xf32>
    %12 = vector.shape_cast %11 : vector<2x16x16x4xf32> to vector<512x4xf32>
    %c0_19 = arith.constant 0 : index
    %c12 = arith.constant 12 : index
    %13 = vector.load %arg5[%c0_19, %c12] : memref<512x16xf32, #tpu.memory_space<vmem>>, vector<512x4xf32>
    tpu.vector_store %arg5[%c0_19, %c12], %12 {strides = array<i32>} : memref<512x16xf32, #tpu.memory_space<vmem>>, vector<512x4xf32>,
    %c0_20 = arith.constant 0 : index
    %c0_21 = arith.constant 0 : index
    %14 = vector.load %arg5[%c0_20, %c0_21] : memref<512x16xf32, #tpu.memory_space<vmem>>, vector<512x16xf32>
    %c0_22 = arith.constant 0 : index
    %c0_23 = arith.constant 0 : index
    %c0_24 = arith.constant 0 : index
    %15 = vector.load %arg2[%c0_22, %c0_23, %c0_24] : memref<4x16x128xf32, #tpu.memory_space<vmem>>, vector<1x16x128xf32>
    %16 = vector.shape_cast %15 : vector<1x16x128xf32> to vector<16x128xf32>
    %cst_25 = arith.constant dense<0.000000e+00> : vector<512x128xf32>
    %17 = tpu.matmul %14, %16, %cst_25 {dimension_numbers = #tpu.dot_dimension_numbers<[1], [0], [0], [1], [0, 0, 1, 1], [], []>} : vector<512x16xf32>, vector<16x128xf32>, vector<512x128xf32> -> vector<512x128xf32>
    %cst_26 = arith.constant dense<0.000000e+00> : vector<128xf32>
    %18 = vector.multi_reduction <add>, %17, %cst_26 [0] : vector<512x128xf32> to vector<128xf32>
    %19 = vector.shape_cast %18 : vector<128xf32> to vector<1x128xf32>
    %20 = arith.addf %0, %19 : vector<1x128xf32>
    %21 = arith.mulf %17, %17 : vector<512x128xf32>
    %cst_27 = arith.constant dense<0.000000e+00> : vector<128xf32>
    %22 = vector.multi_reduction <add>, %21, %cst_27 [0] : vector<512x128xf32> to vector<128xf32>
    %23 = vector.shape_cast %22 : vector<128xf32> to vector<1x128xf32>
    %24 = arith.addf %1, %23 : vector<1x128xf32>
    %25 = vector.extract_strided_slice %17 {offsets = [0, 0], sizes = [512, 8], strides = [1, 1]} : vector<512x128xf32> to vector<512x8xf32>
    %26 = vector.shape_cast %25 : vector<512x8xf32> to vector<2x16x16x8xf32>
    %c0_28 = arith.constant 0 : index
    %c0_29 = arith.constant 0 : index
    %c0_30 = arith.constant 0 : index
    %c0_31 = arith.constant 0 : index
    %c0_32 = arith.constant 0 : index
    %27 = vector.load %arg3[%c0_28, %c0_29, %c0_30, %c0_31, %c0_32] : memref<4x2x16x16x8xf32, #tpu.memory_space<vmem>>, vector<1x2x16x16x8xf32>
    %28 = vector.shape_cast %27 : vector<1x2x16x16x8xf32> to vector<2x16x16x8xf32>
    %29 = vector.shape_cast %26 : vector<2x16x16x8xf32> to vector<1x2x16x16x8xf32>
    tpu.vector_store %arg3[%c0_28, %c0_29, %c0_30, %c0_31, %c0_32], %29 {strides = array<i32>} : memref<4x2x16x16x8xf32, #tpu.memory_space<vmem>>, vector<1x2x16x16x8xf32>,
    %c0_33 = arith.constant 0 : index
    %c0_34 = arith.constant 0 : index
    %c1_35 = arith.constant 1 : index
    %c0_36 = arith.constant 0 : index
    %30 = vector.load %arg1[%c0_33, %c0_34, %c1_35, %c0_36] : memref<2x18x18x4xf32, #tpu.memory_space<vmem>>, vector<2x16x16x4xf32>
    %31 = vector.shape_cast %30 : vector<2x16x16x4xf32> to vector<512x4xf32>
    %c0_37 = arith.constant 0 : index
    %c0_38 = arith.constant 0 : index
    %32 = vector.load %arg5[%c0_37, %c0_38] : memref<512x16xf32, #tpu.memory_space<vmem>>, vector<512x4xf32>
    tpu.vector_store %arg5[%c0_37, %c0_38], %31 {strides = array<i32>} : memref<512x16xf32, #tpu.memory_space<vmem>>, vector<512x4xf32>,
    %c0_39 = arith.constant 0 : index
    %c0_40 = arith.constant 0 : index
    %c2 = arith.constant 2 : index
    %c0_41 = arith.constant 0 : index
    %33 = vector.load %arg1[%c0_39, %c0_40, %c2, %c0_41] : memref<2x18x18x4xf32, #tpu.memory_space<vmem>>, vector<2x16x16x4xf32>
    %34 = vector.shape_cast %33 : vector<2x16x16x4xf32> to vector<512x4xf32>
    %c0_42 = arith.constant 0 : index
    %c4_43 = arith.constant 4 : index
    %35 = vector.load %arg5[%c0_42, %c4_43] : memref<512x16xf32, #tpu.memory_space<vmem>>, vector<512x4xf32>
    tpu.vector_store %arg5[%c0_42, %c4_43], %34 {strides = array<i32>} : memref<512x16xf32, #tpu.memory_space<vmem>>, vector<512x4xf32>,
    %c0_44 = arith.constant 0 : index
    %c1_45 = arith.constant 1 : index
    %c1_46 = arith.constant 1 : index
    %c0_47 = arith.constant 0 : index
    %36 = vector.load %arg1[%c0_44, %c1_45, %c1_46, %c0_47] : memref<2x18x18x4xf32, #tpu.memory_space<vmem>>, vector<2x16x16x4xf32>
    %37 = vector.shape_cast %36 : vector<2x16x16x4xf32> to vector<512x4xf32>
    %c0_48 = arith.constant 0 : index
    %c8_49 = arith.constant 8 : index
    %38 = vector.load %arg5[%c0_48, %c8_49] : memref<512x16xf32, #tpu.memory_space<vmem>>, vector<512x4xf32>
    tpu.vector_store %arg5[%c0_48, %c8_49], %37 {strides = array<i32>} : memref<512x16xf32, #tpu.memory_space<vmem>>, vector<512x4xf32>,
    %c0_50 = arith.constant 0 : index
    %c1_51 = arith.constant 1 : index
    %c2_52 = arith.constant 2 : index
    %c0_53 = arith.constant 0 : index
    %39 = vector.load %arg1[%c0_50, %c1_51, %c2_52, %c0_53] : memref<2x18x18x4xf32, #tpu.memory_space<vmem>>, vector<2x16x16x4xf32>
    %40 = vector.shape_cast %39 : vector<2x16x16x4xf32> to vector<512x4xf32>
    %c0_54 = arith.constant 0 : index
    %c12_55 = arith.constant 12 : index
    %41 = vector.load %arg5[%c0_54, %c12_55] : memref<512x16xf32, #tpu.memory_space<vmem>>, vector<512x4xf32>
    tpu.vector_store %arg5[%c0_54, %c12_55], %40 {strides = array<i32>} : memref<512x16xf32, #tpu.memory_space<vmem>>, vector<512x4xf32>,
    %c0_56 = arith.constant 0 : index
    %c0_57 = arith.constant 0 : index
    %42 = vector.load %arg5[%c0_56, %c0_57] : memref<512x16xf32, #tpu.memory_space<vmem>>, vector<512x16xf32>
    %c1_58 = arith.constant 1 : index
    %c0_59 = arith.constant 0 : index
    %c0_60 = arith.constant 0 : index
    %43 = vector.load %arg2[%c1_58, %c0_59, %c0_60] : memref<4x16x128xf32, #tpu.memory_space<vmem>>, vector<1x16x128xf32>
    %44 = vector.shape_cast %43 : vector<1x16x128xf32> to vector<16x128xf32>
    %cst_61 = arith.constant dense<0.000000e+00> : vector<512x128xf32>
    %45 = tpu.matmul %42, %44, %cst_61 {dimension_numbers = #tpu.dot_dimension_numbers<[1], [0], [0], [1], [0, 0, 1, 1], [], []>} : vector<512x16xf32>, vector<16x128xf32>, vector<512x128xf32> -> vector<512x128xf32>
    %cst_62 = arith.constant dense<0.000000e+00> : vector<128xf32>
    %46 = vector.multi_reduction <add>, %45, %cst_62 [0] : vector<512x128xf32> to vector<128xf32>
    %47 = vector.shape_cast %46 : vector<128xf32> to vector<1x128xf32>
    %48 = arith.addf %20, %47 : vector<1x128xf32>
    %49 = arith.mulf %45, %45 : vector<512x128xf32>
    %cst_63 = arith.constant dense<0.000000e+00> : vector<128xf32>
    %50 = vector.multi_reduction <add>, %49, %cst_63 [0] : vector<512x128xf32> to vector<128xf32>
    %51 = vector.shape_cast %50 : vector<128xf32> to vector<1x128xf32>
    %52 = arith.addf %24, %51 : vector<1x128xf32>
    %53 = vector.extract_strided_slice %45 {offsets = [0, 0], sizes = [512, 8], strides = [1, 1]} : vector<512x128xf32> to vector<512x8xf32>
    %54 = vector.shape_cast %53 : vector<512x8xf32> to vector<2x16x16x8xf32>
    %c1_64 = arith.constant 1 : index
    %c0_65 = arith.constant 0 : index
    %c0_66 = arith.constant 0 : index
    %c0_67 = arith.constant 0 : index
    %c0_68 = arith.constant 0 : index
    %55 = vector.load %arg3[%c1_64, %c0_65, %c0_66, %c0_67, %c0_68] : memref<4x2x16x16x8xf32, #tpu.memory_space<vmem>>, vector<1x2x16x16x8xf32>
    %56 = vector.shape_cast %55 : vector<1x2x16x16x8xf32> to vector<2x16x16x8xf32>
    %57 = vector.shape_cast %54 : vector<2x16x16x8xf32> to vector<1x2x16x16x8xf32>
    tpu.vector_store %arg3[%c1_64, %c0_65, %c0_66, %c0_67, %c0_68], %57 {strides = array<i32>} : memref<4x2x16x16x8xf32, #tpu.memory_space<vmem>>, vector<1x2x16x16x8xf32>,
    %c0_69 = arith.constant 0 : index
    %c1_70 = arith.constant 1 : index
    %c0_71 = arith.constant 0 : index
    %c0_72 = arith.constant 0 : index
    %58 = vector.load %arg1[%c0_69, %c1_70, %c0_71, %c0_72] : memref<2x18x18x4xf32, #tpu.memory_space<vmem>>, vector<2x16x16x4xf32>
    %59 = vector.shape_cast %58 : vector<2x16x16x4xf32> to vector<512x4xf32>
    %c0_73 = arith.constant 0 : index
    %c0_74 = arith.constant 0 : index
    %60 = vector.load %arg5[%c0_73, %c0_74] : memref<512x16xf32, #tpu.memory_space<vmem>>, vector<512x4xf32>
    tpu.vector_store %arg5[%c0_73, %c0_74], %59 {strides = array<i32>} : memref<512x16xf32, #tpu.memory_space<vmem>>, vector<512x4xf32>,
    %c0_75 = arith.constant 0 : index
    %c1_76 = arith.constant 1 : index
    %c1_77 = arith.constant 1 : index
    %c0_78 = arith.constant 0 : index
    %61 = vector.load %arg1[%c0_75, %c1_76, %c1_77, %c0_78] : memref<2x18x18x4xf32, #tpu.memory_space<vmem>>, vector<2x16x16x4xf32>
    %62 = vector.shape_cast %61 : vector<2x16x16x4xf32> to vector<512x4xf32>
    %c0_79 = arith.constant 0 : index
    %c4_80 = arith.constant 4 : index
    %63 = vector.load %arg5[%c0_79, %c4_80] : memref<512x16xf32, #tpu.memory_space<vmem>>, vector<512x4xf32>
    tpu.vector_store %arg5[%c0_79, %c4_80], %62 {strides = array<i32>} : memref<512x16xf32, #tpu.memory_space<vmem>>, vector<512x4xf32>,
    %c0_81 = arith.constant 0 : index
    %c2_82 = arith.constant 2 : index
    %c0_83 = arith.constant 0 : index
    %c0_84 = arith.constant 0 : index
    %64 = vector.load %arg1[%c0_81, %c2_82, %c0_83, %c0_84] : memref<2x18x18x4xf32, #tpu.memory_space<vmem>>, vector<2x16x16x4xf32>
    %65 = vector.shape_cast %64 : vector<2x16x16x4xf32> to vector<512x4xf32>
    %c0_85 = arith.constant 0 : index
    %c8_86 = arith.constant 8 : index
    %66 = vector.load %arg5[%c0_85, %c8_86] : memref<512x16xf32, #tpu.memory_space<vmem>>, vector<512x4xf32>
    tpu.vector_store %arg5[%c0_85, %c8_86], %65 {strides = array<i32>} : memref<512x16xf32, #tpu.memory_space<vmem>>, vector<512x4xf32>,
    %c0_87 = arith.constant 0 : index
    %c2_88 = arith.constant 2 : index
    %c1_89 = arith.constant 1 : index
    %c0_90 = arith.constant 0 : index
    %67 = vector.load %arg1[%c0_87, %c2_88, %c1_89, %c0_90] : memref<2x18x18x4xf32, #tpu.memory_space<vmem>>, vector<2x16x16x4xf32>
    %68 = vector.shape_cast %67 : vector<2x16x16x4xf32> to vector<512x4xf32>
    %c0_91 = arith.constant 0 : index
    %c12_92 = arith.constant 12 : index
    %69 = vector.load %arg5[%c0_91, %c12_92] : memref<512x16xf32, #tpu.memory_space<vmem>>, vector<512x4xf32>
    tpu.vector_store %arg5[%c0_91, %c12_92], %68 {strides = array<i32>} : memref<512x16xf32, #tpu.memory_space<vmem>>, vector<512x4xf32>,
    %c0_93 = arith.constant 0 : index
    %c0_94 = arith.constant 0 : index
    %70 = vector.load %arg5[%c0_93, %c0_94] : memref<512x16xf32, #tpu.memory_space<vmem>>, vector<512x16xf32>
    %c2_95 = arith.constant 2 : index
    %c0_96 = arith.constant 0 : index
    %c0_97 = arith.constant 0 : index
    %71 = vector.load %arg2[%c2_95, %c0_96, %c0_97] : memref<4x16x128xf32, #tpu.memory_space<vmem>>, vector<1x16x128xf32>
    %72 = vector.shape_cast %71 : vector<1x16x128xf32> to vector<16x128xf32>
    %cst_98 = arith.constant dense<0.000000e+00> : vector<512x128xf32>
    %73 = tpu.matmul %70, %72, %cst_98 {dimension_numbers = #tpu.dot_dimension_numbers<[1], [0], [0], [1], [0, 0, 1, 1], [], []>} : vector<512x16xf32>, vector<16x128xf32>, vector<512x128xf32> -> vector<512x128xf32>
    %cst_99 = arith.constant dense<0.000000e+00> : vector<128xf32>
    %74 = vector.multi_reduction <add>, %73, %cst_99 [0] : vector<512x128xf32> to vector<128xf32>
    %75 = vector.shape_cast %74 : vector<128xf32> to vector<1x128xf32>
    %76 = arith.addf %48, %75 : vector<1x128xf32>
    %77 = arith.mulf %73, %73 : vector<512x128xf32>
    %cst_100 = arith.constant dense<0.000000e+00> : vector<128xf32>
    %78 = vector.multi_reduction <add>, %77, %cst_100 [0] : vector<512x128xf32> to vector<128xf32>
    %79 = vector.shape_cast %78 : vector<128xf32> to vector<1x128xf32>
    %80 = arith.addf %52, %79 : vector<1x128xf32>
    %81 = vector.extract_strided_slice %73 {offsets = [0, 0], sizes = [512, 8], strides = [1, 1]} : vector<512x128xf32> to vector<512x8xf32>
    %82 = vector.shape_cast %81 : vector<512x8xf32> to vector<2x16x16x8xf32>
    %c2_101 = arith.constant 2 : index
    %c0_102 = arith.constant 0 : index
    %c0_103 = arith.constant 0 : index
    %c0_104 = arith.constant 0 : index
    %c0_105 = arith.constant 0 : index
    %83 = vector.load %arg3[%c2_101, %c0_102, %c0_103, %c0_104, %c0_105] : memref<4x2x16x16x8xf32, #tpu.memory_space<vmem>>, vector<1x2x16x16x8xf32>
    %84 = vector.shape_cast %83 : vector<1x2x16x16x8xf32> to vector<2x16x16x8xf32>
    %85 = vector.shape_cast %82 : vector<2x16x16x8xf32> to vector<1x2x16x16x8xf32>
    tpu.vector_store %arg3[%c2_101, %c0_102, %c0_103, %c0_104, %c0_105], %85 {strides = array<i32>} : memref<4x2x16x16x8xf32, #tpu.memory_space<vmem>>, vector<1x2x16x16x8xf32>,
    %c0_106 = arith.constant 0 : index
    %c1_107 = arith.constant 1 : index
    %c1_108 = arith.constant 1 : index
    %c0_109 = arith.constant 0 : index
    %86 = vector.load %arg1[%c0_106, %c1_107, %c1_108, %c0_109] : memref<2x18x18x4xf32, #tpu.memory_space<vmem>>, vector<2x16x16x4xf32>
    %87 = vector.shape_cast %86 : vector<2x16x16x4xf32> to vector<512x4xf32>
    %c0_110 = arith.constant 0 : index
    %c0_111 = arith.constant 0 : index
    %88 = vector.load %arg5[%c0_110, %c0_111] : memref<512x16xf32, #tpu.memory_space<vmem>>, vector<512x4xf32>
    tpu.vector_store %arg5[%c0_110, %c0_111], %87 {strides = array<i32>} : memref<512x16xf32, #tpu.memory_space<vmem>>, vector<512x4xf32>,
    %c0_112 = arith.constant 0 : index
    %c1_113 = arith.constant 1 : index
    %c2_114 = arith.constant 2 : index
    %c0_115 = arith.constant 0 : index
    %89 = vector.load %arg1[%c0_112, %c1_113, %c2_114, %c0_115] : memref<2x18x18x4xf32, #tpu.memory_space<vmem>>, vector<2x16x16x4xf32>
    %90 = vector.shape_cast %89 : vector<2x16x16x4xf32> to vector<512x4xf32>
    %c0_116 = arith.constant 0 : index
    %c4_117 = arith.constant 4 : index
    %91 = vector.load %arg5[%c0_116, %c4_117] : memref<512x16xf32, #tpu.memory_space<vmem>>, vector<512x4xf32>
    tpu.vector_store %arg5[%c0_116, %c4_117], %90 {strides = array<i32>} : memref<512x16xf32, #tpu.memory_space<vmem>>, vector<512x4xf32>,
    %c0_118 = arith.constant 0 : index
    %c2_119 = arith.constant 2 : index
    %c1_120 = arith.constant 1 : index
    %c0_121 = arith.constant 0 : index
    %92 = vector.load %arg1[%c0_118, %c2_119, %c1_120, %c0_121] : memref<2x18x18x4xf32, #tpu.memory_space<vmem>>, vector<2x16x16x4xf32>
    %93 = vector.shape_cast %92 : vector<2x16x16x4xf32> to vector<512x4xf32>
    %c0_122 = arith.constant 0 : index
    %c8_123 = arith.constant 8 : index
    %94 = vector.load %arg5[%c0_122, %c8_123] : memref<512x16xf32, #tpu.memory_space<vmem>>, vector<512x4xf32>
    tpu.vector_store %arg5[%c0_122, %c8_123], %93 {strides = array<i32>} : memref<512x16xf32, #tpu.memory_space<vmem>>, vector<512x4xf32>,
    %c0_124 = arith.constant 0 : index
    %c2_125 = arith.constant 2 : index
    %c2_126 = arith.constant 2 : index
    %c0_127 = arith.constant 0 : index
    %95 = vector.load %arg1[%c0_124, %c2_125, %c2_126, %c0_127] : memref<2x18x18x4xf32, #tpu.memory_space<vmem>>, vector<2x16x16x4xf32>
    %96 = vector.shape_cast %95 : vector<2x16x16x4xf32> to vector<512x4xf32>
    %c0_128 = arith.constant 0 : index
    %c12_129 = arith.constant 12 : index
    %97 = vector.load %arg5[%c0_128, %c12_129] : memref<512x16xf32, #tpu.memory_space<vmem>>, vector<512x4xf32>
    tpu.vector_store %arg5[%c0_128, %c12_129], %96 {strides = array<i32>} : memref<512x16xf32, #tpu.memory_space<vmem>>, vector<512x4xf32>,
    %c0_130 = arith.constant 0 : index
    %c0_131 = arith.constant 0 : index
    %98 = vector.load %arg5[%c0_130, %c0_131] : memref<512x16xf32, #tpu.memory_space<vmem>>, vector<512x16xf32>
    %c3 = arith.constant 3 : index
    %c0_132 = arith.constant 0 : index
    %c0_133 = arith.constant 0 : index
    %99 = vector.load %arg2[%c3, %c0_132, %c0_133] : memref<4x16x128xf32, #tpu.memory_space<vmem>>, vector<1x16x128xf32>
    %100 = vector.shape_cast %99 : vector<1x16x128xf32> to vector<16x128xf32>
    %cst_134 = arith.constant dense<0.000000e+00> : vector<512x128xf32>
    %101 = tpu.matmul %98, %100, %cst_134 {dimension_numbers = #tpu.dot_dimension_numbers<[1], [0], [0], [1], [0, 0, 1, 1], [], []>} : vector<512x16xf32>, vector<16x128xf32>, vector<512x128xf32> -> vector<512x128xf32>
    %cst_135 = arith.constant dense<0.000000e+00> : vector<128xf32>
    %102 = vector.multi_reduction <add>, %101, %cst_135 [0] : vector<512x128xf32> to vector<128xf32>
    %103 = vector.shape_cast %102 : vector<128xf32> to vector<1x128xf32>
    %104 = arith.addf %76, %103 : vector<1x128xf32>
    %105 = arith.mulf %101, %101 : vector<512x128xf32>
    %cst_136 = arith.constant dense<0.000000e+00> : vector<128xf32>
    %106 = vector.multi_reduction <add>, %105, %cst_136 [0] : vector<512x128xf32> to vector<128xf32>
    %107 = vector.shape_cast %106 : vector<128xf32> to vector<1x128xf32>
    %108 = arith.addf %80, %107 : vector<1x128xf32>
    %109 = vector.extract_strided_slice %101 {offsets = [0, 0], sizes = [512, 8], strides = [1, 1]} : vector<512x128xf32> to vector<512x8xf32>
    %110 = vector.shape_cast %109 : vector<512x8xf32> to vector<2x16x16x8xf32>
    %c3_137 = arith.constant 3 : index
    %c0_138 = arith.constant 0 : index
    %c0_139 = arith.constant 0 : index
    %c0_140 = arith.constant 0 : index
    %c0_141 = arith.constant 0 : index
    %111 = vector.load %arg3[%c3_137, %c0_138, %c0_139, %c0_140, %c0_141] : memref<4x2x16x16x8xf32, #tpu.memory_space<vmem>>, vector<1x2x16x16x8xf32>
    %112 = vector.shape_cast %111 : vector<1x2x16x16x8xf32> to vector<2x16x16x8xf32>
    %113 = vector.shape_cast %110 : vector<2x16x16x8xf32> to vector<1x2x16x16x8xf32>
    tpu.vector_store %arg3[%c3_137, %c0_138, %c0_139, %c0_140, %c0_141], %113 {strides = array<i32>} : memref<4x2x16x16x8xf32, #tpu.memory_space<vmem>>, vector<1x2x16x16x8xf32>,
    %114 = tpu.concatenate %104, %108 in 0 : vector<1x128xf32>, vector<1x128xf32> -> vector<2x128xf32>
    %c0_142 = arith.constant 0 : index
    %c0_143 = arith.constant 0 : index
    %c0_144 = arith.constant 0 : index
    %115 = vector.load %arg4[%c0_142, %c0_143, %c0_144] : memref<1x2x128xf32, #tpu.memory_space<vmem>>, vector<1x2x128xf32>
    %116 = vector.shape_cast %115 : vector<1x2x128xf32> to vector<2x128xf32>
    %117 = vector.shape_cast %114 : vector<2x128xf32> to vector<1x2x128xf32>
    tpu.vector_store %arg4[%c0_142, %c0_143, %c0_144], %117 {strides = array<i32>} : memref<1x2x128xf32, #tpu.memory_space<vmem>>, vector<1x2x128xf32>,
    return
  }
  func.func @transform_0(%arg0: i32) -> (i32, i32, i32, i32) {
    %c0_i32 = arith.constant 0 : i32
    %c0_i32_0 = arith.constant 0 : i32
    %c0_i32_1 = arith.constant 0 : i32
    %c0_i32_2 = arith.constant 0 : i32
    return %arg0, %c0_i32, %c0_i32_0, %c0_i32_1 : i32, i32, i32, i32
  }
  func.func @transform_1(%arg0: i32) -> (i32, i32, i32) {
    %c0_i32 = arith.constant 0 : i32
    %c0_i32_0 = arith.constant 0 : i32
    %c0_i32_1 = arith.constant 0 : i32
    %c0_i32_2 = arith.constant 0 : i32
    return %c0_i32, %c0_i32_0, %c0_i32_1 : i32, i32, i32
  }
  func.func @transform_2(%arg0: i32) -> (i32, i32, i32, i32, i32) {
    %c0_i32 = arith.constant 0 : i32
    %c0_i32_0 = arith.constant 0 : i32
    %c0_i32_1 = arith.constant 0 : i32
    %c0_i32_2 = arith.constant 0 : i32
    %c0_i32_3 = arith.constant 0 : i32
    return %c0_i32, %arg0, %c0_i32_0, %c0_i32_1, %c0_i32_2 : i32, i32, i32, i32, i32
  }
  func.func @transform_3(%arg0: i32) -> (i32, i32, i32) {
    %c0_i32 = arith.constant 0 : i32
    %c0_i32_0 = arith.constant 0 : i32
    %c0_i32_1 = arith.constant 0 : i32
    return %arg0, %c0_i32, %c0_i32_0 : i32, i32, i32
  }
}

</mosaic_0001>

<llo_original>
// kernel: tpu_custom_call.1
$region0: #{tpu_custom_call.1}
  #allocation0 [shape = 'u32[]', space=smem, size = 0x4, offset = 0x4, fixed_abs, tag = 'smem constant byte address 0x4 - core index']
  #allocation1 [shape = 'u32[72,128]{1,0:T(1,128)}', space=vmem, size = 0x9000, scoped, tag = 'internal scratch']
  #allocation2 [shape = 'f32[512,16]{1,0:T(8,128)}', space=vmem, size = 0x40000, scoped, tag = 'scratch operand']
  %s0 = inlined_call_operand.vmem [shape: f32[2,18,18,4], index: 0, kind: input, shape index: {}]
  %s1 = inlined_call_operand.vmem [shape: f32[4,16,128], index: 1, kind: input, shape index: {}]
  %s2 = inlined_call_operand.vmem [shape: f32[4,2,16,16,8], index: 2, kind: output, shape index: {0}]
  %s3 = inlined_call_operand.hbm [shape: f32[1,2,128], index: 3, kind: output, shape index: {1}]
  %4 = xla_tuple %s2, %s3
  %s5 = sld [smem:[#allocation0]]
  $region26: #{tpu_custom_call.1} parent=0
    _
  %s7 = ssub.s32 1, %s5
  %s8 = scalar_select 0, %s7, %s5
  $region1: #{tpu_custom_call.1} parent=0
    #allocation3 [shape = 'u8[1024]{0}', space=vmem, size = 0x400, scoped, tag = 'output window, operand 1, single buffered']
    #allocation4 [shape = 's32[1]{0}', space=sflag, size = 0x4, scoped, tag = 'scoped memory for tpu_custom_call.1']
    %9 = vsyncpa [#allocation4], 0
    // Predicated region
    $region2: #{tpu_custom_call.1} parent=1 // pred_check
      _
    $region3: #{tpu_custom_call.1} parent=1 // pred_check_branch
      %11 = sbr.rel (0) target = $region5
    $region4: #{tpu_custom_call.1} parent=1 // pred_region
      _
    $region5: #{tpu_custom_call.1} parent=1 // pred_fallthru
      _
    // Predicated region
    $region6: #{tpu_custom_call.1} parent=1 // pred_check
      _
    $region7: #{tpu_custom_call.1} parent=1 // pred_check_branch
      %13 = sbr.rel (0) target = $region9
    $region8: #{tpu_custom_call.1} parent=1 // pred_region
      _
    $region9: #{tpu_custom_call.1} parent=1 // pred_fallthru
      _
    %v14 = vld [vmem:[%s0] sm:$0xff]
    %v15 = vld [vmem:[%s0 + $0x8] sm:$0xff]
    %v16 = vld [vmem:[%s0 + $0x18] sm:$0xff]
    %v17 = vld [vmem:[%s0 + $0x20] sm:$0xff]
    %v18 = vld [vmem:[%s0 + $0x30] sm:$0xff]
    %v19 = vld [vmem:[%s0 + $0x38] sm:$0xff]
    %v20 = vld [vmem:[%s0 + $0x48] sm:$0xff]
    %v21 = vld [vmem:[%s0 + $0x50] sm:$0xff]
    %v22 = vld [vmem:[%s0 + $0x60] sm:$0xff]
    %v23 = vld [vmem:[%s0 + $0x68] sm:$0xff]
    %v24 = vld [vmem:[%s0 + $0x78] sm:$0xff]
    %v25 = vld [vmem:[%s0 + $0x80] sm:$0xff]
    %v26 = vld [vmem:[%s0 + $0x90] sm:$0xff]
    %v27 = vld [vmem:[%s0 + $0x98] sm:$0xff]
    %v28 = vld [vmem:[%s0 + $0xa8] sm:$0xff]
    %v29 = vld [vmem:[%s0 + $0xb0] sm:$0xff]
    %v30 = vld [vmem:[%s0 + $0xc0] sm:$0xff]
    %v31 = vld [vmem:[%s0 + $0xc8] sm:$0xff]
    %v32 = vld [vmem:[%s0 + $0xd8] sm:$0xff]
    %v33 = vld [vmem:[%s0 + $0xe0] sm:$0xff]
    %v34 = vld [vmem:[%s0 + $0xf0] sm:$0xff]
    %v35 = vld [vmem:[%s0 + $0xf8] sm:$0xff]
    %v36 = vld [vmem:[%s0 + $0x108] sm:$0xff]
    %v37 = vld [vmem:[%s0 + $0x110] sm:$0xff]
    %v38 = vld [vmem:[%s0 + $0x120] sm:$0xff]
    %v39 = vld [vmem:[%s0 + $0x128] sm:$0xff]
    %v40 = vld [vmem:[%s0 + $0x138] sm:$0xff]
    %v41 = vld [vmem:[%s0 + $0x140] sm:$0xff]
    %v42 = vld [vmem:[%s0 + $0x150] sm:$0xff]
    %v43 = vld [vmem:[%s0 + $0x158] sm:$0xff]
    %v44 = vld [vmem:[%s0 + $0x168] sm:$0xff]
    %v45 = vld [vmem:[%s0 + $0x170] sm:$0xff]
    %v46 = vld [vmem:[%s0 + $0x1b0] sm:$0xff]
    %v47 = vld [vmem:[%s0 + $0x1b8] sm:$0xff]
    %v48 = vld [vmem:[%s0 + $0x1c8] sm:$0xff]
    %v49 = vld [vmem:[%s0 + $0x1d0] sm:$0xff]
    %v50 = vld [vmem:[%s0 + $0x1e0] sm:$0xff]
    %v51 = vld [vmem:[%s0 + $0x1e8] sm:$0xff]
    %v52 = vld [vmem:[%s0 + $0x1f8] sm:$0xff]
    %v53 = vld [vmem:[%s0 + $0x200] sm:$0xff]
    %v54 = vld [vmem:[%s0 + $0x210] sm:$0xff]
    %v55 = vld [vmem:[%s0 + $0x218] sm:$0xff]
    %v56 = vld [vmem:[%s0 + $0x228] sm:$0xff]
    %v57 = vld [vmem:[%s0 + $0x230] sm:$0xff]
    %v58 = vld [vmem:[%s0 + $0x240] sm:$0xff]
    %v59 = vld [vmem:[%s0 + $0x248] sm:$0xff]
    %v60 = vld [vmem:[%s0 + $0x258] sm:$0xff]
    %v61 = vld [vmem:[%s0 + $0x260] sm:$0xff]
    %v62 = vld [vmem:[%s0 + $0x270] sm:$0xff]
    %v63 = vld [vmem:[%s0 + $0x278] sm:$0xff]
    %v64 = vld [vmem:[%s0 + $0x288] sm:$0xff]
    %v65 = vld [vmem:[%s0 + $0x290] sm:$0xff]
    %v66 = vld [vmem:[%s0 + $0x2a0] sm:$0xff]
    %v67 = vld [vmem:[%s0 + $0x2a8] sm:$0xff]
    %v68 = vld [vmem:[%s0 + $0x2b8] sm:$0xff]
    %v69 = vld [vmem:[%s0 + $0x2c0] sm:$0xff]
    %v70 = vld [vmem:[%s0 + $0x2d0] sm:$0xff]
    %v71 = vld [vmem:[%s0 + $0x2d8] sm:$0xff]
    %v72 = vld [vmem:[%s0 + $0x2e8] sm:$0xff]
    %v73 = vld [vmem:[%s0 + $0x2f0] sm:$0xff]
    %v74 = vld [vmem:[%s0 + $0x300] sm:$0xff]
    %v75 = vld [vmem:[%s0 + $0x308] sm:$0xff]
    %v76 = vld [vmem:[%s0 + $0x318] sm:$0xff]
    %v77 = vld [vmem:[%s0 + $0x320] sm:$0xff]
    %vm78 = vcmask 31744
    %79 = vst.msk [vmem:[#allocation2] sm:$0xff] %vm78, %v14
    %80 = vst.msk [vmem:[#allocation2 + $0x8] sm:$0xff] %vm78, %v15
    %81 = vst.msk [vmem:[#allocation2 + $0x10] sm:$0xff] %vm78, %v16
    %82 = vst.msk [vmem:[#allocation2 + $0x18] sm:$0xff] %vm78, %v17
    %83 = vst.msk [vmem:[#allocation2 + $0x20] sm:$0xff] %vm78, %v18
    %84 = vst.msk [vmem:[#allocation2 + $0x28] sm:$0xff] %vm78, %v19
    %85 = vst.msk [vmem:[#allocation2 + $0x30] sm:$0xff] %vm78, %v20
    %86 = vst.msk [vmem:[#allocation2 + $0x38] sm:$0xff] %vm78, %v21
    %87 = vst.msk [vmem:[#allocation2 + $0x40] sm:$0xff] %vm78, %v22
    %88 = vst.msk [vmem:[#allocation2 + $0x48] sm:$0xff] %vm78, %v23
    %89 = vst.msk [vmem:[#allocation2 + $0x50] sm:$0xff] %vm78, %v24
    %90 = vst.msk [vmem:[#allocation2 + $0x58] sm:$0xff] %vm78, %v25
    %91 = vst.msk [vmem:[#allocation2 + $0x60] sm:$0xff] %vm78, %v26
    %92 = vst.msk [vmem:[#allocation2 + $0x68] sm:$0xff] %vm78, %v27
    %93 = vst.msk [vmem:[#allocation2 + $0x70] sm:$0xff] %vm78, %v28
    %94 = vst.msk [vmem:[#allocation2 + $0x78] sm:$0xff] %vm78, %v29
    %95 = vst.msk [vmem:[#allocation2 + $0x80] sm:$0xff] %vm78, %v30
    %96 = vst.msk [vmem:[#allocation2 + $0x88] sm:$0xff] %vm78, %v31
    %97 = vst.msk [vmem:[#allocation2 + $0x90] sm:$0xff] %vm78, %v32
    %98 = vst.msk [vmem:[#allocation2 + $0x98] sm:$0xff] %vm78, %v33
    %99 = vst.msk [vmem:[#allocation2 + $0xa0] sm:$0xff] %vm78, %v34
    %100 = vst.msk [vmem:[#allocation2 + $0xa8] sm:$0xff] %vm78, %v35
    %101 = vst.msk [vmem:[#allocation2 + $0xb0] sm:$0xff] %vm78, %v36
    %102 = vst.msk [vmem:[#allocation2 + $0xb8] sm:$0xff] %vm78, %v37
    %103 = vst.msk [vmem:[#allocation2 + $0xc0] sm:$0xff] %vm78, %v38
    %104 = vst.msk [vmem:[#allocation2 + $0xc8] sm:$0xff] %vm78, %v39
    %105 = vst.msk [vmem:[#allocation2 + $0xd0] sm:$0xff] %vm78, %v40
    %106 = vst.msk [vmem:[#allocation2 + $0xd8] sm:$0xff] %vm78, %v41
    %107 = vst.msk [vmem:[#allocation2 + $0xe0] sm:$0xff] %vm78, %v42
    %108 = vst.msk [vmem:[#allocation2 + $0xe8] sm:$0xff] %vm78, %v43
    %109 = vst.msk [vmem:[#allocation2 + $0xf0] sm:$0xff] %vm78, %v44
    %110 = vst.msk [vmem:[#allocation2 + $0xf8] sm:$0xff] %vm78, %v45
    %111 = vst.msk [vmem:[#allocation2 + $0x100] sm:$0xff] %vm78, %v46
    %112 = vst.msk [vmem:[#allocation2 + $0x108] sm:$0xff] %vm78, %v47
    %113 = vst.msk [vmem:[#allocation2 + $0x110] sm:$0xff] %vm78, %v48
    %114 = vst.msk [vmem:[#allocation2 + $0x118] sm:$0xff] %vm78, %v49
    %115 = vst.msk [vmem:[#allocation2 + $0x120] sm:$0xff] %vm78, %v50
    %116 = vst.msk [vmem:[#allocation2 + $0x128] sm:$0xff] %vm78, %v51
    %117 = vst.msk [vmem:[#allocation2 + $0x130] sm:$0xff] %vm78, %v52
    %118 = vst.msk [vmem:[#allocation2 + $0x138] sm:$0xff] %vm78, %v53
    %119 = vst.msk [vmem:[#allocation2 + $0x140] sm:$0xff] %vm78, %v54
    %120 = vst.msk [vmem:[#allocation2 + $0x148] sm:$0xff] %vm78, %v55
    %121 = vst.msk [vmem:[#allocation2 + $0x150] sm:$0xff] %vm78, %v56
    %122 = vst.msk [vmem:[#allocation2 + $0x158] sm:$0xff] %vm78, %v57
    %123 = vst.msk [vmem:[#allocation2 + $0x160] sm:$0xff] %vm78, %v58
    %124 = vst.msk [vmem:[#allocation2 + $0x168] sm:$0xff] %vm78, %v59
    %125 = vst.msk [vmem:[#allocation2 + $0x170] sm:$0xff] %vm78, %v60
    %126 = vst.msk [vmem:[#allocation2 + $0x178] sm:$0xff] %vm78, %v61
    %127 = vst.msk [vmem:[#allocation2 + $0x180] sm:$0xff] %vm78, %v62
    %128 = vst.msk [vmem:[#allocation2 + $0x188] sm:$0xff] %vm78, %v63
    %129 = vst.msk [vmem:[#allocation2 + $0x190] sm:$0xff] %vm78, %v64
    %130 = vst.msk [vmem:[#allocation2 + $0x198] sm:$0xff] %vm78, %v65
    %131 = vst.msk [vmem:[#allocation2 + $0x1a0] sm:$0xff] %vm78, %v66
    %132 = vst.msk [vmem:[#allocation2 + $0x1a8] sm:$0xff] %vm78, %v67
    %133 = vst.msk [vmem:[#allocation2 + $0x1b0] sm:$0xff] %vm78, %v68
    %134 = vst.msk [vmem:[#allocation2 + $0x1b8] sm:$0xff] %vm78, %v69
    %135 = vst.msk [vmem:[#allocation2 + $0x1c0] sm:$0xff] %vm78, %v70
    %136 = vst.msk [vmem:[#allocation2 + $0x1c8] sm:$0xff] %vm78, %v71
    %137 = vst.msk [vmem:[#allocation2 + $0x1d0] sm:$0xff] %vm78, %v72
    %138 = vst.msk [vmem:[#allocation2 + $0x1d8] sm:$0xff] %vm78, %v73
    %139 = vst.msk [vmem:[#allocation2 + $0x1e0] sm:$0xff] %vm78, %v74
    %140 = vst.msk [vmem:[#allocation2 + $0x1e8] sm:$0xff] %vm78, %v75
    %141 = vst.msk [vmem:[#allocation2 + $0x1f0] sm:$0xff] %vm78, %v76
    %142 = vst.msk [vmem:[#allocation2 + $0x1f8] sm:$0xff] %vm78, %v77
    %v143 = vld [vmem:[%s0 + $0x1] sm:$0xff]
    %v144 = vld [vmem:[%s0 + $0x9] sm:$0xff]
    %v145 = vld [vmem:[%s0 + $0x19] sm:$0xff]
    %v146 = vld [vmem:[%s0 + $0x21] sm:$0xff]
    %v147 = vld [vmem:[%s0 + $0x31] sm:$0xff]
    %v148 = vld [vmem:[%s0 + $0x39] sm:$0xff]
    %v149 = vld [vmem:[%s0 + $0x49] sm:$0xff]
    %v150 = vld [vmem:[%s0 + $0x51] sm:$0xff]
    %v151 = vld [vmem:[%s0 + $0x61] sm:$0xff]
    %v152 = vld [vmem:[%s0 + $0x69] sm:$0xff]
    %v153 = vld [vmem:[%s0 + $0x79] sm:$0xff]
    %v154 = vld [vmem:[%s0 + $0x81] sm:$0xff]
    %v155 = vld [vmem:[%s0 + $0x91] sm:$0xff]
    %v156 = vld [vmem:[%s0 + $0x99] sm:$0xff]
    %v157 = vld [vmem:[%s0 + $0xa9] sm:$0xff]
    %v158 = vld [vmem:[%s0 + $0xb1] sm:$0xff]
    %v159 = vld [vmem:[%s0 + $0xc1] sm:$0xff]
    %v160 = vld [vmem:[%s0 + $0xc9] sm:$0xff]
    %v161 = vld [vmem:[%s0 + $0xd9] sm:$0xff]
    %v162 = vld [vmem:[%s0 + $0xe1] sm:$0xff]
    %v163 = vld [vmem:[%s0 + $0xf1] sm:$0xff]
    %v164 = vld [vmem:[%s0 + $0xf9] sm:$0xff]
    %v165 = vld [vmem:[%s0 + $0x109] sm:$0xff]
    %v166 = vld [vmem:[%s0 + $0x111] sm:$0xff]
    %v167 = vld [vmem:[%s0 + $0x121] sm:$0xff]
    %v168 = vld [vmem:[%s0 + $0x129] sm:$0xff]
    %v169 = vld [vmem:[%s0 + $0x139] sm:$0xff]
    %v170 = vld [vmem:[%s0 + $0x141] sm:$0xff]
    %v171 = vld [vmem:[%s0 + $0x151] sm:$0xff]
    %v172 = vld [vmem:[%s0 + $0x159] sm:$0xff]
    %v173 = vld [vmem:[%s0 + $0x169] sm:$0xff]
    %v174 = vld [vmem:[%s0 + $0x171] sm:$0xff]
    %v175 = vld [vmem:[%s0 + $0x1b1] sm:$0xff]
    %v176 = vld [vmem:[%s0 + $0x1b9] sm:$0xff]
    %v177 = vld [vmem:[%s0 + $0x1c9] sm:$0xff]
    %v178 = vld [vmem:[%s0 + $0x1d1] sm:$0xff]
    %v179 = vld [vmem:[%s0 + $0x1e1] sm:$0xff]
    %v180 = vld [vmem:[%s0 + $0x1e9] sm:$0xff]
    %v181 = vld [vmem:[%s0 + $0x1f9] sm:$0xff]
    %v182 = vld [vmem:[%s0 + $0x201] sm:$0xff]
    %v183 = vld [vmem:[%s0 + $0x211] sm:$0xff]
    %v184 = vld [vmem:[%s0 + $0x219] sm:$0xff]
    %v185 = vld [vmem:[%s0 + $0x229] sm:$0xff]
    %v186 = vld [vmem:[%s0 + $0x231] sm:$0xff]
    %v187 = vld [vmem:[%s0 + $0x241] sm:$0xff]
    %v188 = vld [vmem:[%s0 + $0x249] sm:$0xff]
    %v189 = vld [vmem:[%s0 + $0x259] sm:$0xff]
    %v190 = vld [vmem:[%s0 + $0x261] sm:$0xff]
    %v191 = vld [vmem:[%s0 + $0x271] sm:$0xff]
    %v192 = vld [vmem:[%s0 + $0x279] sm:$0xff]
    %v193 = vld [vmem:[%s0 + $0x289] sm:$0xff]
    %v194 = vld [vmem:[%s0 + $0x291] sm:$0xff]
    %v195 = vld [vmem:[%s0 + $0x2a1] sm:$0xff]
    %v196 = vld [vmem:[%s0 + $0x2a9] sm:$0xff]
    %v197 = vld [vmem:[%s0 + $0x2b9] sm:$0xff]
    %v198 = vld [vmem:[%s0 + $0x2c1] sm:$0xff]
    %v199 = vld [vmem:[%s0 + $0x2d1] sm:$0xff]
    %v200 = vld [vmem:[%s0 + $0x2d9] sm:$0xff]
    %v201 = vld [vmem:[%s0 + $0x2e9] sm:$0xff]
    %v202 = vld [vmem:[%s0 + $0x2f1] sm:$0xff]
    %v203 = vld [vmem:[%s0 + $0x301] sm:$0xff]
    %v204 = vld [vmem:[%s0 + $0x309] sm:$0xff]
    %v205 = vld [vmem:[%s0 + $0x319] sm:$0xff]
    %v206 = vld [vmem:[%s0 + $0x321] sm:$0xff]
    %271 = vrot.lane.b32.xlu0 %v143, 4
    %v272 = vpop.permute.xlu0 %271
    %273 = vrot.lane.b32.xlu0 %v144, 4
    %v274 = vpop.permute.xlu0 %273
    %275 = vrot.lane.b32.xlu0 %v145, 4
    %v276 = vpop.permute.xlu0 %275
    %277 = vrot.lane.b32.xlu0 %v146, 4
    %v278 = vpop.permute.xlu0 %277
    %279 = vrot.lane.b32.xlu0 %v147, 4
    %v280 = vpop.permute.xlu0 %279
    %281 = vrot.lane.b32.xlu0 %v148, 4
    %v282 = vpop.permute.xlu0 %281
    %283 = vrot.lane.b32.xlu0 %v149, 4
    %v284 = vpop.permute.xlu0 %283
    %285 = vrot.lane.b32.xlu0 %v150, 4
    %v286 = vpop.permute.xlu0 %285
    %287 = vrot.lane.b32.xlu0 %v151, 4
    %v288 = vpop.permute.xlu0 %287
    %289 = vrot.lane.b32.xlu0 %v152, 4
    %v290 = vpop.permute.xlu0 %289
    %291 = vrot.lane.b32.xlu0 %v153, 4
    %v292 = vpop.permute.xlu0 %291
    %293 = vrot.lane.b32.xlu0 %v154, 4
    %v294 = vpop.permute.xlu0 %293
    %295 = vrot.lane.b32.xlu0 %v155, 4
    %v296 = vpop.permute.xlu0 %295
    %297 = vrot.lane.b32.xlu0 %v156, 4
    %v298 = vpop.permute.xlu0 %297
    %299 = vrot.lane.b32.xlu0 %v157, 4
    %v300 = vpop.permute.xlu0 %299
    %301 = vrot.lane.b32.xlu0 %v158, 4
    %v302 = vpop.permute.xlu0 %301
    %303 = vrot.lane.b32.xlu0 %v159, 4
    %v304 = vpop.permute.xlu0 %303
    %305 = vrot.lane.b32.xlu0 %v160, 4
    %v306 = vpop.permute.xlu0 %305
    %307 = vrot.lane.b32.xlu0 %v161, 4
    %v308 = vpop.permute.xlu0 %307
    %309 = vrot.lane.b32.xlu0 %v162, 4
    %v310 = vpop.permute.xlu0 %309
    %311 = vrot.lane.b32.xlu0 %v163, 4
    %v312 = vpop.permute.xlu0 %311
    %313 = vrot.lane.b32.xlu0 %v164, 4
    %v314 = vpop.permute.xlu0 %313
    %315 = vrot.lane.b32.xlu0 %v165, 4
    %v316 = vpop.permute.xlu0 %315
    %317 = vrot.lane.b32.xlu0 %v166, 4
    %v318 = vpop.permute.xlu0 %317
    %319 = vrot.lane.b32.xlu0 %v167, 4
    %v320 = vpop.permute.xlu0 %319
    %321 = vrot.lane.b32.xlu0 %v168, 4
    %v322 = vpop.permute.xlu0 %321
    %323 = vrot.lane.b32.xlu0 %v169, 4
    %v324 = vpop.permute.xlu0 %323
    %325 = vrot.lane.b32.xlu0 %v170, 4
    %v326 = vpop.permute.xlu0 %325
    %327 = vrot.lane.b32.xlu0 %v171, 4
    %v328 = vpop.permute.xlu0 %327
    %329 = vrot.lane.b32.xlu0 %v172, 4
    %v330 = vpop.permute.xlu0 %329
    %331 = vrot.lane.b32.xlu0 %v173, 4
    %v332 = vpop.permute.xlu0 %331
    %333 = vrot.lane.b32.xlu0 %v174, 4
    %v334 = vpop.permute.xlu0 %333
    %335 = vrot.lane.b32.xlu0 %v175, 4
    %v336 = vpop.permute.xlu0 %335
    %337 = vrot.lane.b32.xlu0 %v176, 4
    %v338 = vpop.permute.xlu0 %337
    %339 = vrot.lane.b32.xlu0 %v177, 4
    %v340 = vpop.permute.xlu0 %339
    %341 = vrot.lane.b32.xlu0 %v178, 4
    %v342 = vpop.permute.xlu0 %341
    %343 = vrot.lane.b32.xlu0 %v179, 4
    %v344 = vpop.permute.xlu0 %343
    %345 = vrot.lane.b32.xlu0 %v180, 4
    %v346 = vpop.permute.xlu0 %345
    %347 = vrot.lane.b32.xlu0 %v181, 4
    %v348 = vpop.permute.xlu0 %347
    %349 = vrot.lane.b32.xlu0 %v182, 4
    %v350 = vpop.permute.xlu0 %349
    %351 = vrot.lane.b32.xlu0 %v183, 4
    %v352 = vpop.permute.xlu0 %351
    %353 = vrot.lane.b32.xlu0 %v184, 4
    %v354 = vpop.permute.xlu0 %353
    %355 = vrot.lane.b32.xlu0 %v185, 4
    %v356 = vpop.permute.xlu0 %355
    %357 = vrot.lane.b32.xlu0 %v186, 4
    %v358 = vpop.permute.xlu0 %357
    %359 = vrot.lane.b32.xlu0 %v187, 4
    %v360 = vpop.permute.xlu0 %359
    %361 = vrot.lane.b32.xlu0 %v188, 4
    %v362 = vpop.permute.xlu0 %361
    %363 = vrot.lane.b32.xlu0 %v189, 4
    %v364 = vpop.permute.xlu0 %363
    %365 = vrot.lane.b32.xlu0 %v190, 4
    %v366 = vpop.permute.xlu0 %365
    %367 = vrot.lane.b32.xlu0 %v191, 4
    %v368 = vpop.permute.xlu0 %367
    %369 = vrot.lane.b32.xlu0 %v192, 4
    %v370 = vpop.permute.xlu0 %369
    %371 = vrot.lane.b32.xlu0 %v193, 4
    %v372 = vpop.permute.xlu0 %371
    %373 = vrot.lane.b32.xlu0 %v194, 4
    %v374 = vpop.permute.xlu0 %373
    %375 = vrot.lane.b32.xlu0 %v195, 4
    %v376 = vpop.permute.xlu0 %375
    %377 = vrot.lane.b32.xlu0 %v196, 4
    %v378 = vpop.permute.xlu0 %377
    %379 = vrot.lane.b32.xlu0 %v197, 4
    %v380 = vpop.permute.xlu0 %379
    %381 = vrot.lane.b32.xlu0 %v198, 4
    %v382 = vpop.permute.xlu0 %381
    %383 = vrot.lane.b32.xlu0 %v199, 4
    %v384 = vpop.permute.xlu0 %383
    %385 = vrot.lane.b32.xlu0 %v200, 4
    %v386 = vpop.permute.xlu0 %385
    %387 = vrot.lane.b32.xlu0 %v201, 4
    %v388 = vpop.permute.xlu0 %387
    %389 = vrot.lane.b32.xlu0 %v202, 4
    %v390 = vpop.permute.xlu0 %389
    %391 = vrot.lane.b32.xlu0 %v203, 4
    %v392 = vpop.permute.xlu0 %391
    %393 = vrot.lane.b32.xlu0 %v204, 4
    %v394 = vpop.permute.xlu0 %393
    %395 = vrot.lane.b32.xlu0 %v205, 4
    %v396 = vpop.permute.xlu0 %395
    %397 = vrot.lane.b32.xlu0 %v206, 4
    %v398 = vpop.permute.xlu0 %397
    %vm463 = vcmask 64544
    %464 = vst.msk [vmem:[#allocation2] sm:$0xff] %vm463, %v272
    %465 = vst.msk [vmem:[#allocation2 + $0x8] sm:$0xff] %vm463, %v274
    %466 = vst.msk [vmem:[#allocation2 + $0x10] sm:$0xff] %vm463, %v276
    %467 = vst.msk [vmem:[#allocation2 + $0x18] sm:$0xff] %vm463, %v278
    %468 = vst.msk [vmem:[#allocation2 + $0x20] sm:$0xff] %vm463, %v280
    %469 = vst.msk [vmem:[#allocation2 + $0x28] sm:$0xff] %vm463, %v282
    %470 = vst.msk [vmem:[#allocation2 + $0x30] sm:$0xff] %vm463, %v284
    %471 = vst.msk [vmem:[#allocation2 + $0x38] sm:$0xff] %vm463, %v286
    %472 = vst.msk [vmem:[#allocation2 + $0x40] sm:$0xff] %vm463, %v288
    %473 = vst.msk [vmem:[#allocation2 + $0x48] sm:$0xff] %vm463, %v290
    %474 = vst.msk [vmem:[#allocation2 + $0x50] sm:$0xff] %vm463, %v292
    %475 = vst.msk [vmem:[#allocation2 + $0x58] sm:$0xff] %vm463, %v294
    %476 = vst.msk [vmem:[#allocation2 + $0x60] sm:$0xff] %vm463, %v296
    %477 = vst.msk [vmem:[#allocation2 + $0x68] sm:$0xff] %vm463, %v298
    %478 = vst.msk [vmem:[#allocation2 + $0x70] sm:$0xff] %vm463, %v300
    %479 = vst.msk [vmem:[#allocation2 + $0x78] sm:$0xff] %vm463, %v302
    %480 = vst.msk [vmem:[#allocation2 + $0x80] sm:$0xff] %vm463, %v304
    %481 = vst.msk [vmem:[#allocation2 + $0x88] sm:$0xff] %vm463, %v306
    %482 = vst.msk [vmem:[#allocation2 + $0x90] sm:$0xff] %vm463, %v308
    %483 = vst.msk [vmem:[#allocation2 + $0x98] sm:$0xff] %vm463, %v310
    %484 = vst.msk [vmem:[#allocation2 + $0xa0] sm:$0xff] %vm463, %v312
    %485 = vst.msk [vmem:[#allocation2 + $0xa8] sm:$0xff] %vm463, %v314
    %486 = vst.msk [vmem:[#allocation2 + $0xb0] sm:$0xff] %vm463, %v316
    %487 = vst.msk [vmem:[#allocation2 + $0xb8] sm:$0xff] %vm463, %v318
    %488 = vst.msk [vmem:[#allocation2 + $0xc0] sm:$0xff] %vm463, %v320
    %489 = vst.msk [vmem:[#allocation2 + $0xc8] sm:$0xff] %vm463, %v322
    %490 = vst.msk [vmem:[#allocation2 + $0xd0] sm:$0xff] %vm463, %v324
    %491 = vst.msk [vmem:[#allocation2 + $0xd8] sm:$0xff] %vm463, %v326
    %492 = vst.msk [vmem:[#allocation2 + $0xe0] sm:$0xff] %vm463, %v328
    %493 = vst.msk [vmem:[#allocation2 + $0xe8] sm:$0xff] %vm463, %v330
    %494 = vst.msk [vmem:[#allocation2 + $0xf0] sm:$0xff] %vm463, %v332
    %495 = vst.msk [vmem:[#allocation2 + $0xf8] sm:$0xff] %vm463, %v334
    %496 = vst.msk [vmem:[#allocation2 + $0x100] sm:$0xff] %vm463, %v336
    %497 = vst.msk [vmem:[#allocation2 + $0x108] sm:$0xff] %vm463, %v338
    %498 = vst.msk [vmem:[#allocation2 + $0x110] sm:$0xff] %vm463, %v340
    %499 = vst.msk [vmem:[#allocation2 + $0x118] sm:$0xff] %vm463, %v342
    %500 = vst.msk [vmem:[#allocation2 + $0x120] sm:$0xff] %vm463, %v344
    %501 = vst.msk [vmem:[#allocation2 + $0x128] sm:$0xff] %vm463, %v346
    %502 = vst.msk [vmem:[#allocation2 + $0x130] sm:$0xff] %vm463, %v348
    %503 = vst.msk [vmem:[#allocation2 + $0x138] sm:$0xff] %vm463, %v350
    %504 = vst.msk [vmem:[#allocation2 + $0x140] sm:$0xff] %vm463, %v352
    %505 = vst.msk [vmem:[#allocation2 + $0x148] sm:$0xff] %vm463, %v354
    %506 = vst.msk [vmem:[#allocation2 + $0x150] sm:$0xff] %vm463, %v356
    %507 = vst.msk [vmem:[#allocation2 + $0x158] sm:$0xff] %vm463, %v358
    %508 = vst.msk [vmem:[#allocation2 + $0x160] sm:$0xff] %vm463, %v360
    %509 = vst.msk [vmem:[#allocation2 + $0x168] sm:$0xff] %vm463, %v362
    %510 = vst.msk [vmem:[#allocation2 + $0x170] sm:$0xff] %vm463, %v364
    %511 = vst.msk [vmem:[#allocation2 + $0x178] sm:$0xff] %vm463, %v366
    %512 = vst.msk [vmem:[#allocation2 + $0x180] sm:$0xff] %vm463, %v368
    %513 = vst.msk [vmem:[#allocation2 + $0x188] sm:$0xff] %vm463, %v370
    %514 = vst.msk [vmem:[#allocation2 + $0x190] sm:$0xff] %vm463, %v372
    %515 = vst.msk [vmem:[#allocation2 + $0x198] sm:$0xff] %vm463, %v374
    %516 = vst.msk [vmem:[#allocation2 + $0x1a0] sm:$0xff] %vm463, %v376
    %517 = vst.msk [vmem:[#allocation2 + $0x1a8] sm:$0xff] %vm463, %v378
    %518 = vst.msk [vmem:[#allocation2 + $0x1b0] sm:$0xff] %vm463, %v380
    %519 = vst.msk [vmem:[#allocation2 + $0x1b8] sm:$0xff] %vm463, %v382
    %520 = vst.msk [vmem:[#allocation2 + $0x1c0] sm:$0xff] %vm463, %v384
    %521 = vst.msk [vmem:[#allocation2 + $0x1c8] sm:$0xff] %vm463, %v386
    %522 = vst.msk [vmem:[#allocation2 + $0x1d0] sm:$0xff] %vm463, %v388
    %523 = vst.msk [vmem:[#allocation2 + $0x1d8] sm:$0xff] %vm463, %v390
    %524 = vst.msk [vmem:[#allocation2 + $0x1e0] sm:$0xff] %vm463, %v392
    %525 = vst.msk [vmem:[#allocation2 + $0x1e8] sm:$0xff] %vm463, %v394
    %526 = vst.msk [vmem:[#allocation2 + $0x1f0] sm:$0xff] %vm463, %v396
    %527 = vst.msk [vmem:[#allocation2 + $0x1f8] sm:$0xff] %vm463, %v398
    %s528 = scalar_lea.vmem %s0, 24
    %v529 = vld [vmem:[%s528] sm:$0xff]
    %v530 = vld [vmem:[%s528 + $0x8] sm:$0xff]
    %v531 = vld [vmem:[%s528 + $0x18] sm:$0xff]
    %v532 = vld [vmem:[%s528 + $0x20] sm:$0xff]
    %v533 = vld [vmem:[%s528 + $0x30] sm:$0xff]
    %v534 = vld [vmem:[%s528 + $0x38] sm:$0xff]
    %v535 = vld [vmem:[%s528 + $0x48] sm:$0xff]
    %v536 = vld [vmem:[%s528 + $0x50] sm:$0xff]
    %v537 = vld [vmem:[%s528 + $0x60] sm:$0xff]
    %v538 = vld [vmem:[%s528 + $0x68] sm:$0xff]
    %v539 = vld [vmem:[%s528 + $0x78] sm:$0xff]
    %v540 = vld [vmem:[%s528 + $0x80] sm:$0xff]
    %v541 = vld [vmem:[%s528 + $0x90] sm:$0xff]
    %v542 = vld [vmem:[%s528 + $0x98] sm:$0xff]
    %v543 = vld [vmem:[%s528 + $0xa8] sm:$0xff]
    %v544 = vld [vmem:[%s528 + $0xb0] sm:$0xff]
    %v545 = vld [vmem:[%s528 + $0xc0] sm:$0xff]
    %v546 = vld [vmem:[%s528 + $0xc8] sm:$0xff]
    %v547 = vld [vmem:[%s528 + $0xd8] sm:$0xff]
    %v548 = vld [vmem:[%s528 + $0xe0] sm:$0xff]
    %v549 = vld [vmem:[%s528 + $0xf0] sm:$0xff]
    %v550 = vld [vmem:[%s528 + $0xf8] sm:$0xff]
    %v551 = vld [vmem:[%s528 + $0x108] sm:$0xff]
    %v552 = vld [vmem:[%s528 + $0x110] sm:$0xff]
    %v553 = vld [vmem:[%s528 + $0x120] sm:$0xff]
    %v554 = vld [vmem:[%s528 + $0x128] sm:$0xff]
    %v555 = vld [vmem:[%s528 + $0x138] sm:$0xff]
    %v556 = vld [vmem:[%s528 + $0x140] sm:$0xff]
    %v557 = vld [vmem:[%s528 + $0x150] sm:$0xff]
    %v558 = vld [vmem:[%s528 + $0x158] sm:$0xff]
    %v559 = vld [vmem:[%s528 + $0x168] sm:$0xff]
    %v560 = vld [vmem:[%s528 + $0x170] sm:$0xff]
    %v561 = vld [vmem:[%s528 + $0x1b0] sm:$0xff]
    %v562 = vld [vmem:[%s528 + $0x1b8] sm:$0xff]
    %v563 = vld [vmem:[%s528 + $0x1c8] sm:$0xff]
    %v564 = vld [vmem:[%s528 + $0x1d0] sm:$0xff]
    %v565 = vld [vmem:[%s528 + $0x1e0] sm:$0xff]
    %v566 = vld [vmem:[%s528 + $0x1e8] sm:$0xff]
    %v567 = vld [vmem:[%s528 + $0x1f8] sm:$0xff]
    %v568 = vld [vmem:[%s528 + $0x200] sm:$0xff]
    %v569 = vld [vmem:[%s528 + $0x210] sm:$0xff]
    %v570 = vld [vmem:[%s528 + $0x218] sm:$0xff]
    %v571 = vld [vmem:[%s528 + $0x228] sm:$0xff]
    %v572 = vld [vmem:[%s528 + $0x230] sm:$0xff]
    %v573 = vld [vmem:[%s528 + $0x240] sm:$0xff]
    %v574 = vld [vmem:[%s528 + $0x248] sm:$0xff]
    %v575 = vld [vmem:[%s528 + $0x258] sm:$0xff]
    %v576 = vld [vmem:[%s528 + $0x260] sm:$0xff]
    %v577 = vld [vmem:[%s528 + $0x270] sm:$0xff]
    %v578 = vld [vmem:[%s528 + $0x278] sm:$0xff]
    %v579 = vld [vmem:[%s528 + $0x288] sm:$0xff]
    %v580 = vld [vmem:[%s528 + $0x290] sm:$0xff]
    %v581 = vld [vmem:[%s528 + $0x2a0] sm:$0xff]
    %v582 = vld [vmem:[%s528 + $0x2a8] sm:$0xff]
    %v583 = vld [vmem:[%s528 + $0x2b8] sm:$0xff]
    %v584 = vld [vmem:[%s528 + $0x2c0] sm:$0xff]
    %v585 = vld [vmem:[%s528 + $0x2d0] sm:$0xff]
    %v586 = vld [vmem:[%s528 + $0x2d8] sm:$0xff]
    %v587 = vld [vmem:[%s528 + $0x2e8] sm:$0xff]
    %v588 = vld [vmem:[%s528 + $0x2f0] sm:$0xff]
    %v589 = vld [vmem:[%s528 + $0x300] sm:$0xff]
    %v590 = vld [vmem:[%s528 + $0x308] sm:$0xff]
    %v591 = vld [vmem:[%s528 + $0x318] sm:$0xff]
    %v592 = vld [vmem:[%s528 + $0x320] sm:$0xff]
    %657 = vrot.lane.b32.xlu0 %v529, 8
    %v658 = vpop.permute.xlu0 %657
    %659 = vrot.lane.b32.xlu0 %v530, 8
    %v660 = vpop.permute.xlu0 %659
    %661 = vrot.lane.b32.xlu0 %v531, 8
    %v662 = vpop.permute.xlu0 %661
    %663 = vrot.lane.b32.xlu0 %v532, 8
    %v664 = vpop.permute.xlu0 %663
    %665 = vrot.lane.b32.xlu0 %v533, 8
    %v666 = vpop.permute.xlu0 %665
    %667 = vrot.lane.b32.xlu0 %v534, 8
    %v668 = vpop.permute.xlu0 %667
    %669 = vrot.lane.b32.xlu0 %v535, 8
    %v670 = vpop.permute.xlu0 %669
    %671 = vrot.lane.b32.xlu0 %v536, 8
    %v672 = vpop.permute.xlu0 %671
    %673 = vrot.lane.b32.xlu0 %v537, 8
    %v674 = vpop.permute.xlu0 %673
    %675 = vrot.lane.b32.xlu0 %v538, 8
    %v676 = vpop.permute.xlu0 %675
    %677 = vrot.lane.b32.xlu0 %v539, 8
    %v678 = vpop.permute.xlu0 %677
    %679 = vrot.lane.b32.xlu0 %v540, 8
    %v680 = vpop.permute.xlu0 %679
    %681 = vrot.lane.b32.xlu0 %v541, 8
    %v682 = vpop.permute.xlu0 %681
    %683 = vrot.lane.b32.xlu0 %v542, 8
    %v684 = vpop.permute.xlu0 %683
    %685 = vrot.lane.b32.xlu0 %v543, 8
    %v686 = vpop.permute.xlu0 %685
    %687 = vrot.lane.b32.xlu0 %v544, 8
    %v688 = vpop.permute.xlu0 %687
    %689 = vrot.lane.b32.xlu0 %v545, 8
    %v690 = vpop.permute.xlu0 %689
    %691 = vrot.lane.b32.xlu0 %v546, 8
    %v692 = vpop.permute.xlu0 %691
    %693 = vrot.lane.b32.xlu0 %v547, 8
    %v694 = vpop.permute.xlu0 %693
    %695 = vrot.lane.b32.xlu0 %v548, 8
    %v696 = vpop.permute.xlu0 %695
    %697 = vrot.lane.b32.xlu0 %v549, 8
    %v698 = vpop.permute.xlu0 %697
    %699 = vrot.lane.b32.xlu0 %v550, 8
    %v700 = vpop.permute.xlu0 %699
    %701 = vrot.lane.b32.xlu0 %v551, 8
    %v702 = vpop.permute.xlu0 %701
    %703 = vrot.lane.b32.xlu0 %v552, 8
    %v704 = vpop.permute.xlu0 %703
    %705 = vrot.lane.b32.xlu0 %v553, 8
    %v706 = vpop.permute.xlu0 %705
    %707 = vrot.lane.b32.xlu0 %v554, 8
    %v708 = vpop.permute.xlu0 %707
    %709 = vrot.lane.b32.xlu0 %v555, 8
    %v710 = vpop.permute.xlu0 %709
    %711 = vrot.lane.b32.xlu0 %v556, 8
    %v712 = vpop.permute.xlu0 %711
    %713 = vrot.lane.b32.xlu0 %v557, 8
    %v714 = vpop.permute.xlu0 %713
    %715 = vrot.lane.b32.xlu0 %v558, 8
    %v716 = vpop.permute.xlu0 %715
    %717 = vrot.lane.b32.xlu0 %v559, 8
    %v718 = vpop.permute.xlu0 %717
    %719 = vrot.lane.b32.xlu0 %v560, 8
    %v720 = vpop.permute.xlu0 %719
    %721 = vrot.lane.b32.xlu0 %v561, 8
    %v722 = vpop.permute.xlu0 %721
    %723 = vrot.lane.b32.xlu0 %v562, 8
    %v724 = vpop.permute.xlu0 %723
    %725 = vrot.lane.b32.xlu0 %v563, 8
    %v726 = vpop.permute.xlu0 %725
    %727 = vrot.lane.b32.xlu0 %v564, 8
    %v728 = vpop.permute.xlu0 %727
    %729 = vrot.lane.b32.xlu0 %v565, 8
    %v730 = vpop.permute.xlu0 %729
    %731 = vrot.lane.b32.xlu0 %v566, 8
    %v732 = vpop.permute.xlu0 %731
    %733 = vrot.lane.b32.xlu0 %v567, 8
    %v734 = vpop.permute.xlu0 %733
    %735 = vrot.lane.b32.xlu0 %v568, 8
    %v736 = vpop.permute.xlu0 %735
    %737 = vrot.lane.b32.xlu0 %v569, 8
    %v738 = vpop.permute.xlu0 %737
    %739 = vrot.lane.b32.xlu0 %v570, 8
    %v740 = vpop.permute.xlu0 %739
    %741 = vrot.lane.b32.xlu0 %v571, 8
    %v742 = vpop.permute.xlu0 %741
    %743 = vrot.lane.b32.xlu0 %v572, 8
    %v744 = vpop.permute.xlu0 %743
    %745 = vrot.lane.b32.xlu0 %v573, 8
    %v746 = vpop.permute.xlu0 %745
    %747 = vrot.lane.b32.xlu0 %v574, 8
    %v748 = vpop.permute.xlu0 %747
    %749 = vrot.lane.b32.xlu0 %v575, 8
    %v750 = vpop.permute.xlu0 %749
    %751 = vrot.lane.b32.xlu0 %v576, 8
    %v752 = vpop.permute.xlu0 %751
    %753 = vrot.lane.b32.xlu0 %v577, 8
    %v754 = vpop.permute.xlu0 %753
    %755 = vrot.lane.b32.xlu0 %v578, 8
    %v756 = vpop.permute.xlu0 %755
    %757 = vrot.lane.b32.xlu0 %v579, 8
    %v758 = vpop.permute.xlu0 %757
    %759 = vrot.lane.b32.xlu0 %v580, 8
    %v760 = vpop.permute.xlu0 %759
    %761 = vrot.lane.b32.xlu0 %v581, 8
    %v762 = vpop.permute.xlu0 %761
    %763 = vrot.lane.b32.xlu0 %v582, 8
    %v764 = vpop.permute.xlu0 %763
    %765 = vrot.lane.b32.xlu0 %v583, 8
    %v766 = vpop.permute.xlu0 %765
    %767 = vrot.lane.b32.xlu0 %v584, 8
    %v768 = vpop.permute.xlu0 %767
    %769 = vrot.lane.b32.xlu0 %v585, 8
    %v770 = vpop.permute.xlu0 %769
    %771 = vrot.lane.b32.xlu0 %v586, 8
    %v772 = vpop.permute.xlu0 %771
    %773 = vrot.lane.b32.xlu0 %v587, 8
    %v774 = vpop.permute.xlu0 %773
    %775 = vrot.lane.b32.xlu0 %v588, 8
    %v776 = vpop.permute.xlu0 %775
    %777 = vrot.lane.b32.xlu0 %v589, 8
    %v778 = vpop.permute.xlu0 %777
    %779 = vrot.lane.b32.xlu0 %v590, 8
    %v780 = vpop.permute.xlu0 %779
    %781 = vrot.lane.b32.xlu0 %v591, 8
    %v782 = vpop.permute.xlu0 %781
    %783 = vrot.lane.b32.xlu0 %v592, 8
    %v784 = vpop.permute.xlu0 %783
    %vm849 = vcmask 97344
    %850 = vst.msk [vmem:[#allocation2] sm:$0xff] %vm849, %v658
    %851 = vst.msk [vmem:[#allocation2 + $0x8] sm:$0xff] %vm849, %v660
    %852 = vst.msk [vmem:[#allocation2 + $0x10] sm:$0xff] %vm849, %v662
    %853 = vst.msk [vmem:[#allocation2 + $0x18] sm:$0xff] %vm849, %v664
    %854 = vst.msk [vmem:[#allocation2 + $0x20] sm:$0xff] %vm849, %v666
    %855 = vst.msk [vmem:[#allocation2 + $0x28] sm:$0xff] %vm849, %v668
    %856 = vst.msk [vmem:[#allocation2 + $0x30] sm:$0xff] %vm849, %v670
    %857 = vst.msk [vmem:[#allocation2 + $0x38] sm:$0xff] %vm849, %v672
    %858 = vst.msk [vmem:[#allocation2 + $0x40] sm:$0xff] %vm849, %v674
    %859 = vst.msk [vmem:[#allocation2 + $0x48] sm:$0xff] %vm849, %v676
    %860 = vst.msk [vmem:[#allocation2 + $0x50] sm:$0xff] %vm849, %v678
    %861 = vst.msk [vmem:[#allocation2 + $0x58] sm:$0xff] %vm849, %v680
    %862 = vst.msk [vmem:[#allocation2 + $0x60] sm:$0xff] %vm849, %v682
    %863 = vst.msk [vmem:[#allocation2 + $0x68] sm:$0xff] %vm849, %v684
    %864 = vst.msk [vmem:[#allocation2 + $0x70] sm:$0xff] %vm849, %v686
    %865 = vst.msk [vmem:[#allocation2 + $0x78] sm:$0xff] %vm849, %v688
    %866 = vst.msk [vmem:[#allocation2 + $0x80] sm:$0xff] %vm849, %v690
    %867 = vst.msk [vmem:[#allocation2 + $0x88] sm:$0xff] %vm849, %v692
    %868 = vst.msk [vmem:[#allocation2 + $0x90] sm:$0xff] %vm849, %v694
    %869 = vst.msk [vmem:[#allocation2 + $0x98] sm:$0xff] %vm849, %v696
    %870 = vst.msk [vmem:[#allocation2 + $0xa0] sm:$0xff] %vm849, %v698
    %871 = vst.msk [vmem:[#allocation2 + $0xa8] sm:$0xff] %vm849, %v700
    %872 = vst.msk [vmem:[#allocation2 + $0xb0] sm:$0xff] %vm849, %v702
    %873 = vst.msk [vmem:[#allocation2 + $0xb8] sm:$0xff] %vm849, %v704
    %874 = vst.msk [vmem:[#allocation2 + $0xc0] sm:$0xff] %vm849, %v706
    %875 = vst.msk [vmem:[#allocation2 + $0xc8] sm:$0xff] %vm849, %v708
    %876 = vst.msk [vmem:[#allocation2 + $0xd0] sm:$0xff] %vm849, %v710
    %877 = vst.msk [vmem:[#allocation2 + $0xd8] sm:$0xff] %vm849, %v712
    %878 = vst.msk [vmem:[#allocation2 + $0xe0] sm:$0xff] %vm849, %v714
    %879 = vst.msk [vmem:[#allocation2 + $0xe8] sm:$0xff] %vm849, %v716
    %880 = vst.msk [vmem:[#allocation2 + $0xf0] sm:$0xff] %vm849, %v718
    %881 = vst.msk [vmem:[#allocation2 + $0xf8] sm:$0xff] %vm849, %v720
    %882 = vst.msk [vmem:[#allocation2 + $0x100] sm:$0xff] %vm849, %v722
    %883 = vst.msk [vmem:[#allocation2 + $0x108] sm:$0xff] %vm849, %v724
    %884 = vst.msk [vmem:[#allocation2 + $0x110] sm:$0xff] %vm849, %v726
    %885 = vst.msk [vmem:[#allocation2 + $0x118] sm:$0xff] %vm849, %v728
    %886 = vst.msk [vmem:[#allocation2 + $0x120] sm:$0xff] %vm849, %v730
    %887 = vst.msk [vmem:[#allocation2 + $0x128] sm:$0xff] %vm849, %v732
    %888 = vst.msk [vmem:[#allocation2 + $0x130] sm:$0xff] %vm849, %v734
    %889 = vst.msk [vmem:[#allocation2 + $0x138] sm:$0xff] %vm849, %v736
    %890 = vst.msk [vmem:[#allocation2 + $0x140] sm:$0xff] %vm849, %v738
    %891 = vst.msk [vmem:[#allocation2 + $0x148] sm:$0xff] %vm849, %v740
    %892 = vst.msk [vmem:[#allocation2 + $0x150] sm:$0xff] %vm849, %v742
    %893 = vst.msk [vmem:[#allocation2 + $0x158] sm:$0xff] %vm849, %v744
    %894 = vst.msk [vmem:[#allocation2 + $0x160] sm:$0xff] %vm849, %v746
    %895 = vst.msk [vmem:[#allocation2 + $0x168] sm:$0xff] %vm849, %v748
    %896 = vst.msk [vmem:[#allocation2 + $0x170] sm:$0xff] %vm849, %v750
    %897 = vst.msk [vmem:[#allocation2 + $0x178] sm:$0xff] %vm849, %v752
    %898 = vst.msk [vmem:[#allocation2 + $0x180] sm:$0xff] %vm849, %v754
    %899 = vst.msk [vmem:[#allocation2 + $0x188] sm:$0xff] %vm849, %v756
    %900 = vst.msk [vmem:[#allocation2 + $0x190] sm:$0xff] %vm849, %v758
    %901 = vst.msk [vmem:[#allocation2 + $0x198] sm:$0xff] %vm849, %v760
    %902 = vst.msk [vmem:[#allocation2 + $0x1a0] sm:$0xff] %vm849, %v762
    %903 = vst.msk [vmem:[#allocation2 + $0x1a8] sm:$0xff] %vm849, %v764
    %904 = vst.msk [vmem:[#allocation2 + $0x1b0] sm:$0xff] %vm849, %v766
    %905 = vst.msk [vmem:[#allocation2 + $0x1b8] sm:$0xff] %vm849, %v768
    %906 = vst.msk [vmem:[#allocation2 + $0x1c0] sm:$0xff] %vm849, %v770
    %907 = vst.msk [vmem:[#allocation2 + $0x1c8] sm:$0xff] %vm849, %v772
    %908 = vst.msk [vmem:[#allocation2 + $0x1d0] sm:$0xff] %vm849, %v774
    %909 = vst.msk [vmem:[#allocation2 + $0x1d8] sm:$0xff] %vm849, %v776
    %910 = vst.msk [vmem:[#allocation2 + $0x1e0] sm:$0xff] %vm849, %v778
    %911 = vst.msk [vmem:[#allocation2 + $0x1e8] sm:$0xff] %vm849, %v780
    %912 = vst.msk [vmem:[#allocation2 + $0x1f0] sm:$0xff] %vm849, %v782
    %913 = vst.msk [vmem:[#allocation2 + $0x1f8] sm:$0xff] %vm849, %v784
    %v914 = vld [vmem:[%s528 + $0x1] sm:$0xff]
    %v915 = vld [vmem:[%s528 + $0x9] sm:$0xff]
    %v916 = vld [vmem:[%s528 + $0x19] sm:$0xff]
    %v917 = vld [vmem:[%s528 + $0x21] sm:$0xff]
    %v918 = vld [vmem:[%s528 + $0x31] sm:$0xff]
    %v919 = vld [vmem:[%s528 + $0x39] sm:$0xff]
    %v920 = vld [vmem:[%s528 + $0x49] sm:$0xff]
    %v921 = vld [vmem:[%s528 + $0x51] sm:$0xff]
    %v922 = vld [vmem:[%s528 + $0x61] sm:$0xff]
    %v923 = vld [vmem:[%s528 + $0x69] sm:$0xff]
    %v924 = vld [vmem:[%s528 + $0x79] sm:$0xff]
    %v925 = vld [vmem:[%s528 + $0x81] sm:$0xff]
    %v926 = vld [vmem:[%s528 + $0x91] sm:$0xff]
    %v927 = vld [vmem:[%s528 + $0x99] sm:$0xff]
    %v928 = vld [vmem:[%s528 + $0xa9] sm:$0xff]
    %v929 = vld [vmem:[%s528 + $0xb1] sm:$0xff]
    %v930 = vld [vmem:[%s528 + $0xc1] sm:$0xff]
    %v931 = vld [vmem:[%s528 + $0xc9] sm:$0xff]
    %v932 = vld [vmem:[%s528 + $0xd9] sm:$0xff]
    %v933 = vld [vmem:[%s528 + $0xe1] sm:$0xff]
    %v934 = vld [vmem:[%s528 + $0xf1] sm:$0xff]
    %v935 = vld [vmem:[%s528 + $0xf9] sm:$0xff]
    %v936 = vld [vmem:[%s528 + $0x109] sm:$0xff]
    %v937 = vld [vmem:[%s528 + $0x111] sm:$0xff]
    %v938 = vld [vmem:[%s528 + $0x121] sm:$0xff]
    %v939 = vld [vmem:[%s528 + $0x129] sm:$0xff]
    %v940 = vld [vmem:[%s528 + $0x139] sm:$0xff]
    %v941 = vld [vmem:[%s528 + $0x141] sm:$0xff]
    %v942 = vld [vmem:[%s528 + $0x151] sm:$0xff]
    %v943 = vld [vmem:[%s528 + $0x159] sm:$0xff]
    %v944 = vld [vmem:[%s528 + $0x169] sm:$0xff]
    %v945 = vld [vmem:[%s528 + $0x171] sm:$0xff]
    %v946 = vld [vmem:[%s528 + $0x1b1] sm:$0xff]
    %v947 = vld [vmem:[%s528 + $0x1b9] sm:$0xff]
    %v948 = vld [vmem:[%s528 + $0x1c9] sm:$0xff]
    %v949 = vld [vmem:[%s528 + $0x1d1] sm:$0xff]
    %v950 = vld [vmem:[%s528 + $0x1e1] sm:$0xff]
    %v951 = vld [vmem:[%s528 + $0x1e9] sm:$0xff]
    %v952 = vld [vmem:[%s528 + $0x1f9] sm:$0xff]
    %v953 = vld [vmem:[%s528 + $0x201] sm:$0xff]
    %v954 = vld [vmem:[%s528 + $0x211] sm:$0xff]
    %v955 = vld [vmem:[%s528 + $0x219] sm:$0xff]
    %v956 = vld [vmem:[%s528 + $0x229] sm:$0xff]
    %v957 = vld [vmem:[%s528 + $0x231] sm:$0xff]
    %v958 = vld [vmem:[%s528 + $0x241] sm:$0xff]
    %v959 = vld [vmem:[%s528 + $0x249] sm:$0xff]
    %v960 = vld [vmem:[%s528 + $0x259] sm:$0xff]
    %v961 = vld [vmem:[%s528 + $0x261] sm:$0xff]
    %v962 = vld [vmem:[%s528 + $0x271] sm:$0xff]
    %v963 = vld [vmem:[%s528 + $0x279] sm:$0xff]
    %v964 = vld [vmem:[%s528 + $0x289] sm:$0xff]
    %v965 = vld [vmem:[%s528 + $0x291] sm:$0xff]
    %v966 = vld [vmem:[%s528 + $0x2a1] sm:$0xff]
    %v967 = vld [vmem:[%s528 + $0x2a9] sm:$0xff]
    %v968 = vld [vmem:[%s528 + $0x2b9] sm:$0xff]
    %v969 = vld [vmem:[%s528 + $0x2c1] sm:$0xff]
    %v970 = vld [vmem:[%s528 + $0x2d1] sm:$0xff]
    %v971 = vld [vmem:[%s528 + $0x2d9] sm:$0xff]
    %v972 = vld [vmem:[%s528 + $0x2e9] sm:$0xff]
    %v973 = vld [vmem:[%s528 + $0x2f1] sm:$0xff]
    %v974 = vld [vmem:[%s528 + $0x301] sm:$0xff]
    %v975 = vld [vmem:[%s528 + $0x309] sm:$0xff]
    %v976 = vld [vmem:[%s528 + $0x319] sm:$0xff]
    %v977 = vld [vmem:[%s528 + $0x321] sm:$0xff]
    %1042 = vrot.lane.b32.xlu0 %v914, 12
    %v1043 = vpop.permute.xlu0 %1042
    %1044 = vrot.lane.b32.xlu0 %v915, 12
    %v1045 = vpop.permute.xlu0 %1044
    %1046 = vrot.lane.b32.xlu0 %v916, 12
    %v1047 = vpop.permute.xlu0 %1046
    %1048 = vrot.lane.b32.xlu0 %v917, 12
    %v1049 = vpop.permute.xlu0 %1048
    %1050 = vrot.lane.b32.xlu0 %v918, 12
    %v1051 = vpop.permute.xlu0 %1050
    %1052 = vrot.lane.b32.xlu0 %v919, 12
    %v1053 = vpop.permute.xlu0 %1052
    %1054 = vrot.lane.b32.xlu0 %v920, 12
    %v1055 = vpop.permute.xlu0 %1054
    %1056 = vrot.lane.b32.xlu0 %v921, 12
    %v1057 = vpop.permute.xlu0 %1056
    %1058 = vrot.lane.b32.xlu0 %v922, 12
    %v1059 = vpop.permute.xlu0 %1058
    %1060 = vrot.lane.b32.xlu0 %v923, 12
    %v1061 = vpop.permute.xlu0 %1060
    %1062 = vrot.lane.b32.xlu0 %v924, 12
    %v1063 = vpop.permute.xlu0 %1062
    %1064 = vrot.lane.b32.xlu0 %v925, 12
    %v1065 = vpop.permute.xlu0 %1064
    %1066 = vrot.lane.b32.xlu0 %v926, 12
    %v1067 = vpop.permute.xlu0 %1066
    %1068 = vrot.lane.b32.xlu0 %v927, 12
    %v1069 = vpop.permute.xlu0 %1068
    %1070 = vrot.lane.b32.xlu0 %v928, 12
    %v1071 = vpop.permute.xlu0 %1070
    %1072 = vrot.lane.b32.xlu0 %v929, 12
    %v1073 = vpop.permute.xlu0 %1072
    %1074 = vrot.lane.b32.xlu0 %v930, 12
    %v1075 = vpop.permute.xlu0 %1074
    %1076 = vrot.lane.b32.xlu0 %v931, 12
    %v1077 = vpop.permute.xlu0 %1076
    %1078 = vrot.lane.b32.xlu0 %v932, 12
    %v1079 = vpop.permute.xlu0 %1078
    %1080 = vrot.lane.b32.xlu0 %v933, 12
    %v1081 = vpop.permute.xlu0 %1080
    %1082 = vrot.lane.b32.xlu0 %v934, 12
    %v1083 = vpop.permute.xlu0 %1082
    %1084 = vrot.lane.b32.xlu0 %v935, 12
    %v1085 = vpop.permute.xlu0 %1084
    %1086 = vrot.lane.b32.xlu0 %v936, 12
    %v1087 = vpop.permute.xlu0 %1086
    %1088 = vrot.lane.b32.xlu0 %v937, 12
    %v1089 = vpop.permute.xlu0 %1088
    %1090 = vrot.lane.b32.xlu0 %v938, 12
    %v1091 = vpop.permute.xlu0 %1090
    %1092 = vrot.lane.b32.xlu0 %v939, 12
    %v1093 = vpop.permute.xlu0 %1092
    %1094 = vrot.lane.b32.xlu0 %v940, 12
    %v1095 = vpop.permute.xlu0 %1094
    %1096 = vrot.lane.b32.xlu0 %v941, 12
    %v1097 = vpop.permute.xlu0 %1096
    %1098 = vrot.lane.b32.xlu0 %v942, 12
    %v1099 = vpop.permute.xlu0 %1098
    %1100 = vrot.lane.b32.xlu0 %v943, 12
    %v1101 = vpop.permute.xlu0 %1100
    %1102 = vrot.lane.b32.xlu0 %v944, 12
    %v1103 = vpop.permute.xlu0 %1102
    %1104 = vrot.lane.b32.xlu0 %v945, 12
    %v1105 = vpop.permute.xlu0 %1104
    %1106 = vrot.lane.b32.xlu0 %v946, 12
    %v1107 = vpop.permute.xlu0 %1106
    %1108 = vrot.lane.b32.xlu0 %v947, 12
    %v1109 = vpop.permute.xlu0 %1108
    %1110 = vrot.lane.b32.xlu0 %v948, 12
    %v1111 = vpop.permute.xlu0 %1110
    %1112 = vrot.lane.b32.xlu0 %v949, 12
    %v1113 = vpop.permute.xlu0 %1112
    %1114 = vrot.lane.b32.xlu0 %v950, 12
    %v1115 = vpop.permute.xlu0 %1114
    %1116 = vrot.lane.b32.xlu0 %v951, 12
    %v1117 = vpop.permute.xlu0 %1116
    %1118 = vrot.lane.b32.xlu0 %v952, 12
    %v1119 = vpop.permute.xlu0 %1118
    %1120 = vrot.lane.b32.xlu0 %v953, 12
    %v1121 = vpop.permute.xlu0 %1120
    %1122 = vrot.lane.b32.xlu0 %v954, 12
    %v1123 = vpop.permute.xlu0 %1122
    %1124 = vrot.lane.b32.xlu0 %v955, 12
    %v1125 = vpop.permute.xlu0 %1124
    %1126 = vrot.lane.b32.xlu0 %v956, 12
    %v1127 = vpop.permute.xlu0 %1126
    %1128 = vrot.lane.b32.xlu0 %v957, 12
    %v1129 = vpop.permute.xlu0 %1128
    %1130 = vrot.lane.b32.xlu0 %v958, 12
    %v1131 = vpop.permute.xlu0 %1130
    %1132 = vrot.lane.b32.xlu0 %v959, 12
    %v1133 = vpop.permute.xlu0 %1132
    %1134 = vrot.lane.b32.xlu0 %v960, 12
    %v1135 = vpop.permute.xlu0 %1134
    %1136 = vrot.lane.b32.xlu0 %v961, 12
    %v1137 = vpop.permute.xlu0 %1136
    %1138 = vrot.lane.b32.xlu0 %v962, 12
    %v1139 = vpop.permute.xlu0 %1138
    %1140 = vrot.lane.b32.xlu0 %v963, 12
    %v1141 = vpop.permute.xlu0 %1140
    %1142 = vrot.lane.b32.xlu0 %v964, 12
    %v1143 = vpop.permute.xlu0 %1142
    %1144 = vrot.lane.b32.xlu0 %v965, 12
    %v1145 = vpop.permute.xlu0 %1144
    %1146 = vrot.lane.b32.xlu0 %v966, 12
    %v1147 = vpop.permute.xlu0 %1146
    %1148 = vrot.lane.b32.xlu0 %v967, 12
    %v1149 = vpop.permute.xlu0 %1148
    %1150 = vrot.lane.b32.xlu0 %v968, 12
    %v1151 = vpop.permute.xlu0 %1150
    %1152 = vrot.lane.b32.xlu0 %v969, 12
    %v1153 = vpop.permute.xlu0 %1152
    %1154 = vrot.lane.b32.xlu0 %v970, 12
    %v1155 = vpop.permute.xlu0 %1154
    %1156 = vrot.lane.b32.xlu0 %v971, 12
    %v1157 = vpop.permute.xlu0 %1156
    %1158 = vrot.lane.b32.xlu0 %v972, 12
    %v1159 = vpop.permute.xlu0 %1158
    %1160 = vrot.lane.b32.xlu0 %v973, 12
    %v1161 = vpop.permute.xlu0 %1160
    %1162 = vrot.lane.b32.xlu0 %v974, 12
    %v1163 = vpop.permute.xlu0 %1162
    %1164 = vrot.lane.b32.xlu0 %v975, 12
    %v1165 = vpop.permute.xlu0 %1164
    %1166 = vrot.lane.b32.xlu0 %v976, 12
    %v1167 = vpop.permute.xlu0 %1166
    %1168 = vrot.lane.b32.xlu0 %v977, 12
    %v1169 = vpop.permute.xlu0 %1168
    %vm1234 = vcmask 130144
    %1235 = vst.msk [vmem:[#allocation2] sm:$0xff] %vm1234, %v1043
    %1236 = vst.msk [vmem:[#allocation2 + $0x8] sm:$0xff] %vm1234, %v1045
    %1237 = vst.msk [vmem:[#allocation2 + $0x10] sm:$0xff] %vm1234, %v1047
    %1238 = vst.msk [vmem:[#allocation2 + $0x18] sm:$0xff] %vm1234, %v1049
    %1239 = vst.msk [vmem:[#allocation2 + $0x20] sm:$0xff] %vm1234, %v1051
    %1240 = vst.msk [vmem:[#allocation2 + $0x28] sm:$0xff] %vm1234, %v1053
    %1241 = vst.msk [vmem:[#allocation2 + $0x30] sm:$0xff] %vm1234, %v1055
    %1242 = vst.msk [vmem:[#allocation2 + $0x38] sm:$0xff] %vm1234, %v1057
    %1243 = vst.msk [vmem:[#allocation2 + $0x40] sm:$0xff] %vm1234, %v1059
    %1244 = vst.msk [vmem:[#allocation2 + $0x48] sm:$0xff] %vm1234, %v1061
    %1245 = vst.msk [vmem:[#allocation2 + $0x50] sm:$0xff] %vm1234, %v1063
    %1246 = vst.msk [vmem:[#allocation2 + $0x58] sm:$0xff] %vm1234, %v1065
    %1247 = vst.msk [vmem:[#allocation2 + $0x60] sm:$0xff] %vm1234, %v1067
    %1248 = vst.msk [vmem:[#allocation2 + $0x68] sm:$0xff] %vm1234, %v1069
    %1249 = vst.msk [vmem:[#allocation2 + $0x70] sm:$0xff] %vm1234, %v1071
    %1250 = vst.msk [vmem:[#allocation2 + $0x78] sm:$0xff] %vm1234, %v1073
    %1251 = vst.msk [vmem:[#allocation2 + $0x80] sm:$0xff] %vm1234, %v1075
    %1252 = vst.msk [vmem:[#allocation2 + $0x88] sm:$0xff] %vm1234, %v1077
    %1253 = vst.msk [vmem:[#allocation2 + $0x90] sm:$0xff] %vm1234, %v1079
    %1254 = vst.msk [vmem:[#allocation2 + $0x98] sm:$0xff] %vm1234, %v1081
    %1255 = vst.msk [vmem:[#allocation2 + $0xa0] sm:$0xff] %vm1234, %v1083
    %1256 = vst.msk [vmem:[#allocation2 + $0xa8] sm:$0xff] %vm1234, %v1085
    %1257 = vst.msk [vmem:[#allocation2 + $0xb0] sm:$0xff] %vm1234, %v1087
    %1258 = vst.msk [vmem:[#allocation2 + $0xb8] sm:$0xff] %vm1234, %v1089
    %1259 = vst.msk [vmem:[#allocation2 + $0xc0] sm:$0xff] %vm1234, %v1091
    %1260 = vst.msk [vmem:[#allocation2 + $0xc8] sm:$0xff] %vm1234, %v1093
    %1261 = vst.msk [vmem:[#allocation2 + $0xd0] sm:$0xff] %vm1234, %v1095
    %1262 = vst.msk [vmem:[#allocation2 + $0xd8] sm:$0xff] %vm1234, %v1097
    %1263 = vst.msk [vmem:[#allocation2 + $0xe0] sm:$0xff] %vm1234, %v1099
    %1264 = vst.msk [vmem:[#allocation2 + $0xe8] sm:$0xff] %vm1234, %v1101
    %1265 = vst.msk [vmem:[#allocation2 + $0xf0] sm:$0xff] %vm1234, %v1103
    %1266 = vst.msk [vmem:[#allocation2 + $0xf8] sm:$0xff] %vm1234, %v1105
    %1267 = vst.msk [vmem:[#allocation2 + $0x100] sm:$0xff] %vm1234, %v1107
    %1268 = vst.msk [vmem:[#allocation2 + $0x108] sm:$0xff] %vm1234, %v1109
    %1269 = vst.msk [vmem:[#allocation2 + $0x110] sm:$0xff] %vm1234, %v1111
    %1270 = vst.msk [vmem:[#allocation2 + $0x118] sm:$0xff] %vm1234, %v1113
    %1271 = vst.msk [vmem:[#allocation2 + $0x120] sm:$0xff] %vm1234, %v1115
    %1272 = vst.msk [vmem:[#allocation2 + $0x128] sm:$0xff] %vm1234, %v1117
    %1273 = vst.msk [vmem:[#allocation2 + $0x130] sm:$0xff] %vm1234, %v1119
    %1274 = vst.msk [vmem:[#allocation2 + $0x138] sm:$0xff] %vm1234, %v1121
    %1275 = vst.msk [vmem:[#allocation2 + $0x140] sm:$0xff] %vm1234, %v1123
    %1276 = vst.msk [vmem:[#allocation2 + $0x148] sm:$0xff] %vm1234, %v1125
    %1277 = vst.msk [vmem:[#allocation2 + $0x150] sm:$0xff] %vm1234, %v1127
    %1278 = vst.msk [vmem:[#allocation2 + $0x158] sm:$0xff] %vm1234, %v1129
    %1279 = vst.msk [vmem:[#allocation2 + $0x160] sm:$0xff] %vm1234, %v1131
    %1280 = vst.msk [vmem:[#allocation2 + $0x168] sm:$0xff] %vm1234, %v1133
    %1281 = vst.msk [vmem:[#allocation2 + $0x170] sm:$0xff] %vm1234, %v1135
    %1282 = vst.msk [vmem:[#allocation2 + $0x178] sm:$0xff] %vm1234, %v1137
    %1283 = vst.msk [vmem:[#allocation2 + $0x180] sm:$0xff] %vm1234, %v1139
    %1284 = vst.msk [vmem:[#allocation2 + $0x188] sm:$0xff] %vm1234, %v1141
    %1285 = vst.msk [vmem:[#allocation2 + $0x190] sm:$0xff] %vm1234, %v1143
    %1286 = vst.msk [vmem:[#allocation2 + $0x198] sm:$0xff] %vm1234, %v1145
    %1287 = vst.msk [vmem:[#allocation2 + $0x1a0] sm:$0xff] %vm1234, %v1147
    %1288 = vst.msk [vmem:[#allocation2 + $0x1a8] sm:$0xff] %vm1234, %v1149
    %1289 = vst.msk [vmem:[#allocation2 + $0x1b0] sm:$0xff] %vm1234, %v1151
    %1290 = vst.msk [vmem:[#allocation2 + $0x1b8] sm:$0xff] %vm1234, %v1153
    %1291 = vst.msk [vmem:[#allocation2 + $0x1c0] sm:$0xff] %vm1234, %v1155
    %1292 = vst.msk [vmem:[#allocation2 + $0x1c8] sm:$0xff] %vm1234, %v1157
    %1293 = vst.msk [vmem:[#allocation2 + $0x1d0] sm:$0xff] %vm1234, %v1159
    %1294 = vst.msk [vmem:[#allocation2 + $0x1d8] sm:$0xff] %vm1234, %v1161
    %1295 = vst.msk [vmem:[#allocation2 + $0x1e0] sm:$0xff] %vm1234, %v1163
    %1296 = vst.msk [vmem:[#allocation2 + $0x1e8] sm:$0xff] %vm1234, %v1165
    %1297 = vst.msk [vmem:[#allocation2 + $0x1f0] sm:$0xff] %vm1234, %v1167
    %1298 = vst.msk [vmem:[#allocation2 + $0x1f8] sm:$0xff] %vm1234, %v1169
    %v1299 = vld [vmem:[#allocation2] sm:$0xff]
    %v1300 = vld [vmem:[#allocation2 + $0x8] sm:$0xff]
    %v1301 = vld [vmem:[#allocation2 + $0x10] sm:$0xff]
    %v1302 = vld [vmem:[#allocation2 + $0x18] sm:$0xff]
    %v1303 = vld [vmem:[#allocation2 + $0x20] sm:$0xff]
    %v1304 = vld [vmem:[#allocation2 + $0x28] sm:$0xff]
    %v1305 = vld [vmem:[#allocation2 + $0x30] sm:$0xff]
    %v1306 = vld [vmem:[#allocation2 + $0x38] sm:$0xff]
    %v1307 = vld [vmem:[#allocation2 + $0x40] sm:$0xff]
    %v1308 = vld [vmem:[#allocation2 + $0x48] sm:$0xff]
    %v1309 = vld [vmem:[#allocation2 + $0x50] sm:$0xff]
    %v1310 = vld [vmem:[#allocation2 + $0x58] sm:$0xff]
    %v1311 = vld [vmem:[#allocation2 + $0x60] sm:$0xff]
    %v1312 = vld [vmem:[#allocation2 + $0x68] sm:$0xff]
    %v1313 = vld [vmem:[#allocation2 + $0x70] sm:$0xff]
    %v1314 = vld [vmem:[#allocation2 + $0x78] sm:$0xff]
    %v1315 = vld [vmem:[#allocation2 + $0x80] sm:$0xff]
    %v1316 = vld [vmem:[#allocation2 + $0x88] sm:$0xff]
    %v1317 = vld [vmem:[#allocation2 + $0x90] sm:$0xff]
    %v1318 = vld [vmem:[#allocation2 + $0x98] sm:$0xff]
    %v1319 = vld [vmem:[#allocation2 + $0xa0] sm:$0xff]
    %v1320 = vld [vmem:[#allocation2 + $0xa8] sm:$0xff]
    %v1321 = vld [vmem:[#allocation2 + $0xb0] sm:$0xff]
    %v1322 = vld [vmem:[#allocation2 + $0xb8] sm:$0xff]
    %v1323 = vld [vmem:[#allocation2 + $0xc0] sm:$0xff]
    %v1324 = vld [vmem:[#allocation2 + $0xc8] sm:$0xff]
    %v1325 = vld [vmem:[#allocation2 + $0xd0] sm:$0xff]
    %v1326 = vld [vmem:[#allocation2 + $0xd8] sm:$0xff]
    %v1327 = vld [vmem:[#allocation2 + $0xe0] sm:$0xff]
    %v1328 = vld [vmem:[#allocation2 + $0xe8] sm:$0xff]
    %v1329 = vld [vmem:[#allocation2 + $0xf0] sm:$0xff]
    %v1330 = vld [vmem:[#allocation2 + $0xf8] sm:$0xff]
    %v1331 = vld [vmem:[#allocation2 + $0x100] sm:$0xff]
    %v1332 = vld [vmem:[#allocation2 + $0x108] sm:$0xff]
    %v1333 = vld [vmem:[#allocation2 + $0x110] sm:$0xff]
    %v1334 = vld [vmem:[#allocation2 + $0x118] sm:$0xff]
    %v1335 = vld [vmem:[#allocation2 + $0x120] sm:$0xff]
    %v1336 = vld [vmem:[#allocation2 + $0x128] sm:$0xff]
    %v1337 = vld [vmem:[#allocation2 + $0x130] sm:$0xff]
    %v1338 = vld [vmem:[#allocation2 + $0x138] sm:$0xff]
    %v1339 = vld [vmem:[#allocation2 + $0x140] sm:$0xff]
    %v1340 = vld [vmem:[#allocation2 + $0x148] sm:$0xff]
    %v1341 = vld [vmem:[#allocation2 + $0x150] sm:$0xff]
    %v1342 = vld [vmem:[#allocation2 + $0x158] sm:$0xff]
    %v1343 = vld [vmem:[#allocation2 + $0x160] sm:$0xff]
    %v1344 = vld [vmem:[#allocation2 + $0x168] sm:$0xff]
    %v1345 = vld [vmem:[#allocation2 + $0x170] sm:$0xff]
    %v1346 = vld [vmem:[#allocation2 + $0x178] sm:$0xff]
    %v1347 = vld [vmem:[#allocation2 + $0x180] sm:$0xff]
    %v1348 = vld [vmem:[#allocation2 + $0x188] sm:$0xff]
    %v1349 = vld [vmem:[#allocation2 + $0x190] sm:$0xff]
    %v1350 = vld [vmem:[#allocation2 + $0x198] sm:$0xff]
    %v1351 = vld [vmem:[#allocation2 + $0x1a0] sm:$0xff]
    %v1352 = vld [vmem:[#allocation2 + $0x1a8] sm:$0xff]
    %v1353 = vld [vmem:[#allocation2 + $0x1b0] sm:$0xff]
    %v1354 = vld [vmem:[#allocation2 + $0x1b8] sm:$0xff]
    %v1355 = vld [vmem:[#allocation2 + $0x1c0] sm:$0xff]
    %v1356 = vld [vmem:[#allocation2 + $0x1c8] sm:$0xff]
    %v1357 = vld [vmem:[#allocation2 + $0x1d0] sm:$0xff]
    %v1358 = vld [vmem:[#allocation2 + $0x1d8] sm:$0xff]
    %v1359 = vld [vmem:[#allocation2 + $0x1e0] sm:$0xff]
    %v1360 = vld [vmem:[#allocation2 + $0x1e8] sm:$0xff]
    %v1361 = vld [vmem:[#allocation2 + $0x1f0] sm:$0xff]
    %v1362 = vld [vmem:[#allocation2 + $0x1f8] sm:$0xff]
    %v1363 = vld [vmem:[%s1] sm:$0xff]
    %v1364 = vld [vmem:[%s1 + $0x8] sm:$0xff]
    %vm1365 = vcmask 130048
    %v1367 = vsel %vm1365, %v1299, 0
    %v1370 = vsel %vm1365, %v1300, 0
    %v1373 = vsel %vm1365, %v1301, 0
    %v1376 = vsel %vm1365, %v1302, 0
    %v1379 = vsel %vm1365, %v1303, 0
    %v1382 = vsel %vm1365, %v1304, 0
    %v1385 = vsel %vm1365, %v1305, 0
    %v1388 = vsel %vm1365, %v1306, 0
    %v1391 = vsel %vm1365, %v1307, 0
    %v1394 = vsel %vm1365, %v1308, 0
    %v1397 = vsel %vm1365, %v1309, 0
    %v1400 = vsel %vm1365, %v1310, 0
    %v1403 = vsel %vm1365, %v1311, 0
    %v1406 = vsel %vm1365, %v1312, 0
    %v1409 = vsel %vm1365, %v1313, 0
    %v1412 = vsel %vm1365, %v1314, 0
    %v1415 = vsel %vm1365, %v1315, 0
    %v1418 = vsel %vm1365, %v1316, 0
    %v1421 = vsel %vm1365, %v1317, 0
    %v1424 = vsel %vm1365, %v1318, 0
    %v1427 = vsel %vm1365, %v1319, 0
    %v1430 = vsel %vm1365, %v1320, 0
    %v1433 = vsel %vm1365, %v1321, 0
    %v1436 = vsel %vm1365, %v1322, 0
    %v1439 = vsel %vm1365, %v1323, 0
    %v1442 = vsel %vm1365, %v1324, 0
    %v1445 = vsel %vm1365, %v1325, 0
    %v1448 = vsel %vm1365, %v1326, 0
    %v1451 = vsel %vm1365, %v1327, 0
    %v1454 = vsel %vm1365, %v1328, 0
    %v1457 = vsel %vm1365, %v1329, 0
    %v1460 = vsel %vm1365, %v1330, 0
    %v1463 = vsel %vm1365, %v1331, 0
    %v1466 = vsel %vm1365, %v1332, 0
    %v1469 = vsel %vm1365, %v1333, 0
    %v1472 = vsel %vm1365, %v1334, 0
    %v1475 = vsel %vm1365, %v1335, 0
    %v1478 = vsel %vm1365, %v1336, 0
    %v1481 = vsel %vm1365, %v1337, 0
    %v1484 = vsel %vm1365, %v1338, 0
    %v1487 = vsel %vm1365, %v1339, 0
    %v1490 = vsel %vm1365, %v1340, 0
    %v1493 = vsel %vm1365, %v1341, 0
    %v1496 = vsel %vm1365, %v1342, 0
    %v1499 = vsel %vm1365, %v1343, 0
    %v1502 = vsel %vm1365, %v1344, 0
    %v1505 = vsel %vm1365, %v1345, 0
    %v1508 = vsel %vm1365, %v1346, 0
    %v1511 = vsel %vm1365, %v1347, 0
    %v1514 = vsel %vm1365, %v1348, 0
    %v1517 = vsel %vm1365, %v1349, 0
    %v1520 = vsel %vm1365, %v1350, 0
    %v1523 = vsel %vm1365, %v1351, 0
    %v1526 = vsel %vm1365, %v1352, 0
    %v1529 = vsel %vm1365, %v1353, 0
    %v1532 = vsel %vm1365, %v1354, 0
    %v1535 = vsel %vm1365, %v1355, 0
    %v1538 = vsel %vm1365, %v1356, 0
    %v1541 = vsel %vm1365, %v1357, 0
    %v1544 = vsel %vm1365, %v1358, 0
    %v1547 = vsel %vm1365, %v1359, 0
    %v1550 = vsel %vm1365, %v1360, 0
    %v1553 = vsel %vm1365, %v1361, 0
    %v1556 = vsel %vm1365, %v1362, 0
    %1558 = vmatpush.msra.mxu0 0.0
    %1559 = vmatpush.msra.mxu0 0.0
    %1560 = vmatpush.msra.mxu0 0.0
    %1561 = vmatpush.msra.mxu0 0.0
    %1562 = vmatpush.msra.mxu0 0.0
    %1563 = vmatpush.msra.mxu0 0.0
    %1564 = vmatpush.msra.mxu0 0.0
    %1565 = vmatpush.msra.mxu0 0.0
    %1566 = vmatpush.msra.mxu0 0.0
    %1567 = vmatpush.msra.mxu0 0.0
    %1568 = vmatpush.msra.mxu0 0.0
    %1569 = vmatpush.msra.mxu0 0.0
    %1570 = vmatpush.msra.mxu0 0.0
    %1571 = vmatpush.msra.mxu0 0.0
    %1572 = vmatpush.msra.mxu0 %v1364
    %1573 = vmatpush.msra.mxu0 %v1363
    %1574 = vmatmul.f32.gmra.mxu0 %v1367
    %v1575 = vpop.f32.mrf.mxu0
    %v1576 = vadd.f32 0.0, %v1575
    %1577 = vmatmul.f32.gmra.mxu0 %v1370
    %v1578 = vpop.f32.mrf.mxu0
    %v1579 = vadd.f32 0.0, %v1578
    %1580 = vmatmul.f32.gmra.mxu0 %v1373
    %v1581 = vpop.f32.mrf.mxu0
    %v1582 = vadd.f32 0.0, %v1581
    %1583 = vmatmul.f32.gmra.mxu0 %v1376
    %v1584 = vpop.f32.mrf.mxu0
    %v1585 = vadd.f32 0.0, %v1584
    %1586 = vmatmul.f32.gmra.mxu0 %v1379
    %v1587 = vpop.f32.mrf.mxu0
    %v1588 = vadd.f32 0.0, %v1587
    %1589 = vmatmul.f32.gmra.mxu0 %v1382
    %v1590 = vpop.f32.mrf.mxu0
    %v1591 = vadd.f32 0.0, %v1590
    %1592 = vmatmul.f32.gmra.mxu0 %v1385
    %v1593 = vpop.f32.mrf.mxu0
    %v1594 = vadd.f32 0.0, %v1593
    %1595 = vmatmul.f32.gmra.mxu0 %v1388
    %v1596 = vpop.f32.mrf.mxu0
    %v1597 = vadd.f32 0.0, %v1596
    %1598 = vmatmul.f32.gmra.mxu0 %v1391
    %v1599 = vpop.f32.mrf.mxu0
    %v1600 = vadd.f32 0.0, %v1599
    %1601 = vmatmul.f32.gmra.mxu0 %v1394
    %v1602 = vpop.f32.mrf.mxu0
    %v1603 = vadd.f32 0.0, %v1602
    %1604 = vmatmul.f32.gmra.mxu0 %v1397
    %v1605 = vpop.f32.mrf.mxu0
    %v1606 = vadd.f32 0.0, %v1605
    %1607 = vmatmul.f32.gmra.mxu0 %v1400
    %v1608 = vpop.f32.mrf.mxu0
    %v1609 = vadd.f32 0.0, %v1608
    %1610 = vmatmul.f32.gmra.mxu0 %v1403
    %v1611 = vpop.f32.mrf.mxu0
    %v1612 = vadd.f32 0.0, %v1611
    %1613 = vmatmul.f32.gmra.mxu0 %v1406
    %v1614 = vpop.f32.mrf.mxu0
    %v1615 = vadd.f32 0.0, %v1614
    %1616 = vmatmul.f32.gmra.mxu0 %v1409
    %v1617 = vpop.f32.mrf.mxu0
    %v1618 = vadd.f32 0.0, %v1617
    %1619 = vmatmul.f32.gmra.mxu0 %v1412
    %v1620 = vpop.f32.mrf.mxu0
    %v1621 = vadd.f32 0.0, %v1620
    %1622 = vmatmul.f32.gmra.mxu0 %v1415
    %v1623 = vpop.f32.mrf.mxu0
    %v1624 = vadd.f32 0.0, %v1623
    %1625 = vmatmul.f32.gmra.mxu0 %v1418
    %v1626 = vpop.f32.mrf.mxu0
    %v1627 = vadd.f32 0.0, %v1626
    %1628 = vmatmul.f32.gmra.mxu0 %v1421
    %v1629 = vpop.f32.mrf.mxu0
    %v1630 = vadd.f32 0.0, %v1629
    %1631 = vmatmul.f32.gmra.mxu0 %v1424
    %v1632 = vpop.f32.mrf.mxu0
    %v1633 = vadd.f32 0.0, %v1632
    %1634 = vmatmul.f32.gmra.mxu0 %v1427
    %v1635 = vpop.f32.mrf.mxu0
    %v1636 = vadd.f32 0.0, %v1635
    %1637 = vmatmul.f32.gmra.mxu0 %v1430
    %v1638 = vpop.f32.mrf.mxu0
    %v1639 = vadd.f32 0.0, %v1638
    %1640 = vmatmul.f32.gmra.mxu0 %v1433
    %v1641 = vpop.f32.mrf.mxu0
    %v1642 = vadd.f32 0.0, %v1641
    %1643 = vmatmul.f32.gmra.mxu0 %v1436
    %v1644 = vpop.f32.mrf.mxu0
    %v1645 = vadd.f32 0.0, %v1644
    %1646 = vmatmul.f32.gmra.mxu0 %v1439
    %v1647 = vpop.f32.mrf.mxu0
    %v1648 = vadd.f32 0.0, %v1647
    %1649 = vmatmul.f32.gmra.mxu0 %v1442
    %v1650 = vpop.f32.mrf.mxu0
    %v1651 = vadd.f32 0.0, %v1650
    %1652 = vmatmul.f32.gmra.mxu0 %v1445
    %v1653 = vpop.f32.mrf.mxu0
    %v1654 = vadd.f32 0.0, %v1653
    %1655 = vmatmul.f32.gmra.mxu0 %v1448
    %v1656 = vpop.f32.mrf.mxu0
    %v1657 = vadd.f32 0.0, %v1656
    %1658 = vmatmul.f32.gmra.mxu0 %v1451
    %v1659 = vpop.f32.mrf.mxu0
    %v1660 = vadd.f32 0.0, %v1659
    %1661 = vmatmul.f32.gmra.mxu0 %v1454
    %v1662 = vpop.f32.mrf.mxu0
    %v1663 = vadd.f32 0.0, %v1662
    %1664 = vmatmul.f32.gmra.mxu0 %v1457
    %v1665 = vpop.f32.mrf.mxu0
    %v1666 = vadd.f32 0.0, %v1665
    %1667 = vmatmul.f32.gmra.mxu0 %v1460
    %v1668 = vpop.f32.mrf.mxu0
    %v1669 = vadd.f32 0.0, %v1668
    %1670 = vmatmul.f32.gmra.mxu0 %v1463
    %v1671 = vpop.f32.mrf.mxu0
    %v1672 = vadd.f32 0.0, %v1671
    %1673 = vmatmul.f32.gmra.mxu0 %v1466
    %v1674 = vpop.f32.mrf.mxu0
    %v1675 = vadd.f32 0.0, %v1674
    %1676 = vmatmul.f32.gmra.mxu0 %v1469
    %v1677 = vpop.f32.mrf.mxu0
    %v1678 = vadd.f32 0.0, %v1677
    %1679 = vmatmul.f32.gmra.mxu0 %v1472
    %v1680 = vpop.f32.mrf.mxu0
    %v1681 = vadd.f32 0.0, %v1680
    %1682 = vmatmul.f32.gmra.mxu0 %v1475
    %v1683 = vpop.f32.mrf.mxu0
    %v1684 = vadd.f32 0.0, %v1683
    %1685 = vmatmul.f32.gmra.mxu0 %v1478
    %v1686 = vpop.f32.mrf.mxu0
    %v1687 = vadd.f32 0.0, %v1686
    %1688 = vmatmul.f32.gmra.mxu0 %v1481
    %v1689 = vpop.f32.mrf.mxu0
    %v1690 = vadd.f32 0.0, %v1689
    %1691 = vmatmul.f32.gmra.mxu0 %v1484
    %v1692 = vpop.f32.mrf.mxu0
    %v1693 = vadd.f32 0.0, %v1692
    %1694 = vmatmul.f32.gmra.mxu0 %v1487
    %v1695 = vpop.f32.mrf.mxu0
    %v1696 = vadd.f32 0.0, %v1695
    %1697 = vmatmul.f32.gmra.mxu0 %v1490
    %v1698 = vpop.f32.mrf.mxu0
    %v1699 = vadd.f32 0.0, %v1698
    %1700 = vmatmul.f32.gmra.mxu0 %v1493
    %v1701 = vpop.f32.mrf.mxu0
    %v1702 = vadd.f32 0.0, %v1701
    %1703 = vmatmul.f32.gmra.mxu0 %v1496
    %v1704 = vpop.f32.mrf.mxu0
    %v1705 = vadd.f32 0.0, %v1704
    %1706 = vmatmul.f32.gmra.mxu0 %v1499
    %v1707 = vpop.f32.mrf.mxu0
    %v1708 = vadd.f32 0.0, %v1707
    %1709 = vmatmul.f32.gmra.mxu0 %v1502
    %v1710 = vpop.f32.mrf.mxu0
    %v1711 = vadd.f32 0.0, %v1710
    %1712 = vmatmul.f32.gmra.mxu0 %v1505
    %v1713 = vpop.f32.mrf.mxu0
    %v1714 = vadd.f32 0.0, %v1713
    %1715 = vmatmul.f32.gmra.mxu0 %v1508
    %v1716 = vpop.f32.mrf.mxu0
    %v1717 = vadd.f32 0.0, %v1716
    %1718 = vmatmul.f32.gmra.mxu0 %v1511
    %v1719 = vpop.f32.mrf.mxu0
    %v1720 = vadd.f32 0.0, %v1719
    %1721 = vmatmul.f32.gmra.mxu0 %v1514
    %v1722 = vpop.f32.mrf.mxu0
    %v1723 = vadd.f32 0.0, %v1722
    %1724 = vmatmul.f32.gmra.mxu0 %v1517
    %v1725 = vpop.f32.mrf.mxu0
    %v1726 = vadd.f32 0.0, %v1725
    %1727 = vmatmul.f32.gmra.mxu0 %v1520
    %v1728 = vpop.f32.mrf.mxu0
    %v1729 = vadd.f32 0.0, %v1728
    %1730 = vmatmul.f32.gmra.mxu0 %v1523
    %v1731 = vpop.f32.mrf.mxu0
    %v1732 = vadd.f32 0.0, %v1731
    %1733 = vmatmul.f32.gmra.mxu0 %v1526
    %v1734 = vpop.f32.mrf.mxu0
    %v1735 = vadd.f32 0.0, %v1734
    %1736 = vmatmul.f32.gmra.mxu0 %v1529
    %v1737 = vpop.f32.mrf.mxu0
    %v1738 = vadd.f32 0.0, %v1737
    %1739 = vmatmul.f32.gmra.mxu0 %v1532
    %v1740 = vpop.f32.mrf.mxu0
    %v1741 = vadd.f32 0.0, %v1740
    %1742 = vmatmul.f32.gmra.mxu0 %v1535
    %v1743 = vpop.f32.mrf.mxu0
    %v1744 = vadd.f32 0.0, %v1743
    %1745 = vmatmul.f32.gmra.mxu0 %v1538
    %v1746 = vpop.f32.mrf.mxu0
    %v1747 = vadd.f32 0.0, %v1746
    %1748 = vmatmul.f32.gmra.mxu0 %v1541
    %v1749 = vpop.f32.mrf.mxu0
    %v1750 = vadd.f32 0.0, %v1749
    %1751 = vmatmul.f32.gmra.mxu0 %v1544
    %v1752 = vpop.f32.mrf.mxu0
    %v1753 = vadd.f32 0.0, %v1752
    %1754 = vmatmul.f32.gmra.mxu0 %v1547
    %v1755 = vpop.f32.mrf.mxu0
    %v1756 = vadd.f32 0.0, %v1755
    %1757 = vmatmul.f32.gmra.mxu0 %v1550
    %v1758 = vpop.f32.mrf.mxu0
    %v1759 = vadd.f32 0.0, %v1758
    %1760 = vmatmul.f32.gmra.mxu0 %v1553
    %v1761 = vpop.f32.mrf.mxu0
    %v1762 = vadd.f32 0.0, %v1761
    %1763 = vmatmul.f32.gmra.mxu0 %v1556
    %v1764 = vpop.f32.mrf.mxu0
    %v1765 = vadd.f32 0.0, %v1764
    %1766 = vdwg.mxu0
    %v1767 = vadd.f32 %v1576, %v1579
    %v1768 = vadd.f32 %v1767, %v1582
    %v1769 = vadd.f32 %v1768, %v1585
    %v1770 = vadd.f32 %v1769, %v1588
    %v1771 = vadd.f32 %v1770, %v1591
    %v1772 = vadd.f32 %v1771, %v1594
    %v1773 = vadd.f32 %v1772, %v1597
    %v1774 = vadd.f32 %v1773, %v1600
    %v1775 = vadd.f32 %v1774, %v1603
    %v1776 = vadd.f32 %v1775, %v1606
    %v1777 = vadd.f32 %v1776, %v1609
    %v1778 = vadd.f32 %v1777, %v1612
    %v1779 = vadd.f32 %v1778, %v1615
    %v1780 = vadd.f32 %v1779, %v1618
    %v1781 = vadd.f32 %v1780, %v1621
    %v1782 = vadd.f32 %v1781, %v1624
    %v1783 = vadd.f32 %v1782, %v1627
    %v1784 = vadd.f32 %v1783, %v1630
    %v1785 = vadd.f32 %v1784, %v1633
    %v1786 = vadd.f32 %v1785, %v1636
    %v1787 = vadd.f32 %v1786, %v1639
    %v1788 = vadd.f32 %v1787, %v1642
    %v1789 = vadd.f32 %v1788, %v1645
    %v1790 = vadd.f32 %v1789, %v1648
    %v1791 = vadd.f32 %v1790, %v1651
    %v1792 = vadd.f32 %v1791, %v1654
    %v1793 = vadd.f32 %v1792, %v1657
    %v1794 = vadd.f32 %v1793, %v1660
    %v1795 = vadd.f32 %v1794, %v1663
    %v1796 = vadd.f32 %v1795, %v1666
    %v1797 = vadd.f32 %v1796, %v1669
    %v1798 = vadd.f32 %v1797, %v1672
    %v1799 = vadd.f32 %v1798, %v1675
    %v1800 = vadd.f32 %v1799, %v1678
    %v1801 = vadd.f32 %v1800, %v1681
    %v1802 = vadd.f32 %v1801, %v1684
    %v1803 = vadd.f32 %v1802, %v1687
    %v1804 = vadd.f32 %v1803, %v1690
    %v1805 = vadd.f32 %v1804, %v1693
    %v1806 = vadd.f32 %v1805, %v1696
    %v1807 = vadd.f32 %v1806, %v1699
    %v1808 = vadd.f32 %v1807, %v1702
    %v1809 = vadd.f32 %v1808, %v1705
    %v1810 = vadd.f32 %v1809, %v1708
    %v1811 = vadd.f32 %v1810, %v1711
    %v1812 = vadd.f32 %v1811, %v1714
    %v1813 = vadd.f32 %v1812, %v1717
    %v1814 = vadd.f32 %v1813, %v1720
    %v1815 = vadd.f32 %v1814, %v1723
    %v1816 = vadd.f32 %v1815, %v1726
    %v1817 = vadd.f32 %v1816, %v1729
    %v1818 = vadd.f32 %v1817, %v1732
    %v1819 = vadd.f32 %v1818, %v1735
    %v1820 = vadd.f32 %v1819, %v1738
    %v1821 = vadd.f32 %v1820, %v1741
    %v1822 = vadd.f32 %v1821, %v1744
    %v1823 = vadd.f32 %v1822, %v1747
    %v1824 = vadd.f32 %v1823, %v1750
    %v1825 = vadd.f32 %v1824, %v1753
    %v1826 = vadd.f32 %v1825, %v1756
    %v1827 = vadd.f32 %v1826, %v1759
    %v1828 = vadd.f32 %v1827, %v1762
    %v1829 = vadd.f32 %v1828, %v1765
    %v1830 = vrot.slane %v1829, 4
    %v1831 = vadd.f32 %v1829, %v1830
    %v1832 = vrot.slane %v1831, 2
    %v1833 = vadd.f32 %v1831, %v1832
    %v1834 = vrot.slane %v1833, 1
    %v1835 = vadd.f32 %v1833, %v1834
    %v1836 = vadd.f32 %v1835, 0.0
    %v1837 = vmul.f32 %v1576, %v1576
    %v1838 = vmul.f32 %v1579, %v1579
    %v1839 = vmul.f32 %v1582, %v1582
    %v1840 = vmul.f32 %v1585, %v1585
    %v1841 = vmul.f32 %v1588, %v1588
    %v1842 = vmul.f32 %v1591, %v1591
    %v1843 = vmul.f32 %v1594, %v1594
    %v1844 = vmul.f32 %v1597, %v1597
    %v1845 = vmul.f32 %v1600, %v1600
    %v1846 = vmul.f32 %v1603, %v1603
    %v1847 = vmul.f32 %v1606, %v1606
    %v1848 = vmul.f32 %v1609, %v1609
    %v1849 = vmul.f32 %v1612, %v1612
    %v1850 = vmul.f32 %v1615, %v1615
    %v1851 = vmul.f32 %v1618, %v1618
    %v1852 = vmul.f32 %v1621, %v1621
    %v1853 = vmul.f32 %v1624, %v1624
    %v1854 = vmul.f32 %v1627, %v1627
    %v1855 = vmul.f32 %v1630, %v1630
    %v1856 = vmul.f32 %v1633, %v1633
    %v1857 = vmul.f32 %v1636, %v1636
    %v1858 = vmul.f32 %v1639, %v1639
    %v1859 = vmul.f32 %v1642, %v1642
    %v1860 = vmul.f32 %v1645, %v1645
    %v1861 = vmul.f32 %v1648, %v1648
    %v1862 = vmul.f32 %v1651, %v1651
    %v1863 = vmul.f32 %v1654, %v1654
    %v1864 = vmul.f32 %v1657, %v1657
    %v1865 = vmul.f32 %v1660, %v1660
    %v1866 = vmul.f32 %v1663, %v1663
    %v1867 = vmul.f32 %v1666, %v1666
    %v1868 = vmul.f32 %v1669, %v1669
    %v1869 = vmul.f32 %v1672, %v1672
    %v1870 = vmul.f32 %v1675, %v1675
    %v1871 = vmul.f32 %v1678, %v1678
    %v1872 = vmul.f32 %v1681, %v1681
    %v1873 = vmul.f32 %v1684, %v1684
    %v1874 = vmul.f32 %v1687, %v1687
    %v1875 = vmul.f32 %v1690, %v1690
    %v1876 = vmul.f32 %v1693, %v1693
    %v1877 = vmul.f32 %v1696, %v1696
    %v1878 = vmul.f32 %v1699, %v1699
    %v1879 = vmul.f32 %v1702, %v1702
    %v1880 = vmul.f32 %v1705, %v1705
    %v1881 = vmul.f32 %v1708, %v1708
    %v1882 = vmul.f32 %v1711, %v1711
    %v1883 = vmul.f32 %v1714, %v1714
    %v1884 = vmul.f32 %v1717, %v1717
    %v1885 = vmul.f32 %v1720, %v1720
    %v1886 = vmul.f32 %v1723, %v1723
    %v1887 = vmul.f32 %v1726, %v1726
    %v1888 = vmul.f32 %v1729, %v1729
    %v1889 = vmul.f32 %v1732, %v1732
    %v1890 = vmul.f32 %v1735, %v1735
    %v1891 = vmul.f32 %v1738, %v1738
    %v1892 = vmul.f32 %v1741, %v1741
    %v1893 = vmul.f32 %v1744, %v1744
    %v1894 = vmul.f32 %v1747, %v1747
    %v1895 = vmul.f32 %v1750, %v1750
    %v1896 = vmul.f32 %v1753, %v1753
    %v1897 = vmul.f32 %v1756, %v1756
    %v1898 = vmul.f32 %v1759, %v1759
    %v1899 = vmul.f32 %v1762, %v1762
    %v1900 = vmul.f32 %v1765, %v1765
    %v1901 = vadd.f32 %v1837, %v1838
    %v1902 = vadd.f32 %v1901, %v1839
    %v1903 = vadd.f32 %v1902, %v1840
    %v1904 = vadd.f32 %v1903, %v1841
    %v1905 = vadd.f32 %v1904, %v1842
    %v1906 = vadd.f32 %v1905, %v1843
    %v1907 = vadd.f32 %v1906, %v1844
    %v1908 = vadd.f32 %v1907, %v1845
    %v1909 = vadd.f32 %v1908, %v1846
    %v1910 = vadd.f32 %v1909, %v1847
    %v1911 = vadd.f32 %v1910, %v1848
    %v1912 = vadd.f32 %v1911, %v1849
    %v1913 = vadd.f32 %v1912, %v1850
    %v1914 = vadd.f32 %v1913, %v1851
    %v1915 = vadd.f32 %v1914, %v1852
    %v1916 = vadd.f32 %v1915, %v1853
    %v1917 = vadd.f32 %v1916, %v1854
    %v1918 = vadd.f32 %v1917, %v1855
    %v1919 = vadd.f32 %v1918, %v1856
    %v1920 = vadd.f32 %v1919, %v1857
    %v1921 = vadd.f32 %v1920, %v1858
    %v1922 = vadd.f32 %v1921, %v1859
    %v1923 = vadd.f32 %v1922, %v1860
    %v1924 = vadd.f32 %v1923, %v1861
    %v1925 = vadd.f32 %v1924, %v1862
    %v1926 = vadd.f32 %v1925, %v1863
    %v1927 = vadd.f32 %v1926, %v1864
    %v1928 = vadd.f32 %v1927, %v1865
    %v1929 = vadd.f32 %v1928, %v1866
    %v1930 = vadd.f32 %v1929, %v1867
    %v1931 = vadd.f32 %v1930, %v1868
    %v1932 = vadd.f32 %v1931, %v1869
    %v1933 = vadd.f32 %v1932, %v1870
    %v1934 = vadd.f32 %v1933, %v1871
    %v1935 = vadd.f32 %v1934, %v1872
    %v1936 = vadd.f32 %v1935, %v1873
    %v1937 = vadd.f32 %v1936, %v1874
    %v1938 = vadd.f32 %v1937, %v1875
    %v1939 = vadd.f32 %v1938, %v1876
    %v1940 = vadd.f32 %v1939, %v1877
    %v1941 = vadd.f32 %v1940, %v1878
    %v1942 = vadd.f32 %v1941, %v1879
    %v1943 = vadd.f32 %v1942, %v1880
    %v1944 = vadd.f32 %v1943, %v1881
    %v1945 = vadd.f32 %v1944, %v1882
    %v1946 = vadd.f32 %v1945, %v1883
    %v1947 = vadd.f32 %v1946, %v1884
    %v1948 = vadd.f32 %v1947, %v1885
    %v1949 = vadd.f32 %v1948, %v1886
    %v1950 = vadd.f32 %v1949, %v1887
    %v1951 = vadd.f32 %v1950, %v1888
    %v1952 = vadd.f32 %v1951, %v1889
    %v1953 = vadd.f32 %v1952, %v1890
    %v1954 = vadd.f32 %v1953, %v1891
    %v1955 = vadd.f32 %v1954, %v1892
    %v1956 = vadd.f32 %v1955, %v1893
    %v1957 = vadd.f32 %v1956, %v1894
    %v1958 = vadd.f32 %v1957, %v1895
    %v1959 = vadd.f32 %v1958, %v1896
    %v1960 = vadd.f32 %v1959, %v1897
    %v1961 = vadd.f32 %v1960, %v1898
    %v1962 = vadd.f32 %v1961, %v1899
    %v1963 = vadd.f32 %v1962, %v1900
    %v1964 = vrot.slane %v1963, 4
    %v1965 = vadd.f32 %v1963, %v1964
    %v1966 = vrot.slane %v1965, 2
    %v1967 = vadd.f32 %v1965, %v1966
    %v1968 = vrot.slane %v1967, 1
    %v1969 = vadd.f32 %v1967, %v1968
    %v1970 = vadd.f32 %v1969, 0.0
    %vm1971 = vcmask 64512
    %1972 = vst.msk [vmem:[%s2] sm:$0xff] %vm1971, %v1576
    %1973 = vst.msk [vmem:[%s2 + $0x8] sm:$0xff] %vm1971, %v1579
    %1974 = vst.msk [vmem:[%s2 + $0x10] sm:$0xff] %vm1971, %v1582
    %1975 = vst.msk [vmem:[%s2 + $0x18] sm:$0xff] %vm1971, %v1585
    %1976 = vst.msk [vmem:[%s2 + $0x20] sm:$0xff] %vm1971, %v1588
    %1977 = vst.msk [vmem:[%s2 + $0x28] sm:$0xff] %vm1971, %v1591
    %1978 = vst.msk [vmem:[%s2 + $0x30] sm:$0xff] %vm1971, %v1594
    %1979 = vst.msk [vmem:[%s2 + $0x38] sm:$0xff] %vm1971, %v1597
    %1980 = vst.msk [vmem:[%s2 + $0x40] sm:$0xff] %vm1971, %v1600
    %1981 = vst.msk [vmem:[%s2 + $0x48] sm:$0xff] %vm1971, %v1603
    %1982 = vst.msk [vmem:[%s2 + $0x50] sm:$0xff] %vm1971, %v1606
    %1983 = vst.msk [vmem:[%s2 + $0x58] sm:$0xff] %vm1971, %v1609
    %1984 = vst.msk [vmem:[%s2 + $0x60] sm:$0xff] %vm1971, %v1612
    %1985 = vst.msk [vmem:[%s2 + $0x68] sm:$0xff] %vm1971, %v1615
    %1986 = vst.msk [vmem:[%s2 + $0x70] sm:$0xff] %vm1971, %v1618
    %1987 = vst.msk [vmem:[%s2 + $0x78] sm:$0xff] %vm1971, %v1621
    %1988 = vst.msk [vmem:[%s2 + $0x80] sm:$0xff] %vm1971, %v1624
    %1989 = vst.msk [vmem:[%s2 + $0x88] sm:$0xff] %vm1971, %v1627
    %1990 = vst.msk [vmem:[%s2 + $0x90] sm:$0xff] %vm1971, %v1630
    %1991 = vst.msk [vmem:[%s2 + $0x98] sm:$0xff] %vm1971, %v1633
    %1992 = vst.msk [vmem:[%s2 + $0xa0] sm:$0xff] %vm1971, %v1636
    %1993 = vst.msk [vmem:[%s2 + $0xa8] sm:$0xff] %vm1971, %v1639
    %1994 = vst.msk [vmem:[%s2 + $0xb0] sm:$0xff] %vm1971, %v1642
    %1995 = vst.msk [vmem:[%s2 + $0xb8] sm:$0xff] %vm1971, %v1645
    %1996 = vst.msk [vmem:[%s2 + $0xc0] sm:$0xff] %vm1971, %v1648
    %1997 = vst.msk [vmem:[%s2 + $0xc8] sm:$0xff] %vm1971, %v1651
    %1998 = vst.msk [vmem:[%s2 + $0xd0] sm:$0xff] %vm1971, %v1654
    %1999 = vst.msk [vmem:[%s2 + $0xd8] sm:$0xff] %vm1971, %v1657
    %2000 = vst.msk [vmem:[%s2 + $0xe0] sm:$0xff] %vm1971, %v1660
    %2001 = vst.msk [vmem:[%s2 + $0xe8] sm:$0xff] %vm1971, %v1663
    %2002 = vst.msk [vmem:[%s2 + $0xf0] sm:$0xff] %vm1971, %v1666
    %2003 = vst.msk [vmem:[%s2 + $0xf8] sm:$0xff] %vm1971, %v1669
    %2004 = vst.msk [vmem:[%s2 + $0x100] sm:$0xff] %vm1971, %v1672
    %2005 = vst.msk [vmem:[%s2 + $0x108] sm:$0xff] %vm1971, %v1675
    %2006 = vst.msk [vmem:[%s2 + $0x110] sm:$0xff] %vm1971, %v1678
    %2007 = vst.msk [vmem:[%s2 + $0x118] sm:$0xff] %vm1971, %v1681
    %2008 = vst.msk [vmem:[%s2 + $0x120] sm:$0xff] %vm1971, %v1684
    %2009 = vst.msk [vmem:[%s2 + $0x128] sm:$0xff] %vm1971, %v1687
    %2010 = vst.msk [vmem:[%s2 + $0x130] sm:$0xff] %vm1971, %v1690
    %2011 = vst.msk [vmem:[%s2 + $0x138] sm:$0xff] %vm1971, %v1693
    %2012 = vst.msk [vmem:[%s2 + $0x140] sm:$0xff] %vm1971, %v1696
    %2013 = vst.msk [vmem:[%s2 + $0x148] sm:$0xff] %vm1971, %v1699
    %2014 = vst.msk [vmem:[%s2 + $0x150] sm:$0xff] %vm1971, %v1702
    %2015 = vst.msk [vmem:[%s2 + $0x158] sm:$0xff] %vm1971, %v1705
    %2016 = vst.msk [vmem:[%s2 + $0x160] sm:$0xff] %vm1971, %v1708
    %2017 = vst.msk [vmem:[%s2 + $0x168] sm:$0xff] %vm1971, %v1711
    %2018 = vst.msk [vmem:[%s2 + $0x170] sm:$0xff] %vm1971, %v1714
    %2019 = vst.msk [vmem:[%s2 + $0x178] sm:$0xff] %vm1971, %v1717
    %2020 = vst.msk [vmem:[%s2 + $0x180] sm:$0xff] %vm1971, %v1720
    %2021 = vst.msk [vmem:[%s2 + $0x188] sm:$0xff] %vm1971, %v1723
    %2022 = vst.msk [vmem:[%s2 + $0x190] sm:$0xff] %vm1971, %v1726
    %2023 = vst.msk [vmem:[%s2 + $0x198] sm:$0xff] %vm1971, %v1729
    %2024 = vst.msk [vmem:[%s2 + $0x1a0] sm:$0xff] %vm1971, %v1732
    %2025 = vst.msk [vmem:[%s2 + $0x1a8] sm:$0xff] %vm1971, %v1735
    %2026 = vst.msk [vmem:[%s2 + $0x1b0] sm:$0xff] %vm1971, %v1738
    %2027 = vst.msk [vmem:[%s2 + $0x1b8] sm:$0xff] %vm1971, %v1741
    %2028 = vst.msk [vmem:[%s2 + $0x1c0] sm:$0xff] %vm1971, %v1744
    %2029 = vst.msk [vmem:[%s2 + $0x1c8] sm:$0xff] %vm1971, %v1747
    %2030 = vst.msk [vmem:[%s2 + $0x1d0] sm:$0xff] %vm1971, %v1750
    %2031 = vst.msk [vmem:[%s2 + $0x1d8] sm:$0xff] %vm1971, %v1753
    %2032 = vst.msk [vmem:[%s2 + $0x1e0] sm:$0xff] %vm1971, %v1756
    %2033 = vst.msk [vmem:[%s2 + $0x1e8] sm:$0xff] %vm1971, %v1759
    %2034 = vst.msk [vmem:[%s2 + $0x1f0] sm:$0xff] %vm1971, %v1762
    %2035 = vst.msk [vmem:[%s2 + $0x1f8] sm:$0xff] %vm1971, %v1765
    %v2036 = vld [vmem:[%s0 + $0x1] sm:$0xff]
    %v2037 = vld [vmem:[%s0 + $0x9] sm:$0xff]
    %v2038 = vld [vmem:[%s0 + $0x19] sm:$0xff]
    %v2039 = vld [vmem:[%s0 + $0x21] sm:$0xff]
    %v2040 = vld [vmem:[%s0 + $0x31] sm:$0xff]
    %v2041 = vld [vmem:[%s0 + $0x39] sm:$0xff]
    %v2042 = vld [vmem:[%s0 + $0x49] sm:$0xff]
    %v2043 = vld [vmem:[%s0 + $0x51] sm:$0xff]
    %v2044 = vld [vmem:[%s0 + $0x61] sm:$0xff]
    %v2045 = vld [vmem:[%s0 + $0x69] sm:$0xff]
    %v2046 = vld [vmem:[%s0 + $0x79] sm:$0xff]
    %v2047 = vld [vmem:[%s0 + $0x81] sm:$0xff]
    %v2048 = vld [vmem:[%s0 + $0x91] sm:$0xff]
    %v2049 = vld [vmem:[%s0 + $0x99] sm:$0xff]
    %v2050 = vld [vmem:[%s0 + $0xa9] sm:$0xff]
    %v2051 = vld [vmem:[%s0 + $0xb1] sm:$0xff]
    %v2052 = vld [vmem:[%s0 + $0xc1] sm:$0xff]
    %v2053 = vld [vmem:[%s0 + $0xc9] sm:$0xff]
    %v2054 = vld [vmem:[%s0 + $0xd9] sm:$0xff]
    %v2055 = vld [vmem:[%s0 + $0xe1] sm:$0xff]
    %v2056 = vld [vmem:[%s0 + $0xf1] sm:$0xff]
    %v2057 = vld [vmem:[%s0 + $0xf9] sm:$0xff]
    %v2058 = vld [vmem:[%s0 + $0x109] sm:$0xff]
    %v2059 = vld [vmem:[%s0 + $0x111] sm:$0xff]
    %v2060 = vld [vmem:[%s0 + $0x121] sm:$0xff]
    %v2061 = vld [vmem:[%s0 + $0x129] sm:$0xff]
    %v2062 = vld [vmem:[%s0 + $0x139] sm:$0xff]
    %v2063 = vld [vmem:[%s0 + $0x141] sm:$0xff]
    %v2064 = vld [vmem:[%s0 + $0x151] sm:$0xff]
    %v2065 = vld [vmem:[%s0 + $0x159] sm:$0xff]
    %v2066 = vld [vmem:[%s0 + $0x169] sm:$0xff]
    %v2067 = vld [vmem:[%s0 + $0x171] sm:$0xff]
    %v2068 = vld [vmem:[%s0 + $0x1b1] sm:$0xff]
    %v2069 = vld [vmem:[%s0 + $0x1b9] sm:$0xff]
    %v2070 = vld [vmem:[%s0 + $0x1c9] sm:$0xff]
    %v2071 = vld [vmem:[%s0 + $0x1d1] sm:$0xff]
    %v2072 = vld [vmem:[%s0 + $0x1e1] sm:$0xff]
    %v2073 = vld [vmem:[%s0 + $0x1e9] sm:$0xff]
    %v2074 = vld [vmem:[%s0 + $0x1f9] sm:$0xff]
    %v2075 = vld [vmem:[%s0 + $0x201] sm:$0xff]
    %v2076 = vld [vmem:[%s0 + $0x211] sm:$0xff]
    %v2077 = vld [vmem:[%s0 + $0x219] sm:$0xff]
    %v2078 = vld [vmem:[%s0 + $0x229] sm:$0xff]
    %v2079 = vld [vmem:[%s0 + $0x231] sm:$0xff]
    %v2080 = vld [vmem:[%s0 + $0x241] sm:$0xff]
    %v2081 = vld [vmem:[%s0 + $0x249] sm:$0xff]
    %v2082 = vld [vmem:[%s0 + $0x259] sm:$0xff]
    %v2083 = vld [vmem:[%s0 + $0x261] sm:$0xff]
    %v2084 = vld [vmem:[%s0 + $0x271] sm:$0xff]
    %v2085 = vld [vmem:[%s0 + $0x279] sm:$0xff]
    %v2086 = vld [vmem:[%s0 + $0x289] sm:$0xff]
    %v2087 = vld [vmem:[%s0 + $0x291] sm:$0xff]
    %v2088 = vld [vmem:[%s0 + $0x2a1] sm:$0xff]
    %v2089 = vld [vmem:[%s0 + $0x2a9] sm:$0xff]
    %v2090 = vld [vmem:[%s0 + $0x2b9] sm:$0xff]
    %v2091 = vld [vmem:[%s0 + $0x2c1] sm:$0xff]
    %v2092 = vld [vmem:[%s0 + $0x2d1] sm:$0xff]
    %v2093 = vld [vmem:[%s0 + $0x2d9] sm:$0xff]
    %v2094 = vld [vmem:[%s0 + $0x2e9] sm:$0xff]
    %v2095 = vld [vmem:[%s0 + $0x2f1] sm:$0xff]
    %v2096 = vld [vmem:[%s0 + $0x301] sm:$0xff]
    %v2097 = vld [vmem:[%s0 + $0x309] sm:$0xff]
    %v2098 = vld [vmem:[%s0 + $0x319] sm:$0xff]
    %v2099 = vld [vmem:[%s0 + $0x321] sm:$0xff]
    %2100 = vst.msk [vmem:[#allocation2] sm:$0xff] %vm78, %v2036
    %2101 = vst.msk [vmem:[#allocation2 + $0x8] sm:$0xff] %vm78, %v2037
    %2102 = vst.msk [vmem:[#allocation2 + $0x10] sm:$0xff] %vm78, %v2038
    %2103 = vst.msk [vmem:[#allocation2 + $0x18] sm:$0xff] %vm78, %v2039
    %2104 = vst.msk [vmem:[#allocation2 + $0x20] sm:$0xff] %vm78, %v2040
    %2105 = vst.msk [vmem:[#allocation2 + $0x28] sm:$0xff] %vm78, %v2041
    %2106 = vst.msk [vmem:[#allocation2 + $0x30] sm:$0xff] %vm78, %v2042
    %2107 = vst.msk [vmem:[#allocation2 + $0x38] sm:$0xff] %vm78, %v2043
    %2108 = vst.msk [vmem:[#allocation2 + $0x40] sm:$0xff] %vm78, %v2044
    %2109 = vst.msk [vmem:[#allocation2 + $0x48] sm:$0xff] %vm78, %v2045
    %2110 = vst.msk [vmem:[#allocation2 + $0x50] sm:$0xff] %vm78, %v2046
    %2111 = vst.msk [vmem:[#allocation2 + $0x58] sm:$0xff] %vm78, %v2047
    %2112 = vst.msk [vmem:[#allocation2 + $0x60] sm:$0xff] %vm78, %v2048
    %2113 = vst.msk [vmem:[#allocation2 + $0x68] sm:$0xff] %vm78, %v2049
    %2114 = vst.msk [vmem:[#allocation2 + $0x70] sm:$0xff] %vm78, %v2050
    %2115 = vst.msk [vmem:[#allocation2 + $0x78] sm:$0xff] %vm78, %v2051
    %2116 = vst.msk [vmem:[#allocation2 + $0x80] sm:$0xff] %vm78, %v2052
    %2117 = vst.msk [vmem:[#allocation2 + $0x88] sm:$0xff] %vm78, %v2053
    %2118 = vst.msk [vmem:[#allocation2 + $0x90] sm:$0xff] %vm78, %v2054
    %2119 = vst.msk [vmem:[#allocation2 + $0x98] sm:$0xff] %vm78, %v2055
    %2120 = vst.msk [vmem:[#allocation2 + $0xa0] sm:$0xff] %vm78, %v2056
    %2121 = vst.msk [vmem:[#allocation2 + $0xa8] sm:$0xff] %vm78, %v2057
    %2122 = vst.msk [vmem:[#allocation2 + $0xb0] sm:$0xff] %vm78, %v2058
    %2123 = vst.msk [vmem:[#allocation2 + $0xb8] sm:$0xff] %vm78, %v2059
    %2124 = vst.msk [vmem:[#allocation2 + $0xc0] sm:$0xff] %vm78, %v2060
    %2125 = vst.msk [vmem:[#allocation2 + $0xc8] sm:$0xff] %vm78, %v2061
    %2126 = vst.msk [vmem:[#allocation2 + $0xd0] sm:$0xff] %vm78, %v2062
    %2127 = vst.msk [vmem:[#allocation2 + $0xd8] sm:$0xff] %vm78, %v2063
    %2128 = vst.msk [vmem:[#allocation2 + $0xe0] sm:$0xff] %vm78, %v2064
    %2129 = vst.msk [vmem:[#allocation2 + $0xe8] sm:$0xff] %vm78, %v2065
    %2130 = vst.msk [vmem:[#allocation2 + $0xf0] sm:$0xff] %vm78, %v2066
    %2131 = vst.msk [vmem:[#allocation2 + $0xf8] sm:$0xff] %vm78, %v2067
    %2132 = vst.msk [vmem:[#allocation2 + $0x100] sm:$0xff] %vm78, %v2068
    %2133 = vst.msk [vmem:[#allocation2 + $0x108] sm:$0xff] %vm78, %v2069
    %2134 = vst.msk [vmem:[#allocation2 + $0x110] sm:$0xff] %vm78, %v2070
    %2135 = vst.msk [vmem:[#allocation2 + $0x118] sm:$0xff] %vm78, %v2071
    %2136 = vst.msk [vmem:[#allocation2 + $0x120] sm:$0xff] %vm78, %v2072
    %2137 = vst.msk [vmem:[#allocation2 + $0x128] sm:$0xff] %vm78, %v2073
    %2138 = vst.msk [vmem:[#allocation2 + $0x130] sm:$0xff] %vm78, %v2074
    %2139 = vst.msk [vmem:[#allocation2 + $0x138] sm:$0xff] %vm78, %v2075
    %2140 = vst.msk [vmem:[#allocation2 + $0x140] sm:$0xff] %vm78, %v2076
    %2141 = vst.msk [vmem:[#allocation2 + $0x148] sm:$0xff] %vm78, %v2077
    %2142 = vst.msk [vmem:[#allocation2 + $0x150] sm:$0xff] %vm78, %v2078
    %2143 = vst.msk [vmem:[#allocation2 + $0x158] sm:$0xff] %vm78, %v2079
    %2144 = vst.msk [vmem:[#allocation2 + $0x160] sm:$0xff] %vm78, %v2080
    %2145 = vst.msk [vmem:[#allocation2 + $0x168] sm:$0xff] %vm78, %v2081
    %2146 = vst.msk [vmem:[#allocation2 + $0x170] sm:$0xff] %vm78, %v2082
    %2147 = vst.msk [vmem:[#allocation2 + $0x178] sm:$0xff] %vm78, %v2083
    %2148 = vst.msk [vmem:[#allocation2 + $0x180] sm:$0xff] %vm78, %v2084
    %2149 = vst.msk [vmem:[#allocation2 + $0x188] sm:$0xff] %vm78, %v2085
    %2150 = vst.msk [vmem:[#allocation2 + $0x190] sm:$0xff] %vm78, %v2086
    %2151 = vst.msk [vmem:[#allocation2 + $0x198] sm:$0xff] %vm78, %v2087
    %2152 = vst.msk [vmem:[#allocation2 + $0x1a0] sm:$0xff] %vm78, %v2088
    %2153 = vst.msk [vmem:[#allocation2 + $0x1a8] sm:$0xff] %vm78, %v2089
    %2154 = vst.msk [vmem:[#allocation2 + $0x1b0] sm:$0xff] %vm78, %v2090
    %2155 = vst.msk [vmem:[#allocation2 + $0x1b8] sm:$0xff] %vm78, %v2091
    %2156 = vst.msk [vmem:[#allocation2 + $0x1c0] sm:$0xff] %vm78, %v2092
    %2157 = vst.msk [vmem:[#allocation2 + $0x1c8] sm:$0xff] %vm78, %v2093
    %2158 = vst.msk [vmem:[#allocation2 + $0x1d0] sm:$0xff] %vm78, %v2094
    %2159 = vst.msk [vmem:[#allocation2 + $0x1d8] sm:$0xff] %vm78, %v2095
    %2160 = vst.msk [vmem:[#allocation2 + $0x1e0] sm:$0xff] %vm78, %v2096
    %2161 = vst.msk [vmem:[#allocation2 + $0x1e8] sm:$0xff] %vm78, %v2097
    %2162 = vst.msk [vmem:[#allocation2 + $0x1f0] sm:$0xff] %vm78, %v2098
    %2163 = vst.msk [vmem:[#allocation2 + $0x1f8] sm:$0xff] %vm78, %v2099
    %v2164 = vld [vmem:[%s0 + $0x2] sm:$0xff]
    %v2165 = vld [vmem:[%s0 + $0xa] sm:$0xff]
    %v2166 = vld [vmem:[%s0 + $0x1a] sm:$0xff]
    %v2167 = vld [vmem:[%s0 + $0x22] sm:$0xff]
    %v2168 = vld [vmem:[%s0 + $0x32] sm:$0xff]
    %v2169 = vld [vmem:[%s0 + $0x3a] sm:$0xff]
    %v2170 = vld [vmem:[%s0 + $0x4a] sm:$0xff]
    %v2171 = vld [vmem:[%s0 + $0x52] sm:$0xff]
    %v2172 = vld [vmem:[%s0 + $0x62] sm:$0xff]
    %v2173 = vld [vmem:[%s0 + $0x6a] sm:$0xff]
    %v2174 = vld [vmem:[%s0 + $0x7a] sm:$0xff]
    %v2175 = vld [vmem:[%s0 + $0x82] sm:$0xff]
    %v2176 = vld [vmem:[%s0 + $0x92] sm:$0xff]
    %v2177 = vld [vmem:[%s0 + $0x9a] sm:$0xff]
    %v2178 = vld [vmem:[%s0 + $0xaa] sm:$0xff]
    %v2179 = vld [vmem:[%s0 + $0xb2] sm:$0xff]
    %v2180 = vld [vmem:[%s0 + $0xc2] sm:$0xff]
    %v2181 = vld [vmem:[%s0 + $0xca] sm:$0xff]
    %v2182 = vld [vmem:[%s0 + $0xda] sm:$0xff]
    %v2183 = vld [vmem:[%s0 + $0xe2] sm:$0xff]
    %v2184 = vld [vmem:[%s0 + $0xf2] sm:$0xff]
    %v2185 = vld [vmem:[%s0 + $0xfa] sm:$0xff]
    %v2186 = vld [vmem:[%s0 + $0x10a] sm:$0xff]
    %v2187 = vld [vmem:[%s0 + $0x112] sm:$0xff]
    %v2188 = vld [vmem:[%s0 + $0x122] sm:$0xff]
    %v2189 = vld [vmem:[%s0 + $0x12a] sm:$0xff]
    %v2190 = vld [vmem:[%s0 + $0x13a] sm:$0xff]
    %v2191 = vld [vmem:[%s0 + $0x142] sm:$0xff]
    %v2192 = vld [vmem:[%s0 + $0x152] sm:$0xff]
    %v2193 = vld [vmem:[%s0 + $0x15a] sm:$0xff]
    %v2194 = vld [vmem:[%s0 + $0x16a] sm:$0xff]
    %v2195 = vld [vmem:[%s0 + $0x172] sm:$0xff]
    %v2196 = vld [vmem:[%s0 + $0x1b2] sm:$0xff]
    %v2197 = vld [vmem:[%s0 + $0x1ba] sm:$0xff]
    %v2198 = vld [vmem:[%s0 + $0x1ca] sm:$0xff]
    %v2199 = vld [vmem:[%s0 + $0x1d2] sm:$0xff]
    %v2200 = vld [vmem:[%s0 + $0x1e2] sm:$0xff]
    %v2201 = vld [vmem:[%s0 + $0x1ea] sm:$0xff]
    %v2202 = vld [vmem:[%s0 + $0x1fa] sm:$0xff]
    %v2203 = vld [vmem:[%s0 + $0x202] sm:$0xff]
    %v2204 = vld [vmem:[%s0 + $0x212] sm:$0xff]
    %v2205 = vld [vmem:[%s0 + $0x21a] sm:$0xff]
    %v2206 = vld [vmem:[%s0 + $0x22a] sm:$0xff]
    %v2207 = vld [vmem:[%s0 + $0x232] sm:$0xff]
    %v2208 = vld [vmem:[%s0 + $0x242] sm:$0xff]
    %v2209 = vld [vmem:[%s0 + $0x24a] sm:$0xff]
    %v2210 = vld [vmem:[%s0 + $0x25a] sm:$0xff]
    %v2211 = vld [vmem:[%s0 + $0x262] sm:$0xff]
    %v2212 = vld [vmem:[%s0 + $0x272] sm:$0xff]
    %v2213 = vld [vmem:[%s0 + $0x27a] sm:$0xff]
    %v2214 = vld [vmem:[%s0 + $0x28a] sm:$0xff]
    %v2215 = vld [vmem:[%s0 + $0x292] sm:$0xff]
    %v2216 = vld [vmem:[%s0 + $0x2a2] sm:$0xff]
    %v2217 = vld [vmem:[%s0 + $0x2aa] sm:$0xff]
    %v2218 = vld [vmem:[%s0 + $0x2ba] sm:$0xff]
    %v2219 = vld [vmem:[%s0 + $0x2c2] sm:$0xff]
    %v2220 = vld [vmem:[%s0 + $0x2d2] sm:$0xff]
    %v2221 = vld [vmem:[%s0 + $0x2da] sm:$0xff]
    %v2222 = vld [vmem:[%s0 + $0x2ea] sm:$0xff]
    %v2223 = vld [vmem:[%s0 + $0x2f2] sm:$0xff]
    %v2224 = vld [vmem:[%s0 + $0x302] sm:$0xff]
    %v2225 = vld [vmem:[%s0 + $0x30a] sm:$0xff]
    %v2226 = vld [vmem:[%s0 + $0x31a] sm:$0xff]
    %v2227 = vld [vmem:[%s0 + $0x322] sm:$0xff]
    %2292 = vrot.lane.b32.xlu0 %v2164, 4
    %v2293 = vpop.permute.xlu0 %2292
    %2294 = vrot.lane.b32.xlu0 %v2165, 4
    %v2295 = vpop.permute.xlu0 %2294
    %2296 = vrot.lane.b32.xlu0 %v2166, 4
    %v2297 = vpop.permute.xlu0 %2296
    %2298 = vrot.lane.b32.xlu0 %v2167, 4
    %v2299 = vpop.permute.xlu0 %2298
    %2300 = vrot.lane.b32.xlu0 %v2168, 4
    %v2301 = vpop.permute.xlu0 %2300
    %2302 = vrot.lane.b32.xlu0 %v2169, 4
    %v2303 = vpop.permute.xlu0 %2302
    %2304 = vrot.lane.b32.xlu0 %v2170, 4
    %v2305 = vpop.permute.xlu0 %2304
    %2306 = vrot.lane.b32.xlu0 %v2171, 4
    %v2307 = vpop.permute.xlu0 %2306
    %2308 = vrot.lane.b32.xlu0 %v2172, 4
    %v2309 = vpop.permute.xlu0 %2308
    %2310 = vrot.lane.b32.xlu0 %v2173, 4
    %v2311 = vpop.permute.xlu0 %2310
    %2312 = vrot.lane.b32.xlu0 %v2174, 4
    %v2313 = vpop.permute.xlu0 %2312
    %2314 = vrot.lane.b32.xlu0 %v2175, 4
    %v2315 = vpop.permute.xlu0 %2314
    %2316 = vrot.lane.b32.xlu0 %v2176, 4
    %v2317 = vpop.permute.xlu0 %2316
    %2318 = vrot.lane.b32.xlu0 %v2177, 4
    %v2319 = vpop.permute.xlu0 %2318
    %2320 = vrot.lane.b32.xlu0 %v2178, 4
    %v2321 = vpop.permute.xlu0 %2320
    %2322 = vrot.lane.b32.xlu0 %v2179, 4
    %v2323 = vpop.permute.xlu0 %2322
    %2324 = vrot.lane.b32.xlu0 %v2180, 4
    %v2325 = vpop.permute.xlu0 %2324
    %2326 = vrot.lane.b32.xlu0 %v2181, 4
    %v2327 = vpop.permute.xlu0 %2326
    %2328 = vrot.lane.b32.xlu0 %v2182, 4
    %v2329 = vpop.permute.xlu0 %2328
    %2330 = vrot.lane.b32.xlu0 %v2183, 4
    %v2331 = vpop.permute.xlu0 %2330
    %2332 = vrot.lane.b32.xlu0 %v2184, 4
    %v2333 = vpop.permute.xlu0 %2332
    %2334 = vrot.lane.b32.xlu0 %v2185, 4
    %v2335 = vpop.permute.xlu0 %2334
    %2336 = vrot.lane.b32.xlu0 %v2186, 4
    %v2337 = vpop.permute.xlu0 %2336
    %2338 = vrot.lane.b32.xlu0 %v2187, 4
    %v2339 = vpop.permute.xlu0 %2338
    %2340 = vrot.lane.b32.xlu0 %v2188, 4
    %v2341 = vpop.permute.xlu0 %2340
    %2342 = vrot.lane.b32.xlu0 %v2189, 4
    %v2343 = vpop.permute.xlu0 %2342
    %2344 = vrot.lane.b32.xlu0 %v2190, 4
    %v2345 = vpop.permute.xlu0 %2344
    %2346 = vrot.lane.b32.xlu0 %v2191, 4
    %v2347 = vpop.permute.xlu0 %2346
    %2348 = vrot.lane.b32.xlu0 %v2192, 4
    %v2349 = vpop.permute.xlu0 %2348
    %2350 = vrot.lane.b32.xlu0 %v2193, 4
    %v2351 = vpop.permute.xlu0 %2350
    %2352 = vrot.lane.b32.xlu0 %v2194, 4
    %v2353 = vpop.permute.xlu0 %2352
    %2354 = vrot.lane.b32.xlu0 %v2195, 4
    %v2355 = vpop.permute.xlu0 %2354
    %2356 = vrot.lane.b32.xlu0 %v2196, 4
    %v2357 = vpop.permute.xlu0 %2356
    %2358 = vrot.lane.b32.xlu0 %v2197, 4
    %v2359 = vpop.permute.xlu0 %2358
    %2360 = vrot.lane.b32.xlu0 %v2198, 4
    %v2361 = vpop.permute.xlu0 %2360
    %2362 = vrot.lane.b32.xlu0 %v2199, 4
    %v2363 = vpop.permute.xlu0 %2362
    %2364 = vrot.lane.b32.xlu0 %v2200, 4
    %v2365 = vpop.permute.xlu0 %2364
    %2366 = vrot.lane.b32.xlu0 %v2201, 4
    %v2367 = vpop.permute.xlu0 %2366
    %2368 = vrot.lane.b32.xlu0 %v2202, 4
    %v2369 = vpop.permute.xlu0 %2368
    %2370 = vrot.lane.b32.xlu0 %v2203, 4
    %v2371 = vpop.permute.xlu0 %2370
    %2372 = vrot.lane.b32.xlu0 %v2204, 4
    %v2373 = vpop.permute.xlu0 %2372
    %2374 = vrot.lane.b32.xlu0 %v2205, 4
    %v2375 = vpop.permute.xlu0 %2374
    %2376 = vrot.lane.b32.xlu0 %v2206, 4
    %v2377 = vpop.permute.xlu0 %2376
    %2378 = vrot.lane.b32.xlu0 %v2207, 4
    %v2379 = vpop.permute.xlu0 %2378
    %2380 = vrot.lane.b32.xlu0 %v2208, 4
    %v2381 = vpop.permute.xlu0 %2380
    %2382 = vrot.lane.b32.xlu0 %v2209, 4
    %v2383 = vpop.permute.xlu0 %2382
    %2384 = vrot.lane.b32.xlu0 %v2210, 4
    %v2385 = vpop.permute.xlu0 %2384
    %2386 = vrot.lane.b32.xlu0 %v2211, 4
    %v2387 = vpop.permute.xlu0 %2386
    %2388 = vrot.lane.b32.xlu0 %v2212, 4
    %v2389 = vpop.permute.xlu0 %2388
    %2390 = vrot.lane.b32.xlu0 %v2213, 4
    %v2391 = vpop.permute.xlu0 %2390
    %2392 = vrot.lane.b32.xlu0 %v2214, 4
    %v2393 = vpop.permute.xlu0 %2392
    %2394 = vrot.lane.b32.xlu0 %v2215, 4
    %v2395 = vpop.permute.xlu0 %2394
    %2396 = vrot.lane.b32.xlu0 %v2216, 4
    %v2397 = vpop.permute.xlu0 %2396
    %2398 = vrot.lane.b32.xlu0 %v2217, 4
    %v2399 = vpop.permute.xlu0 %2398
    %2400 = vrot.lane.b32.xlu0 %v2218, 4
    %v2401 = vpop.permute.xlu0 %2400
    %2402 = vrot.lane.b32.xlu0 %v2219, 4
    %v2403 = vpop.permute.xlu0 %2402
    %2404 = vrot.lane.b32.xlu0 %v2220, 4
    %v2405 = vpop.permute.xlu0 %2404
    %2406 = vrot.lane.b32.xlu0 %v2221, 4
    %v2407 = vpop.permute.xlu0 %2406
    %2408 = vrot.lane.b32.xlu0 %v2222, 4
    %v2409 = vpop.permute.xlu0 %2408
    %2410 = vrot.lane.b32.xlu0 %v2223, 4
    %v2411 = vpop.permute.xlu0 %2410
    %2412 = vrot.lane.b32.xlu0 %v2224, 4
    %v2413 = vpop.permute.xlu0 %2412
    %2414 = vrot.lane.b32.xlu0 %v2225, 4
    %v2415 = vpop.permute.xlu0 %2414
    %2416 = vrot.lane.b32.xlu0 %v2226, 4
    %v2417 = vpop.permute.xlu0 %2416
    %2418 = vrot.lane.b32.xlu0 %v2227, 4
    %v2419 = vpop.permute.xlu0 %2418
    %2484 = vst.msk [vmem:[#allocation2] sm:$0xff] %vm463, %v2293
    %2485 = vst.msk [vmem:[#allocation2 + $0x8] sm:$0xff] %vm463, %v2295
    %2486 = vst.msk [vmem:[#allocation2 + $0x10] sm:$0xff] %vm463, %v2297
    %2487 = vst.msk [vmem:[#allocation2 + $0x18] sm:$0xff] %vm463, %v2299
    %2488 = vst.msk [vmem:[#allocation2 + $0x20] sm:$0xff] %vm463, %v2301
    %2489 = vst.msk [vmem:[#allocation2 + $0x28] sm:$0xff] %vm463, %v2303
    %2490 = vst.msk [vmem:[#allocation2 + $0x30] sm:$0xff] %vm463, %v2305
    %2491 = vst.msk [vmem:[#allocation2 + $0x38] sm:$0xff] %vm463, %v2307
    %2492 = vst.msk [vmem:[#allocation2 + $0x40] sm:$0xff] %vm463, %v2309
    %2493 = vst.msk [vmem:[#allocation2 + $0x48] sm:$0xff] %vm463, %v2311
    %2494 = vst.msk [vmem:[#allocation2 + $0x50] sm:$0xff] %vm463, %v2313
    %2495 = vst.msk [vmem:[#allocation2 + $0x58] sm:$0xff] %vm463, %v2315
    %2496 = vst.msk [vmem:[#allocation2 + $0x60] sm:$0xff] %vm463, %v2317
    %2497 = vst.msk [vmem:[#allocation2 + $0x68] sm:$0xff] %vm463, %v2319
    %2498 = vst.msk [vmem:[#allocation2 + $0x70] sm:$0xff] %vm463, %v2321
    %2499 = vst.msk [vmem:[#allocation2 + $0x78] sm:$0xff] %vm463, %v2323
    %2500 = vst.msk [vmem:[#allocation2 + $0x80] sm:$0xff] %vm463, %v2325
    %2501 = vst.msk [vmem:[#allocation2 + $0x88] sm:$0xff] %vm463, %v2327
    %2502 = vst.msk [vmem:[#allocation2 + $0x90] sm:$0xff] %vm463, %v2329
    %2503 = vst.msk [vmem:[#allocation2 + $0x98] sm:$0xff] %vm463, %v2331
    %2504 = vst.msk [vmem:[#allocation2 + $0xa0] sm:$0xff] %vm463, %v2333
    %2505 = vst.msk [vmem:[#allocation2 + $0xa8] sm:$0xff] %vm463, %v2335
    %2506 = vst.msk [vmem:[#allocation2 + $0xb0] sm:$0xff] %vm463, %v2337
    %2507 = vst.msk [vmem:[#allocation2 + $0xb8] sm:$0xff] %vm463, %v2339
    %2508 = vst.msk [vmem:[#allocation2 + $0xc0] sm:$0xff] %vm463, %v2341
    %2509 = vst.msk [vmem:[#allocation2 + $0xc8] sm:$0xff] %vm463, %v2343
    %2510 = vst.msk [vmem:[#allocation2 + $0xd0] sm:$0xff] %vm463, %v2345
    %2511 = vst.msk [vmem:[#allocation2 + $0xd8] sm:$0xff] %vm463, %v2347
    %2512 = vst.msk [vmem:[#allocation2 + $0xe0] sm:$0xff] %vm463, %v2349
    %2513 = vst.msk [vmem:[#allocation2 + $0xe8] sm:$0xff] %vm463, %v2351
    %2514 = vst.msk [vmem:[#allocation2 + $0xf0] sm:$0xff] %vm463, %v2353
    %2515 = vst.msk [vmem:[#allocation2 + $0xf8] sm:$0xff] %vm463, %v2355
    %2516 = vst.msk [vmem:[#allocation2 + $0x100] sm:$0xff] %vm463, %v2357
    %2517 = vst.msk [vmem:[#allocation2 + $0x108] sm:$0xff] %vm463, %v2359
    %2518 = vst.msk [vmem:[#allocation2 + $0x110] sm:$0xff] %vm463, %v2361
    %2519 = vst.msk [vmem:[#allocation2 + $0x118] sm:$0xff] %vm463, %v2363
    %2520 = vst.msk [vmem:[#allocation2 + $0x120] sm:$0xff] %vm463, %v2365
    %2521 = vst.msk [vmem:[#allocation2 + $0x128] sm:$0xff] %vm463, %v2367
    %2522 = vst.msk [vmem:[#allocation2 + $0x130] sm:$0xff] %vm463, %v2369
    %2523 = vst.msk [vmem:[#allocation2 + $0x138] sm:$0xff] %vm463, %v2371
    %2524 = vst.msk [vmem:[#allocation2 + $0x140] sm:$0xff] %vm463, %v2373
    %2525 = vst.msk [vmem:[#allocation2 + $0x148] sm:$0xff] %vm463, %v2375
    %2526 = vst.msk [vmem:[#allocation2 + $0x150] sm:$0xff] %vm463, %v2377
    %2527 = vst.msk [vmem:[#allocation2 + $0x158] sm:$0xff] %vm463, %v2379
    %2528 = vst.msk [vmem:[#allocation2 + $0x160] sm:$0xff] %vm463, %v2381
    %2529 = vst.msk [vmem:[#allocation2 + $0x168] sm:$0xff] %vm463, %v2383
    %2530 = vst.msk [vmem:[#allocation2 + $0x170] sm:$0xff] %vm463, %v2385
    %2531 = vst.msk [vmem:[#allocation2 + $0x178] sm:$0xff] %vm463, %v2387
    %2532 = vst.msk [vmem:[#allocation2 + $0x180] sm:$0xff] %vm463, %v2389
    %2533 = vst.msk [vmem:[#allocation2 + $0x188] sm:$0xff] %vm463, %v2391
    %2534 = vst.msk [vmem:[#allocation2 + $0x190] sm:$0xff] %vm463, %v2393
    %2535 = vst.msk [vmem:[#allocation2 + $0x198] sm:$0xff] %vm463, %v2395
    %2536 = vst.msk [vmem:[#allocation2 + $0x1a0] sm:$0xff] %vm463, %v2397
    %2537 = vst.msk [vmem:[#allocation2 + $0x1a8] sm:$0xff] %vm463, %v2399
    %2538 = vst.msk [vmem:[#allocation2 + $0x1b0] sm:$0xff] %vm463, %v2401
    %2539 = vst.msk [vmem:[#allocation2 + $0x1b8] sm:$0xff] %vm463, %v2403
    %2540 = vst.msk [vmem:[#allocation2 + $0x1c0] sm:$0xff] %vm463, %v2405
    %2541 = vst.msk [vmem:[#allocation2 + $0x1c8] sm:$0xff] %vm463, %v2407
    %2542 = vst.msk [vmem:[#allocation2 + $0x1d0] sm:$0xff] %vm463, %v2409
    %2543 = vst.msk [vmem:[#allocation2 + $0x1d8] sm:$0xff] %vm463, %v2411
    %2544 = vst.msk [vmem:[#allocation2 + $0x1e0] sm:$0xff] %vm463, %v2413
    %2545 = vst.msk [vmem:[#allocation2 + $0x1e8] sm:$0xff] %vm463, %v2415
    %2546 = vst.msk [vmem:[#allocation2 + $0x1f0] sm:$0xff] %vm463, %v2417
    %2547 = vst.msk [vmem:[#allocation2 + $0x1f8] sm:$0xff] %vm463, %v2419
    %v2548 = vld [vmem:[%s528 + $0x1] sm:$0xff]
    %v2549 = vld [vmem:[%s528 + $0x9] sm:$0xff]
    %v2550 = vld [vmem:[%s528 + $0x19] sm:$0xff]
    %v2551 = vld [vmem:[%s528 + $0x21] sm:$0xff]
    %v2552 = vld [vmem:[%s528 + $0x31] sm:$0xff]
    %v2553 = vld [vmem:[%s528 + $0x39] sm:$0xff]
    %v2554 = vld [vmem:[%s528 + $0x49] sm:$0xff]
    %v2555 = vld [vmem:[%s528 + $0x51] sm:$0xff]
    %v2556 = vld [vmem:[%s528 + $0x61] sm:$0xff]
    %v2557 = vld [vmem:[%s528 + $0x69] sm:$0xff]
    %v2558 = vld [vmem:[%s528 + $0x79] sm:$0xff]
    %v2559 = vld [vmem:[%s528 + $0x81] sm:$0xff]
    %v2560 = vld [vmem:[%s528 + $0x91] sm:$0xff]
    %v2561 = vld [vmem:[%s528 + $0x99] sm:$0xff]
    %v2562 = vld [vmem:[%s528 + $0xa9] sm:$0xff]
    %v2563 = vld [vmem:[%s528 + $0xb1] sm:$0xff]
    %v2564 = vld [vmem:[%s528 + $0xc1] sm:$0xff]
    %v2565 = vld [vmem:[%s528 + $0xc9] sm:$0xff]
    %v2566 = vld [vmem:[%s528 + $0xd9] sm:$0xff]
    %v2567 = vld [vmem:[%s528 + $0xe1] sm:$0xff]
    %v2568 = vld [vmem:[%s528 + $0xf1] sm:$0xff]
    %v2569 = vld [vmem:[%s528 + $0xf9] sm:$0xff]
    %v2570 = vld [vmem:[%s528 + $0x109] sm:$0xff]
    %v2571 = vld [vmem:[%s528 + $0x111] sm:$0xff]
    %v2572 = vld [vmem:[%s528 + $0x121] sm:$0xff]
    %v2573 = vld [vmem:[%s528 + $0x129] sm:$0xff]
    %v2574 = vld [vmem:[%s528 + $0x139] sm:$0xff]
    %v2575 = vld [vmem:[%s528 + $0x141] sm:$0xff]
    %v2576 = vld [vmem:[%s528 + $0x151] sm:$0xff]
    %v2577 = vld [vmem:[%s528 + $0x159] sm:$0xff]
    %v2578 = vld [vmem:[%s528 + $0x169] sm:$0xff]
    %v2579 = vld [vmem:[%s528 + $0x171] sm:$0xff]
    %v2580 = vld [vmem:[%s528 + $0x1b1] sm:$0xff]
    %v2581 = vld [vmem:[%s528 + $0x1b9] sm:$0xff]
    %v2582 = vld [vmem:[%s528 + $0x1c9] sm:$0xff]
    %v2583 = vld [vmem:[%s528 + $0x1d1] sm:$0xff]
    %v2584 = vld [vmem:[%s528 + $0x1e1] sm:$0xff]
    %v2585 = vld [vmem:[%s528 + $0x1e9] sm:$0xff]
    %v2586 = vld [vmem:[%s528 + $0x1f9] sm:$0xff]
    %v2587 = vld [vmem:[%s528 + $0x201] sm:$0xff]
    %v2588 = vld [vmem:[%s528 + $0x211] sm:$0xff]
    %v2589 = vld [vmem:[%s528 + $0x219] sm:$0xff]
    %v2590 = vld [vmem:[%s528 + $0x229] sm:$0xff]
    %v2591 = vld [vmem:[%s528 + $0x231] sm:$0xff]
    %v2592 = vld [vmem:[%s528 + $0x241] sm:$0xff]
    %v2593 = vld [vmem:[%s528 + $0x249] sm:$0xff]
    %v2594 = vld [vmem:[%s528 + $0x259] sm:$0xff]
    %v2595 = vld [vmem:[%s528 + $0x261] sm:$0xff]
    %v2596 = vld [vmem:[%s528 + $0x271] sm:$0xff]
    %v2597 = vld [vmem:[%s528 + $0x279] sm:$0xff]
    %v2598 = vld [vmem:[%s528 + $0x289] sm:$0xff]
    %v2599 = vld [vmem:[%s528 + $0x291] sm:$0xff]
    %v2600 = vld [vmem:[%s528 + $0x2a1] sm:$0xff]
    %v2601 = vld [vmem:[%s528 + $0x2a9] sm:$0xff]
    %v2602 = vld [vmem:[%s528 + $0x2b9] sm:$0xff]
    %v2603 = vld [vmem:[%s528 + $0x2c1] sm:$0xff]
    %v2604 = vld [vmem:[%s528 + $0x2d1] sm:$0xff]
    %v2605 = vld [vmem:[%s528 + $0x2d9] sm:$0xff]
    %v2606 = vld [vmem:[%s528 + $0x2e9] sm:$0xff]
    %v2607 = vld [vmem:[%s528 + $0x2f1] sm:$0xff]
    %v2608 = vld [vmem:[%s528 + $0x301] sm:$0xff]
    %v2609 = vld [vmem:[%s528 + $0x309] sm:$0xff]
    %v2610 = vld [vmem:[%s528 + $0x319] sm:$0xff]
    %v2611 = vld [vmem:[%s528 + $0x321] sm:$0xff]
    %2676 = vrot.lane.b32.xlu0 %v2548, 8
    %v2677 = vpop.permute.xlu0 %2676
    %2678 = vrot.lane.b32.xlu0 %v2549, 8
    %v2679 = vpop.permute.xlu0 %2678
    %2680 = vrot.lane.b32.xlu0 %v2550, 8
    %v2681 = vpop.permute.xlu0 %2680
    %2682 = vrot.lane.b32.xlu0 %v2551, 8
    %v2683 = vpop.permute.xlu0 %2682
    %2684 = vrot.lane.b32.xlu0 %v2552, 8
    %v2685 = vpop.permute.xlu0 %2684
    %2686 = vrot.lane.b32.xlu0 %v2553, 8
    %v2687 = vpop.permute.xlu0 %2686
    %2688 = vrot.lane.b32.xlu0 %v2554, 8
    %v2689 = vpop.permute.xlu0 %2688
    %2690 = vrot.lane.b32.xlu0 %v2555, 8
    %v2691 = vpop.permute.xlu0 %2690
    %2692 = vrot.lane.b32.xlu0 %v2556, 8
    %v2693 = vpop.permute.xlu0 %2692
    %2694 = vrot.lane.b32.xlu0 %v2557, 8
    %v2695 = vpop.permute.xlu0 %2694
    %2696 = vrot.lane.b32.xlu0 %v2558, 8
    %v2697 = vpop.permute.xlu0 %2696
    %2698 = vrot.lane.b32.xlu0 %v2559, 8
    %v2699 = vpop.permute.xlu0 %2698
    %2700 = vrot.lane.b32.xlu0 %v2560, 8
    %v2701 = vpop.permute.xlu0 %2700
    %2702 = vrot.lane.b32.xlu0 %v2561, 8
    %v2703 = vpop.permute.xlu0 %2702
    %2704 = vrot.lane.b32.xlu0 %v2562, 8
    %v2705 = vpop.permute.xlu0 %2704
    %2706 = vrot.lane.b32.xlu0 %v2563, 8
    %v2707 = vpop.permute.xlu0 %2706
    %2708 = vrot.lane.b32.xlu0 %v2564, 8
    %v2709 = vpop.permute.xlu0 %2708
    %2710 = vrot.lane.b32.xlu0 %v2565, 8
    %v2711 = vpop.permute.xlu0 %2710
    %2712 = vrot.lane.b32.xlu0 %v2566, 8
    %v2713 = vpop.permute.xlu0 %2712
    %2714 = vrot.lane.b32.xlu0 %v2567, 8
    %v2715 = vpop.permute.xlu0 %2714
    %2716 = vrot.lane.b32.xlu0 %v2568, 8
    %v2717 = vpop.permute.xlu0 %2716
    %2718 = vrot.lane.b32.xlu0 %v2569, 8
    %v2719 = vpop.permute.xlu0 %2718
    %2720 = vrot.lane.b32.xlu0 %v2570, 8
    %v2721 = vpop.permute.xlu0 %2720
    %2722 = vrot.lane.b32.xlu0 %v2571, 8
    %v2723 = vpop.permute.xlu0 %2722
    %2724 = vrot.lane.b32.xlu0 %v2572, 8
    %v2725 = vpop.permute.xlu0 %2724
    %2726 = vrot.lane.b32.xlu0 %v2573, 8
    %v2727 = vpop.permute.xlu0 %2726
    %2728 = vrot.lane.b32.xlu0 %v2574, 8
    %v2729 = vpop.permute.xlu0 %2728
    %2730 = vrot.lane.b32.xlu0 %v2575, 8
    %v2731 = vpop.permute.xlu0 %2730
    %2732 = vrot.lane.b32.xlu0 %v2576, 8
    %v2733 = vpop.permute.xlu0 %2732
    %2734 = vrot.lane.b32.xlu0 %v2577, 8
    %v2735 = vpop.permute.xlu0 %2734
    %2736 = vrot.lane.b32.xlu0 %v2578, 8
    %v2737 = vpop.permute.xlu0 %2736
    %2738 = vrot.lane.b32.xlu0 %v2579, 8
    %v2739 = vpop.permute.xlu0 %2738
    %2740 = vrot.lane.b32.xlu0 %v2580, 8
    %v2741 = vpop.permute.xlu0 %2740
    %2742 = vrot.lane.b32.xlu0 %v2581, 8
    %v2743 = vpop.permute.xlu0 %2742
    %2744 = vrot.lane.b32.xlu0 %v2582, 8
    %v2745 = vpop.permute.xlu0 %2744
    %2746 = vrot.lane.b32.xlu0 %v2583, 8
    %v2747 = vpop.permute.xlu0 %2746
    %2748 = vrot.lane.b32.xlu0 %v2584, 8
    %v2749 = vpop.permute.xlu0 %2748
    %2750 = vrot.lane.b32.xlu0 %v2585, 8
    %v2751 = vpop.permute.xlu0 %2750
    %2752 = vrot.lane.b32.xlu0 %v2586, 8
    %v2753 = vpop.permute.xlu0 %2752
    %2754 = vrot.lane.b32.xlu0 %v2587, 8
    %v2755 = vpop.permute.xlu0 %2754
    %2756 = vrot.lane.b32.xlu0 %v2588, 8
    %v2757 = vpop.permute.xlu0 %2756
    %2758 = vrot.lane.b32.xlu0 %v2589, 8
    %v2759 = vpop.permute.xlu0 %2758
    %2760 = vrot.lane.b32.xlu0 %v2590, 8
    %v2761 = vpop.permute.xlu0 %2760
    %2762 = vrot.lane.b32.xlu0 %v2591, 8
    %v2763 = vpop.permute.xlu0 %2762
    %2764 = vrot.lane.b32.xlu0 %v2592, 8
    %v2765 = vpop.permute.xlu0 %2764
    %2766 = vrot.lane.b32.xlu0 %v2593, 8
    %v2767 = vpop.permute.xlu0 %2766
    %2768 = vrot.lane.b32.xlu0 %v2594, 8
    %v2769 = vpop.permute.xlu0 %2768
    %2770 = vrot.lane.b32.xlu0 %v2595, 8
    %v2771 = vpop.permute.xlu0 %2770
    %2772 = vrot.lane.b32.xlu0 %v2596, 8
    %v2773 = vpop.permute.xlu0 %2772
    %2774 = vrot.lane.b32.xlu0 %v2597, 8
    %v2775 = vpop.permute.xlu0 %2774
    %2776 = vrot.lane.b32.xlu0 %v2598, 8
    %v2777 = vpop.permute.xlu0 %2776
    %2778 = vrot.lane.b32.xlu0 %v2599, 8
    %v2779 = vpop.permute.xlu0 %2778
    %2780 = vrot.lane.b32.xlu0 %v2600, 8
    %v2781 = vpop.permute.xlu0 %2780
    %2782 = vrot.lane.b32.xlu0 %v2601, 8
    %v2783 = vpop.permute.xlu0 %2782
    %2784 = vrot.lane.b32.xlu0 %v2602, 8
    %v2785 = vpop.permute.xlu0 %2784
    %2786 = vrot.lane.b32.xlu0 %v2603, 8
    %v2787 = vpop.permute.xlu0 %2786
    %2788 = vrot.lane.b32.xlu0 %v2604, 8
    %v2789 = vpop.permute.xlu0 %2788
    %2790 = vrot.lane.b32.xlu0 %v2605, 8
    %v2791 = vpop.permute.xlu0 %2790
    %2792 = vrot.lane.b32.xlu0 %v2606, 8
    %v2793 = vpop.permute.xlu0 %2792
    %2794 = vrot.lane.b32.xlu0 %v2607, 8
    %v2795 = vpop.permute.xlu0 %2794
    %2796 = vrot.lane.b32.xlu0 %v2608, 8
    %v2797 = vpop.permute.xlu0 %2796
    %2798 = vrot.lane.b32.xlu0 %v2609, 8
    %v2799 = vpop.permute.xlu0 %2798
    %2800 = vrot.lane.b32.xlu0 %v2610, 8
    %v2801 = vpop.permute.xlu0 %2800
    %2802 = vrot.lane.b32.xlu0 %v2611, 8
    %v2803 = vpop.permute.xlu0 %2802
    %2868 = vst.msk [vmem:[#allocation2] sm:$0xff] %vm849, %v2677
    %2869 = vst.msk [vmem:[#allocation2 + $0x8] sm:$0xff] %vm849, %v2679
    %2870 = vst.msk [vmem:[#allocation2 + $0x10] sm:$0xff] %vm849, %v2681
    %2871 = vst.msk [vmem:[#allocation2 + $0x18] sm:$0xff] %vm849, %v2683
    %2872 = vst.msk [vmem:[#allocation2 + $0x20] sm:$0xff] %vm849, %v2685
    %2873 = vst.msk [vmem:[#allocation2 + $0x28] sm:$0xff] %vm849, %v2687
    %2874 = vst.msk [vmem:[#allocation2 + $0x30] sm:$0xff] %vm849, %v2689
    %2875 = vst.msk [vmem:[#allocation2 + $0x38] sm:$0xff] %vm849, %v2691
    %2876 = vst.msk [vmem:[#allocation2 + $0x40] sm:$0xff] %vm849, %v2693
    %2877 = vst.msk [vmem:[#allocation2 + $0x48] sm:$0xff] %vm849, %v2695
    %2878 = vst.msk [vmem:[#allocation2 + $0x50] sm:$0xff] %vm849, %v2697
    %2879 = vst.msk [vmem:[#allocation2 + $0x58] sm:$0xff] %vm849, %v2699
    %2880 = vst.msk [vmem:[#allocation2 + $0x60] sm:$0xff] %vm849, %v2701
    %2881 = vst.msk [vmem:[#allocation2 + $0x68] sm:$0xff] %vm849, %v2703
    %2882 = vst.msk [vmem:[#allocation2 + $0x70] sm:$0xff] %vm849, %v2705
    %2883 = vst.msk [vmem:[#allocation2 + $0x78] sm:$0xff] %vm849, %v2707
    %2884 = vst.msk [vmem:[#allocation2 + $0x80] sm:$0xff] %vm849, %v2709
    %2885 = vst.msk [vmem:[#allocation2 + $0x88] sm:$0xff] %vm849, %v2711
    %2886 = vst.msk [vmem:[#allocation2 + $0x90] sm:$0xff] %vm849, %v2713
    %2887 = vst.msk [vmem:[#allocation2 + $0x98] sm:$0xff] %vm849, %v2715
    %2888 = vst.msk [vmem:[#allocation2 + $0xa0] sm:$0xff] %vm849, %v2717
    %2889 = vst.msk [vmem:[#allocation2 + $0xa8] sm:$0xff] %vm849, %v2719
    %2890 = vst.msk [vmem:[#allocation2 + $0xb0] sm:$0xff] %vm849, %v2721
    %2891 = vst.msk [vmem:[#allocation2 + $0xb8] sm:$0xff] %vm849, %v2723
    %2892 = vst.msk [vmem:[#allocation2 + $0xc0] sm:$0xff] %vm849, %v2725
    %2893 = vst.msk [vmem:[#allocation2 + $0xc8] sm:$0xff] %vm849, %v2727
    %2894 = vst.msk [vmem:[#allocation2 + $0xd0] sm:$0xff] %vm849, %v2729
    %2895 = vst.msk [vmem:[#allocation2 + $0xd8] sm:$0xff] %vm849, %v2731
    %2896 = vst.msk [vmem:[#allocation2 + $0xe0] sm:$0xff] %vm849, %v2733
    %2897 = vst.msk [vmem:[#allocation2 + $0xe8] sm:$0xff] %vm849, %v2735
    %2898 = vst.msk [vmem:[#allocation2 + $0xf0] sm:$0xff] %vm849, %v2737
    %2899 = vst.msk [vmem:[#allocation2 + $0xf8] sm:$0xff] %vm849, %v2739
    %2900 = vst.msk [vmem:[#allocation2 + $0x100] sm:$0xff] %vm849, %v2741
    %2901 = vst.msk [vmem:[#allocation2 + $0x108] sm:$0xff] %vm849, %v2743
    %2902 = vst.msk [vmem:[#allocation2 + $0x110] sm:$0xff] %vm849, %v2745
    %2903 = vst.msk [vmem:[#allocation2 + $0x118] sm:$0xff] %vm849, %v2747
    %2904 = vst.msk [vmem:[#allocation2 + $0x120] sm:$0xff] %vm849, %v2749
    %2905 = vst.msk [vmem:[#allocation2 + $0x128] sm:$0xff] %vm849, %v2751
    %2906 = vst.msk [vmem:[#allocation2 + $0x130] sm:$0xff] %vm849, %v2753
    %2907 = vst.msk [vmem:[#allocation2 + $0x138] sm:$0xff] %vm849, %v2755
    %2908 = vst.msk [vmem:[#allocation2 + $0x140] sm:$0xff] %vm849, %v2757
    %2909 = vst.msk [vmem:[#allocation2 + $0x148] sm:$0xff] %vm849, %v2759
    %2910 = vst.msk [vmem:[#allocation2 + $0x150] sm:$0xff] %vm849, %v2761
    %2911 = vst.msk [vmem:[#allocation2 + $0x158] sm:$0xff] %vm849, %v2763
    %2912 = vst.msk [vmem:[#allocation2 + $0x160] sm:$0xff] %vm849, %v2765
    %2913 = vst.msk [vmem:[#allocation2 + $0x168] sm:$0xff] %vm849, %v2767
    %2914 = vst.msk [vmem:[#allocation2 + $0x170] sm:$0xff] %vm849, %v2769
    %2915 = vst.msk [vmem:[#allocation2 + $0x178] sm:$0xff] %vm849, %v2771
    %2916 = vst.msk [vmem:[#allocation2 + $0x180] sm:$0xff] %vm849, %v2773
    %2917 = vst.msk [vmem:[#allocation2 + $0x188] sm:$0xff] %vm849, %v2775
    %2918 = vst.msk [vmem:[#allocation2 + $0x190] sm:$0xff] %vm849, %v2777
    %2919 = vst.msk [vmem:[#allocation2 + $0x198] sm:$0xff] %vm849, %v2779
    %2920 = vst.msk [vmem:[#allocation2 + $0x1a0] sm:$0xff] %vm849, %v2781
    %2921 = vst.msk [vmem:[#allocation2 + $0x1a8] sm:$0xff] %vm849, %v2783
    %2922 = vst.msk [vmem:[#allocation2 + $0x1b0] sm:$0xff] %vm849, %v2785
    %2923 = vst.msk [vmem:[#allocation2 + $0x1b8] sm:$0xff] %vm849, %v2787
    %2924 = vst.msk [vmem:[#allocation2 + $0x1c0] sm:$0xff] %vm849, %v2789
    %2925 = vst.msk [vmem:[#allocation2 + $0x1c8] sm:$0xff] %vm849, %v2791
    %2926 = vst.msk [vmem:[#allocation2 + $0x1d0] sm:$0xff] %vm849, %v2793
    %2927 = vst.msk [vmem:[#allocation2 + $0x1d8] sm:$0xff] %vm849, %v2795
    %2928 = vst.msk [vmem:[#allocation2 + $0x1e0] sm:$0xff] %vm849, %v2797
    %2929 = vst.msk [vmem:[#allocation2 + $0x1e8] sm:$0xff] %vm849, %v2799
    %2930 = vst.msk [vmem:[#allocation2 + $0x1f0] sm:$0xff] %vm849, %v2801
    %2931 = vst.msk [vmem:[#allocation2 + $0x1f8] sm:$0xff] %vm849, %v2803
    %v2932 = vld [vmem:[%s528 + $0x2] sm:$0xff]
    %v2933 = vld [vmem:[%s528 + $0xa] sm:$0xff]
    %v2934 = vld [vmem:[%s528 + $0x1a] sm:$0xff]
    %v2935 = vld [vmem:[%s528 + $0x22] sm:$0xff]
    %v2936 = vld [vmem:[%s528 + $0x32] sm:$0xff]
    %v2937 = vld [vmem:[%s528 + $0x3a] sm:$0xff]
    %v2938 = vld [vmem:[%s528 + $0x4a] sm:$0xff]
    %v2939 = vld [vmem:[%s528 + $0x52] sm:$0xff]
    %v2940 = vld [vmem:[%s528 + $0x62] sm:$0xff]
    %v2941 = vld [vmem:[%s528 + $0x6a] sm:$0xff]
    %v2942 = vld [vmem:[%s528 + $0x7a] sm:$0xff]
    %v2943 = vld [vmem:[%s528 + $0x82] sm:$0xff]
    %v2944 = vld [vmem:[%s528 + $0x92] sm:$0xff]
    %v2945 = vld [vmem:[%s528 + $0x9a] sm:$0xff]
    %v2946 = vld [vmem:[%s528 + $0xaa] sm:$0xff]
    %v2947 = vld [vmem:[%s528 + $0xb2] sm:$0xff]
    %v2948 = vld [vmem:[%s528 + $0xc2] sm:$0xff]
    %v2949 = vld [vmem:[%s528 + $0xca] sm:$0xff]
    %v2950 = vld [vmem:[%s528 + $0xda] sm:$0xff]
    %v2951 = vld [vmem:[%s528 + $0xe2] sm:$0xff]
    %v2952 = vld [vmem:[%s528 + $0xf2] sm:$0xff]
    %v2953 = vld [vmem:[%s528 + $0xfa] sm:$0xff]
    %v2954 = vld [vmem:[%s528 + $0x10a] sm:$0xff]
    %v2955 = vld [vmem:[%s528 + $0x112] sm:$0xff]
    %v2956 = vld [vmem:[%s528 + $0x122] sm:$0xff]
    %v2957 = vld [vmem:[%s528 + $0x12a] sm:$0xff]
    %v2958 = vld [vmem:[%s528 + $0x13a] sm:$0xff]
    %v2959 = vld [vmem:[%s528 + $0x142] sm:$0xff]
    %v2960 = vld [vmem:[%s528 + $0x152] sm:$0xff]
    %v2961 = vld [vmem:[%s528 + $0x15a] sm:$0xff]
    %v2962 = vld [vmem:[%s528 + $0x16a] sm:$0xff]
    %v2963 = vld [vmem:[%s528 + $0x172] sm:$0xff]
    %v2964 = vld [vmem:[%s528 + $0x1b2] sm:$0xff]
    %v2965 = vld [vmem:[%s528 + $0x1ba] sm:$0xff]
    %v2966 = vld [vmem:[%s528 + $0x1ca] sm:$0xff]
    %v2967 = vld [vmem:[%s528 + $0x1d2] sm:$0xff]
    %v2968 = vld [vmem:[%s528 + $0x1e2] sm:$0xff]
    %v2969 = vld [vmem:[%s528 + $0x1ea] sm:$0xff]
    %v2970 = vld [vmem:[%s528 + $0x1fa] sm:$0xff]
    %v2971 = vld [vmem:[%s528 + $0x202] sm:$0xff]
    %v2972 = vld [vmem:[%s528 + $0x212] sm:$0xff]
    %v2973 = vld [vmem:[%s528 + $0x21a] sm:$0xff]
    %v2974 = vld [vmem:[%s528 + $0x22a] sm:$0xff]
    %v2975 = vld [vmem:[%s528 + $0x232] sm:$0xff]
    %v2976 = vld [vmem:[%s528 + $0x242] sm:$0xff]
    %v2977 = vld [vmem:[%s528 + $0x24a] sm:$0xff]
    %v2978 = vld [vmem:[%s528 + $0x25a] sm:$0xff]
    %v2979 = vld [vmem:[%s528 + $0x262] sm:$0xff]
    %v2980 = vld [vmem:[%s528 + $0x272] sm:$0xff]
    %v2981 = vld [vmem:[%s528 + $0x27a] sm:$0xff]
    %v2982 = vld [vmem:[%s528 + $0x28a] sm:$0xff]
    %v2983 = vld [vmem:[%s528 + $0x292] sm:$0xff]
    %v2984 = vld [vmem:[%s528 + $0x2a2] sm:$0xff]
    %v2985 = vld [vmem:[%s528 + $0x2aa] sm:$0xff]
    %v2986 = vld [vmem:[%s528 + $0x2ba] sm:$0xff]
    %v2987 = vld [vmem:[%s528 + $0x2c2] sm:$0xff]
    %v2988 = vld [vmem:[%s528 + $0x2d2] sm:$0xff]
    %v2989 = vld [vmem:[%s528 + $0x2da] sm:$0xff]
    %v2990 = vld [vmem:[%s528 + $0x2ea] sm:$0xff]
    %v2991 = vld [vmem:[%s528 + $0x2f2] sm:$0xff]
    %v2992 = vld [vmem:[%s528 + $0x302] sm:$0xff]
    %v2993 = vld [vmem:[%s528 + $0x30a] sm:$0xff]
    %v2994 = vld [vmem:[%s528 + $0x31a] sm:$0xff]
    %v2995 = vld [vmem:[%s528 + $0x322] sm:$0xff]
    %3060 = vrot.lane.b32.xlu0 %v2932, 12
    %v3061 = vpop.permute.xlu0 %3060
    %3062 = vrot.lane.b32.xlu0 %v2933, 12
    %v3063 = vpop.permute.xlu0 %3062
    %3064 = vrot.lane.b32.xlu0 %v2934, 12
    %v3065 = vpop.permute.xlu0 %3064
    %3066 = vrot.lane.b32.xlu0 %v2935, 12
    %v3067 = vpop.permute.xlu0 %3066
    %3068 = vrot.lane.b32.xlu0 %v2936, 12
    %v3069 = vpop.permute.xlu0 %3068
    %3070 = vrot.lane.b32.xlu0 %v2937, 12
    %v3071 = vpop.permute.xlu0 %3070
    %3072 = vrot.lane.b32.xlu0 %v2938, 12
    %v3073 = vpop.permute.xlu0 %3072
    %3074 = vrot.lane.b32.xlu0 %v2939, 12
    %v3075 = vpop.permute.xlu0 %3074
    %3076 = vrot.lane.b32.xlu0 %v2940, 12
    %v3077 = vpop.permute.xlu0 %3076
    %3078 = vrot.lane.b32.xlu0 %v2941, 12
    %v3079 = vpop.permute.xlu0 %3078
    %3080 = vrot.lane.b32.xlu0 %v2942, 12
    %v3081 = vpop.permute.xlu0 %3080
    %3082 = vrot.lane.b32.xlu0 %v2943, 12
    %v3083 = vpop.permute.xlu0 %3082
    %3084 = vrot.lane.b32.xlu0 %v2944, 12
    %v3085 = vpop.permute.xlu0 %3084
    %3086 = vrot.lane.b32.xlu0 %v2945, 12
    %v3087 = vpop.permute.xlu0 %3086
    %3088 = vrot.lane.b32.xlu0 %v2946, 12
    %v3089 = vpop.permute.xlu0 %3088
    %3090 = vrot.lane.b32.xlu0 %v2947, 12
    %v3091 = vpop.permute.xlu0 %3090
    %3092 = vrot.lane.b32.xlu0 %v2948, 12
    %v3093 = vpop.permute.xlu0 %3092
    %3094 = vrot.lane.b32.xlu0 %v2949, 12
    %v3095 = vpop.permute.xlu0 %3094
    %3096 = vrot.lane.b32.xlu0 %v2950, 12
    %v3097 = vpop.permute.xlu0 %3096
    %3098 = vrot.lane.b32.xlu0 %v2951, 12
    %v3099 = vpop.permute.xlu0 %3098
    %3100 = vrot.lane.b32.xlu0 %v2952, 12
    %v3101 = vpop.permute.xlu0 %3100
    %3102 = vrot.lane.b32.xlu0 %v2953, 12
    %v3103 = vpop.permute.xlu0 %3102
    %3104 = vrot.lane.b32.xlu0 %v2954, 12
    %v3105 = vpop.permute.xlu0 %3104
    %3106 = vrot.lane.b32.xlu0 %v2955, 12
    %v3107 = vpop.permute.xlu0 %3106
    %3108 = vrot.lane.b32.xlu0 %v2956, 12
    %v3109 = vpop.permute.xlu0 %3108
    %3110 = vrot.lane.b32.xlu0 %v2957, 12
    %v3111 = vpop.permute.xlu0 %3110
    %3112 = vrot.lane.b32.xlu0 %v2958, 12
    %v3113 = vpop.permute.xlu0 %3112
    %3114 = vrot.lane.b32.xlu0 %v2959, 12
    %v3115 = vpop.permute.xlu0 %3114
    %3116 = vrot.lane.b32.xlu0 %v2960, 12
    %v3117 = vpop.permute.xlu0 %3116
    %3118 = vrot.lane.b32.xlu0 %v2961, 12
    %v3119 = vpop.permute.xlu0 %3118
    %3120 = vrot.lane.b32.xlu0 %v2962, 12
    %v3121 = vpop.permute.xlu0 %3120
    %3122 = vrot.lane.b32.xlu0 %v2963, 12
    %v3123 = vpop.permute.xlu0 %3122
    %3124 = vrot.lane.b32.xlu0 %v2964, 12
    %v3125 = vpop.permute.xlu0 %3124
    %3126 = vrot.lane.b32.xlu0 %v2965, 12
    %v3127 = vpop.permute.xlu0 %3126
    %3128 = vrot.lane.b32.xlu0 %v2966, 12
    %v3129 = vpop.permute.xlu0 %3128
    %3130 = vrot.lane.b32.xlu0 %v2967, 12
    %v3131 = vpop.permute.xlu0 %3130
    %3132 = vrot.lane.b32.xlu0 %v2968, 12
    %v3133 = vpop.permute.xlu0 %3132
    %3134 = vrot.lane.b32.xlu0 %v2969, 12
    %v3135 = vpop.permute.xlu0 %3134
    %3136 = vrot.lane.b32.xlu0 %v2970, 12
    %v3137 = vpop.permute.xlu0 %3136
    %3138 = vrot.lane.b32.xlu0 %v2971, 12
    %v3139 = vpop.permute.xlu0 %3138
    %3140 = vrot.lane.b32.xlu0 %v2972, 12
    %v3141 = vpop.permute.xlu0 %3140
    %3142 = vrot.lane.b32.xlu0 %v2973, 12
    %v3143 = vpop.permute.xlu0 %3142
    %3144 = vrot.lane.b32.xlu0 %v2974, 12
    %v3145 = vpop.permute.xlu0 %3144
    %3146 = vrot.lane.b32.xlu0 %v2975, 12
    %v3147 = vpop.permute.xlu0 %3146
    %3148 = vrot.lane.b32.xlu0 %v2976, 12
    %v3149 = vpop.permute.xlu0 %3148
    %3150 = vrot.lane.b32.xlu0 %v2977, 12
    %v3151 = vpop.permute.xlu0 %3150
    %3152 = vrot.lane.b32.xlu0 %v2978, 12
    %v3153 = vpop.permute.xlu0 %3152
    %3154 = vrot.lane.b32.xlu0 %v2979, 12
    %v3155 = vpop.permute.xlu0 %3154
    %3156 = vrot.lane.b32.xlu0 %v2980, 12
    %v3157 = vpop.permute.xlu0 %3156
    %3158 = vrot.lane.b32.xlu0 %v2981, 12
    %v3159 = vpop.permute.xlu0 %3158
    %3160 = vrot.lane.b32.xlu0 %v2982, 12
    %v3161 = vpop.permute.xlu0 %3160
    %3162 = vrot.lane.b32.xlu0 %v2983, 12
    %v3163 = vpop.permute.xlu0 %3162
    %3164 = vrot.lane.b32.xlu0 %v2984, 12
    %v3165 = vpop.permute.xlu0 %3164
    %3166 = vrot.lane.b32.xlu0 %v2985, 12
    %v3167 = vpop.permute.xlu0 %3166
    %3168 = vrot.lane.b32.xlu0 %v2986, 12
    %v3169 = vpop.permute.xlu0 %3168
    %3170 = vrot.lane.b32.xlu0 %v2987, 12
    %v3171 = vpop.permute.xlu0 %3170
    %3172 = vrot.lane.b32.xlu0 %v2988, 12
    %v3173 = vpop.permute.xlu0 %3172
    %3174 = vrot.lane.b32.xlu0 %v2989, 12
    %v3175 = vpop.permute.xlu0 %3174
    %3176 = vrot.lane.b32.xlu0 %v2990, 12
    %v3177 = vpop.permute.xlu0 %3176
    %3178 = vrot.lane.b32.xlu0 %v2991, 12
    %v3179 = vpop.permute.xlu0 %3178
    %3180 = vrot.lane.b32.xlu0 %v2992, 12
    %v3181 = vpop.permute.xlu0 %3180
    %3182 = vrot.lane.b32.xlu0 %v2993, 12
    %v3183 = vpop.permute.xlu0 %3182
    %3184 = vrot.lane.b32.xlu0 %v2994, 12
    %v3185 = vpop.permute.xlu0 %3184
    %3186 = vrot.lane.b32.xlu0 %v2995, 12
    %v3187 = vpop.permute.xlu0 %3186
    %3252 = vst.msk [vmem:[#allocation2] sm:$0xff] %vm1234, %v3061
    %3253 = vst.msk [vmem:[#allocation2 + $0x8] sm:$0xff] %vm1234, %v3063
    %3254 = vst.msk [vmem:[#allocation2 + $0x10] sm:$0xff] %vm1234, %v3065
    %3255 = vst.msk [vmem:[#allocation2 + $0x18] sm:$0xff] %vm1234, %v3067
    %3256 = vst.msk [vmem:[#allocation2 + $0x20] sm:$0xff] %vm1234, %v3069
    %3257 = vst.msk [vmem:[#allocation2 + $0x28] sm:$0xff] %vm1234, %v3071
    %3258 = vst.msk [vmem:[#allocation2 + $0x30] sm:$0xff] %vm1234, %v3073
    %3259 = vst.msk [vmem:[#allocation2 + $0x38] sm:$0xff] %vm1234, %v3075
    %3260 = vst.msk [vmem:[#allocation2 + $0x40] sm:$0xff] %vm1234, %v3077
    %3261 = vst.msk [vmem:[#allocation2 + $0x48] sm:$0xff] %vm1234, %v3079
    %3262 = vst.msk [vmem:[#allocation2 + $0x50] sm:$0xff] %vm1234, %v3081
    %3263 = vst.msk [vmem:[#allocation2 + $0x58] sm:$0xff] %vm1234, %v3083
    %3264 = vst.msk [vmem:[#allocation2 + $0x60] sm:$0xff] %vm1234, %v3085
    %3265 = vst.msk [vmem:[#allocation2 + $0x68] sm:$0xff] %vm1234, %v3087
    %3266 = vst.msk [vmem:[#allocation2 + $0x70] sm:$0xff] %vm1234, %v3089
    %3267 = vst.msk [vmem:[#allocation2 + $0x78] sm:$0xff] %vm1234, %v3091
    %3268 = vst.msk [vmem:[#allocation2 + $0x80] sm:$0xff] %vm1234, %v3093
    %3269 = vst.msk [vmem:[#allocation2 + $0x88] sm:$0xff] %vm1234, %v3095
    %3270 = vst.msk [vmem:[#allocation2 + $0x90] sm:$0xff] %vm1234, %v3097
    %3271 = vst.msk [vmem:[#allocation2 + $0x98] sm:$0xff] %vm1234, %v3099
    %3272 = vst.msk [vmem:[#allocation2 + $0xa0] sm:$0xff] %vm1234, %v3101
    %3273 = vst.msk [vmem:[#allocation2 + $0xa8] sm:$0xff] %vm1234, %v3103
    %3274 = vst.msk [vmem:[#allocation2 + $0xb0] sm:$0xff] %vm1234, %v3105
    %3275 = vst.msk [vmem:[#allocation2 + $0xb8] sm:$0xff] %vm1234, %v3107
    %3276 = vst.msk [vmem:[#allocation2 + $0xc0] sm:$0xff] %vm1234, %v3109
    %3277 = vst.msk [vmem:[#allocation2 + $0xc8] sm:$0xff] %vm1234, %v3111
    %3278 = vst.msk [vmem:[#allocation2 + $0xd0] sm:$0xff] %vm1234, %v3113
    %3279 = vst.msk [vmem:[#allocation2 + $0xd8] sm:$0xff] %vm1234, %v3115
    %3280 = vst.msk [vmem:[#allocation2 + $0xe0] sm:$0xff] %vm1234, %v3117
    %3281 = vst.msk [vmem:[#allocation2 + $0xe8] sm:$0xff] %vm1234, %v3119
    %3282 = vst.msk [vmem:[#allocation2 + $0xf0] sm:$0xff] %vm1234, %v3121
    %3283 = vst.msk [vmem:[#allocation2 + $0xf8] sm:$0xff] %vm1234, %v3123
    %3284 = vst.msk [vmem:[#allocation2 + $0x100] sm:$0xff] %vm1234, %v3125
    %3285 = vst.msk [vmem:[#allocation2 + $0x108] sm:$0xff] %vm1234, %v3127
    %3286 = vst.msk [vmem:[#allocation2 + $0x110] sm:$0xff] %vm1234, %v3129
    %3287 = vst.msk [vmem:[#allocation2 + $0x118] sm:$0xff] %vm1234, %v3131
    %3288 = vst.msk [vmem:[#allocation2 + $0x120] sm:$0xff] %vm1234, %v3133
    %3289 = vst.msk [vmem:[#allocation2 + $0x128] sm:$0xff] %vm1234, %v3135
    %3290 = vst.msk [vmem:[#allocation2 + $0x130] sm:$0xff] %vm1234, %v3137
    %3291 = vst.msk [vmem:[#allocation2 + $0x138] sm:$0xff] %vm1234, %v3139
    %3292 = vst.msk [vmem:[#allocation2 + $0x140] sm:$0xff] %vm1234, %v3141
    %3293 = vst.msk [vmem:[#allocation2 + $0x148] sm:$0xff] %vm1234, %v3143
    %3294 = vst.msk [vmem:[#allocation2 + $0x150] sm:$0xff] %vm1234, %v3145
    %3295 = vst.msk [vmem:[#allocation2 + $0x158] sm:$0xff] %vm1234, %v3147
    %3296 = vst.msk [vmem:[#allocation2 + $0x160] sm:$0xff] %vm1234, %v3149
    %3297 = vst.msk [vmem:[#allocation2 + $0x168] sm:$0xff] %vm1234, %v3151
    %3298 = vst.msk [vmem:[#allocation2 + $0x170] sm:$0xff] %vm1234, %v3153
    %3299 = vst.msk [vmem:[#allocation2 + $0x178] sm:$0xff] %vm1234, %v3155
    %3300 = vst.msk [vmem:[#allocation2 + $0x180] sm:$0xff] %vm1234, %v3157
    %3301 = vst.msk [vmem:[#allocation2 + $0x188] sm:$0xff] %vm1234, %v3159
    %3302 = vst.msk [vmem:[#allocation2 + $0x190] sm:$0xff] %vm1234, %v3161
    %3303 = vst.msk [vmem:[#allocation2 + $0x198] sm:$0xff] %vm1234, %v3163
    %3304 = vst.msk [vmem:[#allocation2 + $0x1a0] sm:$0xff] %vm1234, %v3165
    %3305 = vst.msk [vmem:[#allocation2 + $0x1a8] sm:$0xff] %vm1234, %v3167
    %3306 = vst.msk [vmem:[#allocation2 + $0x1b0] sm:$0xff] %vm1234, %v3169
    %3307 = vst.msk [vmem:[#allocation2 + $0x1b8] sm:$0xff] %vm1234, %v3171
    %3308 = vst.msk [vmem:[#allocation2 + $0x1c0] sm:$0xff] %vm1234, %v3173
    %3309 = vst.msk [vmem:[#allocation2 + $0x1c8] sm:$0xff] %vm1234, %v3175
    %3310 = vst.msk [vmem:[#allocation2 + $0x1d0] sm:$0xff] %vm1234, %v3177
    %3311 = vst.msk [vmem:[#allocation2 + $0x1d8] sm:$0xff] %vm1234, %v3179
    %3312 = vst.msk [vmem:[#allocation2 + $0x1e0] sm:$0xff] %vm1234, %v3181
    %3313 = vst.msk [vmem:[#allocation2 + $0x1e8] sm:$0xff] %vm1234, %v3183
    %3314 = vst.msk [vmem:[#allocation2 + $0x1f0] sm:$0xff] %vm1234, %v3185
    %3315 = vst.msk [vmem:[#allocation2 + $0x1f8] sm:$0xff] %vm1234, %v3187
    %v3316 = vld [vmem:[#allocation2] sm:$0xff]
    %v3317 = vld [vmem:[#allocation2 + $0x8] sm:$0xff]
    %v3318 = vld [vmem:[#allocation2 + $0x10] sm:$0xff]
    %v3319 = vld [vmem:[#allocation2 + $0x18] sm:$0xff]
    %v3320 = vld [vmem:[#allocation2 + $0x20] sm:$0xff]
    %v3321 = vld [vmem:[#allocation2 + $0x28] sm:$0xff]
    %v3322 = vld [vmem:[#allocation2 + $0x30] sm:$0xff]
    %v3323 = vld [vmem:[#allocation2 + $0x38] sm:$0xff]
    %v3324 = vld [vmem:[#allocation2 + $0x40] sm:$0xff]
    %v3325 = vld [vmem:[#allocation2 + $0x48] sm:$0xff]
    %v3326 = vld [vmem:[#allocation2 + $0x50] sm:$0xff]
    %v3327 = vld [vmem:[#allocation2 + $0x58] sm:$0xff]
    %v3328 = vld [vmem:[#allocation2 + $0x60] sm:$0xff]
    %v3329 = vld [vmem:[#allocation2 + $0x68] sm:$0xff]
    %v3330 = vld [vmem:[#allocation2 + $0x70] sm:$0xff]
    %v3331 = vld [vmem:[#allocation2 + $0x78] sm:$0xff]
    %v3332 = vld [vmem:[#allocation2 + $0x80] sm:$0xff]
    %v3333 = vld [vmem:[#allocation2 + $0x88] sm:$0xff]
    %v3334 = vld [vmem:[#allocation2 + $0x90] sm:$0xff]
    %v3335 = vld [vmem:[#allocation2 + $0x98] sm:$0xff]
    %v3336 = vld [vmem:[#allocation2 + $0xa0] sm:$0xff]
    %v3337 = vld [vmem:[#allocation2 + $0xa8] sm:$0xff]
    %v3338 = vld [vmem:[#allocation2 + $0xb0] sm:$0xff]
    %v3339 = vld [vmem:[#allocation2 + $0xb8] sm:$0xff]
    %v3340 = vld [vmem:[#allocation2 + $0xc0] sm:$0xff]
    %v3341 = vld [vmem:[#allocation2 + $0xc8] sm:$0xff]
    %v3342 = vld [vmem:[#allocation2 + $0xd0] sm:$0xff]
    %v3343 = vld [vmem:[#allocation2 + $0xd8] sm:$0xff]
    %v3344 = vld [vmem:[#allocation2 + $0xe0] sm:$0xff]
    %v3345 = vld [vmem:[#allocation2 + $0xe8] sm:$0xff]
    %v3346 = vld [vmem:[#allocation2 + $0xf0] sm:$0xff]
    %v3347 = vld [vmem:[#allocation2 + $0xf8] sm:$0xff]
    %v3348 = vld [vmem:[#allocation2 + $0x100] sm:$0xff]
    %v3349 = vld [vmem:[#allocation2 + $0x108] sm:$0xff]
    %v3350 = vld [vmem:[#allocation2 + $0x110] sm:$0xff]
    %v3351 = vld [vmem:[#allocation2 + $0x118] sm:$0xff]
    %v3352 = vld [vmem:[#allocation2 + $0x120] sm:$0xff]
    %v3353 = vld [vmem:[#allocation2 + $0x128] sm:$0xff]
    %v3354 = vld [vmem:[#allocation2 + $0x130] sm:$0xff]
    %v3355 = vld [vmem:[#allocation2 + $0x138] sm:$0xff]
    %v3356 = vld [vmem:[#allocation2 + $0x140] sm:$0xff]
    %v3357 = vld [vmem:[#allocation2 + $0x148] sm:$0xff]
    %v3358 = vld [vmem:[#allocation2 + $0x150] sm:$0xff]
    %v3359 = vld [vmem:[#allocation2 + $0x158] sm:$0xff]
    %v3360 = vld [vmem:[#allocation2 + $0x160] sm:$0xff]
    %v3361 = vld [vmem:[#allocation2 + $0x168] sm:$0xff]
    %v3362 = vld [vmem:[#allocation2 + $0x170] sm:$0xff]
    %v3363 = vld [vmem:[#allocation2 + $0x178] sm:$0xff]
    %v3364 = vld [vmem:[#allocation2 + $0x180] sm:$0xff]
    %v3365 = vld [vmem:[#allocation2 + $0x188] sm:$0xff]
    %v3366 = vld [vmem:[#allocation2 + $0x190] sm:$0xff]
    %v3367 = vld [vmem:[#allocation2 + $0x198] sm:$0xff]
    %v3368 = vld [vmem:[#allocation2 + $0x1a0] sm:$0xff]
    %v3369 = vld [vmem:[#allocation2 + $0x1a8] sm:$0xff]
    %v3370 = vld [vmem:[#allocation2 + $0x1b0] sm:$0xff]
    %v3371 = vld [vmem:[#allocation2 + $0x1b8] sm:$0xff]
    %v3372 = vld [vmem:[#allocation2 + $0x1c0] sm:$0xff]
    %v3373 = vld [vmem:[#allocation2 + $0x1c8] sm:$0xff]
    %v3374 = vld [vmem:[#allocation2 + $0x1d0] sm:$0xff]
    %v3375 = vld [vmem:[#allocation2 + $0x1d8] sm:$0xff]
    %v3376 = vld [vmem:[#allocation2 + $0x1e0] sm:$0xff]
    %v3377 = vld [vmem:[#allocation2 + $0x1e8] sm:$0xff]
    %v3378 = vld [vmem:[#allocation2 + $0x1f0] sm:$0xff]
    %v3379 = vld [vmem:[#allocation2 + $0x1f8] sm:$0xff]
    %s3380 = scalar_lea.vmem %s1, 16
    %v3381 = vld [vmem:[%s3380] sm:$0xff]
    %v3382 = vld [vmem:[%s3380 + $0x8] sm:$0xff]
    %v3384 = vsel %vm1365, %v3316, 0
    %v3387 = vsel %vm1365, %v3317, 0
    %v3390 = vsel %vm1365, %v3318, 0
    %v3393 = vsel %vm1365, %v3319, 0
    %v3396 = vsel %vm1365, %v3320, 0
    %v3399 = vsel %vm1365, %v3321, 0
    %v3402 = vsel %vm1365, %v3322, 0
    %v3405 = vsel %vm1365, %v3323, 0
    %v3408 = vsel %vm1365, %v3324, 0
    %v3411 = vsel %vm1365, %v3325, 0
    %v3414 = vsel %vm1365, %v3326, 0
    %v3417 = vsel %vm1365, %v3327, 0
    %v3420 = vsel %vm1365, %v3328, 0
    %v3423 = vsel %vm1365, %v3329, 0
    %v3426 = vsel %vm1365, %v3330, 0
    %v3429 = vsel %vm1365, %v3331, 0
    %v3432 = vsel %vm1365, %v3332, 0
    %v3435 = vsel %vm1365, %v3333, 0
    %v3438 = vsel %vm1365, %v3334, 0
    %v3441 = vsel %vm1365, %v3335, 0
    %v3444 = vsel %vm1365, %v3336, 0
    %v3447 = vsel %vm1365, %v3337, 0
    %v3450 = vsel %vm1365, %v3338, 0
    %v3453 = vsel %vm1365, %v3339, 0
    %v3456 = vsel %vm1365, %v3340, 0
    %v3459 = vsel %vm1365, %v3341, 0
    %v3462 = vsel %vm1365, %v3342, 0
    %v3465 = vsel %vm1365, %v3343, 0
    %v3468 = vsel %vm1365, %v3344, 0
    %v3471 = vsel %vm1365, %v3345, 0
    %v3474 = vsel %vm1365, %v3346, 0
    %v3477 = vsel %vm1365, %v3347, 0
    %v3480 = vsel %vm1365, %v3348, 0
    %v3483 = vsel %vm1365, %v3349, 0
    %v3486 = vsel %vm1365, %v3350, 0
    %v3489 = vsel %vm1365, %v3351, 0
    %v3492 = vsel %vm1365, %v3352, 0
    %v3495 = vsel %vm1365, %v3353, 0
    %v3498 = vsel %vm1365, %v3354, 0
    %v3501 = vsel %vm1365, %v3355, 0
    %v3504 = vsel %vm1365, %v3356, 0
    %v3507 = vsel %vm1365, %v3357, 0
    %v3510 = vsel %vm1365, %v3358, 0
    %v3513 = vsel %vm1365, %v3359, 0
    %v3516 = vsel %vm1365, %v3360, 0
    %v3519 = vsel %vm1365, %v3361, 0
    %v3522 = vsel %vm1365, %v3362, 0
    %v3525 = vsel %vm1365, %v3363, 0
    %v3528 = vsel %vm1365, %v3364, 0
    %v3531 = vsel %vm1365, %v3365, 0
    %v3534 = vsel %vm1365, %v3366, 0
    %v3537 = vsel %vm1365, %v3367, 0
    %v3540 = vsel %vm1365, %v3368, 0
    %v3543 = vsel %vm1365, %v3369, 0
    %v3546 = vsel %vm1365, %v3370, 0
    %v3549 = vsel %vm1365, %v3371, 0
    %v3552 = vsel %vm1365, %v3372, 0
    %v3555 = vsel %vm1365, %v3373, 0
    %v3558 = vsel %vm1365, %v3374, 0
    %v3561 = vsel %vm1365, %v3375, 0
    %v3564 = vsel %vm1365, %v3376, 0
    %v3567 = vsel %vm1365, %v3377, 0
    %v3570 = vsel %vm1365, %v3378, 0
    %v3573 = vsel %vm1365, %v3379, 0
    %3575 = vmatpush.msra.mxu0 0.0
    %3576 = vmatpush.msra.mxu0 0.0
    %3577 = vmatpush.msra.mxu0 0.0
    %3578 = vmatpush.msra.mxu0 0.0
    %3579 = vmatpush.msra.mxu0 0.0
    %3580 = vmatpush.msra.mxu0 0.0
    %3581 = vmatpush.msra.mxu0 0.0
    %3582 = vmatpush.msra.mxu0 0.0
    %3583 = vmatpush.msra.mxu0 0.0
    %3584 = vmatpush.msra.mxu0 0.0
    %3585 = vmatpush.msra.mxu0 0.0
    %3586 = vmatpush.msra.mxu0 0.0
    %3587 = vmatpush.msra.mxu0 0.0
    %3588 = vmatpush.msra.mxu0 0.0
    %3589 = vmatpush.msra.mxu0 %v3382
    %3590 = vmatpush.msra.mxu0 %v3381
    %3591 = vmatmul.f32.gmra.mxu0 %v3384
    %v3592 = vpop.f32.mrf.mxu0
    %v3593 = vadd.f32 0.0, %v3592
    %3594 = vmatmul.f32.gmra.mxu0 %v3387
    %v3595 = vpop.f32.mrf.mxu0
    %v3596 = vadd.f32 0.0, %v3595
    %3597 = vmatmul.f32.gmra.mxu0 %v3390
    %v3598 = vpop.f32.mrf.mxu0
    %v3599 = vadd.f32 0.0, %v3598
    %3600 = vmatmul.f32.gmra.mxu0 %v3393
    %v3601 = vpop.f32.mrf.mxu0
    %v3602 = vadd.f32 0.0, %v3601
    %3603 = vmatmul.f32.gmra.mxu0 %v3396
    %v3604 = vpop.f32.mrf.mxu0
    %v3605 = vadd.f32 0.0, %v3604
    %3606 = vmatmul.f32.gmra.mxu0 %v3399
    %v3607 = vpop.f32.mrf.mxu0
    %v3608 = vadd.f32 0.0, %v3607
    %3609 = vmatmul.f32.gmra.mxu0 %v3402
    %v3610 = vpop.f32.mrf.mxu0
    %v3611 = vadd.f32 0.0, %v3610
    %3612 = vmatmul.f32.gmra.mxu0 %v3405
    %v3613 = vpop.f32.mrf.mxu0
    %v3614 = vadd.f32 0.0, %v3613
    %3615 = vmatmul.f32.gmra.mxu0 %v3408
    %v3616 = vpop.f32.mrf.mxu0
    %v3617 = vadd.f32 0.0, %v3616
    %3618 = vmatmul.f32.gmra.mxu0 %v3411
    %v3619 = vpop.f32.mrf.mxu0
    %v3620 = vadd.f32 0.0, %v3619
    %3621 = vmatmul.f32.gmra.mxu0 %v3414
    %v3622 = vpop.f32.mrf.mxu0
    %v3623 = vadd.f32 0.0, %v3622
    %3624 = vmatmul.f32.gmra.mxu0 %v3417
    %v3625 = vpop.f32.mrf.mxu0
    %v3626 = vadd.f32 0.0, %v3625
    %3627 = vmatmul.f32.gmra.mxu0 %v3420
    %v3628 = vpop.f32.mrf.mxu0
    %v3629 = vadd.f32 0.0, %v3628
    %3630 = vmatmul.f32.gmra.mxu0 %v3423
    %v3631 = vpop.f32.mrf.mxu0
    %v3632 = vadd.f32 0.0, %v3631
    %3633 = vmatmul.f32.gmra.mxu0 %v3426
    %v3634 = vpop.f32.mrf.mxu0
    %v3635 = vadd.f32 0.0, %v3634
    %3636 = vmatmul.f32.gmra.mxu0 %v3429
    %v3637 = vpop.f32.mrf.mxu0
    %v3638 = vadd.f32 0.0, %v3637
    %3639 = vmatmul.f32.gmra.mxu0 %v3432
    %v3640 = vpop.f32.mrf.mxu0
    %v3641 = vadd.f32 0.0, %v3640
    %3642 = vmatmul.f32.gmra.mxu0 %v3435
    %v3643 = vpop.f32.mrf.mxu0
    %v3644 = vadd.f32 0.0, %v3643
    %3645 = vmatmul.f32.gmra.mxu0 %v3438
    %v3646 = vpop.f32.mrf.mxu0
    %v3647 = vadd.f32 0.0, %v3646
    %3648 = vmatmul.f32.gmra.mxu0 %v3441
    %v3649 = vpop.f32.mrf.mxu0
    %v3650 = vadd.f32 0.0, %v3649
    %3651 = vmatmul.f32.gmra.mxu0 %v3444
    %v3652 = vpop.f32.mrf.mxu0
    %v3653 = vadd.f32 0.0, %v3652
    %3654 = vmatmul.f32.gmra.mxu0 %v3447
    %v3655 = vpop.f32.mrf.mxu0
    %v3656 = vadd.f32 0.0, %v3655
    %3657 = vmatmul.f32.gmra.mxu0 %v3450
    %v3658 = vpop.f32.mrf.mxu0
    %v3659 = vadd.f32 0.0, %v3658
    %3660 = vmatmul.f32.gmra.mxu0 %v3453
    %v3661 = vpop.f32.mrf.mxu0
    %v3662 = vadd.f32 0.0, %v3661
    %3663 = vmatmul.f32.gmra.mxu0 %v3456
    %v3664 = vpop.f32.mrf.mxu0
    %v3665 = vadd.f32 0.0, %v3664
    %3666 = vmatmul.f32.gmra.mxu0 %v3459
    %v3667 = vpop.f32.mrf.mxu0
    %v3668 = vadd.f32 0.0, %v3667
    %3669 = vmatmul.f32.gmra.mxu0 %v3462
    %v3670 = vpop.f32.mrf.mxu0
    %v3671 = vadd.f32 0.0, %v3670
    %3672 = vmatmul.f32.gmra.mxu0 %v3465
    %v3673 = vpop.f32.mrf.mxu0
    %v3674 = vadd.f32 0.0, %v3673
    %3675 = vmatmul.f32.gmra.mxu0 %v3468
    %v3676 = vpop.f32.mrf.mxu0
    %v3677 = vadd.f32 0.0, %v3676
    %3678 = vmatmul.f32.gmra.mxu0 %v3471
    %v3679 = vpop.f32.mrf.mxu0
    %v3680 = vadd.f32 0.0, %v3679
    %3681 = vmatmul.f32.gmra.mxu0 %v3474
    %v3682 = vpop.f32.mrf.mxu0
    %v3683 = vadd.f32 0.0, %v3682
    %3684 = vmatmul.f32.gmra.mxu0 %v3477
    %v3685 = vpop.f32.mrf.mxu0
    %v3686 = vadd.f32 0.0, %v3685
    %3687 = vmatmul.f32.gmra.mxu0 %v3480
    %v3688 = vpop.f32.mrf.mxu0
    %v3689 = vadd.f32 0.0, %v3688
    %3690 = vmatmul.f32.gmra.mxu0 %v3483
    %v3691 = vpop.f32.mrf.mxu0
    %v3692 = vadd.f32 0.0, %v3691
    %3693 = vmatmul.f32.gmra.mxu0 %v3486
    %v3694 = vpop.f32.mrf.mxu0
    %v3695 = vadd.f32 0.0, %v3694
    %3696 = vmatmul.f32.gmra.mxu0 %v3489
    %v3697 = vpop.f32.mrf.mxu0
    %v3698 = vadd.f32 0.0, %v3697
    %3699 = vmatmul.f32.gmra.mxu0 %v3492
    %v3700 = vpop.f32.mrf.mxu0
    %v3701 = vadd.f32 0.0, %v3700
    %3702 = vmatmul.f32.gmra.mxu0 %v3495
    %v3703 = vpop.f32.mrf.mxu0
    %v3704 = vadd.f32 0.0, %v3703
    %3705 = vmatmul.f32.gmra.mxu0 %v3498
    %v3706 = vpop.f32.mrf.mxu0
    %v3707 = vadd.f32 0.0, %v3706
    %3708 = vmatmul.f32.gmra.mxu0 %v3501
    %v3709 = vpop.f32.mrf.mxu0
    %v3710 = vadd.f32 0.0, %v3709
    %3711 = vmatmul.f32.gmra.mxu0 %v3504
    %v3712 = vpop.f32.mrf.mxu0
    %v3713 = vadd.f32 0.0, %v3712
    %3714 = vmatmul.f32.gmra.mxu0 %v3507
    %v3715 = vpop.f32.mrf.mxu0
    %v3716 = vadd.f32 0.0, %v3715
    %3717 = vmatmul.f32.gmra.mxu0 %v3510
    %v3718 = vpop.f32.mrf.mxu0
    %v3719 = vadd.f32 0.0, %v3718
    %3720 = vmatmul.f32.gmra.mxu0 %v3513
    %v3721 = vpop.f32.mrf.mxu0
    %v3722 = vadd.f32 0.0, %v3721
    %3723 = vmatmul.f32.gmra.mxu0 %v3516
    %v3724 = vpop.f32.mrf.mxu0
    %v3725 = vadd.f32 0.0, %v3724
    %3726 = vmatmul.f32.gmra.mxu0 %v3519
    %v3727 = vpop.f32.mrf.mxu0
    %v3728 = vadd.f32 0.0, %v3727
    %3729 = vmatmul.f32.gmra.mxu0 %v3522
    %v3730 = vpop.f32.mrf.mxu0
    %v3731 = vadd.f32 0.0, %v3730
    %3732 = vmatmul.f32.gmra.mxu0 %v3525
    %v3733 = vpop.f32.mrf.mxu0
    %v3734 = vadd.f32 0.0, %v3733
    %3735 = vmatmul.f32.gmra.mxu0 %v3528
    %v3736 = vpop.f32.mrf.mxu0
    %v3737 = vadd.f32 0.0, %v3736
    %3738 = vmatmul.f32.gmra.mxu0 %v3531
    %v3739 = vpop.f32.mrf.mxu0
    %v3740 = vadd.f32 0.0, %v3739
    %3741 = vmatmul.f32.gmra.mxu0 %v3534
    %v3742 = vpop.f32.mrf.mxu0
    %v3743 = vadd.f32 0.0, %v3742
    %3744 = vmatmul.f32.gmra.mxu0 %v3537
    %v3745 = vpop.f32.mrf.mxu0
    %v3746 = vadd.f32 0.0, %v3745
    %3747 = vmatmul.f32.gmra.mxu0 %v3540
    %v3748 = vpop.f32.mrf.mxu0
    %v3749 = vadd.f32 0.0, %v3748
    %3750 = vmatmul.f32.gmra.mxu0 %v3543
    %v3751 = vpop.f32.mrf.mxu0
    %v3752 = vadd.f32 0.0, %v3751
    %3753 = vmatmul.f32.gmra.mxu0 %v3546
    %v3754 = vpop.f32.mrf.mxu0
    %v3755 = vadd.f32 0.0, %v3754
    %3756 = vmatmul.f32.gmra.mxu0 %v3549
    %v3757 = vpop.f32.mrf.mxu0
    %v3758 = vadd.f32 0.0, %v3757
    %3759 = vmatmul.f32.gmra.mxu0 %v3552
    %v3760 = vpop.f32.mrf.mxu0
    %v3761 = vadd.f32 0.0, %v3760
    %3762 = vmatmul.f32.gmra.mxu0 %v3555
    %v3763 = vpop.f32.mrf.mxu0
    %v3764 = vadd.f32 0.0, %v3763
    %3765 = vmatmul.f32.gmra.mxu0 %v3558
    %v3766 = vpop.f32.mrf.mxu0
    %v3767 = vadd.f32 0.0, %v3766
    %3768 = vmatmul.f32.gmra.mxu0 %v3561
    %v3769 = vpop.f32.mrf.mxu0
    %v3770 = vadd.f32 0.0, %v3769
    %3771 = vmatmul.f32.gmra.mxu0 %v3564
    %v3772 = vpop.f32.mrf.mxu0
    %v3773 = vadd.f32 0.0, %v3772
    %3774 = vmatmul.f32.gmra.mxu0 %v3567
    %v3775 = vpop.f32.mrf.mxu0
    %v3776 = vadd.f32 0.0, %v3775
    %3777 = vmatmul.f32.gmra.mxu0 %v3570
    %v3778 = vpop.f32.mrf.mxu0
    %v3779 = vadd.f32 0.0, %v3778
    %3780 = vmatmul.f32.gmra.mxu0 %v3573
    %v3781 = vpop.f32.mrf.mxu0
    %v3782 = vadd.f32 0.0, %v3781
    %3783 = vdwg.mxu0
    %v3784 = vadd.f32 %v3593, %v3596
    %v3785 = vadd.f32 %v3784, %v3599
    %v3786 = vadd.f32 %v3785, %v3602
    %v3787 = vadd.f32 %v3786, %v3605
    %v3788 = vadd.f32 %v3787, %v3608
    %v3789 = vadd.f32 %v3788, %v3611
    %v3790 = vadd.f32 %v3789, %v3614
    %v3791 = vadd.f32 %v3790, %v3617
    %v3792 = vadd.f32 %v3791, %v3620
    %v3793 = vadd.f32 %v3792, %v3623
    %v3794 = vadd.f32 %v3793, %v3626
    %v3795 = vadd.f32 %v3794, %v3629
    %v3796 = vadd.f32 %v3795, %v3632
    %v3797 = vadd.f32 %v3796, %v3635
    %v3798 = vadd.f32 %v3797, %v3638
    %v3799 = vadd.f32 %v3798, %v3641
    %v3800 = vadd.f32 %v3799, %v3644
    %v3801 = vadd.f32 %v3800, %v3647
    %v3802 = vadd.f32 %v3801, %v3650
    %v3803 = vadd.f32 %v3802, %v3653
    %v3804 = vadd.f32 %v3803, %v3656
    %v3805 = vadd.f32 %v3804, %v3659
    %v3806 = vadd.f32 %v3805, %v3662
    %v3807 = vadd.f32 %v3806, %v3665
    %v3808 = vadd.f32 %v3807, %v3668
    %v3809 = vadd.f32 %v3808, %v3671
    %v3810 = vadd.f32 %v3809, %v3674
    %v3811 = vadd.f32 %v3810, %v3677
    %v3812 = vadd.f32 %v3811, %v3680
    %v3813 = vadd.f32 %v3812, %v3683
    %v3814 = vadd.f32 %v3813, %v3686
    %v3815 = vadd.f32 %v3814, %v3689
    %v3816 = vadd.f32 %v3815, %v3692
    %v3817 = vadd.f32 %v3816, %v3695
    %v3818 = vadd.f32 %v3817, %v3698
    %v3819 = vadd.f32 %v3818, %v3701
    %v3820 = vadd.f32 %v3819, %v3704
    %v3821 = vadd.f32 %v3820, %v3707
    %v3822 = vadd.f32 %v3821, %v3710
    %v3823 = vadd.f32 %v3822, %v3713
    %v3824 = vadd.f32 %v3823, %v3716
    %v3825 = vadd.f32 %v3824, %v3719
    %v3826 = vadd.f32 %v3825, %v3722
    %v3827 = vadd.f32 %v3826, %v3725
    %v3828 = vadd.f32 %v3827, %v3728
    %v3829 = vadd.f32 %v3828, %v3731
    %v3830 = vadd.f32 %v3829, %v3734
    %v3831 = vadd.f32 %v3830, %v3737
    %v3832 = vadd.f32 %v3831, %v3740
    %v3833 = vadd.f32 %v3832, %v3743
    %v3834 = vadd.f32 %v3833, %v3746
    %v3835 = vadd.f32 %v3834, %v3749
    %v3836 = vadd.f32 %v3835, %v3752
    %v3837 = vadd.f32 %v3836, %v3755
    %v3838 = vadd.f32 %v3837, %v3758
    %v3839 = vadd.f32 %v3838, %v3761
    %v3840 = vadd.f32 %v3839, %v3764
    %v3841 = vadd.f32 %v3840, %v3767
    %v3842 = vadd.f32 %v3841, %v3770
    %v3843 = vadd.f32 %v3842, %v3773
    %v3844 = vadd.f32 %v3843, %v3776
    %v3845 = vadd.f32 %v3844, %v3779
    %v3846 = vadd.f32 %v3845, %v3782
    %v3847 = vrot.slane %v3846, 4
    %v3848 = vadd.f32 %v3846, %v3847
    %v3849 = vrot.slane %v3848, 2
    %v3850 = vadd.f32 %v3848, %v3849
    %v3851 = vrot.slane %v3850, 1
    %v3852 = vadd.f32 %v3850, %v3851
    %v3853 = vadd.f32 %v1836, %v3852
    %v3854 = vmul.f32 %v3593, %v3593
    %v3855 = vmul.f32 %v3596, %v3596
    %v3856 = vmul.f32 %v3599, %v3599
    %v3857 = vmul.f32 %v3602, %v3602
    %v3858 = vmul.f32 %v3605, %v3605
    %v3859 = vmul.f32 %v3608, %v3608
    %v3860 = vmul.f32 %v3611, %v3611
    %v3861 = vmul.f32 %v3614, %v3614
    %v3862 = vmul.f32 %v3617, %v3617
    %v3863 = vmul.f32 %v3620, %v3620
    %v3864 = vmul.f32 %v3623, %v3623
    %v3865 = vmul.f32 %v3626, %v3626
    %v3866 = vmul.f32 %v3629, %v3629
    %v3867 = vmul.f32 %v3632, %v3632
    %v3868 = vmul.f32 %v3635, %v3635
    %v3869 = vmul.f32 %v3638, %v3638
    %v3870 = vmul.f32 %v3641, %v3641
    %v3871 = vmul.f32 %v3644, %v3644
    %v3872 = vmul.f32 %v3647, %v3647
    %v3873 = vmul.f32 %v3650, %v3650
    %v3874 = vmul.f32 %v3653, %v3653
    %v3875 = vmul.f32 %v3656, %v3656
    %v3876 = vmul.f32 %v3659, %v3659
    %v3877 = vmul.f32 %v3662, %v3662
    %v3878 = vmul.f32 %v3665, %v3665
    %v3879 = vmul.f32 %v3668, %v3668
    %v3880 = vmul.f32 %v3671, %v3671
    %v3881 = vmul.f32 %v3674, %v3674
    %v3882 = vmul.f32 %v3677, %v3677
    %v3883 = vmul.f32 %v3680, %v3680
    %v3884 = vmul.f32 %v3683, %v3683
    %v3885 = vmul.f32 %v3686, %v3686
    %v3886 = vmul.f32 %v3689, %v3689
    %v3887 = vmul.f32 %v3692, %v3692
    %v3888 = vmul.f32 %v3695, %v3695
    %v3889 = vmul.f32 %v3698, %v3698
    %v3890 = vmul.f32 %v3701, %v3701
    %v3891 = vmul.f32 %v3704, %v3704
    %v3892 = vmul.f32 %v3707, %v3707
    %v3893 = vmul.f32 %v3710, %v3710
    %v3894 = vmul.f32 %v3713, %v3713
    %v3895 = vmul.f32 %v3716, %v3716
    %v3896 = vmul.f32 %v3719, %v3719
    %v3897 = vmul.f32 %v3722, %v3722
    %v3898 = vmul.f32 %v3725, %v3725
    %v3899 = vmul.f32 %v3728, %v3728
    %v3900 = vmul.f32 %v3731, %v3731
    %v3901 = vmul.f32 %v3734, %v3734
    %v3902 = vmul.f32 %v3737, %v3737
    %v3903 = vmul.f32 %v3740, %v3740
    %v3904 = vmul.f32 %v3743, %v3743
    %v3905 = vmul.f32 %v3746, %v3746
    %v3906 = vmul.f32 %v3749, %v3749
    %v3907 = vmul.f32 %v3752, %v3752
    %v3908 = vmul.f32 %v3755, %v3755
    %v3909 = vmul.f32 %v3758, %v3758
    %v3910 = vmul.f32 %v3761, %v3761
    %v3911 = vmul.f32 %v3764, %v3764
    %v3912 = vmul.f32 %v3767, %v3767
    %v3913 = vmul.f32 %v3770, %v3770
    %v3914 = vmul.f32 %v3773, %v3773
    %v3915 = vmul.f32 %v3776, %v3776
    %v3916 = vmul.f32 %v3779, %v3779
    %v3917 = vmul.f32 %v3782, %v3782
    %v3918 = vadd.f32 %v3854, %v3855
    %v3919 = vadd.f32 %v3918, %v3856
    %v3920 = vadd.f32 %v3919, %v3857
    %v3921 = vadd.f32 %v3920, %v3858
    %v3922 = vadd.f32 %v3921, %v3859
    %v3923 = vadd.f32 %v3922, %v3860
    %v3924 = vadd.f32 %v3923, %v3861
    %v3925 = vadd.f32 %v3924, %v3862
    %v3926 = vadd.f32 %v3925, %v3863
    %v3927 = vadd.f32 %v3926, %v3864
    %v3928 = vadd.f32 %v3927, %v3865
    %v3929 = vadd.f32 %v3928, %v3866
    %v3930 = vadd.f32 %v3929, %v3867
    %v3931 = vadd.f32 %v3930, %v3868
    %v3932 = vadd.f32 %v3931, %v3869
    %v3933 = vadd.f32 %v3932, %v3870
    %v3934 = vadd.f32 %v3933, %v3871
    %v3935 = vadd.f32 %v3934, %v3872
    %v3936 = vadd.f32 %v3935, %v3873
    %v3937 = vadd.f32 %v3936, %v3874
    %v3938 = vadd.f32 %v3937, %v3875
    %v3939 = vadd.f32 %v3938, %v3876
    %v3940 = vadd.f32 %v3939, %v3877
    %v3941 = vadd.f32 %v3940, %v3878
    %v3942 = vadd.f32 %v3941, %v3879
    %v3943 = vadd.f32 %v3942, %v3880
    %v3944 = vadd.f32 %v3943, %v3881
    %v3945 = vadd.f32 %v3944, %v3882
    %v3946 = vadd.f32 %v3945, %v3883
    %v3947 = vadd.f32 %v3946, %v3884
    %v3948 = vadd.f32 %v3947, %v3885
    %v3949 = vadd.f32 %v3948, %v3886
    %v3950 = vadd.f32 %v3949, %v3887
    %v3951 = vadd.f32 %v3950, %v3888
    %v3952 = vadd.f32 %v3951, %v3889
    %v3953 = vadd.f32 %v3952, %v3890
    %v3954 = vadd.f32 %v3953, %v3891
    %v3955 = vadd.f32 %v3954, %v3892
    %v3956 = vadd.f32 %v3955, %v3893
    %v3957 = vadd.f32 %v3956, %v3894
    %v3958 = vadd.f32 %v3957, %v3895
    %v3959 = vadd.f32 %v3958, %v3896
    %v3960 = vadd.f32 %v3959, %v3897
    %v3961 = vadd.f32 %v3960, %v3898
    %v3962 = vadd.f32 %v3961, %v3899
    %v3963 = vadd.f32 %v3962, %v3900
    %v3964 = vadd.f32 %v3963, %v3901
    %v3965 = vadd.f32 %v3964, %v3902
    %v3966 = vadd.f32 %v3965, %v3903
    %v3967 = vadd.f32 %v3966, %v3904
    %v3968 = vadd.f32 %v3967, %v3905
    %v3969 = vadd.f32 %v3968, %v3906
    %v3970 = vadd.f32 %v3969, %v3907
    %v3971 = vadd.f32 %v3970, %v3908
    %v3972 = vadd.f32 %v3971, %v3909
    %v3973 = vadd.f32 %v3972, %v3910
    %v3974 = vadd.f32 %v3973, %v3911
    %v3975 = vadd.f32 %v3974, %v3912
    %v3976 = vadd.f32 %v3975, %v3913
    %v3977 = vadd.f32 %v3976, %v3914
    %v3978 = vadd.f32 %v3977, %v3915
    %v3979 = vadd.f32 %v3978, %v3916
    %v3980 = vadd.f32 %v3979, %v3917
    %v3981 = vrot.slane %v3980, 4
    %v3982 = vadd.f32 %v3980, %v3981
    %v3983 = vrot.slane %v3982, 2
    %v3984 = vadd.f32 %v3982, %v3983
    %v3985 = vrot.slane %v3984, 1
    %v3986 = vadd.f32 %v3984, %v3985
    %v3987 = vadd.f32 %v1970, %v3986
    %s3988 = scalar_lea.vmem %s2, 512
    %3989 = vst.msk [vmem:[%s3988] sm:$0xff] %vm1971, %v3593
    %3990 = vst.msk [vmem:[%s3988 + $0x8] sm:$0xff] %vm1971, %v3596
    %3991 = vst.msk [vmem:[%s3988 + $0x10] sm:$0xff] %vm1971, %v3599
    %3992 = vst.msk [vmem:[%s3988 + $0x18] sm:$0xff] %vm1971, %v3602
    %3993 = vst.msk [vmem:[%s3988 + $0x20] sm:$0xff] %vm1971, %v3605
    %3994 = vst.msk [vmem:[%s3988 + $0x28] sm:$0xff] %vm1971, %v3608
    %3995 = vst.msk [vmem:[%s3988 + $0x30] sm:$0xff] %vm1971, %v3611
    %3996 = vst.msk [vmem:[%s3988 + $0x38] sm:$0xff] %vm1971, %v3614
    %3997 = vst.msk [vmem:[%s3988 + $0x40] sm:$0xff] %vm1971, %v3617
    %3998 = vst.msk [vmem:[%s3988 + $0x48] sm:$0xff] %vm1971, %v3620
    %3999 = vst.msk [vmem:[%s3988 + $0x50] sm:$0xff] %vm1971, %v3623
    %4000 = vst.msk [vmem:[%s3988 + $0x58] sm:$0xff] %vm1971, %v3626
    %4001 = vst.msk [vmem:[%s3988 + $0x60] sm:$0xff] %vm1971, %v3629
    %4002 = vst.msk [vmem:[%s3988 + $0x68] sm:$0xff] %vm1971, %v3632
    %4003 = vst.msk [vmem:[%s3988 + $0x70] sm:$0xff] %vm1971, %v3635
    %4004 = vst.msk [vmem:[%s3988 + $0x78] sm:$0xff] %vm1971, %v3638
    %4005 = vst.msk [vmem:[%s3988 + $0x80] sm:$0xff] %vm1971, %v3641
    %4006 = vst.msk [vmem:[%s3988 + $0x88] sm:$0xff] %vm1971, %v3644
    %4007 = vst.msk [vmem:[%s3988 + $0x90] sm:$0xff] %vm1971, %v3647
    %4008 = vst.msk [vmem:[%s3988 + $0x98] sm:$0xff] %vm1971, %v3650
    %4009 = vst.msk [vmem:[%s3988 + $0xa0] sm:$0xff] %vm1971, %v3653
    %4010 = vst.msk [vmem:[%s3988 + $0xa8] sm:$0xff] %vm1971, %v3656
    %4011 = vst.msk [vmem:[%s3988 + $0xb0] sm:$0xff] %vm1971, %v3659
    %4012 = vst.msk [vmem:[%s3988 + $0xb8] sm:$0xff] %vm1971, %v3662
    %4013 = vst.msk [vmem:[%s3988 + $0xc0] sm:$0xff] %vm1971, %v3665
    %4014 = vst.msk [vmem:[%s3988 + $0xc8] sm:$0xff] %vm1971, %v3668
    %4015 = vst.msk [vmem:[%s3988 + $0xd0] sm:$0xff] %vm1971, %v3671
    %4016 = vst.msk [vmem:[%s3988 + $0xd8] sm:$0xff] %vm1971, %v3674
    %4017 = vst.msk [vmem:[%s3988 + $0xe0] sm:$0xff] %vm1971, %v3677
    %4018 = vst.msk [vmem:[%s3988 + $0xe8] sm:$0xff] %vm1971, %v3680
    %4019 = vst.msk [vmem:[%s3988 + $0xf0] sm:$0xff] %vm1971, %v3683
    %4020 = vst.msk [vmem:[%s3988 + $0xf8] sm:$0xff] %vm1971, %v3686
    %4021 = vst.msk [vmem:[%s3988 + $0x100] sm:$0xff] %vm1971, %v3689
    %4022 = vst.msk [vmem:[%s3988 + $0x108] sm:$0xff] %vm1971, %v3692
    %4023 = vst.msk [vmem:[%s3988 + $0x110] sm:$0xff] %vm1971, %v3695
    %4024 = vst.msk [vmem:[%s3988 + $0x118] sm:$0xff] %vm1971, %v3698
    %4025 = vst.msk [vmem:[%s3988 + $0x120] sm:$0xff] %vm1971, %v3701
    %4026 = vst.msk [vmem:[%s3988 + $0x128] sm:$0xff] %vm1971, %v3704
    %4027 = vst.msk [vmem:[%s3988 + $0x130] sm:$0xff] %vm1971, %v3707
    %4028 = vst.msk [vmem:[%s3988 + $0x138] sm:$0xff] %vm1971, %v3710
    %4029 = vst.msk [vmem:[%s3988 + $0x140] sm:$0xff] %vm1971, %v3713
    %4030 = vst.msk [vmem:[%s3988 + $0x148] sm:$0xff] %vm1971, %v3716
    %4031 = vst.msk [vmem:[%s3988 + $0x150] sm:$0xff] %vm1971, %v3719
    %4032 = vst.msk [vmem:[%s3988 + $0x158] sm:$0xff] %vm1971, %v3722
    %4033 = vst.msk [vmem:[%s3988 + $0x160] sm:$0xff] %vm1971, %v3725
    %4034 = vst.msk [vmem:[%s3988 + $0x168] sm:$0xff] %vm1971, %v3728
    %4035 = vst.msk [vmem:[%s3988 + $0x170] sm:$0xff] %vm1971, %v3731
    %4036 = vst.msk [vmem:[%s3988 + $0x178] sm:$0xff] %vm1971, %v3734
    %4037 = vst.msk [vmem:[%s3988 + $0x180] sm:$0xff] %vm1971, %v3737
    %4038 = vst.msk [vmem:[%s3988 + $0x188] sm:$0xff] %vm1971, %v3740
    %4039 = vst.msk [vmem:[%s3988 + $0x190] sm:$0xff] %vm1971, %v3743
    %4040 = vst.msk [vmem:[%s3988 + $0x198] sm:$0xff] %vm1971, %v3746
    %4041 = vst.msk [vmem:[%s3988 + $0x1a0] sm:$0xff] %vm1971, %v3749
    %4042 = vst.msk [vmem:[%s3988 + $0x1a8] sm:$0xff] %vm1971, %v3752
    %4043 = vst.msk [vmem:[%s3988 + $0x1b0] sm:$0xff] %vm1971, %v3755
    %4044 = vst.msk [vmem:[%s3988 + $0x1b8] sm:$0xff] %vm1971, %v3758
    %4045 = vst.msk [vmem:[%s3988 + $0x1c0] sm:$0xff] %vm1971, %v3761
    %4046 = vst.msk [vmem:[%s3988 + $0x1c8] sm:$0xff] %vm1971, %v3764
    %4047 = vst.msk [vmem:[%s3988 + $0x1d0] sm:$0xff] %vm1971, %v3767
    %4048 = vst.msk [vmem:[%s3988 + $0x1d8] sm:$0xff] %vm1971, %v3770
    %4049 = vst.msk [vmem:[%s3988 + $0x1e0] sm:$0xff] %vm1971, %v3773
    %4050 = vst.msk [vmem:[%s3988 + $0x1e8] sm:$0xff] %vm1971, %v3776
    %4051 = vst.msk [vmem:[%s3988 + $0x1f0] sm:$0xff] %vm1971, %v3779
    %4052 = vst.msk [vmem:[%s3988 + $0x1f8] sm:$0xff] %vm1971, %v3782
    %v4053 = vld [vmem:[%s528] sm:$0xff]
    %v4054 = vld [vmem:[%s528 + $0x8] sm:$0xff]
    %v4055 = vld [vmem:[%s528 + $0x18] sm:$0xff]
    %v4056 = vld [vmem:[%s528 + $0x20] sm:$0xff]
    %v4057 = vld [vmem:[%s528 + $0x30] sm:$0xff]
    %v4058 = vld [vmem:[%s528 + $0x38] sm:$0xff]
    %v4059 = vld [vmem:[%s528 + $0x48] sm:$0xff]
    %v4060 = vld [vmem:[%s528 + $0x50] sm:$0xff]
    %v4061 = vld [vmem:[%s528 + $0x60] sm:$0xff]
    %v4062 = vld [vmem:[%s528 + $0x68] sm:$0xff]
    %v4063 = vld [vmem:[%s528 + $0x78] sm:$0xff]
    %v4064 = vld [vmem:[%s528 + $0x80] sm:$0xff]
    %v4065 = vld [vmem:[%s528 + $0x90] sm:$0xff]
    %v4066 = vld [vmem:[%s528 + $0x98] sm:$0xff]
    %v4067 = vld [vmem:[%s528 + $0xa8] sm:$0xff]
    %v4068 = vld [vmem:[%s528 + $0xb0] sm:$0xff]
    %v4069 = vld [vmem:[%s528 + $0xc0] sm:$0xff]
    %v4070 = vld [vmem:[%s528 + $0xc8] sm:$0xff]
    %v4071 = vld [vmem:[%s528 + $0xd8] sm:$0xff]
    %v4072 = vld [vmem:[%s528 + $0xe0] sm:$0xff]
    %v4073 = vld [vmem:[%s528 + $0xf0] sm:$0xff]
    %v4074 = vld [vmem:[%s528 + $0xf8] sm:$0xff]
    %v4075 = vld [vmem:[%s528 + $0x108] sm:$0xff]
    %v4076 = vld [vmem:[%s528 + $0x110] sm:$0xff]
    %v4077 = vld [vmem:[%s528 + $0x120] sm:$0xff]
    %v4078 = vld [vmem:[%s528 + $0x128] sm:$0xff]
    %v4079 = vld [vmem:[%s528 + $0x138] sm:$0xff]
    %v4080 = vld [vmem:[%s528 + $0x140] sm:$0xff]
    %v4081 = vld [vmem:[%s528 + $0x150] sm:$0xff]
    %v4082 = vld [vmem:[%s528 + $0x158] sm:$0xff]
    %v4083 = vld [vmem:[%s528 + $0x168] sm:$0xff]
    %v4084 = vld [vmem:[%s528 + $0x170] sm:$0xff]
    %v4085 = vld [vmem:[%s528 + $0x1b0] sm:$0xff]
    %v4086 = vld [vmem:[%s528 + $0x1b8] sm:$0xff]
    %v4087 = vld [vmem:[%s528 + $0x1c8] sm:$0xff]
    %v4088 = vld [vmem:[%s528 + $0x1d0] sm:$0xff]
    %v4089 = vld [vmem:[%s528 + $0x1e0] sm:$0xff]
    %v4090 = vld [vmem:[%s528 + $0x1e8] sm:$0xff]
    %v4091 = vld [vmem:[%s528 + $0x1f8] sm:$0xff]
    %v4092 = vld [vmem:[%s528 + $0x200] sm:$0xff]
    %v4093 = vld [vmem:[%s528 + $0x210] sm:$0xff]
    %v4094 = vld [vmem:[%s528 + $0x218] sm:$0xff]
    %v4095 = vld [vmem:[%s528 + $0x228] sm:$0xff]
    %v4096 = vld [vmem:[%s528 + $0x230] sm:$0xff]
    %v4097 = vld [vmem:[%s528 + $0x240] sm:$0xff]
    %v4098 = vld [vmem:[%s528 + $0x248] sm:$0xff]
    %v4099 = vld [vmem:[%s528 + $0x258] sm:$0xff]
    %v4100 = vld [vmem:[%s528 + $0x260] sm:$0xff]
    %v4101 = vld [vmem:[%s528 + $0x270] sm:$0xff]
    %v4102 = vld [vmem:[%s528 + $0x278] sm:$0xff]
    %v4103 = vld [vmem:[%s528 + $0x288] sm:$0xff]
    %v4104 = vld [vmem:[%s528 + $0x290] sm:$0xff]
    %v4105 = vld [vmem:[%s528 + $0x2a0] sm:$0xff]
    %v4106 = vld [vmem:[%s528 + $0x2a8] sm:$0xff]
    %v4107 = vld [vmem:[%s528 + $0x2b8] sm:$0xff]
    %v4108 = vld [vmem:[%s528 + $0x2c0] sm:$0xff]
    %v4109 = vld [vmem:[%s528 + $0x2d0] sm:$0xff]
    %v4110 = vld [vmem:[%s528 + $0x2d8] sm:$0xff]
    %v4111 = vld [vmem:[%s528 + $0x2e8] sm:$0xff]
    %v4112 = vld [vmem:[%s528 + $0x2f0] sm:$0xff]
    %v4113 = vld [vmem:[%s528 + $0x300] sm:$0xff]
    %v4114 = vld [vmem:[%s528 + $0x308] sm:$0xff]
    %v4115 = vld [vmem:[%s528 + $0x318] sm:$0xff]
    %v4116 = vld [vmem:[%s528 + $0x320] sm:$0xff]
    %4117 = vst.msk [vmem:[#allocation2] sm:$0xff] %vm78, %v4053
    %4118 = vst.msk [vmem:[#allocation2 + $0x8] sm:$0xff] %vm78, %v4054
    %4119 = vst.msk [vmem:[#allocation2 + $0x10] sm:$0xff] %vm78, %v4055
    %4120 = vst.msk [vmem:[#allocation2 + $0x18] sm:$0xff] %vm78, %v4056
    %4121 = vst.msk [vmem:[#allocation2 + $0x20] sm:$0xff] %vm78, %v4057
    %4122 = vst.msk [vmem:[#allocation2 + $0x28] sm:$0xff] %vm78, %v4058
    %4123 = vst.msk [vmem:[#allocation2 + $0x30] sm:$0xff] %vm78, %v4059
    %4124 = vst.msk [vmem:[#allocation2 + $0x38] sm:$0xff] %vm78, %v4060
    %4125 = vst.msk [vmem:[#allocation2 + $0x40] sm:$0xff] %vm78, %v4061
    %4126 = vst.msk [vmem:[#allocation2 + $0x48] sm:$0xff] %vm78, %v4062
    %4127 = vst.msk [vmem:[#allocation2 + $0x50] sm:$0xff] %vm78, %v4063
    %4128 = vst.msk [vmem:[#allocation2 + $0x58] sm:$0xff] %vm78, %v4064
    %4129 = vst.msk [vmem:[#allocation2 + $0x60] sm:$0xff] %vm78, %v4065
    %4130 = vst.msk [vmem:[#allocation2 + $0x68] sm:$0xff] %vm78, %v4066
    %4131 = vst.msk [vmem:[#allocation2 + $0x70] sm:$0xff] %vm78, %v4067
    %4132 = vst.msk [vmem:[#allocation2 + $0x78] sm:$0xff] %vm78, %v4068
    %4133 = vst.msk [vmem:[#allocation2 + $0x80] sm:$0xff] %vm78, %v4069
    %4134 = vst.msk [vmem:[#allocation2 + $0x88] sm:$0xff] %vm78, %v4070
    %4135 = vst.msk [vmem:[#allocation2 + $0x90] sm:$0xff] %vm78, %v4071
    %4136 = vst.msk [vmem:[#allocation2 + $0x98] sm:$0xff] %vm78, %v4072
    %4137 = vst.msk [vmem:[#allocation2 + $0xa0] sm:$0xff] %vm78, %v4073
    %4138 = vst.msk [vmem:[#allocation2 + $0xa8] sm:$0xff] %vm78, %v4074
    %4139 = vst.msk [vmem:[#allocation2 + $0xb0] sm:$0xff] %vm78, %v4075
    %4140 = vst.msk [vmem:[#allocation2 + $0xb8] sm:$0xff] %vm78, %v4076
    %4141 = vst.msk [vmem:[#allocation2 + $0xc0] sm:$0xff] %vm78, %v4077
    %4142 = vst.msk [vmem:[#allocation2 + $0xc8] sm:$0xff] %vm78, %v4078
    %4143 = vst.msk [vmem:[#allocation2 + $0xd0] sm:$0xff] %vm78, %v4079
    %4144 = vst.msk [vmem:[#allocation2 + $0xd8] sm:$0xff] %vm78, %v4080
    %4145 = vst.msk [vmem:[#allocation2 + $0xe0] sm:$0xff] %vm78, %v4081
    %4146 = vst.msk [vmem:[#allocation2 + $0xe8] sm:$0xff] %vm78, %v4082
    %4147 = vst.msk [vmem:[#allocation2 + $0xf0] sm:$0xff] %vm78, %v4083
    %4148 = vst.msk [vmem:[#allocation2 + $0xf8] sm:$0xff] %vm78, %v4084
    %4149 = vst.msk [vmem:[#allocation2 + $0x100] sm:$0xff] %vm78, %v4085
    %4150 = vst.msk [vmem:[#allocation2 + $0x108] sm:$0xff] %vm78, %v4086
    %4151 = vst.msk [vmem:[#allocation2 + $0x110] sm:$0xff] %vm78, %v4087
    %4152 = vst.msk [vmem:[#allocation2 + $0x118] sm:$0xff] %vm78, %v4088
    %4153 = vst.msk [vmem:[#allocation2 + $0x120] sm:$0xff] %vm78, %v4089
    %4154 = vst.msk [vmem:[#allocation2 + $0x128] sm:$0xff] %vm78, %v4090
    %4155 = vst.msk [vmem:[#allocation2 + $0x130] sm:$0xff] %vm78, %v4091
    %4156 = vst.msk [vmem:[#allocation2 + $0x138] sm:$0xff] %vm78, %v4092
    %4157 = vst.msk [vmem:[#allocation2 + $0x140] sm:$0xff] %vm78, %v4093
    %4158 = vst.msk [vmem:[#allocation2 + $0x148] sm:$0xff] %vm78, %v4094
    %4159 = vst.msk [vmem:[#allocation2 + $0x150] sm:$0xff] %vm78, %v4095
    %4160 = vst.msk [vmem:[#allocation2 + $0x158] sm:$0xff] %vm78, %v4096
    %4161 = vst.msk [vmem:[#allocation2 + $0x160] sm:$0xff] %vm78, %v4097
    %4162 = vst.msk [vmem:[#allocation2 + $0x168] sm:$0xff] %vm78, %v4098
    %4163 = vst.msk [vmem:[#allocation2 + $0x170] sm:$0xff] %vm78, %v4099
    %4164 = vst.msk [vmem:[#allocation2 + $0x178] sm:$0xff] %vm78, %v4100
    %4165 = vst.msk [vmem:[#allocation2 + $0x180] sm:$0xff] %vm78, %v4101
    %4166 = vst.msk [vmem:[#allocation2 + $0x188] sm:$0xff] %vm78, %v4102
    %4167 = vst.msk [vmem:[#allocation2 + $0x190] sm:$0xff] %vm78, %v4103
    %4168 = vst.msk [vmem:[#allocation2 + $0x198] sm:$0xff] %vm78, %v4104
    %4169 = vst.msk [vmem:[#allocation2 + $0x1a0] sm:$0xff] %vm78, %v4105
    %4170 = vst.msk [vmem:[#allocation2 + $0x1a8] sm:$0xff] %vm78, %v4106
    %4171 = vst.msk [vmem:[#allocation2 + $0x1b0] sm:$0xff] %vm78, %v4107
    %4172 = vst.msk [vmem:[#allocation2 + $0x1b8] sm:$0xff] %vm78, %v4108
    %4173 = vst.msk [vmem:[#allocation2 + $0x1c0] sm:$0xff] %vm78, %v4109
    %4174 = vst.msk [vmem:[#allocation2 + $0x1c8] sm:$0xff] %vm78, %v4110
    %4175 = vst.msk [vmem:[#allocation2 + $0x1d0] sm:$0xff] %vm78, %v4111
    %4176 = vst.msk [vmem:[#allocation2 + $0x1d8] sm:$0xff] %vm78, %v4112
    %4177 = vst.msk [vmem:[#allocation2 + $0x1e0] sm:$0xff] %vm78, %v4113
    %4178 = vst.msk [vmem:[#allocation2 + $0x1e8] sm:$0xff] %vm78, %v4114
    %4179 = vst.msk [vmem:[#allocation2 + $0x1f0] sm:$0xff] %vm78, %v4115
    %4180 = vst.msk [vmem:[#allocation2 + $0x1f8] sm:$0xff] %vm78, %v4116
    %v4181 = vld [vmem:[%s528 + $0x1] sm:$0xff]
    %v4182 = vld [vmem:[%s528 + $0x9] sm:$0xff]
    %v4183 = vld [vmem:[%s528 + $0x19] sm:$0xff]
    %v4184 = vld [vmem:[%s528 + $0x21] sm:$0xff]
    %v4185 = vld [vmem:[%s528 + $0x31] sm:$0xff]
    %v4186 = vld [vmem:[%s528 + $0x39] sm:$0xff]
    %v4187 = vld [vmem:[%s528 + $0x49] sm:$0xff]
    %v4188 = vld [vmem:[%s528 + $0x51] sm:$0xff]
    %v4189 = vld [vmem:[%s528 + $0x61] sm:$0xff]
    %v4190 = vld [vmem:[%s528 + $0x69] sm:$0xff]
    %v4191 = vld [vmem:[%s528 + $0x79] sm:$0xff]
    %v4192 = vld [vmem:[%s528 + $0x81] sm:$0xff]
    %v4193 = vld [vmem:[%s528 + $0x91] sm:$0xff]
    %v4194 = vld [vmem:[%s528 + $0x99] sm:$0xff]
    %v4195 = vld [vmem:[%s528 + $0xa9] sm:$0xff]
    %v4196 = vld [vmem:[%s528 + $0xb1] sm:$0xff]
    %v4197 = vld [vmem:[%s528 + $0xc1] sm:$0xff]
    %v4198 = vld [vmem:[%s528 + $0xc9] sm:$0xff]
    %v4199 = vld [vmem:[%s528 + $0xd9] sm:$0xff]
    %v4200 = vld [vmem:[%s528 + $0xe1] sm:$0xff]
    %v4201 = vld [vmem:[%s528 + $0xf1] sm:$0xff]
    %v4202 = vld [vmem:[%s528 + $0xf9] sm:$0xff]
    %v4203 = vld [vmem:[%s528 + $0x109] sm:$0xff]
    %v4204 = vld [vmem:[%s528 + $0x111] sm:$0xff]
    %v4205 = vld [vmem:[%s528 + $0x121] sm:$0xff]
    %v4206 = vld [vmem:[%s528 + $0x129] sm:$0xff]
    %v4207 = vld [vmem:[%s528 + $0x139] sm:$0xff]
    %v4208 = vld [vmem:[%s528 + $0x141] sm:$0xff]
    %v4209 = vld [vmem:[%s528 + $0x151] sm:$0xff]
    %v4210 = vld [vmem:[%s528 + $0x159] sm:$0xff]
    %v4211 = vld [vmem:[%s528 + $0x169] sm:$0xff]
    %v4212 = vld [vmem:[%s528 + $0x171] sm:$0xff]
    %v4213 = vld [vmem:[%s528 + $0x1b1] sm:$0xff]
    %v4214 = vld [vmem:[%s528 + $0x1b9] sm:$0xff]
    %v4215 = vld [vmem:[%s528 + $0x1c9] sm:$0xff]
    %v4216 = vld [vmem:[%s528 + $0x1d1] sm:$0xff]
    %v4217 = vld [vmem:[%s528 + $0x1e1] sm:$0xff]
    %v4218 = vld [vmem:[%s528 + $0x1e9] sm:$0xff]
    %v4219 = vld [vmem:[%s528 + $0x1f9] sm:$0xff]
    %v4220 = vld [vmem:[%s528 + $0x201] sm:$0xff]
    %v4221 = vld [vmem:[%s528 + $0x211] sm:$0xff]
    %v4222 = vld [vmem:[%s528 + $0x219] sm:$0xff]
    %v4223 = vld [vmem:[%s528 + $0x229] sm:$0xff]
    %v4224 = vld [vmem:[%s528 + $0x231] sm:$0xff]
    %v4225 = vld [vmem:[%s528 + $0x241] sm:$0xff]
    %v4226 = vld [vmem:[%s528 + $0x249] sm:$0xff]
    %v4227 = vld [vmem:[%s528 + $0x259] sm:$0xff]
    %v4228 = vld [vmem:[%s528 + $0x261] sm:$0xff]
    %v4229 = vld [vmem:[%s528 + $0x271] sm:$0xff]
    %v4230 = vld [vmem:[%s528 + $0x279] sm:$0xff]
    %v4231 = vld [vmem:[%s528 + $0x289] sm:$0xff]
    %v4232 = vld [vmem:[%s528 + $0x291] sm:$0xff]
    %v4233 = vld [vmem:[%s528 + $0x2a1] sm:$0xff]
    %v4234 = vld [vmem:[%s528 + $0x2a9] sm:$0xff]
    %v4235 = vld [vmem:[%s528 + $0x2b9] sm:$0xff]
    %v4236 = vld [vmem:[%s528 + $0x2c1] sm:$0xff]
    %v4237 = vld [vmem:[%s528 + $0x2d1] sm:$0xff]
    %v4238 = vld [vmem:[%s528 + $0x2d9] sm:$0xff]
    %v4239 = vld [vmem:[%s528 + $0x2e9] sm:$0xff]
    %v4240 = vld [vmem:[%s528 + $0x2f1] sm:$0xff]
    %v4241 = vld [vmem:[%s528 + $0x301] sm:$0xff]
    %v4242 = vld [vmem:[%s528 + $0x309] sm:$0xff]
    %v4243 = vld [vmem:[%s528 + $0x319] sm:$0xff]
    %v4244 = vld [vmem:[%s528 + $0x321] sm:$0xff]
    %4309 = vrot.lane.b32.xlu0 %v4181, 4
    %v4310 = vpop.permute.xlu0 %4309
    %4311 = vrot.lane.b32.xlu0 %v4182, 4
    %v4312 = vpop.permute.xlu0 %4311
    %4313 = vrot.lane.b32.xlu0 %v4183, 4
    %v4314 = vpop.permute.xlu0 %4313
    %4315 = vrot.lane.b32.xlu0 %v4184, 4
    %v4316 = vpop.permute.xlu0 %4315
    %4317 = vrot.lane.b32.xlu0 %v4185, 4
    %v4318 = vpop.permute.xlu0 %4317
    %4319 = vrot.lane.b32.xlu0 %v4186, 4
    %v4320 = vpop.permute.xlu0 %4319
    %4321 = vrot.lane.b32.xlu0 %v4187, 4
    %v4322 = vpop.permute.xlu0 %4321
    %4323 = vrot.lane.b32.xlu0 %v4188, 4
    %v4324 = vpop.permute.xlu0 %4323
    %4325 = vrot.lane.b32.xlu0 %v4189, 4
    %v4326 = vpop.permute.xlu0 %4325
    %4327 = vrot.lane.b32.xlu0 %v4190, 4
    %v4328 = vpop.permute.xlu0 %4327
    %4329 = vrot.lane.b32.xlu0 %v4191, 4
    %v4330 = vpop.permute.xlu0 %4329
    %4331 = vrot.lane.b32.xlu0 %v4192, 4
    %v4332 = vpop.permute.xlu0 %4331
    %4333 = vrot.lane.b32.xlu0 %v4193, 4
    %v4334 = vpop.permute.xlu0 %4333
    %4335 = vrot.lane.b32.xlu0 %v4194, 4
    %v4336 = vpop.permute.xlu0 %4335
    %4337 = vrot.lane.b32.xlu0 %v4195, 4
    %v4338 = vpop.permute.xlu0 %4337
    %4339 = vrot.lane.b32.xlu0 %v4196, 4
    %v4340 = vpop.permute.xlu0 %4339
    %4341 = vrot.lane.b32.xlu0 %v4197, 4
    %v4342 = vpop.permute.xlu0 %4341
    %4343 = vrot.lane.b32.xlu0 %v4198, 4
    %v4344 = vpop.permute.xlu0 %4343
    %4345 = vrot.lane.b32.xlu0 %v4199, 4
    %v4346 = vpop.permute.xlu0 %4345
    %4347 = vrot.lane.b32.xlu0 %v4200, 4
    %v4348 = vpop.permute.xlu0 %4347
    %4349 = vrot.lane.b32.xlu0 %v4201, 4
    %v4350 = vpop.permute.xlu0 %4349
    %4351 = vrot.lane.b32.xlu0 %v4202, 4
    %v4352 = vpop.permute.xlu0 %4351
    %4353 = vrot.lane.b32.xlu0 %v4203, 4
    %v4354 = vpop.permute.xlu0 %4353
    %4355 = vrot.lane.b32.xlu0 %v4204, 4
    %v4356 = vpop.permute.xlu0 %4355
    %4357 = vrot.lane.b32.xlu0 %v4205, 4
    %v4358 = vpop.permute.xlu0 %4357
    %4359 = vrot.lane.b32.xlu0 %v4206, 4
    %v4360 = vpop.permute.xlu0 %4359
    %4361 = vrot.lane.b32.xlu0 %v4207, 4
    %v4362 = vpop.permute.xlu0 %4361
    %4363 = vrot.lane.b32.xlu0 %v4208, 4
    %v4364 = vpop.permute.xlu0 %4363
    %4365 = vrot.lane.b32.xlu0 %v4209, 4
    %v4366 = vpop.permute.xlu0 %4365
    %4367 = vrot.lane.b32.xlu0 %v4210, 4
    %v4368 = vpop.permute.xlu0 %4367
    %4369 = vrot.lane.b32.xlu0 %v4211, 4
    %v4370 = vpop.permute.xlu0 %4369
    %4371 = vrot.lane.b32.xlu0 %v4212, 4
    %v4372 = vpop.permute.xlu0 %4371
    %4373 = vrot.lane.b32.xlu0 %v4213, 4
    %v4374 = vpop.permute.xlu0 %4373
    %4375 = vrot.lane.b32.xlu0 %v4214, 4
    %v4376 = vpop.permute.xlu0 %4375
    %4377 = vrot.lane.b32.xlu0 %v4215, 4
    %v4378 = vpop.permute.xlu0 %4377
    %4379 = vrot.lane.b32.xlu0 %v4216, 4
    %v4380 = vpop.permute.xlu0 %4379
    %4381 = vrot.lane.b32.xlu0 %v4217, 4
    %v4382 = vpop.permute.xlu0 %4381
    %4383 = vrot.lane.b32.xlu0 %v4218, 4
    %v4384 = vpop.permute.xlu0 %4383
    %4385 = vrot.lane.b32.xlu0 %v4219, 4
    %v4386 = vpop.permute.xlu0 %4385
    %4387 = vrot.lane.b32.xlu0 %v4220, 4
    %v4388 = vpop.permute.xlu0 %4387
    %4389 = vrot.lane.b32.xlu0 %v4221, 4
    %v4390 = vpop.permute.xlu0 %4389
    %4391 = vrot.lane.b32.xlu0 %v4222, 4
    %v4392 = vpop.permute.xlu0 %4391
    %4393 = vrot.lane.b32.xlu0 %v4223, 4
    %v4394 = vpop.permute.xlu0 %4393
    %4395 = vrot.lane.b32.xlu0 %v4224, 4
    %v4396 = vpop.permute.xlu0 %4395
    %4397 = vrot.lane.b32.xlu0 %v4225, 4
    %v4398 = vpop.permute.xlu0 %4397
    %4399 = vrot.lane.b32.xlu0 %v4226, 4
    %v4400 = vpop.permute.xlu0 %4399
    %4401 = vrot.lane.b32.xlu0 %v4227, 4
    %v4402 = vpop.permute.xlu0 %4401
    %4403 = vrot.lane.b32.xlu0 %v4228, 4
    %v4404 = vpop.permute.xlu0 %4403
    %4405 = vrot.lane.b32.xlu0 %v4229, 4
    %v4406 = vpop.permute.xlu0 %4405
    %4407 = vrot.lane.b32.xlu0 %v4230, 4
    %v4408 = vpop.permute.xlu0 %4407
    %4409 = vrot.lane.b32.xlu0 %v4231, 4
    %v4410 = vpop.permute.xlu0 %4409
    %4411 = vrot.lane.b32.xlu0 %v4232, 4
    %v4412 = vpop.permute.xlu0 %4411
    %4413 = vrot.lane.b32.xlu0 %v4233, 4
    %v4414 = vpop.permute.xlu0 %4413
    %4415 = vrot.lane.b32.xlu0 %v4234, 4
    %v4416 = vpop.permute.xlu0 %4415
    %4417 = vrot.lane.b32.xlu0 %v4235, 4
    %v4418 = vpop.permute.xlu0 %4417
    %4419 = vrot.lane.b32.xlu0 %v4236, 4
    %v4420 = vpop.permute.xlu0 %4419
    %4421 = vrot.lane.b32.xlu0 %v4237, 4
    %v4422 = vpop.permute.xlu0 %4421
    %4423 = vrot.lane.b32.xlu0 %v4238, 4
    %v4424 = vpop.permute.xlu0 %4423
    %4425 = vrot.lane.b32.xlu0 %v4239, 4
    %v4426 = vpop.permute.xlu0 %4425
    %4427 = vrot.lane.b32.xlu0 %v4240, 4
    %v4428 = vpop.permute.xlu0 %4427
    %4429 = vrot.lane.b32.xlu0 %v4241, 4
    %v4430 = vpop.permute.xlu0 %4429
    %4431 = vrot.lane.b32.xlu0 %v4242, 4
    %v4432 = vpop.permute.xlu0 %4431
    %4433 = vrot.lane.b32.xlu0 %v4243, 4
    %v4434 = vpop.permute.xlu0 %4433
    %4435 = vrot.lane.b32.xlu0 %v4244, 4
    %v4436 = vpop.permute.xlu0 %4435
    %4501 = vst.msk [vmem:[#allocation2] sm:$0xff] %vm463, %v4310
    %4502 = vst.msk [vmem:[#allocation2 + $0x8] sm:$0xff] %vm463, %v4312
    %4503 = vst.msk [vmem:[#allocation2 + $0x10] sm:$0xff] %vm463, %v4314
    %4504 = vst.msk [vmem:[#allocation2 + $0x18] sm:$0xff] %vm463, %v4316
    %4505 = vst.msk [vmem:[#allocation2 + $0x20] sm:$0xff] %vm463, %v4318
    %4506 = vst.msk [vmem:[#allocation2 + $0x28] sm:$0xff] %vm463, %v4320
    %4507 = vst.msk [vmem:[#allocation2 + $0x30] sm:$0xff] %vm463, %v4322
    %4508 = vst.msk [vmem:[#allocation2 + $0x38] sm:$0xff] %vm463, %v4324
    %4509 = vst.msk [vmem:[#allocation2 + $0x40] sm:$0xff] %vm463, %v4326
    %4510 = vst.msk [vmem:[#allocation2 + $0x48] sm:$0xff] %vm463, %v4328
    %4511 = vst.msk [vmem:[#allocation2 + $0x50] sm:$0xff] %vm463, %v4330
    %4512 = vst.msk [vmem:[#allocation2 + $0x58] sm:$0xff] %vm463, %v4332
    %4513 = vst.msk [vmem:[#allocation2 + $0x60] sm:$0xff] %vm463, %v4334
    %4514 = vst.msk [vmem:[#allocation2 + $0x68] sm:$0xff] %vm463, %v4336
    %4515 = vst.msk [vmem:[#allocation2 + $0x70] sm:$0xff] %vm463, %v4338
    %4516 = vst.msk [vmem:[#allocation2 + $0x78] sm:$0xff] %vm463, %v4340
    %4517 = vst.msk [vmem:[#allocation2 + $0x80] sm:$0xff] %vm463, %v4342
    %4518 = vst.msk [vmem:[#allocation2 + $0x88] sm:$0xff] %vm463, %v4344
    %4519 = vst.msk [vmem:[#allocation2 + $0x90] sm:$0xff] %vm463, %v4346
    %4520 = vst.msk [vmem:[#allocation2 + $0x98] sm:$0xff] %vm463, %v4348
    %4521 = vst.msk [vmem:[#allocation2 + $0xa0] sm:$0xff] %vm463, %v4350
    %4522 = vst.msk [vmem:[#allocation2 + $0xa8] sm:$0xff] %vm463, %v4352
    %4523 = vst.msk [vmem:[#allocation2 + $0xb0] sm:$0xff] %vm463, %v4354
    %4524 = vst.msk [vmem:[#allocation2 + $0xb8] sm:$0xff] %vm463, %v4356
    %4525 = vst.msk [vmem:[#allocation2 + $0xc0] sm:$0xff] %vm463, %v4358
    %4526 = vst.msk [vmem:[#allocation2 + $0xc8] sm:$0xff] %vm463, %v4360
    %4527 = vst.msk [vmem:[#allocation2 + $0xd0] sm:$0xff] %vm463, %v4362
    %4528 = vst.msk [vmem:[#allocation2 + $0xd8] sm:$0xff] %vm463, %v4364
    %4529 = vst.msk [vmem:[#allocation2 + $0xe0] sm:$0xff] %vm463, %v4366
    %4530 = vst.msk [vmem:[#allocation2 + $0xe8] sm:$0xff] %vm463, %v4368
    %4531 = vst.msk [vmem:[#allocation2 + $0xf0] sm:$0xff] %vm463, %v4370
    %4532 = vst.msk [vmem:[#allocation2 + $0xf8] sm:$0xff] %vm463, %v4372
    %4533 = vst.msk [vmem:[#allocation2 + $0x100] sm:$0xff] %vm463, %v4374
    %4534 = vst.msk [vmem:[#allocation2 + $0x108] sm:$0xff] %vm463, %v4376
    %4535 = vst.msk [vmem:[#allocation2 + $0x110] sm:$0xff] %vm463, %v4378
    %4536 = vst.msk [vmem:[#allocation2 + $0x118] sm:$0xff] %vm463, %v4380
    %4537 = vst.msk [vmem:[#allocation2 + $0x120] sm:$0xff] %vm463, %v4382
    %4538 = vst.msk [vmem:[#allocation2 + $0x128] sm:$0xff] %vm463, %v4384
    %4539 = vst.msk [vmem:[#allocation2 + $0x130] sm:$0xff] %vm463, %v4386
    %4540 = vst.msk [vmem:[#allocation2 + $0x138] sm:$0xff] %vm463, %v4388
    %4541 = vst.msk [vmem:[#allocation2 + $0x140] sm:$0xff] %vm463, %v4390
    %4542 = vst.msk [vmem:[#allocation2 + $0x148] sm:$0xff] %vm463, %v4392
    %4543 = vst.msk [vmem:[#allocation2 + $0x150] sm:$0xff] %vm463, %v4394
    %4544 = vst.msk [vmem:[#allocation2 + $0x158] sm:$0xff] %vm463, %v4396
    %4545 = vst.msk [vmem:[#allocation2 + $0x160] sm:$0xff] %vm463, %v4398
    %4546 = vst.msk [vmem:[#allocation2 + $0x168] sm:$0xff] %vm463, %v4400
    %4547 = vst.msk [vmem:[#allocation2 + $0x170] sm:$0xff] %vm463, %v4402
    %4548 = vst.msk [vmem:[#allocation2 + $0x178] sm:$0xff] %vm463, %v4404
    %4549 = vst.msk [vmem:[#allocation2 + $0x180] sm:$0xff] %vm463, %v4406
    %4550 = vst.msk [vmem:[#allocation2 + $0x188] sm:$0xff] %vm463, %v4408
    %4551 = vst.msk [vmem:[#allocation2 + $0x190] sm:$0xff] %vm463, %v4410
    %4552 = vst.msk [vmem:[#allocation2 + $0x198] sm:$0xff] %vm463, %v4412
    %4553 = vst.msk [vmem:[#allocation2 + $0x1a0] sm:$0xff] %vm463, %v4414
    %4554 = vst.msk [vmem:[#allocation2 + $0x1a8] sm:$0xff] %vm463, %v4416
    %4555 = vst.msk [vmem:[#allocation2 + $0x1b0] sm:$0xff] %vm463, %v4418
    %4556 = vst.msk [vmem:[#allocation2 + $0x1b8] sm:$0xff] %vm463, %v4420
    %4557 = vst.msk [vmem:[#allocation2 + $0x1c0] sm:$0xff] %vm463, %v4422
    %4558 = vst.msk [vmem:[#allocation2 + $0x1c8] sm:$0xff] %vm463, %v4424
    %4559 = vst.msk [vmem:[#allocation2 + $0x1d0] sm:$0xff] %vm463, %v4426
    %4560 = vst.msk [vmem:[#allocation2 + $0x1d8] sm:$0xff] %vm463, %v4428
    %4561 = vst.msk [vmem:[#allocation2 + $0x1e0] sm:$0xff] %vm463, %v4430
    %4562 = vst.msk [vmem:[#allocation2 + $0x1e8] sm:$0xff] %vm463, %v4432
    %4563 = vst.msk [vmem:[#allocation2 + $0x1f0] sm:$0xff] %vm463, %v4434
    %4564 = vst.msk [vmem:[#allocation2 + $0x1f8] sm:$0xff] %vm463, %v4436
    %s4565 = scalar_lea.vmem %s0, 48
    %v4566 = vld [vmem:[%s4565] sm:$0xff]
    %v4567 = vld [vmem:[%s4565 + $0x8] sm:$0xff]
    %v4568 = vld [vmem:[%s4565 + $0x18] sm:$0xff]
    %v4569 = vld [vmem:[%s4565 + $0x20] sm:$0xff]
    %v4570 = vld [vmem:[%s4565 + $0x30] sm:$0xff]
    %v4571 = vld [vmem:[%s4565 + $0x38] sm:$0xff]
    %v4572 = vld [vmem:[%s4565 + $0x48] sm:$0xff]
    %v4573 = vld [vmem:[%s4565 + $0x50] sm:$0xff]
    %v4574 = vld [vmem:[%s4565 + $0x60] sm:$0xff]
    %v4575 = vld [vmem:[%s4565 + $0x68] sm:$0xff]
    %v4576 = vld [vmem:[%s4565 + $0x78] sm:$0xff]
    %v4577 = vld [vmem:[%s4565 + $0x80] sm:$0xff]
    %v4578 = vld [vmem:[%s4565 + $0x90] sm:$0xff]
    %v4579 = vld [vmem:[%s4565 + $0x98] sm:$0xff]
    %v4580 = vld [vmem:[%s4565 + $0xa8] sm:$0xff]
    %v4581 = vld [vmem:[%s4565 + $0xb0] sm:$0xff]
    %v4582 = vld [vmem:[%s4565 + $0xc0] sm:$0xff]
    %v4583 = vld [vmem:[%s4565 + $0xc8] sm:$0xff]
    %v4584 = vld [vmem:[%s4565 + $0xd8] sm:$0xff]
    %v4585 = vld [vmem:[%s4565 + $0xe0] sm:$0xff]
    %v4586 = vld [vmem:[%s4565 + $0xf0] sm:$0xff]
    %v4587 = vld [vmem:[%s4565 + $0xf8] sm:$0xff]
    %v4588 = vld [vmem:[%s4565 + $0x108] sm:$0xff]
    %v4589 = vld [vmem:[%s4565 + $0x110] sm:$0xff]
    %v4590 = vld [vmem:[%s4565 + $0x120] sm:$0xff]
    %v4591 = vld [vmem:[%s4565 + $0x128] sm:$0xff]
    %v4592 = vld [vmem:[%s4565 + $0x138] sm:$0xff]
    %v4593 = vld [vmem:[%s4565 + $0x140] sm:$0xff]
    %v4594 = vld [vmem:[%s4565 + $0x150] sm:$0xff]
    %v4595 = vld [vmem:[%s4565 + $0x158] sm:$0xff]
    %v4596 = vld [vmem:[%s4565 + $0x168] sm:$0xff]
    %v4597 = vld [vmem:[%s4565 + $0x170] sm:$0xff]
    %v4598 = vld [vmem:[%s4565 + $0x1b0] sm:$0xff]
    %v4599 = vld [vmem:[%s4565 + $0x1b8] sm:$0xff]
    %v4600 = vld [vmem:[%s4565 + $0x1c8] sm:$0xff]
    %v4601 = vld [vmem:[%s4565 + $0x1d0] sm:$0xff]
    %v4602 = vld [vmem:[%s4565 + $0x1e0] sm:$0xff]
    %v4603 = vld [vmem:[%s4565 + $0x1e8] sm:$0xff]
    %v4604 = vld [vmem:[%s4565 + $0x1f8] sm:$0xff]
    %v4605 = vld [vmem:[%s4565 + $0x200] sm:$0xff]
    %v4606 = vld [vmem:[%s4565 + $0x210] sm:$0xff]
    %v4607 = vld [vmem:[%s4565 + $0x218] sm:$0xff]
    %v4608 = vld [vmem:[%s4565 + $0x228] sm:$0xff]
    %v4609 = vld [vmem:[%s4565 + $0x230] sm:$0xff]
    %v4610 = vld [vmem:[%s4565 + $0x240] sm:$0xff]
    %v4611 = vld [vmem:[%s4565 + $0x248] sm:$0xff]
    %v4612 = vld [vmem:[%s4565 + $0x258] sm:$0xff]
    %v4613 = vld [vmem:[%s4565 + $0x260] sm:$0xff]
    %v4614 = vld [vmem:[%s4565 + $0x270] sm:$0xff]
    %v4615 = vld [vmem:[%s4565 + $0x278] sm:$0xff]
    %v4616 = vld [vmem:[%s4565 + $0x288] sm:$0xff]
    %v4617 = vld [vmem:[%s4565 + $0x290] sm:$0xff]
    %v4618 = vld [vmem:[%s4565 + $0x2a0] sm:$0xff]
    %v4619 = vld [vmem:[%s4565 + $0x2a8] sm:$0xff]
    %v4620 = vld [vmem:[%s4565 + $0x2b8] sm:$0xff]
    %v4621 = vld [vmem:[%s4565 + $0x2c0] sm:$0xff]
    %v4622 = vld [vmem:[%s4565 + $0x2d0] sm:$0xff]
    %v4623 = vld [vmem:[%s4565 + $0x2d8] sm:$0xff]
    %v4624 = vld [vmem:[%s4565 + $0x2e8] sm:$0xff]
    %v4625 = vld [vmem:[%s4565 + $0x2f0] sm:$0xff]
    %v4626 = vld [vmem:[%s4565 + $0x300] sm:$0xff]
    %v4627 = vld [vmem:[%s4565 + $0x308] sm:$0xff]
    %v4628 = vld [vmem:[%s4565 + $0x318] sm:$0xff]
    %v4629 = vld [vmem:[%s4565 + $0x320] sm:$0xff]
    %4694 = vrot.lane.b32.xlu0 %v4566, 8
    %v4695 = vpop.permute.xlu0 %4694
    %4696 = vrot.lane.b32.xlu0 %v4567, 8
    %v4697 = vpop.permute.xlu0 %4696
    %4698 = vrot.lane.b32.xlu0 %v4568, 8
    %v4699 = vpop.permute.xlu0 %4698
    %4700 = vrot.lane.b32.xlu0 %v4569, 8
    %v4701 = vpop.permute.xlu0 %4700
    %4702 = vrot.lane.b32.xlu0 %v4570, 8
    %v4703 = vpop.permute.xlu0 %4702
    %4704 = vrot.lane.b32.xlu0 %v4571, 8
    %v4705 = vpop.permute.xlu0 %4704
    %4706 = vrot.lane.b32.xlu0 %v4572, 8
    %v4707 = vpop.permute.xlu0 %4706
    %4708 = vrot.lane.b32.xlu0 %v4573, 8
    %v4709 = vpop.permute.xlu0 %4708
    %4710 = vrot.lane.b32.xlu0 %v4574, 8
    %v4711 = vpop.permute.xlu0 %4710
    %4712 = vrot.lane.b32.xlu0 %v4575, 8
    %v4713 = vpop.permute.xlu0 %4712
    %4714 = vrot.lane.b32.xlu0 %v4576, 8
    %v4715 = vpop.permute.xlu0 %4714
    %4716 = vrot.lane.b32.xlu0 %v4577, 8
    %v4717 = vpop.permute.xlu0 %4716
    %4718 = vrot.lane.b32.xlu0 %v4578, 8
    %v4719 = vpop.permute.xlu0 %4718
    %4720 = vrot.lane.b32.xlu0 %v4579, 8
    %v4721 = vpop.permute.xlu0 %4720
    %4722 = vrot.lane.b32.xlu0 %v4580, 8
    %v4723 = vpop.permute.xlu0 %4722
    %4724 = vrot.lane.b32.xlu0 %v4581, 8
    %v4725 = vpop.permute.xlu0 %4724
    %4726 = vrot.lane.b32.xlu0 %v4582, 8
    %v4727 = vpop.permute.xlu0 %4726
    %4728 = vrot.lane.b32.xlu0 %v4583, 8
    %v4729 = vpop.permute.xlu0 %4728
    %4730 = vrot.lane.b32.xlu0 %v4584, 8
    %v4731 = vpop.permute.xlu0 %4730
    %4732 = vrot.lane.b32.xlu0 %v4585, 8
    %v4733 = vpop.permute.xlu0 %4732
    %4734 = vrot.lane.b32.xlu0 %v4586, 8
    %v4735 = vpop.permute.xlu0 %4734
    %4736 = vrot.lane.b32.xlu0 %v4587, 8
    %v4737 = vpop.permute.xlu0 %4736
    %4738 = vrot.lane.b32.xlu0 %v4588, 8
    %v4739 = vpop.permute.xlu0 %4738
    %4740 = vrot.lane.b32.xlu0 %v4589, 8
    %v4741 = vpop.permute.xlu0 %4740
    %4742 = vrot.lane.b32.xlu0 %v4590, 8
    %v4743 = vpop.permute.xlu0 %4742
    %4744 = vrot.lane.b32.xlu0 %v4591, 8
    %v4745 = vpop.permute.xlu0 %4744
    %4746 = vrot.lane.b32.xlu0 %v4592, 8
    %v4747 = vpop.permute.xlu0 %4746
    %4748 = vrot.lane.b32.xlu0 %v4593, 8
    %v4749 = vpop.permute.xlu0 %4748
    %4750 = vrot.lane.b32.xlu0 %v4594, 8
    %v4751 = vpop.permute.xlu0 %4750
    %4752 = vrot.lane.b32.xlu0 %v4595, 8
    %v4753 = vpop.permute.xlu0 %4752
    %4754 = vrot.lane.b32.xlu0 %v4596, 8
    %v4755 = vpop.permute.xlu0 %4754
    %4756 = vrot.lane.b32.xlu0 %v4597, 8
    %v4757 = vpop.permute.xlu0 %4756
    %4758 = vrot.lane.b32.xlu0 %v4598, 8
    %v4759 = vpop.permute.xlu0 %4758
    %4760 = vrot.lane.b32.xlu0 %v4599, 8
    %v4761 = vpop.permute.xlu0 %4760
    %4762 = vrot.lane.b32.xlu0 %v4600, 8
    %v4763 = vpop.permute.xlu0 %4762
    %4764 = vrot.lane.b32.xlu0 %v4601, 8
    %v4765 = vpop.permute.xlu0 %4764
    %4766 = vrot.lane.b32.xlu0 %v4602, 8
    %v4767 = vpop.permute.xlu0 %4766
    %4768 = vrot.lane.b32.xlu0 %v4603, 8
    %v4769 = vpop.permute.xlu0 %4768
    %4770 = vrot.lane.b32.xlu0 %v4604, 8
    %v4771 = vpop.permute.xlu0 %4770
    %4772 = vrot.lane.b32.xlu0 %v4605, 8
    %v4773 = vpop.permute.xlu0 %4772
    %4774 = vrot.lane.b32.xlu0 %v4606, 8
    %v4775 = vpop.permute.xlu0 %4774
    %4776 = vrot.lane.b32.xlu0 %v4607, 8
    %v4777 = vpop.permute.xlu0 %4776
    %4778 = vrot.lane.b32.xlu0 %v4608, 8
    %v4779 = vpop.permute.xlu0 %4778
    %4780 = vrot.lane.b32.xlu0 %v4609, 8
    %v4781 = vpop.permute.xlu0 %4780
    %4782 = vrot.lane.b32.xlu0 %v4610, 8
    %v4783 = vpop.permute.xlu0 %4782
    %4784 = vrot.lane.b32.xlu0 %v4611, 8
    %v4785 = vpop.permute.xlu0 %4784
    %4786 = vrot.lane.b32.xlu0 %v4612, 8
    %v4787 = vpop.permute.xlu0 %4786
    %4788 = vrot.lane.b32.xlu0 %v4613, 8
    %v4789 = vpop.permute.xlu0 %4788
    %4790 = vrot.lane.b32.xlu0 %v4614, 8
    %v4791 = vpop.permute.xlu0 %4790
    %4792 = vrot.lane.b32.xlu0 %v4615, 8
    %v4793 = vpop.permute.xlu0 %4792
    %4794 = vrot.lane.b32.xlu0 %v4616, 8
    %v4795 = vpop.permute.xlu0 %4794
    %4796 = vrot.lane.b32.xlu0 %v4617, 8
    %v4797 = vpop.permute.xlu0 %4796
    %4798 = vrot.lane.b32.xlu0 %v4618, 8
    %v4799 = vpop.permute.xlu0 %4798
    %4800 = vrot.lane.b32.xlu0 %v4619, 8
    %v4801 = vpop.permute.xlu0 %4800
    %4802 = vrot.lane.b32.xlu0 %v4620, 8
    %v4803 = vpop.permute.xlu0 %4802
    %4804 = vrot.lane.b32.xlu0 %v4621, 8
    %v4805 = vpop.permute.xlu0 %4804
    %4806 = vrot.lane.b32.xlu0 %v4622, 8
    %v4807 = vpop.permute.xlu0 %4806
    %4808 = vrot.lane.b32.xlu0 %v4623, 8
    %v4809 = vpop.permute.xlu0 %4808
    %4810 = vrot.lane.b32.xlu0 %v4624, 8
    %v4811 = vpop.permute.xlu0 %4810
    %4812 = vrot.lane.b32.xlu0 %v4625, 8
    %v4813 = vpop.permute.xlu0 %4812
    %4814 = vrot.lane.b32.xlu0 %v4626, 8
    %v4815 = vpop.permute.xlu0 %4814
    %4816 = vrot.lane.b32.xlu0 %v4627, 8
    %v4817 = vpop.permute.xlu0 %4816
    %4818 = vrot.lane.b32.xlu0 %v4628, 8
    %v4819 = vpop.permute.xlu0 %4818
    %4820 = vrot.lane.b32.xlu0 %v4629, 8
    %v4821 = vpop.permute.xlu0 %4820
    %4886 = vst.msk [vmem:[#allocation2] sm:$0xff] %vm849, %v4695
    %4887 = vst.msk [vmem:[#allocation2 + $0x8] sm:$0xff] %vm849, %v4697
    %4888 = vst.msk [vmem:[#allocation2 + $0x10] sm:$0xff] %vm849, %v4699
    %4889 = vst.msk [vmem:[#allocation2 + $0x18] sm:$0xff] %vm849, %v4701
    %4890 = vst.msk [vmem:[#allocation2 + $0x20] sm:$0xff] %vm849, %v4703
    %4891 = vst.msk [vmem:[#allocation2 + $0x28] sm:$0xff] %vm849, %v4705
    %4892 = vst.msk [vmem:[#allocation2 + $0x30] sm:$0xff] %vm849, %v4707
    %4893 = vst.msk [vmem:[#allocation2 + $0x38] sm:$0xff] %vm849, %v4709
    %4894 = vst.msk [vmem:[#allocation2 + $0x40] sm:$0xff] %vm849, %v4711
    %4895 = vst.msk [vmem:[#allocation2 + $0x48] sm:$0xff] %vm849, %v4713
    %4896 = vst.msk [vmem:[#allocation2 + $0x50] sm:$0xff] %vm849, %v4715
    %4897 = vst.msk [vmem:[#allocation2 + $0x58] sm:$0xff] %vm849, %v4717
    %4898 = vst.msk [vmem:[#allocation2 + $0x60] sm:$0xff] %vm849, %v4719
    %4899 = vst.msk [vmem:[#allocation2 + $0x68] sm:$0xff] %vm849, %v4721
    %4900 = vst.msk [vmem:[#allocation2 + $0x70] sm:$0xff] %vm849, %v4723
    %4901 = vst.msk [vmem:[#allocation2 + $0x78] sm:$0xff] %vm849, %v4725
    %4902 = vst.msk [vmem:[#allocation2 + $0x80] sm:$0xff] %vm849, %v4727
    %4903 = vst.msk [vmem:[#allocation2 + $0x88] sm:$0xff] %vm849, %v4729
    %4904 = vst.msk [vmem:[#allocation2 + $0x90] sm:$0xff] %vm849, %v4731
    %4905 = vst.msk [vmem:[#allocation2 + $0x98] sm:$0xff] %vm849, %v4733
    %4906 = vst.msk [vmem:[#allocation2 + $0xa0] sm:$0xff] %vm849, %v4735
    %4907 = vst.msk [vmem:[#allocation2 + $0xa8] sm:$0xff] %vm849, %v4737
    %4908 = vst.msk [vmem:[#allocation2 + $0xb0] sm:$0xff] %vm849, %v4739
    %4909 = vst.msk [vmem:[#allocation2 + $0xb8] sm:$0xff] %vm849, %v4741
    %4910 = vst.msk [vmem:[#allocation2 + $0xc0] sm:$0xff] %vm849, %v4743
    %4911 = vst.msk [vmem:[#allocation2 + $0xc8] sm:$0xff] %vm849, %v4745
    %4912 = vst.msk [vmem:[#allocation2 + $0xd0] sm:$0xff] %vm849, %v4747
    %4913 = vst.msk [vmem:[#allocation2 + $0xd8] sm:$0xff] %vm849, %v4749
    %4914 = vst.msk [vmem:[#allocation2 + $0xe0] sm:$0xff] %vm849, %v4751
    %4915 = vst.msk [vmem:[#allocation2 + $0xe8] sm:$0xff] %vm849, %v4753
    %4916 = vst.msk [vmem:[#allocation2 + $0xf0] sm:$0xff] %vm849, %v4755
    %4917 = vst.msk [vmem:[#allocation2 + $0xf8] sm:$0xff] %vm849, %v4757
    %4918 = vst.msk [vmem:[#allocation2 + $0x100] sm:$0xff] %vm849, %v4759
    %4919 = vst.msk [vmem:[#allocation2 + $0x108] sm:$0xff] %vm849, %v4761
    %4920 = vst.msk [vmem:[#allocation2 + $0x110] sm:$0xff] %vm849, %v4763
    %4921 = vst.msk [vmem:[#allocation2 + $0x118] sm:$0xff] %vm849, %v4765
    %4922 = vst.msk [vmem:[#allocation2 + $0x120] sm:$0xff] %vm849, %v4767
    %4923 = vst.msk [vmem:[#allocation2 + $0x128] sm:$0xff] %vm849, %v4769
    %4924 = vst.msk [vmem:[#allocation2 + $0x130] sm:$0xff] %vm849, %v4771
    %4925 = vst.msk [vmem:[#allocation2 + $0x138] sm:$0xff] %vm849, %v4773
    %4926 = vst.msk [vmem:[#allocation2 + $0x140] sm:$0xff] %vm849, %v4775
    %4927 = vst.msk [vmem:[#allocation2 + $0x148] sm:$0xff] %vm849, %v4777
    %4928 = vst.msk [vmem:[#allocation2 + $0x150] sm:$0xff] %vm849, %v4779
    %4929 = vst.msk [vmem:[#allocation2 + $0x158] sm:$0xff] %vm849, %v4781
    %4930 = vst.msk [vmem:[#allocation2 + $0x160] sm:$0xff] %vm849, %v4783
    %4931 = vst.msk [vmem:[#allocation2 + $0x168] sm:$0xff] %vm849, %v4785
    %4932 = vst.msk [vmem:[#allocation2 + $0x170] sm:$0xff] %vm849, %v4787
    %4933 = vst.msk [vmem:[#allocation2 + $0x178] sm:$0xff] %vm849, %v4789
    %4934 = vst.msk [vmem:[#allocation2 + $0x180] sm:$0xff] %vm849, %v4791
    %4935 = vst.msk [vmem:[#allocation2 + $0x188] sm:$0xff] %vm849, %v4793
    %4936 = vst.msk [vmem:[#allocation2 + $0x190] sm:$0xff] %vm849, %v4795
    %4937 = vst.msk [vmem:[#allocation2 + $0x198] sm:$0xff] %vm849, %v4797
    %4938 = vst.msk [vmem:[#allocation2 + $0x1a0] sm:$0xff] %vm849, %v4799
    %4939 = vst.msk [vmem:[#allocation2 + $0x1a8] sm:$0xff] %vm849, %v4801
    %4940 = vst.msk [vmem:[#allocation2 + $0x1b0] sm:$0xff] %vm849, %v4803
    %4941 = vst.msk [vmem:[#allocation2 + $0x1b8] sm:$0xff] %vm849, %v4805
    %4942 = vst.msk [vmem:[#allocation2 + $0x1c0] sm:$0xff] %vm849, %v4807
    %4943 = vst.msk [vmem:[#allocation2 + $0x1c8] sm:$0xff] %vm849, %v4809
    %4944 = vst.msk [vmem:[#allocation2 + $0x1d0] sm:$0xff] %vm849, %v4811
    %4945 = vst.msk [vmem:[#allocation2 + $0x1d8] sm:$0xff] %vm849, %v4813
    %4946 = vst.msk [vmem:[#allocation2 + $0x1e0] sm:$0xff] %vm849, %v4815
    %4947 = vst.msk [vmem:[#allocation2 + $0x1e8] sm:$0xff] %vm849, %v4817
    %4948 = vst.msk [vmem:[#allocation2 + $0x1f0] sm:$0xff] %vm849, %v4819
    %4949 = vst.msk [vmem:[#allocation2 + $0x1f8] sm:$0xff] %vm849, %v4821
    %v4950 = vld [vmem:[%s4565 + $0x1] sm:$0xff]
    %v4951 = vld [vmem:[%s4565 + $0x9] sm:$0xff]
    %v4952 = vld [vmem:[%s4565 + $0x19] sm:$0xff]
    %v4953 = vld [vmem:[%s4565 + $0x21] sm:$0xff]
    %v4954 = vld [vmem:[%s4565 + $0x31] sm:$0xff]
    %v4955 = vld [vmem:[%s4565 + $0x39] sm:$0xff]
    %v4956 = vld [vmem:[%s4565 + $0x49] sm:$0xff]
    %v4957 = vld [vmem:[%s4565 + $0x51] sm:$0xff]
    %v4958 = vld [vmem:[%s4565 + $0x61] sm:$0xff]
    %v4959 = vld [vmem:[%s4565 + $0x69] sm:$0xff]
    %v4960 = vld [vmem:[%s4565 + $0x79] sm:$0xff]
    %v4961 = vld [vmem:[%s4565 + $0x81] sm:$0xff]
    %v4962 = vld [vmem:[%s4565 + $0x91] sm:$0xff]
    %v4963 = vld [vmem:[%s4565 + $0x99] sm:$0xff]
    %v4964 = vld [vmem:[%s4565 + $0xa9] sm:$0xff]
    %v4965 = vld [vmem:[%s4565 + $0xb1] sm:$0xff]
    %v4966 = vld [vmem:[%s4565 + $0xc1] sm:$0xff]
    %v4967 = vld [vmem:[%s4565 + $0xc9] sm:$0xff]
    %v4968 = vld [vmem:[%s4565 + $0xd9] sm:$0xff]
    %v4969 = vld [vmem:[%s4565 + $0xe1] sm:$0xff]
    %v4970 = vld [vmem:[%s4565 + $0xf1] sm:$0xff]
    %v4971 = vld [vmem:[%s4565 + $0xf9] sm:$0xff]
    %v4972 = vld [vmem:[%s4565 + $0x109] sm:$0xff]
    %v4973 = vld [vmem:[%s4565 + $0x111] sm:$0xff]
    %v4974 = vld [vmem:[%s4565 + $0x121] sm:$0xff]
    %v4975 = vld [vmem:[%s4565 + $0x129] sm:$0xff]
    %v4976 = vld [vmem:[%s4565 + $0x139] sm:$0xff]
    %v4977 = vld [vmem:[%s4565 + $0x141] sm:$0xff]
    %v4978 = vld [vmem:[%s4565 + $0x151] sm:$0xff]
    %v4979 = vld [vmem:[%s4565 + $0x159] sm:$0xff]
    %v4980 = vld [vmem:[%s4565 + $0x169] sm:$0xff]
    %v4981 = vld [vmem:[%s4565 + $0x171] sm:$0xff]
    %v4982 = vld [vmem:[%s4565 + $0x1b1] sm:$0xff]
    %v4983 = vld [vmem:[%s4565 + $0x1b9] sm:$0xff]
    %v4984 = vld [vmem:[%s4565 + $0x1c9] sm:$0xff]
    %v4985 = vld [vmem:[%s4565 + $0x1d1] sm:$0xff]
    %v4986 = vld [vmem:[%s4565 + $0x1e1] sm:$0xff]
    %v4987 = vld [vmem:[%s4565 + $0x1e9] sm:$0xff]
    %v4988 = vld [vmem:[%s4565 + $0x1f9] sm:$0xff]
    %v4989 = vld [vmem:[%s4565 + $0x201] sm:$0xff]
    %v4990 = vld [vmem:[%s4565 + $0x211] sm:$0xff]
    %v4991 = vld [vmem:[%s4565 + $0x219] sm:$0xff]
    %v4992 = vld [vmem:[%s4565 + $0x229] sm:$0xff]
    %v4993 = vld [vmem:[%s4565 + $0x231] sm:$0xff]
    %v4994 = vld [vmem:[%s4565 + $0x241] sm:$0xff]
    %v4995 = vld [vmem:[%s4565 + $0x249] sm:$0xff]
    %v4996 = vld [vmem:[%s4565 + $0x259] sm:$0xff]
    %v4997 = vld [vmem:[%s4565 + $0x261] sm:$0xff]
    %v4998 = vld [vmem:[%s4565 + $0x271] sm:$0xff]
    %v4999 = vld [vmem:[%s4565 + $0x279] sm:$0xff]
    %v5000 = vld [vmem:[%s4565 + $0x289] sm:$0xff]
    %v5001 = vld [vmem:[%s4565 + $0x291] sm:$0xff]
    %v5002 = vld [vmem:[%s4565 + $0x2a1] sm:$0xff]
    %v5003 = vld [vmem:[%s4565 + $0x2a9] sm:$0xff]
    %v5004 = vld [vmem:[%s4565 + $0x2b9] sm:$0xff]
    %v5005 = vld [vmem:[%s4565 + $0x2c1] sm:$0xff]
    %v5006 = vld [vmem:[%s4565 + $0x2d1] sm:$0xff]
    %v5007 = vld [vmem:[%s4565 + $0x2d9] sm:$0xff]
    %v5008 = vld [vmem:[%s4565 + $0x2e9] sm:$0xff]
    %v5009 = vld [vmem:[%s4565 + $0x2f1] sm:$0xff]
    %v5010 = vld [vmem:[%s4565 + $0x301] sm:$0xff]
    %v5011 = vld [vmem:[%s4565 + $0x309] sm:$0xff]
    %v5012 = vld [vmem:[%s4565 + $0x319] sm:$0xff]
    %v5013 = vld [vmem:[%s4565 + $0x321] sm:$0xff]
    %5078 = vrot.lane.b32.xlu0 %v4950, 12
    %v5079 = vpop.permute.xlu0 %5078
    %5080 = vrot.lane.b32.xlu0 %v4951, 12
    %v5081 = vpop.permute.xlu0 %5080
    %5082 = vrot.lane.b32.xlu0 %v4952, 12
    %v5083 = vpop.permute.xlu0 %5082
    %5084 = vrot.lane.b32.xlu0 %v4953, 12
    %v5085 = vpop.permute.xlu0 %5084
    %5086 = vrot.lane.b32.xlu0 %v4954, 12
    %v5087 = vpop.permute.xlu0 %5086
    %5088 = vrot.lane.b32.xlu0 %v4955, 12
    %v5089 = vpop.permute.xlu0 %5088
    %5090 = vrot.lane.b32.xlu0 %v4956, 12
    %v5091 = vpop.permute.xlu0 %5090
    %5092 = vrot.lane.b32.xlu0 %v4957, 12
    %v5093 = vpop.permute.xlu0 %5092
    %5094 = vrot.lane.b32.xlu0 %v4958, 12
    %v5095 = vpop.permute.xlu0 %5094
    %5096 = vrot.lane.b32.xlu0 %v4959, 12
    %v5097 = vpop.permute.xlu0 %5096
    %5098 = vrot.lane.b32.xlu0 %v4960, 12
    %v5099 = vpop.permute.xlu0 %5098
    %5100 = vrot.lane.b32.xlu0 %v4961, 12
    %v5101 = vpop.permute.xlu0 %5100
    %5102 = vrot.lane.b32.xlu0 %v4962, 12
    %v5103 = vpop.permute.xlu0 %5102
    %5104 = vrot.lane.b32.xlu0 %v4963, 12
    %v5105 = vpop.permute.xlu0 %5104
    %5106 = vrot.lane.b32.xlu0 %v4964, 12
    %v5107 = vpop.permute.xlu0 %5106
    %5108 = vrot.lane.b32.xlu0 %v4965, 12
    %v5109 = vpop.permute.xlu0 %5108
    %5110 = vrot.lane.b32.xlu0 %v4966, 12
    %v5111 = vpop.permute.xlu0 %5110
    %5112 = vrot.lane.b32.xlu0 %v4967, 12
    %v5113 = vpop.permute.xlu0 %5112
    %5114 = vrot.lane.b32.xlu0 %v4968, 12
    %v5115 = vpop.permute.xlu0 %5114
    %5116 = vrot.lane.b32.xlu0 %v4969, 12
    %v5117 = vpop.permute.xlu0 %5116
    %5118 = vrot.lane.b32.xlu0 %v4970, 12
    %v5119 = vpop.permute.xlu0 %5118
    %5120 = vrot.lane.b32.xlu0 %v4971, 12
    %v5121 = vpop.permute.xlu0 %5120
    %5122 = vrot.lane.b32.xlu0 %v4972, 12
    %v5123 = vpop.permute.xlu0 %5122
    %5124 = vrot.lane.b32.xlu0 %v4973, 12
    %v5125 = vpop.permute.xlu0 %5124
    %5126 = vrot.lane.b32.xlu0 %v4974, 12
    %v5127 = vpop.permute.xlu0 %5126
    %5128 = vrot.lane.b32.xlu0 %v4975, 12
    %v5129 = vpop.permute.xlu0 %5128
    %5130 = vrot.lane.b32.xlu0 %v4976, 12
    %v5131 = vpop.permute.xlu0 %5130
    %5132 = vrot.lane.b32.xlu0 %v4977, 12
    %v5133 = vpop.permute.xlu0 %5132
    %5134 = vrot.lane.b32.xlu0 %v4978, 12
    %v5135 = vpop.permute.xlu0 %5134
    %5136 = vrot.lane.b32.xlu0 %v4979, 12
    %v5137 = vpop.permute.xlu0 %5136
    %5138 = vrot.lane.b32.xlu0 %v4980, 12
    %v5139 = vpop.permute.xlu0 %5138
    %5140 = vrot.lane.b32.xlu0 %v4981, 12
    %v5141 = vpop.permute.xlu0 %5140
    %5142 = vrot.lane.b32.xlu0 %v4982, 12
    %v5143 = vpop.permute.xlu0 %5142
    %5144 = vrot.lane.b32.xlu0 %v4983, 12
    %v5145 = vpop.permute.xlu0 %5144
    %5146 = vrot.lane.b32.xlu0 %v4984, 12
    %v5147 = vpop.permute.xlu0 %5146
    %5148 = vrot.lane.b32.xlu0 %v4985, 12
    %v5149 = vpop.permute.xlu0 %5148
    %5150 = vrot.lane.b32.xlu0 %v4986, 12
    %v5151 = vpop.permute.xlu0 %5150
    %5152 = vrot.lane.b32.xlu0 %v4987, 12
    %v5153 = vpop.permute.xlu0 %5152
    %5154 = vrot.lane.b32.xlu0 %v4988, 12
    %v5155 = vpop.permute.xlu0 %5154
    %5156 = vrot.lane.b32.xlu0 %v4989, 12
    %v5157 = vpop.permute.xlu0 %5156
    %5158 = vrot.lane.b32.xlu0 %v4990, 12
    %v5159 = vpop.permute.xlu0 %5158
    %5160 = vrot.lane.b32.xlu0 %v4991, 12
    %v5161 = vpop.permute.xlu0 %5160
    %5162 = vrot.lane.b32.xlu0 %v4992, 12
    %v5163 = vpop.permute.xlu0 %5162
    %5164 = vrot.lane.b32.xlu0 %v4993, 12
    %v5165 = vpop.permute.xlu0 %5164
    %5166 = vrot.lane.b32.xlu0 %v4994, 12
    %v5167 = vpop.permute.xlu0 %5166
    %5168 = vrot.lane.b32.xlu0 %v4995, 12
    %v5169 = vpop.permute.xlu0 %5168
    %5170 = vrot.lane.b32.xlu0 %v4996, 12
    %v5171 = vpop.permute.xlu0 %5170
    %5172 = vrot.lane.b32.xlu0 %v4997, 12
    %v5173 = vpop.permute.xlu0 %5172
    %5174 = vrot.lane.b32.xlu0 %v4998, 12
    %v5175 = vpop.permute.xlu0 %5174
    %5176 = vrot.lane.b32.xlu0 %v4999, 12
    %v5177 = vpop.permute.xlu0 %5176
    %5178 = vrot.lane.b32.xlu0 %v5000, 12
    %v5179 = vpop.permute.xlu0 %5178
    %5180 = vrot.lane.b32.xlu0 %v5001, 12
    %v5181 = vpop.permute.xlu0 %5180
    %5182 = vrot.lane.b32.xlu0 %v5002, 12
    %v5183 = vpop.permute.xlu0 %5182
    %5184 = vrot.lane.b32.xlu0 %v5003, 12
    %v5185 = vpop.permute.xlu0 %5184
    %5186 = vrot.lane.b32.xlu0 %v5004, 12
    %v5187 = vpop.permute.xlu0 %5186
    %5188 = vrot.lane.b32.xlu0 %v5005, 12
    %v5189 = vpop.permute.xlu0 %5188
    %5190 = vrot.lane.b32.xlu0 %v5006, 12
    %v5191 = vpop.permute.xlu0 %5190
    %5192 = vrot.lane.b32.xlu0 %v5007, 12
    %v5193 = vpop.permute.xlu0 %5192
    %5194 = vrot.lane.b32.xlu0 %v5008, 12
    %v5195 = vpop.permute.xlu0 %5194
    %5196 = vrot.lane.b32.xlu0 %v5009, 12
    %v5197 = vpop.permute.xlu0 %5196
    %5198 = vrot.lane.b32.xlu0 %v5010, 12
    %v5199 = vpop.permute.xlu0 %5198
    %5200 = vrot.lane.b32.xlu0 %v5011, 12
    %v5201 = vpop.permute.xlu0 %5200
    %5202 = vrot.lane.b32.xlu0 %v5012, 12
    %v5203 = vpop.permute.xlu0 %5202
    %5204 = vrot.lane.b32.xlu0 %v5013, 12
    %v5205 = vpop.permute.xlu0 %5204
    %5270 = vst.msk [vmem:[#allocation2] sm:$0xff] %vm1234, %v5079
    %5271 = vst.msk [vmem:[#allocation2 + $0x8] sm:$0xff] %vm1234, %v5081
    %5272 = vst.msk [vmem:[#allocation2 + $0x10] sm:$0xff] %vm1234, %v5083
    %5273 = vst.msk [vmem:[#allocation2 + $0x18] sm:$0xff] %vm1234, %v5085
    %5274 = vst.msk [vmem:[#allocation2 + $0x20] sm:$0xff] %vm1234, %v5087
    %5275 = vst.msk [vmem:[#allocation2 + $0x28] sm:$0xff] %vm1234, %v5089
    %5276 = vst.msk [vmem:[#allocation2 + $0x30] sm:$0xff] %vm1234, %v5091
    %5277 = vst.msk [vmem:[#allocation2 + $0x38] sm:$0xff] %vm1234, %v5093
    %5278 = vst.msk [vmem:[#allocation2 + $0x40] sm:$0xff] %vm1234, %v5095
    %5279 = vst.msk [vmem:[#allocation2 + $0x48] sm:$0xff] %vm1234, %v5097
    %5280 = vst.msk [vmem:[#allocation2 + $0x50] sm:$0xff] %vm1234, %v5099
    %5281 = vst.msk [vmem:[#allocation2 + $0x58] sm:$0xff] %vm1234, %v5101
    %5282 = vst.msk [vmem:[#allocation2 + $0x60] sm:$0xff] %vm1234, %v5103
    %5283 = vst.msk [vmem:[#allocation2 + $0x68] sm:$0xff] %vm1234, %v5105
    %5284 = vst.msk [vmem:[#allocation2 + $0x70] sm:$0xff] %vm1234, %v5107
    %5285 = vst.msk [vmem:[#allocation2 + $0x78] sm:$0xff] %vm1234, %v5109
    %5286 = vst.msk [vmem:[#allocation2 + $0x80] sm:$0xff] %vm1234, %v5111
    %5287 = vst.msk [vmem:[#allocation2 + $0x88] sm:$0xff] %vm1234, %v5113
    %5288 = vst.msk [vmem:[#allocation2 + $0x90] sm:$0xff] %vm1234, %v5115
    %5289 = vst.msk [vmem:[#allocation2 + $0x98] sm:$0xff] %vm1234, %v5117
    %5290 = vst.msk [vmem:[#allocation2 + $0xa0] sm:$0xff] %vm1234, %v5119
    %5291 = vst.msk [vmem:[#allocation2 + $0xa8] sm:$0xff] %vm1234, %v5121
    %5292 = vst.msk [vmem:[#allocation2 + $0xb0] sm:$0xff] %vm1234, %v5123
    %5293 = vst.msk [vmem:[#allocation2 + $0xb8] sm:$0xff] %vm1234, %v5125
    %5294 = vst.msk [vmem:[#allocation2 + $0xc0] sm:$0xff] %vm1234, %v5127
    %5295 = vst.msk [vmem:[#allocation2 + $0xc8] sm:$0xff] %vm1234, %v5129
    %5296 = vst.msk [vmem:[#allocation2 + $0xd0] sm:$0xff] %vm1234, %v5131
    %5297 = vst.msk [vmem:[#allocation2 + $0xd8] sm:$0xff] %vm1234, %v5133
    %5298 = vst.msk [vmem:[#allocation2 + $0xe0] sm:$0xff] %vm1234, %v5135
    %5299 = vst.msk [vmem:[#allocation2 + $0xe8] sm:$0xff] %vm1234, %v5137
    %5300 = vst.msk [vmem:[#allocation2 + $0xf0] sm:$0xff] %vm1234, %v5139
    %5301 = vst.msk [vmem:[#allocation2 + $0xf8] sm:$0xff] %vm1234, %v5141
    %5302 = vst.msk [vmem:[#allocation2 + $0x100] sm:$0xff] %vm1234, %v5143
    %5303 = vst.msk [vmem:[#allocation2 + $0x108] sm:$0xff] %vm1234, %v5145
    %5304 = vst.msk [vmem:[#allocation2 + $0x110] sm:$0xff] %vm1234, %v5147
    %5305 = vst.msk [vmem:[#allocation2 + $0x118] sm:$0xff] %vm1234, %v5149
    %5306 = vst.msk [vmem:[#allocation2 + $0x120] sm:$0xff] %vm1234, %v5151
    %5307 = vst.msk [vmem:[#allocation2 + $0x128] sm:$0xff] %vm1234, %v5153
    %5308 = vst.msk [vmem:[#allocation2 + $0x130] sm:$0xff] %vm1234, %v5155
    %5309 = vst.msk [vmem:[#allocation2 + $0x138] sm:$0xff] %vm1234, %v5157
    %5310 = vst.msk [vmem:[#allocation2 + $0x140] sm:$0xff] %vm1234, %v5159
    %5311 = vst.msk [vmem:[#allocation2 + $0x148] sm:$0xff] %vm1234, %v5161
    %5312 = vst.msk [vmem:[#allocation2 + $0x150] sm:$0xff] %vm1234, %v5163
    %5313 = vst.msk [vmem:[#allocation2 + $0x158] sm:$0xff] %vm1234, %v5165
    %5314 = vst.msk [vmem:[#allocation2 + $0x160] sm:$0xff] %vm1234, %v5167
    %5315 = vst.msk [vmem:[#allocation2 + $0x168] sm:$0xff] %vm1234, %v5169
    %5316 = vst.msk [vmem:[#allocation2 + $0x170] sm:$0xff] %vm1234, %v5171
    %5317 = vst.msk [vmem:[#allocation2 + $0x178] sm:$0xff] %vm1234, %v5173
    %5318 = vst.msk [vmem:[#allocation2 + $0x180] sm:$0xff] %vm1234, %v5175
    %5319 = vst.msk [vmem:[#allocation2 + $0x188] sm:$0xff] %vm1234, %v5177
    %5320 = vst.msk [vmem:[#allocation2 + $0x190] sm:$0xff] %vm1234, %v5179
    %5321 = vst.msk [vmem:[#allocation2 + $0x198] sm:$0xff] %vm1234, %v5181
    %5322 = vst.msk [vmem:[#allocation2 + $0x1a0] sm:$0xff] %vm1234, %v5183
    %5323 = vst.msk [vmem:[#allocation2 + $0x1a8] sm:$0xff] %vm1234, %v5185
    %5324 = vst.msk [vmem:[#allocation2 + $0x1b0] sm:$0xff] %vm1234, %v5187
    %5325 = vst.msk [vmem:[#allocation2 + $0x1b8] sm:$0xff] %vm1234, %v5189
    %5326 = vst.msk [vmem:[#allocation2 + $0x1c0] sm:$0xff] %vm1234, %v5191
    %5327 = vst.msk [vmem:[#allocation2 + $0x1c8] sm:$0xff] %vm1234, %v5193
    %5328 = vst.msk [vmem:[#allocation2 + $0x1d0] sm:$0xff] %vm1234, %v5195
    %5329 = vst.msk [vmem:[#allocation2 + $0x1d8] sm:$0xff] %vm1234, %v5197
    %5330 = vst.msk [vmem:[#allocation2 + $0x1e0] sm:$0xff] %vm1234, %v5199
    %5331 = vst.msk [vmem:[#allocation2 + $0x1e8] sm:$0xff] %vm1234, %v5201
    %5332 = vst.msk [vmem:[#allocation2 + $0x1f0] sm:$0xff] %vm1234, %v5203
    %5333 = vst.msk [vmem:[#allocation2 + $0x1f8] sm:$0xff] %vm1234, %v5205
    %v5334 = vld [vmem:[#allocation2] sm:$0xff]
    %v5335 = vld [vmem:[#allocation2 + $0x8] sm:$0xff]
    %v5336 = vld [vmem:[#allocation2 + $0x10] sm:$0xff]
    %v5337 = vld [vmem:[#allocation2 + $0x18] sm:$0xff]
    %v5338 = vld [vmem:[#allocation2 + $0x20] sm:$0xff]
    %v5339 = vld [vmem:[#allocation2 + $0x28] sm:$0xff]
    %v5340 = vld [vmem:[#allocation2 + $0x30] sm:$0xff]
    %v5341 = vld [vmem:[#allocation2 + $0x38] sm:$0xff]
    %v5342 = vld [vmem:[#allocation2 + $0x40] sm:$0xff]
    %v5343 = vld [vmem:[#allocation2 + $0x48] sm:$0xff]
    %v5344 = vld [vmem:[#allocation2 + $0x50] sm:$0xff]
    %v5345 = vld [vmem:[#allocation2 + $0x58] sm:$0xff]
    %v5346 = vld [vmem:[#allocation2 + $0x60] sm:$0xff]
    %v5347 = vld [vmem:[#allocation2 + $0x68] sm:$0xff]
    %v5348 = vld [vmem:[#allocation2 + $0x70] sm:$0xff]
    %v5349 = vld [vmem:[#allocation2 + $0x78] sm:$0xff]
    %v5350 = vld [vmem:[#allocation2 + $0x80] sm:$0xff]
    %v5351 = vld [vmem:[#allocation2 + $0x88] sm:$0xff]
    %v5352 = vld [vmem:[#allocation2 + $0x90] sm:$0xff]
    %v5353 = vld [vmem:[#allocation2 + $0x98] sm:$0xff]
    %v5354 = vld [vmem:[#allocation2 + $0xa0] sm:$0xff]
    %v5355 = vld [vmem:[#allocation2 + $0xa8] sm:$0xff]
    %v5356 = vld [vmem:[#allocation2 + $0xb0] sm:$0xff]
    %v5357 = vld [vmem:[#allocation2 + $0xb8] sm:$0xff]
    %v5358 = vld [vmem:[#allocation2 + $0xc0] sm:$0xff]
    %v5359 = vld [vmem:[#allocation2 + $0xc8] sm:$0xff]
    %v5360 = vld [vmem:[#allocation2 + $0xd0] sm:$0xff]
    %v5361 = vld [vmem:[#allocation2 + $0xd8] sm:$0xff]
    %v5362 = vld [vmem:[#allocation2 + $0xe0] sm:$0xff]
    %v5363 = vld [vmem:[#allocation2 + $0xe8] sm:$0xff]
    %v5364 = vld [vmem:[#allocation2 + $0xf0] sm:$0xff]
    %v5365 = vld [vmem:[#allocation2 + $0xf8] sm:$0xff]
    %v5366 = vld [vmem:[#allocation2 + $0x100] sm:$0xff]
    %v5367 = vld [vmem:[#allocation2 + $0x108] sm:$0xff]
    %v5368 = vld [vmem:[#allocation2 + $0x110] sm:$0xff]
    %v5369 = vld [vmem:[#allocation2 + $0x118] sm:$0xff]
    %v5370 = vld [vmem:[#allocation2 + $0x120] sm:$0xff]
    %v5371 = vld [vmem:[#allocation2 + $0x128] sm:$0xff]
    %v5372 = vld [vmem:[#allocation2 + $0x130] sm:$0xff]
    %v5373 = vld [vmem:[#allocation2 + $0x138] sm:$0xff]
    %v5374 = vld [vmem:[#allocation2 + $0x140] sm:$0xff]
    %v5375 = vld [vmem:[#allocation2 + $0x148] sm:$0xff]
    %v5376 = vld [vmem:[#allocation2 + $0x150] sm:$0xff]
    %v5377 = vld [vmem:[#allocation2 + $0x158] sm:$0xff]
    %v5378 = vld [vmem:[#allocation2 + $0x160] sm:$0xff]
    %v5379 = vld [vmem:[#allocation2 + $0x168] sm:$0xff]
    %v5380 = vld [vmem:[#allocation2 + $0x170] sm:$0xff]
    %v5381 = vld [vmem:[#allocation2 + $0x178] sm:$0xff]
    %v5382 = vld [vmem:[#allocation2 + $0x180] sm:$0xff]
    %v5383 = vld [vmem:[#allocation2 + $0x188] sm:$0xff]
    %v5384 = vld [vmem:[#allocation2 + $0x190] sm:$0xff]
    %v5385 = vld [vmem:[#allocation2 + $0x198] sm:$0xff]
    %v5386 = vld [vmem:[#allocation2 + $0x1a0] sm:$0xff]
    %v5387 = vld [vmem:[#allocation2 + $0x1a8] sm:$0xff]
    %v5388 = vld [vmem:[#allocation2 + $0x1b0] sm:$0xff]
    %v5389 = vld [vmem:[#allocation2 + $0x1b8] sm:$0xff]
    %v5390 = vld [vmem:[#allocation2 + $0x1c0] sm:$0xff]
    %v5391 = vld [vmem:[#allocation2 + $0x1c8] sm:$0xff]
    %v5392 = vld [vmem:[#allocation2 + $0x1d0] sm:$0xff]
    %v5393 = vld [vmem:[#allocation2 + $0x1d8] sm:$0xff]
    %v5394 = vld [vmem:[#allocation2 + $0x1e0] sm:$0xff]
    %v5395 = vld [vmem:[#allocation2 + $0x1e8] sm:$0xff]
    %v5396 = vld [vmem:[#allocation2 + $0x1f0] sm:$0xff]
    %v5397 = vld [vmem:[#allocation2 + $0x1f8] sm:$0xff]
    %s5398 = scalar_lea.vmem %s1, 32
    %v5399 = vld [vmem:[%s5398] sm:$0xff]
    %v5400 = vld [vmem:[%s5398 + $0x8] sm:$0xff]
    %v5402 = vsel %vm1365, %v5334, 0
    %v5405 = vsel %vm1365, %v5335, 0
    %v5408 = vsel %vm1365, %v5336, 0
    %v5411 = vsel %vm1365, %v5337, 0
    %v5414 = vsel %vm1365, %v5338, 0
    %v5417 = vsel %vm1365, %v5339, 0
    %v5420 = vsel %vm1365, %v5340, 0
    %v5423 = vsel %vm1365, %v5341, 0
    %v5426 = vsel %vm1365, %v5342, 0
    %v5429 = vsel %vm1365, %v5343, 0
    %v5432 = vsel %vm1365, %v5344, 0
    %v5435 = vsel %vm1365, %v5345, 0
    %v5438 = vsel %vm1365, %v5346, 0
    %v5441 = vsel %vm1365, %v5347, 0
    %v5444 = vsel %vm1365, %v5348, 0
    %v5447 = vsel %vm1365, %v5349, 0
    %v5450 = vsel %vm1365, %v5350, 0
    %v5453 = vsel %vm1365, %v5351, 0
    %v5456 = vsel %vm1365, %v5352, 0
    %v5459 = vsel %vm1365, %v5353, 0
    %v5462 = vsel %vm1365, %v5354, 0
    %v5465 = vsel %vm1365, %v5355, 0
    %v5468 = vsel %vm1365, %v5356, 0
    %v5471 = vsel %vm1365, %v5357, 0
    %v5474 = vsel %vm1365, %v5358, 0
    %v5477 = vsel %vm1365, %v5359, 0
    %v5480 = vsel %vm1365, %v5360, 0
    %v5483 = vsel %vm1365, %v5361, 0
    %v5486 = vsel %vm1365, %v5362, 0
    %v5489 = vsel %vm1365, %v5363, 0
    %v5492 = vsel %vm1365, %v5364, 0
    %v5495 = vsel %vm1365, %v5365, 0
    %v5498 = vsel %vm1365, %v5366, 0
    %v5501 = vsel %vm1365, %v5367, 0
    %v5504 = vsel %vm1365, %v5368, 0
    %v5507 = vsel %vm1365, %v5369, 0
    %v5510 = vsel %vm1365, %v5370, 0
    %v5513 = vsel %vm1365, %v5371, 0
    %v5516 = vsel %vm1365, %v5372, 0
    %v5519 = vsel %vm1365, %v5373, 0
    %v5522 = vsel %vm1365, %v5374, 0
    %v5525 = vsel %vm1365, %v5375, 0
    %v5528 = vsel %vm1365, %v5376, 0
    %v5531 = vsel %vm1365, %v5377, 0
    %v5534 = vsel %vm1365, %v5378, 0
    %v5537 = vsel %vm1365, %v5379, 0
    %v5540 = vsel %vm1365, %v5380, 0
    %v5543 = vsel %vm1365, %v5381, 0
    %v5546 = vsel %vm1365, %v5382, 0
    %v5549 = vsel %vm1365, %v5383, 0
    %v5552 = vsel %vm1365, %v5384, 0
    %v5555 = vsel %vm1365, %v5385, 0
    %v5558 = vsel %vm1365, %v5386, 0
    %v5561 = vsel %vm1365, %v5387, 0
    %v5564 = vsel %vm1365, %v5388, 0
    %v5567 = vsel %vm1365, %v5389, 0
    %v5570 = vsel %vm1365, %v5390, 0
    %v5573 = vsel %vm1365, %v5391, 0
    %v5576 = vsel %vm1365, %v5392, 0
    %v5579 = vsel %vm1365, %v5393, 0
    %v5582 = vsel %vm1365, %v5394, 0
    %v5585 = vsel %vm1365, %v5395, 0
    %v5588 = vsel %vm1365, %v5396, 0
    %v5591 = vsel %vm1365, %v5397, 0
    %5593 = vmatpush.msra.mxu0 0.0
    %5594 = vmatpush.msra.mxu0 0.0
    %5595 = vmatpush.msra.mxu0 0.0
    %5596 = vmatpush.msra.mxu0 0.0
    %5597 = vmatpush.msra.mxu0 0.0
    %5598 = vmatpush.msra.mxu0 0.0
    %5599 = vmatpush.msra.mxu0 0.0
    %5600 = vmatpush.msra.mxu0 0.0
    %5601 = vmatpush.msra.mxu0 0.0
    %5602 = vmatpush.msra.mxu0 0.0
    %5603 = vmatpush.msra.mxu0 0.0
    %5604 = vmatpush.msra.mxu0 0.0
    %5605 = vmatpush.msra.mxu0 0.0
    %5606 = vmatpush.msra.mxu0 0.0
    %5607 = vmatpush.msra.mxu0 %v5400
    %5608 = vmatpush.msra.mxu0 %v5399
    %5609 = vmatmul.f32.gmra.mxu0 %v5402
    %v5610 = vpop.f32.mrf.mxu0
    %v5611 = vadd.f32 0.0, %v5610
    %5612 = vmatmul.f32.gmra.mxu0 %v5405
    %v5613 = vpop.f32.mrf.mxu0
    %v5614 = vadd.f32 0.0, %v5613
    %5615 = vmatmul.f32.gmra.mxu0 %v5408
    %v5616 = vpop.f32.mrf.mxu0
    %v5617 = vadd.f32 0.0, %v5616
    %5618 = vmatmul.f32.gmra.mxu0 %v5411
    %v5619 = vpop.f32.mrf.mxu0
    %v5620 = vadd.f32 0.0, %v5619
    %5621 = vmatmul.f32.gmra.mxu0 %v5414
    %v5622 = vpop.f32.mrf.mxu0
    %v5623 = vadd.f32 0.0, %v5622
    %5624 = vmatmul.f32.gmra.mxu0 %v5417
    %v5625 = vpop.f32.mrf.mxu0
    %v5626 = vadd.f32 0.0, %v5625
    %5627 = vmatmul.f32.gmra.mxu0 %v5420
    %v5628 = vpop.f32.mrf.mxu0
    %v5629 = vadd.f32 0.0, %v5628
    %5630 = vmatmul.f32.gmra.mxu0 %v5423
    %v5631 = vpop.f32.mrf.mxu0
    %v5632 = vadd.f32 0.0, %v5631
    %5633 = vmatmul.f32.gmra.mxu0 %v5426
    %v5634 = vpop.f32.mrf.mxu0
    %v5635 = vadd.f32 0.0, %v5634
    %5636 = vmatmul.f32.gmra.mxu0 %v5429
    %v5637 = vpop.f32.mrf.mxu0
    %v5638 = vadd.f32 0.0, %v5637
    %5639 = vmatmul.f32.gmra.mxu0 %v5432
    %v5640 = vpop.f32.mrf.mxu0
    %v5641 = vadd.f32 0.0, %v5640
    %5642 = vmatmul.f32.gmra.mxu0 %v5435
    %v5643 = vpop.f32.mrf.mxu0
    %v5644 = vadd.f32 0.0, %v5643
    %5645 = vmatmul.f32.gmra.mxu0 %v5438
    %v5646 = vpop.f32.mrf.mxu0
    %v5647 = vadd.f32 0.0, %v5646
    %5648 = vmatmul.f32.gmra.mxu0 %v5441
    %v5649 = vpop.f32.mrf.mxu0
    %v5650 = vadd.f32 0.0, %v5649
    %5651 = vmatmul.f32.gmra.mxu0 %v5444
    %v5652 = vpop.f32.mrf.mxu0
    %v5653 = vadd.f32 0.0, %v5652
    %5654 = vmatmul.f32.gmra.mxu0 %v5447
    %v5655 = vpop.f32.mrf.mxu0
    %v5656 = vadd.f32 0.0, %v5655
    %5657 = vmatmul.f32.gmra.mxu0 %v5450
    %v5658 = vpop.f32.mrf.mxu0
    %v5659 = vadd.f32 0.0, %v5658
    %5660 = vmatmul.f32.gmra.mxu0 %v5453
    %v5661 = vpop.f32.mrf.mxu0
    %v5662 = vadd.f32 0.0, %v5661
    %5663 = vmatmul.f32.gmra.mxu0 %v5456
    %v5664 = vpop.f32.mrf.mxu0
    %v5665 = vadd.f32 0.0, %v5664
    %5666 = vmatmul.f32.gmra.mxu0 %v5459
    %v5667 = vpop.f32.mrf.mxu0
    %v5668 = vadd.f32 0.0, %v5667
    %5669 = vmatmul.f32.gmra.mxu0 %v5462
    %v5670 = vpop.f32.mrf.mxu0
    %v5671 = vadd.f32 0.0, %v5670
    %5672 = vmatmul.f32.gmra.mxu0 %v5465
    %v5673 = vpop.f32.mrf.mxu0
    %v5674 = vadd.f32 0.0, %v5673
    %5675 = vmatmul.f32.gmra.mxu0 %v5468
    %v5676 = vpop.f32.mrf.mxu0
    %v5677 = vadd.f32 0.0, %v5676
    %5678 = vmatmul.f32.gmra.mxu0 %v5471
    %v5679 = vpop.f32.mrf.mxu0
    %v5680 = vadd.f32 0.0, %v5679
    %5681 = vmatmul.f32.gmra.mxu0 %v5474
    %v5682 = vpop.f32.mrf.mxu0
    %v5683 = vadd.f32 0.0, %v5682
    %5684 = vmatmul.f32.gmra.mxu0 %v5477
    %v5685 = vpop.f32.mrf.mxu0
    %v5686 = vadd.f32 0.0, %v5685
    %5687 = vmatmul.f32.gmra.mxu0 %v5480
    %v5688 = vpop.f32.mrf.mxu0
    %v5689 = vadd.f32 0.0, %v5688
    %5690 = vmatmul.f32.gmra.mxu0 %v5483
    %v5691 = vpop.f32.mrf.mxu0
    %v5692 = vadd.f32 0.0, %v5691
    %5693 = vmatmul.f32.gmra.mxu0 %v5486
    %v5694 = vpop.f32.mrf.mxu0
    %v5695 = vadd.f32 0.0, %v5694
    %5696 = vmatmul.f32.gmra.mxu0 %v5489
    %v5697 = vpop.f32.mrf.mxu0
    %v5698 = vadd.f32 0.0, %v5697
    %5699 = vmatmul.f32.gmra.mxu0 %v5492
    %v5700 = vpop.f32.mrf.mxu0
    %v5701 = vadd.f32 0.0, %v5700
    %5702 = vmatmul.f32.gmra.mxu0 %v5495
    %v5703 = vpop.f32.mrf.mxu0
    %v5704 = vadd.f32 0.0, %v5703
    %5705 = vmatmul.f32.gmra.mxu0 %v5498
    %v5706 = vpop.f32.mrf.mxu0
    %v5707 = vadd.f32 0.0, %v5706
    %5708 = vmatmul.f32.gmra.mxu0 %v5501
    %v5709 = vpop.f32.mrf.mxu0
    %v5710 = vadd.f32 0.0, %v5709
    %5711 = vmatmul.f32.gmra.mxu0 %v5504
    %v5712 = vpop.f32.mrf.mxu0
    %v5713 = vadd.f32 0.0, %v5712
    %5714 = vmatmul.f32.gmra.mxu0 %v5507
    %v5715 = vpop.f32.mrf.mxu0
    %v5716 = vadd.f32 0.0, %v5715
    %5717 = vmatmul.f32.gmra.mxu0 %v5510
    %v5718 = vpop.f32.mrf.mxu0
    %v5719 = vadd.f32 0.0, %v5718
    %5720 = vmatmul.f32.gmra.mxu0 %v5513
    %v5721 = vpop.f32.mrf.mxu0
    %v5722 = vadd.f32 0.0, %v5721
    %5723 = vmatmul.f32.gmra.mxu0 %v5516
    %v5724 = vpop.f32.mrf.mxu0
    %v5725 = vadd.f32 0.0, %v5724
    %5726 = vmatmul.f32.gmra.mxu0 %v5519
    %v5727 = vpop.f32.mrf.mxu0
    %v5728 = vadd.f32 0.0, %v5727
    %5729 = vmatmul.f32.gmra.mxu0 %v5522
    %v5730 = vpop.f32.mrf.mxu0
    %v5731 = vadd.f32 0.0, %v5730
    %5732 = vmatmul.f32.gmra.mxu0 %v5525
    %v5733 = vpop.f32.mrf.mxu0
    %v5734 = vadd.f32 0.0, %v5733
    %5735 = vmatmul.f32.gmra.mxu0 %v5528
    %v5736 = vpop.f32.mrf.mxu0
    %v5737 = vadd.f32 0.0, %v5736
    %5738 = vmatmul.f32.gmra.mxu0 %v5531
    %v5739 = vpop.f32.mrf.mxu0
    %v5740 = vadd.f32 0.0, %v5739
    %5741 = vmatmul.f32.gmra.mxu0 %v5534
    %v5742 = vpop.f32.mrf.mxu0
    %v5743 = vadd.f32 0.0, %v5742
    %5744 = vmatmul.f32.gmra.mxu0 %v5537
    %v5745 = vpop.f32.mrf.mxu0
    %v5746 = vadd.f32 0.0, %v5745
    %5747 = vmatmul.f32.gmra.mxu0 %v5540
    %v5748 = vpop.f32.mrf.mxu0
    %v5749 = vadd.f32 0.0, %v5748
    %5750 = vmatmul.f32.gmra.mxu0 %v5543
    %v5751 = vpop.f32.mrf.mxu0
    %v5752 = vadd.f32 0.0, %v5751
    %5753 = vmatmul.f32.gmra.mxu0 %v5546
    %v5754 = vpop.f32.mrf.mxu0
    %v5755 = vadd.f32 0.0, %v5754
    %5756 = vmatmul.f32.gmra.mxu0 %v5549
    %v5757 = vpop.f32.mrf.mxu0
    %v5758 = vadd.f32 0.0, %v5757
    %5759 = vmatmul.f32.gmra.mxu0 %v5552
    %v5760 = vpop.f32.mrf.mxu0
    %v5761 = vadd.f32 0.0, %v5760
    %5762 = vmatmul.f32.gmra.mxu0 %v5555
    %v5763 = vpop.f32.mrf.mxu0
    %v5764 = vadd.f32 0.0, %v5763
    %5765 = vmatmul.f32.gmra.mxu0 %v5558
    %v5766 = vpop.f32.mrf.mxu0
    %v5767 = vadd.f32 0.0, %v5766
    %5768 = vmatmul.f32.gmra.mxu0 %v5561
    %v5769 = vpop.f32.mrf.mxu0
    %v5770 = vadd.f32 0.0, %v5769
    %5771 = vmatmul.f32.gmra.mxu0 %v5564
    %v5772 = vpop.f32.mrf.mxu0
    %v5773 = vadd.f32 0.0, %v5772
    %5774 = vmatmul.f32.gmra.mxu0 %v5567
    %v5775 = vpop.f32.mrf.mxu0
    %v5776 = vadd.f32 0.0, %v5775
    %5777 = vmatmul.f32.gmra.mxu0 %v5570
    %v5778 = vpop.f32.mrf.mxu0
    %v5779 = vadd.f32 0.0, %v5778
    %5780 = vmatmul.f32.gmra.mxu0 %v5573
    %v5781 = vpop.f32.mrf.mxu0
    %v5782 = vadd.f32 0.0, %v5781
    %5783 = vmatmul.f32.gmra.mxu0 %v5576
    %v5784 = vpop.f32.mrf.mxu0
    %v5785 = vadd.f32 0.0, %v5784
    %5786 = vmatmul.f32.gmra.mxu0 %v5579
    %v5787 = vpop.f32.mrf.mxu0
    %v5788 = vadd.f32 0.0, %v5787
    %5789 = vmatmul.f32.gmra.mxu0 %v5582
    %v5790 = vpop.f32.mrf.mxu0
    %v5791 = vadd.f32 0.0, %v5790
    %5792 = vmatmul.f32.gmra.mxu0 %v5585
    %v5793 = vpop.f32.mrf.mxu0
    %v5794 = vadd.f32 0.0, %v5793
    %5795 = vmatmul.f32.gmra.mxu0 %v5588
    %v5796 = vpop.f32.mrf.mxu0
    %v5797 = vadd.f32 0.0, %v5796
    %5798 = vmatmul.f32.gmra.mxu0 %v5591
    %v5799 = vpop.f32.mrf.mxu0
    %v5800 = vadd.f32 0.0, %v5799
    %5801 = vdwg.mxu0
    %v5802 = vadd.f32 %v5611, %v5614
    %v5803 = vadd.f32 %v5802, %v5617
    %v5804 = vadd.f32 %v5803, %v5620
    %v5805 = vadd.f32 %v5804, %v5623
    %v5806 = vadd.f32 %v5805, %v5626
    %v5807 = vadd.f32 %v5806, %v5629
    %v5808 = vadd.f32 %v5807, %v5632
    %v5809 = vadd.f32 %v5808, %v5635
    %v5810 = vadd.f32 %v5809, %v5638
    %v5811 = vadd.f32 %v5810, %v5641
    %v5812 = vadd.f32 %v5811, %v5644
    %v5813 = vadd.f32 %v5812, %v5647
    %v5814 = vadd.f32 %v5813, %v5650
    %v5815 = vadd.f32 %v5814, %v5653
    %v5816 = vadd.f32 %v5815, %v5656
    %v5817 = vadd.f32 %v5816, %v5659
    %v5818 = vadd.f32 %v5817, %v5662
    %v5819 = vadd.f32 %v5818, %v5665
    %v5820 = vadd.f32 %v5819, %v5668
    %v5821 = vadd.f32 %v5820, %v5671
    %v5822 = vadd.f32 %v5821, %v5674
    %v5823 = vadd.f32 %v5822, %v5677
    %v5824 = vadd.f32 %v5823, %v5680
    %v5825 = vadd.f32 %v5824, %v5683
    %v5826 = vadd.f32 %v5825, %v5686
    %v5827 = vadd.f32 %v5826, %v5689
    %v5828 = vadd.f32 %v5827, %v5692
    %v5829 = vadd.f32 %v5828, %v5695
    %v5830 = vadd.f32 %v5829, %v5698
    %v5831 = vadd.f32 %v5830, %v5701
    %v5832 = vadd.f32 %v5831, %v5704
    %v5833 = vadd.f32 %v5832, %v5707
    %v5834 = vadd.f32 %v5833, %v5710
    %v5835 = vadd.f32 %v5834, %v5713
    %v5836 = vadd.f32 %v5835, %v5716
    %v5837 = vadd.f32 %v5836, %v5719
    %v5838 = vadd.f32 %v5837, %v5722
    %v5839 = vadd.f32 %v5838, %v5725
    %v5840 = vadd.f32 %v5839, %v5728
    %v5841 = vadd.f32 %v5840, %v5731
    %v5842 = vadd.f32 %v5841, %v5734
    %v5843 = vadd.f32 %v5842, %v5737
    %v5844 = vadd.f32 %v5843, %v5740
    %v5845 = vadd.f32 %v5844, %v5743
    %v5846 = vadd.f32 %v5845, %v5746
    %v5847 = vadd.f32 %v5846, %v5749
    %v5848 = vadd.f32 %v5847, %v5752
    %v5849 = vadd.f32 %v5848, %v5755
    %v5850 = vadd.f32 %v5849, %v5758
    %v5851 = vadd.f32 %v5850, %v5761
    %v5852 = vadd.f32 %v5851, %v5764
    %v5853 = vadd.f32 %v5852, %v5767
    %v5854 = vadd.f32 %v5853, %v5770
    %v5855 = vadd.f32 %v5854, %v5773
    %v5856 = vadd.f32 %v5855, %v5776
    %v5857 = vadd.f32 %v5856, %v5779
    %v5858 = vadd.f32 %v5857, %v5782
    %v5859 = vadd.f32 %v5858, %v5785
    %v5860 = vadd.f32 %v5859, %v5788
    %v5861 = vadd.f32 %v5860, %v5791
    %v5862 = vadd.f32 %v5861, %v5794
    %v5863 = vadd.f32 %v5862, %v5797
    %v5864 = vadd.f32 %v5863, %v5800
    %v5865 = vrot.slane %v5864, 4
    %v5866 = vadd.f32 %v5864, %v5865
    %v5867 = vrot.slane %v5866, 2
    %v5868 = vadd.f32 %v5866, %v5867
    %v5869 = vrot.slane %v5868, 1
    %v5870 = vadd.f32 %v5868, %v5869
    %v5871 = vadd.f32 %v3853, %v5870
    %v5872 = vmul.f32 %v5611, %v5611
    %v5873 = vmul.f32 %v5614, %v5614
    %v5874 = vmul.f32 %v5617, %v5617
    %v5875 = vmul.f32 %v5620, %v5620
    %v5876 = vmul.f32 %v5623, %v5623
    %v5877 = vmul.f32 %v5626, %v5626
    %v5878 = vmul.f32 %v5629, %v5629
    %v5879 = vmul.f32 %v5632, %v5632
    %v5880 = vmul.f32 %v5635, %v5635
    %v5881 = vmul.f32 %v5638, %v5638
    %v5882 = vmul.f32 %v5641, %v5641
    %v5883 = vmul.f32 %v5644, %v5644
    %v5884 = vmul.f32 %v5647, %v5647
    %v5885 = vmul.f32 %v5650, %v5650
    %v5886 = vmul.f32 %v5653, %v5653
    %v5887 = vmul.f32 %v5656, %v5656
    %v5888 = vmul.f32 %v5659, %v5659
    %v5889 = vmul.f32 %v5662, %v5662
    %v5890 = vmul.f32 %v5665, %v5665
    %v5891 = vmul.f32 %v5668, %v5668
    %v5892 = vmul.f32 %v5671, %v5671
    %v5893 = vmul.f32 %v5674, %v5674
    %v5894 = vmul.f32 %v5677, %v5677
    %v5895 = vmul.f32 %v5680, %v5680
    %v5896 = vmul.f32 %v5683, %v5683
    %v5897 = vmul.f32 %v5686, %v5686
    %v5898 = vmul.f32 %v5689, %v5689
    %v5899 = vmul.f32 %v5692, %v5692
    %v5900 = vmul.f32 %v5695, %v5695
    %v5901 = vmul.f32 %v5698, %v5698
    %v5902 = vmul.f32 %v5701, %v5701
    %v5903 = vmul.f32 %v5704, %v5704
    %v5904 = vmul.f32 %v5707, %v5707
    %v5905 = vmul.f32 %v5710, %v5710
    %v5906 = vmul.f32 %v5713, %v5713
    %v5907 = vmul.f32 %v5716, %v5716
    %v5908 = vmul.f32 %v5719, %v5719
    %v5909 = vmul.f32 %v5722, %v5722
    %v5910 = vmul.f32 %v5725, %v5725
    %v5911 = vmul.f32 %v5728, %v5728
    %v5912 = vmul.f32 %v5731, %v5731
    %v5913 = vmul.f32 %v5734, %v5734
    %v5914 = vmul.f32 %v5737, %v5737
    %v5915 = vmul.f32 %v5740, %v5740
    %v5916 = vmul.f32 %v5743, %v5743
    %v5917 = vmul.f32 %v5746, %v5746
    %v5918 = vmul.f32 %v5749, %v5749
    %v5919 = vmul.f32 %v5752, %v5752
    %v5920 = vmul.f32 %v5755, %v5755
    %v5921 = vmul.f32 %v5758, %v5758
    %v5922 = vmul.f32 %v5761, %v5761
    %v5923 = vmul.f32 %v5764, %v5764
    %v5924 = vmul.f32 %v5767, %v5767
    %v5925 = vmul.f32 %v5770, %v5770
    %v5926 = vmul.f32 %v5773, %v5773
    %v5927 = vmul.f32 %v5776, %v5776
    %v5928 = vmul.f32 %v5779, %v5779
    %v5929 = vmul.f32 %v5782, %v5782
    %v5930 = vmul.f32 %v5785, %v5785
    %v5931 = vmul.f32 %v5788, %v5788
    %v5932 = vmul.f32 %v5791, %v5791
    %v5933 = vmul.f32 %v5794, %v5794
    %v5934 = vmul.f32 %v5797, %v5797
    %v5935 = vmul.f32 %v5800, %v5800
    %v5936 = vadd.f32 %v5872, %v5873
    %v5937 = vadd.f32 %v5936, %v5874
    %v5938 = vadd.f32 %v5937, %v5875
    %v5939 = vadd.f32 %v5938, %v5876
    %v5940 = vadd.f32 %v5939, %v5877
    %v5941 = vadd.f32 %v5940, %v5878
    %v5942 = vadd.f32 %v5941, %v5879
    %v5943 = vadd.f32 %v5942, %v5880
    %v5944 = vadd.f32 %v5943, %v5881
    %v5945 = vadd.f32 %v5944, %v5882
    %v5946 = vadd.f32 %v5945, %v5883
    %v5947 = vadd.f32 %v5946, %v5884
    %v5948 = vadd.f32 %v5947, %v5885
    %v5949 = vadd.f32 %v5948, %v5886
    %v5950 = vadd.f32 %v5949, %v5887
    %v5951 = vadd.f32 %v5950, %v5888
    %v5952 = vadd.f32 %v5951, %v5889
    %v5953 = vadd.f32 %v5952, %v5890
    %v5954 = vadd.f32 %v5953, %v5891
    %v5955 = vadd.f32 %v5954, %v5892
    %v5956 = vadd.f32 %v5955, %v5893
    %v5957 = vadd.f32 %v5956, %v5894
    %v5958 = vadd.f32 %v5957, %v5895
    %v5959 = vadd.f32 %v5958, %v5896
    %v5960 = vadd.f32 %v5959, %v5897
    %v5961 = vadd.f32 %v5960, %v5898
    %v5962 = vadd.f32 %v5961, %v5899
    %v5963 = vadd.f32 %v5962, %v5900
    %v5964 = vadd.f32 %v5963, %v5901
    %v5965 = vadd.f32 %v5964, %v5902
    %v5966 = vadd.f32 %v5965, %v5903
    %v5967 = vadd.f32 %v5966, %v5904
    %v5968 = vadd.f32 %v5967, %v5905
    %v5969 = vadd.f32 %v5968, %v5906
    %v5970 = vadd.f32 %v5969, %v5907
    %v5971 = vadd.f32 %v5970, %v5908
    %v5972 = vadd.f32 %v5971, %v5909
    %v5973 = vadd.f32 %v5972, %v5910
    %v5974 = vadd.f32 %v5973, %v5911
    %v5975 = vadd.f32 %v5974, %v5912
    %v5976 = vadd.f32 %v5975, %v5913
    %v5977 = vadd.f32 %v5976, %v5914
    %v5978 = vadd.f32 %v5977, %v5915
    %v5979 = vadd.f32 %v5978, %v5916
    %v5980 = vadd.f32 %v5979, %v5917
    %v5981 = vadd.f32 %v5980, %v5918
    %v5982 = vadd.f32 %v5981, %v5919
    %v5983 = vadd.f32 %v5982, %v5920
    %v5984 = vadd.f32 %v5983, %v5921
    %v5985 = vadd.f32 %v5984, %v5922
    %v5986 = vadd.f32 %v5985, %v5923
    %v5987 = vadd.f32 %v5986, %v5924
    %v5988 = vadd.f32 %v5987, %v5925
    %v5989 = vadd.f32 %v5988, %v5926
    %v5990 = vadd.f32 %v5989, %v5927
    %v5991 = vadd.f32 %v5990, %v5928
    %v5992 = vadd.f32 %v5991, %v5929
    %v5993 = vadd.f32 %v5992, %v5930
    %v5994 = vadd.f32 %v5993, %v5931
    %v5995 = vadd.f32 %v5994, %v5932
    %v5996 = vadd.f32 %v5995, %v5933
    %v5997 = vadd.f32 %v5996, %v5934
    %v5998 = vadd.f32 %v5997, %v5935
    %v5999 = vrot.slane %v5998, 4
    %v6000 = vadd.f32 %v5998, %v5999
    %v6001 = vrot.slane %v6000, 2
    %v6002 = vadd.f32 %v6000, %v6001
    %v6003 = vrot.slane %v6002, 1
    %v6004 = vadd.f32 %v6002, %v6003
    %v6005 = vadd.f32 %v3987, %v6004
    %s6006 = scalar_lea.vmem %s2, 1024
    %6007 = vst.msk [vmem:[%s6006] sm:$0xff] %vm1971, %v5611
    %6008 = vst.msk [vmem:[%s6006 + $0x8] sm:$0xff] %vm1971, %v5614
    %6009 = vst.msk [vmem:[%s6006 + $0x10] sm:$0xff] %vm1971, %v5617
    %6010 = vst.msk [vmem:[%s6006 + $0x18] sm:$0xff] %vm1971, %v5620
    %6011 = vst.msk [vmem:[%s6006 + $0x20] sm:$0xff] %vm1971, %v5623
    %6012 = vst.msk [vmem:[%s6006 + $0x28] sm:$0xff] %vm1971, %v5626
    %6013 = vst.msk [vmem:[%s6006 + $0x30] sm:$0xff] %vm1971, %v5629
    %6014 = vst.msk [vmem:[%s6006 + $0x38] sm:$0xff] %vm1971, %v5632
    %6015 = vst.msk [vmem:[%s6006 + $0x40] sm:$0xff] %vm1971, %v5635
    %6016 = vst.msk [vmem:[%s6006 + $0x48] sm:$0xff] %vm1971, %v5638
    %6017 = vst.msk [vmem:[%s6006 + $0x50] sm:$0xff] %vm1971, %v5641
    %6018 = vst.msk [vmem:[%s6006 + $0x58] sm:$0xff] %vm1971, %v5644
    %6019 = vst.msk [vmem:[%s6006 + $0x60] sm:$0xff] %vm1971, %v5647
    %6020 = vst.msk [vmem:[%s6006 + $0x68] sm:$0xff] %vm1971, %v5650
    %6021 = vst.msk [vmem:[%s6006 + $0x70] sm:$0xff] %vm1971, %v5653
    %6022 = vst.msk [vmem:[%s6006 + $0x78] sm:$0xff] %vm1971, %v5656
    %6023 = vst.msk [vmem:[%s6006 + $0x80] sm:$0xff] %vm1971, %v5659
    %6024 = vst.msk [vmem:[%s6006 + $0x88] sm:$0xff] %vm1971, %v5662
    %6025 = vst.msk [vmem:[%s6006 + $0x90] sm:$0xff] %vm1971, %v5665
    %6026 = vst.msk [vmem:[%s6006 + $0x98] sm:$0xff] %vm1971, %v5668
    %6027 = vst.msk [vmem:[%s6006 + $0xa0] sm:$0xff] %vm1971, %v5671
    %6028 = vst.msk [vmem:[%s6006 + $0xa8] sm:$0xff] %vm1971, %v5674
    %6029 = vst.msk [vmem:[%s6006 + $0xb0] sm:$0xff] %vm1971, %v5677
    %6030 = vst.msk [vmem:[%s6006 + $0xb8] sm:$0xff] %vm1971, %v5680
    %6031 = vst.msk [vmem:[%s6006 + $0xc0] sm:$0xff] %vm1971, %v5683
    %6032 = vst.msk [vmem:[%s6006 + $0xc8] sm:$0xff] %vm1971, %v5686
    %6033 = vst.msk [vmem:[%s6006 + $0xd0] sm:$0xff] %vm1971, %v5689
    %6034 = vst.msk [vmem:[%s6006 + $0xd8] sm:$0xff] %vm1971, %v5692
    %6035 = vst.msk [vmem:[%s6006 + $0xe0] sm:$0xff] %vm1971, %v5695
    %6036 = vst.msk [vmem:[%s6006 + $0xe8] sm:$0xff] %vm1971, %v5698
    %6037 = vst.msk [vmem:[%s6006 + $0xf0] sm:$0xff] %vm1971, %v5701
    %6038 = vst.msk [vmem:[%s6006 + $0xf8] sm:$0xff] %vm1971, %v5704
    %6039 = vst.msk [vmem:[%s6006 + $0x100] sm:$0xff] %vm1971, %v5707
    %6040 = vst.msk [vmem:[%s6006 + $0x108] sm:$0xff] %vm1971, %v5710
    %6041 = vst.msk [vmem:[%s6006 + $0x110] sm:$0xff] %vm1971, %v5713
    %6042 = vst.msk [vmem:[%s6006 + $0x118] sm:$0xff] %vm1971, %v5716
    %6043 = vst.msk [vmem:[%s6006 + $0x120] sm:$0xff] %vm1971, %v5719
    %6044 = vst.msk [vmem:[%s6006 + $0x128] sm:$0xff] %vm1971, %v5722
    %6045 = vst.msk [vmem:[%s6006 + $0x130] sm:$0xff] %vm1971, %v5725
    %6046 = vst.msk [vmem:[%s6006 + $0x138] sm:$0xff] %vm1971, %v5728
    %6047 = vst.msk [vmem:[%s6006 + $0x140] sm:$0xff] %vm1971, %v5731
    %6048 = vst.msk [vmem:[%s6006 + $0x148] sm:$0xff] %vm1971, %v5734
    %6049 = vst.msk [vmem:[%s6006 + $0x150] sm:$0xff] %vm1971, %v5737
    %6050 = vst.msk [vmem:[%s6006 + $0x158] sm:$0xff] %vm1971, %v5740
    %6051 = vst.msk [vmem:[%s6006 + $0x160] sm:$0xff] %vm1971, %v5743
    %6052 = vst.msk [vmem:[%s6006 + $0x168] sm:$0xff] %vm1971, %v5746
    %6053 = vst.msk [vmem:[%s6006 + $0x170] sm:$0xff] %vm1971, %v5749
    %6054 = vst.msk [vmem:[%s6006 + $0x178] sm:$0xff] %vm1971, %v5752
    %6055 = vst.msk [vmem:[%s6006 + $0x180] sm:$0xff] %vm1971, %v5755
    %6056 = vst.msk [vmem:[%s6006 + $0x188] sm:$0xff] %vm1971, %v5758
    %6057 = vst.msk [vmem:[%s6006 + $0x190] sm:$0xff] %vm1971, %v5761
    %6058 = vst.msk [vmem:[%s6006 + $0x198] sm:$0xff] %vm1971, %v5764
    %6059 = vst.msk [vmem:[%s6006 + $0x1a0] sm:$0xff] %vm1971, %v5767
    %6060 = vst.msk [vmem:[%s6006 + $0x1a8] sm:$0xff] %vm1971, %v5770
    %6061 = vst.msk [vmem:[%s6006 + $0x1b0] sm:$0xff] %vm1971, %v5773
    %6062 = vst.msk [vmem:[%s6006 + $0x1b8] sm:$0xff] %vm1971, %v5776
    %6063 = vst.msk [vmem:[%s6006 + $0x1c0] sm:$0xff] %vm1971, %v5779
    %6064 = vst.msk [vmem:[%s6006 + $0x1c8] sm:$0xff] %vm1971, %v5782
    %6065 = vst.msk [vmem:[%s6006 + $0x1d0] sm:$0xff] %vm1971, %v5785
    %6066 = vst.msk [vmem:[%s6006 + $0x1d8] sm:$0xff] %vm1971, %v5788
    %6067 = vst.msk [vmem:[%s6006 + $0x1e0] sm:$0xff] %vm1971, %v5791
    %6068 = vst.msk [vmem:[%s6006 + $0x1e8] sm:$0xff] %vm1971, %v5794
    %6069 = vst.msk [vmem:[%s6006 + $0x1f0] sm:$0xff] %vm1971, %v5797
    %6070 = vst.msk [vmem:[%s6006 + $0x1f8] sm:$0xff] %vm1971, %v5800
    %v6071 = vld [vmem:[%s528 + $0x1] sm:$0xff]
    %v6072 = vld [vmem:[%s528 + $0x9] sm:$0xff]
    %v6073 = vld [vmem:[%s528 + $0x19] sm:$0xff]
    %v6074 = vld [vmem:[%s528 + $0x21] sm:$0xff]
    %v6075 = vld [vmem:[%s528 + $0x31] sm:$0xff]
    %v6076 = vld [vmem:[%s528 + $0x39] sm:$0xff]
    %v6077 = vld [vmem:[%s528 + $0x49] sm:$0xff]
    %v6078 = vld [vmem:[%s528 + $0x51] sm:$0xff]
    %v6079 = vld [vmem:[%s528 + $0x61] sm:$0xff]
    %v6080 = vld [vmem:[%s528 + $0x69] sm:$0xff]
    %v6081 = vld [vmem:[%s528 + $0x79] sm:$0xff]
    %v6082 = vld [vmem:[%s528 + $0x81] sm:$0xff]
    %v6083 = vld [vmem:[%s528 + $0x91] sm:$0xff]
    %v6084 = vld [vmem:[%s528 + $0x99] sm:$0xff]
    %v6085 = vld [vmem:[%s528 + $0xa9] sm:$0xff]
    %v6086 = vld [vmem:[%s528 + $0xb1] sm:$0xff]
    %v6087 = vld [vmem:[%s528 + $0xc1] sm:$0xff]
    %v6088 = vld [vmem:[%s528 + $0xc9] sm:$0xff]
    %v6089 = vld [vmem:[%s528 + $0xd9] sm:$0xff]
    %v6090 = vld [vmem:[%s528 + $0xe1] sm:$0xff]
    %v6091 = vld [vmem:[%s528 + $0xf1] sm:$0xff]
    %v6092 = vld [vmem:[%s528 + $0xf9] sm:$0xff]
    %v6093 = vld [vmem:[%s528 + $0x109] sm:$0xff]
    %v6094 = vld [vmem:[%s528 + $0x111] sm:$0xff]
    %v6095 = vld [vmem:[%s528 + $0x121] sm:$0xff]
    %v6096 = vld [vmem:[%s528 + $0x129] sm:$0xff]
    %v6097 = vld [vmem:[%s528 + $0x139] sm:$0xff]
    %v6098 = vld [vmem:[%s528 + $0x141] sm:$0xff]
    %v6099 = vld [vmem:[%s528 + $0x151] sm:$0xff]
    %v6100 = vld [vmem:[%s528 + $0x159] sm:$0xff]
    %v6101 = vld [vmem:[%s528 + $0x169] sm:$0xff]
    %v6102 = vld [vmem:[%s528 + $0x171] sm:$0xff]
    %v6103 = vld [vmem:[%s528 + $0x1b1] sm:$0xff]
    %v6104 = vld [vmem:[%s528 + $0x1b9] sm:$0xff]
    %v6105 = vld [vmem:[%s528 + $0x1c9] sm:$0xff]
    %v6106 = vld [vmem:[%s528 + $0x1d1] sm:$0xff]
    %v6107 = vld [vmem:[%s528 + $0x1e1] sm:$0xff]
    %v6108 = vld [vmem:[%s528 + $0x1e9] sm:$0xff]
    %v6109 = vld [vmem:[%s528 + $0x1f9] sm:$0xff]
    %v6110 = vld [vmem:[%s528 + $0x201] sm:$0xff]
    %v6111 = vld [vmem:[%s528 + $0x211] sm:$0xff]
    %v6112 = vld [vmem:[%s528 + $0x219] sm:$0xff]
    %v6113 = vld [vmem:[%s528 + $0x229] sm:$0xff]
    %v6114 = vld [vmem:[%s528 + $0x231] sm:$0xff]
    %v6115 = vld [vmem:[%s528 + $0x241] sm:$0xff]
    %v6116 = vld [vmem:[%s528 + $0x249] sm:$0xff]
    %v6117 = vld [vmem:[%s528 + $0x259] sm:$0xff]
    %v6118 = vld [vmem:[%s528 + $0x261] sm:$0xff]
    %v6119 = vld [vmem:[%s528 + $0x271] sm:$0xff]
    %v6120 = vld [vmem:[%s528 + $0x279] sm:$0xff]
    %v6121 = vld [vmem:[%s528 + $0x289] sm:$0xff]
    %v6122 = vld [vmem:[%s528 + $0x291] sm:$0xff]
    %v6123 = vld [vmem:[%s528 + $0x2a1] sm:$0xff]
    %v6124 = vld [vmem:[%s528 + $0x2a9] sm:$0xff]
    %v6125 = vld [vmem:[%s528 + $0x2b9] sm:$0xff]
    %v6126 = vld [vmem:[%s528 + $0x2c1] sm:$0xff]
    %v6127 = vld [vmem:[%s528 + $0x2d1] sm:$0xff]
    %v6128 = vld [vmem:[%s528 + $0x2d9] sm:$0xff]
    %v6129 = vld [vmem:[%s528 + $0x2e9] sm:$0xff]
    %v6130 = vld [vmem:[%s528 + $0x2f1] sm:$0xff]
    %v6131 = vld [vmem:[%s528 + $0x301] sm:$0xff]
    %v6132 = vld [vmem:[%s528 + $0x309] sm:$0xff]
    %v6133 = vld [vmem:[%s528 + $0x319] sm:$0xff]
    %v6134 = vld [vmem:[%s528 + $0x321] sm:$0xff]
    %6135 = vst.msk [vmem:[#allocation2] sm:$0xff] %vm78, %v6071
    %6136 = vst.msk [vmem:[#allocation2 + $0x8] sm:$0xff] %vm78, %v6072
    %6137 = vst.msk [vmem:[#allocation2 + $0x10] sm:$0xff] %vm78, %v6073
    %6138 = vst.msk [vmem:[#allocation2 + $0x18] sm:$0xff] %vm78, %v6074
    %6139 = vst.msk [vmem:[#allocation2 + $0x20] sm:$0xff] %vm78, %v6075
    %6140 = vst.msk [vmem:[#allocation2 + $0x28] sm:$0xff] %vm78, %v6076
    %6141 = vst.msk [vmem:[#allocation2 + $0x30] sm:$0xff] %vm78, %v6077
    %6142 = vst.msk [vmem:[#allocation2 + $0x38] sm:$0xff] %vm78, %v6078
    %6143 = vst.msk [vmem:[#allocation2 + $0x40] sm:$0xff] %vm78, %v6079
    %6144 = vst.msk [vmem:[#allocation2 + $0x48] sm:$0xff] %vm78, %v6080
    %6145 = vst.msk [vmem:[#allocation2 + $0x50] sm:$0xff] %vm78, %v6081
    %6146 = vst.msk [vmem:[#allocation2 + $0x58] sm:$0xff] %vm78, %v6082
    %6147 = vst.msk [vmem:[#allocation2 + $0x60] sm:$0xff] %vm78, %v6083
    %6148 = vst.msk [vmem:[#allocation2 + $0x68] sm:$0xff] %vm78, %v6084
    %6149 = vst.msk [vmem:[#allocation2 + $0x70] sm:$0xff] %vm78, %v6085
    %6150 = vst.msk [vmem:[#allocation2 + $0x78] sm:$0xff] %vm78, %v6086
    %6151 = vst.msk [vmem:[#allocation2 + $0x80] sm:$0xff] %vm78, %v6087
    %6152 = vst.msk [vmem:[#allocation2 + $0x88] sm:$0xff] %vm78, %v6088
    %6153 = vst.msk [vmem:[#allocation2 + $0x90] sm:$0xff] %vm78, %v6089
    %6154 = vst.msk [vmem:[#allocation2 + $0x98] sm:$0xff] %vm78, %v6090
    %6155 = vst.msk [vmem:[#allocation2 + $0xa0] sm:$0xff] %vm78, %v6091
    %6156 = vst.msk [vmem:[#allocation2 + $0xa8] sm:$0xff] %vm78, %v6092
    %6157 = vst.msk [vmem:[#allocation2 + $0xb0] sm:$0xff] %vm78, %v6093
    %6158 = vst.msk [vmem:[#allocation2 + $0xb8] sm:$0xff] %vm78, %v6094
    %6159 = vst.msk [vmem:[#allocation2 + $0xc0] sm:$0xff] %vm78, %v6095
    %6160 = vst.msk [vmem:[#allocation2 + $0xc8] sm:$0xff] %vm78, %v6096
    %6161 = vst.msk [vmem:[#allocation2 + $0xd0] sm:$0xff] %vm78, %v6097
    %6162 = vst.msk [vmem:[#allocation2 + $0xd8] sm:$0xff] %vm78, %v6098
    %6163 = vst.msk [vmem:[#allocation2 + $0xe0] sm:$0xff] %vm78, %v6099
    %6164 = vst.msk [vmem:[#allocation2 + $0xe8] sm:$0xff] %vm78, %v6100
    %6165 = vst.msk [vmem:[#allocation2 + $0xf0] sm:$0xff] %vm78, %v6101
    %6166 = vst.msk [vmem:[#allocation2 + $0xf8] sm:$0xff] %vm78, %v6102
    %6167 = vst.msk [vmem:[#allocation2 + $0x100] sm:$0xff] %vm78, %v6103
    %6168 = vst.msk [vmem:[#allocation2 + $0x108] sm:$0xff] %vm78, %v6104
    %6169 = vst.msk [vmem:[#allocation2 + $0x110] sm:$0xff] %vm78, %v6105
    %6170 = vst.msk [vmem:[#allocation2 + $0x118] sm:$0xff] %vm78, %v6106
    %6171 = vst.msk [vmem:[#allocation2 + $0x120] sm:$0xff] %vm78, %v6107
    %6172 = vst.msk [vmem:[#allocation2 + $0x128] sm:$0xff] %vm78, %v6108
    %6173 = vst.msk [vmem:[#allocation2 + $0x130] sm:$0xff] %vm78, %v6109
    %6174 = vst.msk [vmem:[#allocation2 + $0x138] sm:$0xff] %vm78, %v6110
    %6175 = vst.msk [vmem:[#allocation2 + $0x140] sm:$0xff] %vm78, %v6111
    %6176 = vst.msk [vmem:[#allocation2 + $0x148] sm:$0xff] %vm78, %v6112
    %6177 = vst.msk [vmem:[#allocation2 + $0x150] sm:$0xff] %vm78, %v6113
    %6178 = vst.msk [vmem:[#allocation2 + $0x158] sm:$0xff] %vm78, %v6114
    %6179 = vst.msk [vmem:[#allocation2 + $0x160] sm:$0xff] %vm78, %v6115
    %6180 = vst.msk [vmem:[#allocation2 + $0x168] sm:$0xff] %vm78, %v6116
    %6181 = vst.msk [vmem:[#allocation2 + $0x170] sm:$0xff] %vm78, %v6117
    %6182 = vst.msk [vmem:[#allocation2 + $0x178] sm:$0xff] %vm78, %v6118
    %6183 = vst.msk [vmem:[#allocation2 + $0x180] sm:$0xff] %vm78, %v6119
    %6184 = vst.msk [vmem:[#allocation2 + $0x188] sm:$0xff] %vm78, %v6120
    %6185 = vst.msk [vmem:[#allocation2 + $0x190] sm:$0xff] %vm78, %v6121
    %6186 = vst.msk [vmem:[#allocation2 + $0x198] sm:$0xff] %vm78, %v6122
    %6187 = vst.msk [vmem:[#allocation2 + $0x1a0] sm:$0xff] %vm78, %v6123
    %6188 = vst.msk [vmem:[#allocation2 + $0x1a8] sm:$0xff] %vm78, %v6124
    %6189 = vst.msk [vmem:[#allocation2 + $0x1b0] sm:$0xff] %vm78, %v6125
    %6190 = vst.msk [vmem:[#allocation2 + $0x1b8] sm:$0xff] %vm78, %v6126
    %6191 = vst.msk [vmem:[#allocation2 + $0x1c0] sm:$0xff] %vm78, %v6127
    %6192 = vst.msk [vmem:[#allocation2 + $0x1c8] sm:$0xff] %vm78, %v6128
    %6193 = vst.msk [vmem:[#allocation2 + $0x1d0] sm:$0xff] %vm78, %v6129
    %6194 = vst.msk [vmem:[#allocation2 + $0x1d8] sm:$0xff] %vm78, %v6130
    %6195 = vst.msk [vmem:[#allocation2 + $0x1e0] sm:$0xff] %vm78, %v6131
    %6196 = vst.msk [vmem:[#allocation2 + $0x1e8] sm:$0xff] %vm78, %v6132
    %6197 = vst.msk [vmem:[#allocation2 + $0x1f0] sm:$0xff] %vm78, %v6133
    %6198 = vst.msk [vmem:[#allocation2 + $0x1f8] sm:$0xff] %vm78, %v6134
    %v6199 = vld [vmem:[%s528 + $0x2] sm:$0xff]
    %v6200 = vld [vmem:[%s528 + $0xa] sm:$0xff]
    %v6201 = vld [vmem:[%s528 + $0x1a] sm:$0xff]
    %v6202 = vld [vmem:[%s528 + $0x22] sm:$0xff]
    %v6203 = vld [vmem:[%s528 + $0x32] sm:$0xff]
    %v6204 = vld [vmem:[%s528 + $0x3a] sm:$0xff]
    %v6205 = vld [vmem:[%s528 + $0x4a] sm:$0xff]
    %v6206 = vld [vmem:[%s528 + $0x52] sm:$0xff]
    %v6207 = vld [vmem:[%s528 + $0x62] sm:$0xff]
    %v6208 = vld [vmem:[%s528 + $0x6a] sm:$0xff]
    %v6209 = vld [vmem:[%s528 + $0x7a] sm:$0xff]
    %v6210 = vld [vmem:[%s528 + $0x82] sm:$0xff]
    %v6211 = vld [vmem:[%s528 + $0x92] sm:$0xff]
    %v6212 = vld [vmem:[%s528 + $0x9a] sm:$0xff]
    %v6213 = vld [vmem:[%s528 + $0xaa] sm:$0xff]
    %v6214 = vld [vmem:[%s528 + $0xb2] sm:$0xff]
    %v6215 = vld [vmem:[%s528 + $0xc2] sm:$0xff]
    %v6216 = vld [vmem:[%s528 + $0xca] sm:$0xff]
    %v6217 = vld [vmem:[%s528 + $0xda] sm:$0xff]
    %v6218 = vld [vmem:[%s528 + $0xe2] sm:$0xff]
    %v6219 = vld [vmem:[%s528 + $0xf2] sm:$0xff]
    %v6220 = vld [vmem:[%s528 + $0xfa] sm:$0xff]
    %v6221 = vld [vmem:[%s528 + $0x10a] sm:$0xff]
    %v6222 = vld [vmem:[%s528 + $0x112] sm:$0xff]
    %v6223 = vld [vmem:[%s528 + $0x122] sm:$0xff]
    %v6224 = vld [vmem:[%s528 + $0x12a] sm:$0xff]
    %v6225 = vld [vmem:[%s528 + $0x13a] sm:$0xff]
    %v6226 = vld [vmem:[%s528 + $0x142] sm:$0xff]
    %v6227 = vld [vmem:[%s528 + $0x152] sm:$0xff]
    %v6228 = vld [vmem:[%s528 + $0x15a] sm:$0xff]
    %v6229 = vld [vmem:[%s528 + $0x16a] sm:$0xff]
    %v6230 = vld [vmem:[%s528 + $0x172] sm:$0xff]
    %v6231 = vld [vmem:[%s528 + $0x1b2] sm:$0xff]
    %v6232 = vld [vmem:[%s528 + $0x1ba] sm:$0xff]
    %v6233 = vld [vmem:[%s528 + $0x1ca] sm:$0xff]
    %v6234 = vld [vmem:[%s528 + $0x1d2] sm:$0xff]
    %v6235 = vld [vmem:[%s528 + $0x1e2] sm:$0xff]
    %v6236 = vld [vmem:[%s528 + $0x1ea] sm:$0xff]
    %v6237 = vld [vmem:[%s528 + $0x1fa] sm:$0xff]
    %v6238 = vld [vmem:[%s528 + $0x202] sm:$0xff]
    %v6239 = vld [vmem:[%s528 + $0x212] sm:$0xff]
    %v6240 = vld [vmem:[%s528 + $0x21a] sm:$0xff]
    %v6241 = vld [vmem:[%s528 + $0x22a] sm:$0xff]
    %v6242 = vld [vmem:[%s528 + $0x232] sm:$0xff]
    %v6243 = vld [vmem:[%s528 + $0x242] sm:$0xff]
    %v6244 = vld [vmem:[%s528 + $0x24a] sm:$0xff]
    %v6245 = vld [vmem:[%s528 + $0x25a] sm:$0xff]
    %v6246 = vld [vmem:[%s528 + $0x262] sm:$0xff]
    %v6247 = vld [vmem:[%s528 + $0x272] sm:$0xff]
    %v6248 = vld [vmem:[%s528 + $0x27a] sm:$0xff]
    %v6249 = vld [vmem:[%s528 + $0x28a] sm:$0xff]
    %v6250 = vld [vmem:[%s528 + $0x292] sm:$0xff]
    %v6251 = vld [vmem:[%s528 + $0x2a2] sm:$0xff]
    %v6252 = vld [vmem:[%s528 + $0x2aa] sm:$0xff]
    %v6253 = vld [vmem:[%s528 + $0x2ba] sm:$0xff]
    %v6254 = vld [vmem:[%s528 + $0x2c2] sm:$0xff]
    %v6255 = vld [vmem:[%s528 + $0x2d2] sm:$0xff]
    %v6256 = vld [vmem:[%s528 + $0x2da] sm:$0xff]
    %v6257 = vld [vmem:[%s528 + $0x2ea] sm:$0xff]
    %v6258 = vld [vmem:[%s528 + $0x2f2] sm:$0xff]
    %v6259 = vld [vmem:[%s528 + $0x302] sm:$0xff]
    %v6260 = vld [vmem:[%s528 + $0x30a] sm:$0xff]
    %v6261 = vld [vmem:[%s528 + $0x31a] sm:$0xff]
    %v6262 = vld [vmem:[%s528 + $0x322] sm:$0xff]
    %6327 = vrot.lane.b32.xlu0 %v6199, 4
    %v6328 = vpop.permute.xlu0 %6327
    %6329 = vrot.lane.b32.xlu0 %v6200, 4
    %v6330 = vpop.permute.xlu0 %6329
    %6331 = vrot.lane.b32.xlu0 %v6201, 4
    %v6332 = vpop.permute.xlu0 %6331
    %6333 = vrot.lane.b32.xlu0 %v6202, 4
    %v6334 = vpop.permute.xlu0 %6333
    %6335 = vrot.lane.b32.xlu0 %v6203, 4
    %v6336 = vpop.permute.xlu0 %6335
    %6337 = vrot.lane.b32.xlu0 %v6204, 4
    %v6338 = vpop.permute.xlu0 %6337
    %6339 = vrot.lane.b32.xlu0 %v6205, 4
    %v6340 = vpop.permute.xlu0 %6339
    %6341 = vrot.lane.b32.xlu0 %v6206, 4
    %v6342 = vpop.permute.xlu0 %6341
    %6343 = vrot.lane.b32.xlu0 %v6207, 4
    %v6344 = vpop.permute.xlu0 %6343
    %6345 = vrot.lane.b32.xlu0 %v6208, 4
    %v6346 = vpop.permute.xlu0 %6345
    %6347 = vrot.lane.b32.xlu0 %v6209, 4
    %v6348 = vpop.permute.xlu0 %6347
    %6349 = vrot.lane.b32.xlu0 %v6210, 4
    %v6350 = vpop.permute.xlu0 %6349
    %6351 = vrot.lane.b32.xlu0 %v6211, 4
    %v6352 = vpop.permute.xlu0 %6351
    %6353 = vrot.lane.b32.xlu0 %v6212, 4
    %v6354 = vpop.permute.xlu0 %6353
    %6355 = vrot.lane.b32.xlu0 %v6213, 4
    %v6356 = vpop.permute.xlu0 %6355
    %6357 = vrot.lane.b32.xlu0 %v6214, 4
    %v6358 = vpop.permute.xlu0 %6357
    %6359 = vrot.lane.b32.xlu0 %v6215, 4
    %v6360 = vpop.permute.xlu0 %6359
    %6361 = vrot.lane.b32.xlu0 %v6216, 4
    %v6362 = vpop.permute.xlu0 %6361
    %6363 = vrot.lane.b32.xlu0 %v6217, 4
    %v6364 = vpop.permute.xlu0 %6363
    %6365 = vrot.lane.b32.xlu0 %v6218, 4
    %v6366 = vpop.permute.xlu0 %6365
    %6367 = vrot.lane.b32.xlu0 %v6219, 4
    %v6368 = vpop.permute.xlu0 %6367
    %6369 = vrot.lane.b32.xlu0 %v6220, 4
    %v6370 = vpop.permute.xlu0 %6369
    %6371 = vrot.lane.b32.xlu0 %v6221, 4
    %v6372 = vpop.permute.xlu0 %6371
    %6373 = vrot.lane.b32.xlu0 %v6222, 4
    %v6374 = vpop.permute.xlu0 %6373
    %6375 = vrot.lane.b32.xlu0 %v6223, 4
    %v6376 = vpop.permute.xlu0 %6375
    %6377 = vrot.lane.b32.xlu0 %v6224, 4
    %v6378 = vpop.permute.xlu0 %6377
    %6379 = vrot.lane.b32.xlu0 %v6225, 4
    %v6380 = vpop.permute.xlu0 %6379
    %6381 = vrot.lane.b32.xlu0 %v6226, 4
    %v6382 = vpop.permute.xlu0 %6381
    %6383 = vrot.lane.b32.xlu0 %v6227, 4
    %v6384 = vpop.permute.xlu0 %6383
    %6385 = vrot.lane.b32.xlu0 %v6228, 4
    %v6386 = vpop.permute.xlu0 %6385
    %6387 = vrot.lane.b32.xlu0 %v6229, 4
    %v6388 = vpop.permute.xlu0 %6387
    %6389 = vrot.lane.b32.xlu0 %v6230, 4
    %v6390 = vpop.permute.xlu0 %6389
    %6391 = vrot.lane.b32.xlu0 %v6231, 4
    %v6392 = vpop.permute.xlu0 %6391
    %6393 = vrot.lane.b32.xlu0 %v6232, 4
    %v6394 = vpop.permute.xlu0 %6393
    %6395 = vrot.lane.b32.xlu0 %v6233, 4
    %v6396 = vpop.permute.xlu0 %6395
    %6397 = vrot.lane.b32.xlu0 %v6234, 4
    %v6398 = vpop.permute.xlu0 %6397
    %6399 = vrot.lane.b32.xlu0 %v6235, 4
    %v6400 = vpop.permute.xlu0 %6399
    %6401 = vrot.lane.b32.xlu0 %v6236, 4
    %v6402 = vpop.permute.xlu0 %6401
    %6403 = vrot.lane.b32.xlu0 %v6237, 4
    %v6404 = vpop.permute.xlu0 %6403
    %6405 = vrot.lane.b32.xlu0 %v6238, 4
    %v6406 = vpop.permute.xlu0 %6405
    %6407 = vrot.lane.b32.xlu0 %v6239, 4
    %v6408 = vpop.permute.xlu0 %6407
    %6409 = vrot.lane.b32.xlu0 %v6240, 4
    %v6410 = vpop.permute.xlu0 %6409
    %6411 = vrot.lane.b32.xlu0 %v6241, 4
    %v6412 = vpop.permute.xlu0 %6411
    %6413 = vrot.lane.b32.xlu0 %v6242, 4
    %v6414 = vpop.permute.xlu0 %6413
    %6415 = vrot.lane.b32.xlu0 %v6243, 4
    %v6416 = vpop.permute.xlu0 %6415
    %6417 = vrot.lane.b32.xlu0 %v6244, 4
    %v6418 = vpop.permute.xlu0 %6417
    %6419 = vrot.lane.b32.xlu0 %v6245, 4
    %v6420 = vpop.permute.xlu0 %6419
    %6421 = vrot.lane.b32.xlu0 %v6246, 4
    %v6422 = vpop.permute.xlu0 %6421
    %6423 = vrot.lane.b32.xlu0 %v6247, 4
    %v6424 = vpop.permute.xlu0 %6423
    %6425 = vrot.lane.b32.xlu0 %v6248, 4
    %v6426 = vpop.permute.xlu0 %6425
    %6427 = vrot.lane.b32.xlu0 %v6249, 4
    %v6428 = vpop.permute.xlu0 %6427
    %6429 = vrot.lane.b32.xlu0 %v6250, 4
    %v6430 = vpop.permute.xlu0 %6429
    %6431 = vrot.lane.b32.xlu0 %v6251, 4
    %v6432 = vpop.permute.xlu0 %6431
    %6433 = vrot.lane.b32.xlu0 %v6252, 4
    %v6434 = vpop.permute.xlu0 %6433
    %6435 = vrot.lane.b32.xlu0 %v6253, 4
    %v6436 = vpop.permute.xlu0 %6435
    %6437 = vrot.lane.b32.xlu0 %v6254, 4
    %v6438 = vpop.permute.xlu0 %6437
    %6439 = vrot.lane.b32.xlu0 %v6255, 4
    %v6440 = vpop.permute.xlu0 %6439
    %6441 = vrot.lane.b32.xlu0 %v6256, 4
    %v6442 = vpop.permute.xlu0 %6441
    %6443 = vrot.lane.b32.xlu0 %v6257, 4
    %v6444 = vpop.permute.xlu0 %6443
    %6445 = vrot.lane.b32.xlu0 %v6258, 4
    %v6446 = vpop.permute.xlu0 %6445
    %6447 = vrot.lane.b32.xlu0 %v6259, 4
    %v6448 = vpop.permute.xlu0 %6447
    %6449 = vrot.lane.b32.xlu0 %v6260, 4
    %v6450 = vpop.permute.xlu0 %6449
    %6451 = vrot.lane.b32.xlu0 %v6261, 4
    %v6452 = vpop.permute.xlu0 %6451
    %6453 = vrot.lane.b32.xlu0 %v6262, 4
    %v6454 = vpop.permute.xlu0 %6453
    %6519 = vst.msk [vmem:[#allocation2] sm:$0xff] %vm463, %v6328
    %6520 = vst.msk [vmem:[#allocation2 + $0x8] sm:$0xff] %vm463, %v6330
    %6521 = vst.msk [vmem:[#allocation2 + $0x10] sm:$0xff] %vm463, %v6332
    %6522 = vst.msk [vmem:[#allocation2 + $0x18] sm:$0xff] %vm463, %v6334
    %6523 = vst.msk [vmem:[#allocation2 + $0x20] sm:$0xff] %vm463, %v6336
    %6524 = vst.msk [vmem:[#allocation2 + $0x28] sm:$0xff] %vm463, %v6338
    %6525 = vst.msk [vmem:[#allocation2 + $0x30] sm:$0xff] %vm463, %v6340
    %6526 = vst.msk [vmem:[#allocation2 + $0x38] sm:$0xff] %vm463, %v6342
    %6527 = vst.msk [vmem:[#allocation2 + $0x40] sm:$0xff] %vm463, %v6344
    %6528 = vst.msk [vmem:[#allocation2 + $0x48] sm:$0xff] %vm463, %v6346
    %6529 = vst.msk [vmem:[#allocation2 + $0x50] sm:$0xff] %vm463, %v6348
    %6530 = vst.msk [vmem:[#allocation2 + $0x58] sm:$0xff] %vm463, %v6350
    %6531 = vst.msk [vmem:[#allocation2 + $0x60] sm:$0xff] %vm463, %v6352
    %6532 = vst.msk [vmem:[#allocation2 + $0x68] sm:$0xff] %vm463, %v6354
    %6533 = vst.msk [vmem:[#allocation2 + $0x70] sm:$0xff] %vm463, %v6356
    %6534 = vst.msk [vmem:[#allocation2 + $0x78] sm:$0xff] %vm463, %v6358
    %6535 = vst.msk [vmem:[#allocation2 + $0x80] sm:$0xff] %vm463, %v6360
    %6536 = vst.msk [vmem:[#allocation2 + $0x88] sm:$0xff] %vm463, %v6362
    %6537 = vst.msk [vmem:[#allocation2 + $0x90] sm:$0xff] %vm463, %v6364
    %6538 = vst.msk [vmem:[#allocation2 + $0x98] sm:$0xff] %vm463, %v6366
    %6539 = vst.msk [vmem:[#allocation2 + $0xa0] sm:$0xff] %vm463, %v6368
    %6540 = vst.msk [vmem:[#allocation2 + $0xa8] sm:$0xff] %vm463, %v6370
    %6541 = vst.msk [vmem:[#allocation2 + $0xb0] sm:$0xff] %vm463, %v6372
    %6542 = vst.msk [vmem:[#allocation2 + $0xb8] sm:$0xff] %vm463, %v6374
    %6543 = vst.msk [vmem:[#allocation2 + $0xc0] sm:$0xff] %vm463, %v6376
    %6544 = vst.msk [vmem:[#allocation2 + $0xc8] sm:$0xff] %vm463, %v6378
    %6545 = vst.msk [vmem:[#allocation2 + $0xd0] sm:$0xff] %vm463, %v6380
    %6546 = vst.msk [vmem:[#allocation2 + $0xd8] sm:$0xff] %vm463, %v6382
    %6547 = vst.msk [vmem:[#allocation2 + $0xe0] sm:$0xff] %vm463, %v6384
    %6548 = vst.msk [vmem:[#allocation2 + $0xe8] sm:$0xff] %vm463, %v6386
    %6549 = vst.msk [vmem:[#allocation2 + $0xf0] sm:$0xff] %vm463, %v6388
    %6550 = vst.msk [vmem:[#allocation2 + $0xf8] sm:$0xff] %vm463, %v6390
    %6551 = vst.msk [vmem:[#allocation2 + $0x100] sm:$0xff] %vm463, %v6392
    %6552 = vst.msk [vmem:[#allocation2 + $0x108] sm:$0xff] %vm463, %v6394
    %6553 = vst.msk [vmem:[#allocation2 + $0x110] sm:$0xff] %vm463, %v6396
    %6554 = vst.msk [vmem:[#allocation2 + $0x118] sm:$0xff] %vm463, %v6398
    %6555 = vst.msk [vmem:[#allocation2 + $0x120] sm:$0xff] %vm463, %v6400
    %6556 = vst.msk [vmem:[#allocation2 + $0x128] sm:$0xff] %vm463, %v6402
    %6557 = vst.msk [vmem:[#allocation2 + $0x130] sm:$0xff] %vm463, %v6404
    %6558 = vst.msk [vmem:[#allocation2 + $0x138] sm:$0xff] %vm463, %v6406
    %6559 = vst.msk [vmem:[#allocation2 + $0x140] sm:$0xff] %vm463, %v6408
    %6560 = vst.msk [vmem:[#allocation2 + $0x148] sm:$0xff] %vm463, %v6410
    %6561 = vst.msk [vmem:[#allocation2 + $0x150] sm:$0xff] %vm463, %v6412
    %6562 = vst.msk [vmem:[#allocation2 + $0x158] sm:$0xff] %vm463, %v6414
    %6563 = vst.msk [vmem:[#allocation2 + $0x160] sm:$0xff] %vm463, %v6416
    %6564 = vst.msk [vmem:[#allocation2 + $0x168] sm:$0xff] %vm463, %v6418
    %6565 = vst.msk [vmem:[#allocation2 + $0x170] sm:$0xff] %vm463, %v6420
    %6566 = vst.msk [vmem:[#allocation2 + $0x178] sm:$0xff] %vm463, %v6422
    %6567 = vst.msk [vmem:[#allocation2 + $0x180] sm:$0xff] %vm463, %v6424
    %6568 = vst.msk [vmem:[#allocation2 + $0x188] sm:$0xff] %vm463, %v6426
    %6569 = vst.msk [vmem:[#allocation2 + $0x190] sm:$0xff] %vm463, %v6428
    %6570 = vst.msk [vmem:[#allocation2 + $0x198] sm:$0xff] %vm463, %v6430
    %6571 = vst.msk [vmem:[#allocation2 + $0x1a0] sm:$0xff] %vm463, %v6432
    %6572 = vst.msk [vmem:[#allocation2 + $0x1a8] sm:$0xff] %vm463, %v6434
    %6573 = vst.msk [vmem:[#allocation2 + $0x1b0] sm:$0xff] %vm463, %v6436
    %6574 = vst.msk [vmem:[#allocation2 + $0x1b8] sm:$0xff] %vm463, %v6438
    %6575 = vst.msk [vmem:[#allocation2 + $0x1c0] sm:$0xff] %vm463, %v6440
    %6576 = vst.msk [vmem:[#allocation2 + $0x1c8] sm:$0xff] %vm463, %v6442
    %6577 = vst.msk [vmem:[#allocation2 + $0x1d0] sm:$0xff] %vm463, %v6444
    %6578 = vst.msk [vmem:[#allocation2 + $0x1d8] sm:$0xff] %vm463, %v6446
    %6579 = vst.msk [vmem:[#allocation2 + $0x1e0] sm:$0xff] %vm463, %v6448
    %6580 = vst.msk [vmem:[#allocation2 + $0x1e8] sm:$0xff] %vm463, %v6450
    %6581 = vst.msk [vmem:[#allocation2 + $0x1f0] sm:$0xff] %vm463, %v6452
    %6582 = vst.msk [vmem:[#allocation2 + $0x1f8] sm:$0xff] %vm463, %v6454
    %v6583 = vld [vmem:[%s4565 + $0x1] sm:$0xff]
    %v6584 = vld [vmem:[%s4565 + $0x9] sm:$0xff]
    %v6585 = vld [vmem:[%s4565 + $0x19] sm:$0xff]
    %v6586 = vld [vmem:[%s4565 + $0x21] sm:$0xff]
    %v6587 = vld [vmem:[%s4565 + $0x31] sm:$0xff]
    %v6588 = vld [vmem:[%s4565 + $0x39] sm:$0xff]
    %v6589 = vld [vmem:[%s4565 + $0x49] sm:$0xff]
    %v6590 = vld [vmem:[%s4565 + $0x51] sm:$0xff]
    %v6591 = vld [vmem:[%s4565 + $0x61] sm:$0xff]
    %v6592 = vld [vmem:[%s4565 + $0x69] sm:$0xff]
    %v6593 = vld [vmem:[%s4565 + $0x79] sm:$0xff]
    %v6594 = vld [vmem:[%s4565 + $0x81] sm:$0xff]
    %v6595 = vld [vmem:[%s4565 + $0x91] sm:$0xff]
    %v6596 = vld [vmem:[%s4565 + $0x99] sm:$0xff]
    %v6597 = vld [vmem:[%s4565 + $0xa9] sm:$0xff]
    %v6598 = vld [vmem:[%s4565 + $0xb1] sm:$0xff]
    %v6599 = vld [vmem:[%s4565 + $0xc1] sm:$0xff]
    %v6600 = vld [vmem:[%s4565 + $0xc9] sm:$0xff]
    %v6601 = vld [vmem:[%s4565 + $0xd9] sm:$0xff]
    %v6602 = vld [vmem:[%s4565 + $0xe1] sm:$0xff]
    %v6603 = vld [vmem:[%s4565 + $0xf1] sm:$0xff]
    %v6604 = vld [vmem:[%s4565 + $0xf9] sm:$0xff]
    %v6605 = vld [vmem:[%s4565 + $0x109] sm:$0xff]
    %v6606 = vld [vmem:[%s4565 + $0x111] sm:$0xff]
    %v6607 = vld [vmem:[%s4565 + $0x121] sm:$0xff]
    %v6608 = vld [vmem:[%s4565 + $0x129] sm:$0xff]
    %v6609 = vld [vmem:[%s4565 + $0x139] sm:$0xff]
    %v6610 = vld [vmem:[%s4565 + $0x141] sm:$0xff]
    %v6611 = vld [vmem:[%s4565 + $0x151] sm:$0xff]
    %v6612 = vld [vmem:[%s4565 + $0x159] sm:$0xff]
    %v6613 = vld [vmem:[%s4565 + $0x169] sm:$0xff]
    %v6614 = vld [vmem:[%s4565 + $0x171] sm:$0xff]
    %v6615 = vld [vmem:[%s4565 + $0x1b1] sm:$0xff]
    %v6616 = vld [vmem:[%s4565 + $0x1b9] sm:$0xff]
    %v6617 = vld [vmem:[%s4565 + $0x1c9] sm:$0xff]
    %v6618 = vld [vmem:[%s4565 + $0x1d1] sm:$0xff]
    %v6619 = vld [vmem:[%s4565 + $0x1e1] sm:$0xff]
    %v6620 = vld [vmem:[%s4565 + $0x1e9] sm:$0xff]
    %v6621 = vld [vmem:[%s4565 + $0x1f9] sm:$0xff]
    %v6622 = vld [vmem:[%s4565 + $0x201] sm:$0xff]
    %v6623 = vld [vmem:[%s4565 + $0x211] sm:$0xff]
    %v6624 = vld [vmem:[%s4565 + $0x219] sm:$0xff]
    %v6625 = vld [vmem:[%s4565 + $0x229] sm:$0xff]
    %v6626 = vld [vmem:[%s4565 + $0x231] sm:$0xff]
    %v6627 = vld [vmem:[%s4565 + $0x241] sm:$0xff]
    %v6628 = vld [vmem:[%s4565 + $0x249] sm:$0xff]
    %v6629 = vld [vmem:[%s4565 + $0x259] sm:$0xff]
    %v6630 = vld [vmem:[%s4565 + $0x261] sm:$0xff]
    %v6631 = vld [vmem:[%s4565 + $0x271] sm:$0xff]
    %v6632 = vld [vmem:[%s4565 + $0x279] sm:$0xff]
    %v6633 = vld [vmem:[%s4565 + $0x289] sm:$0xff]
    %v6634 = vld [vmem:[%s4565 + $0x291] sm:$0xff]
    %v6635 = vld [vmem:[%s4565 + $0x2a1] sm:$0xff]
    %v6636 = vld [vmem:[%s4565 + $0x2a9] sm:$0xff]
    %v6637 = vld [vmem:[%s4565 + $0x2b9] sm:$0xff]
    %v6638 = vld [vmem:[%s4565 + $0x2c1] sm:$0xff]
    %v6639 = vld [vmem:[%s4565 + $0x2d1] sm:$0xff]
    %v6640 = vld [vmem:[%s4565 + $0x2d9] sm:$0xff]
    %v6641 = vld [vmem:[%s4565 + $0x2e9] sm:$0xff]
    %v6642 = vld [vmem:[%s4565 + $0x2f1] sm:$0xff]
    %v6643 = vld [vmem:[%s4565 + $0x301] sm:$0xff]
    %v6644 = vld [vmem:[%s4565 + $0x309] sm:$0xff]
    %v6645 = vld [vmem:[%s4565 + $0x319] sm:$0xff]
    %v6646 = vld [vmem:[%s4565 + $0x321] sm:$0xff]
    %6711 = vrot.lane.b32.xlu0 %v6583, 8
    %v6712 = vpop.permute.xlu0 %6711
    %6713 = vrot.lane.b32.xlu0 %v6584, 8
    %v6714 = vpop.permute.xlu0 %6713
    %6715 = vrot.lane.b32.xlu0 %v6585, 8
    %v6716 = vpop.permute.xlu0 %6715
    %6717 = vrot.lane.b32.xlu0 %v6586, 8
    %v6718 = vpop.permute.xlu0 %6717
    %6719 = vrot.lane.b32.xlu0 %v6587, 8
    %v6720 = vpop.permute.xlu0 %6719
    %6721 = vrot.lane.b32.xlu0 %v6588, 8
    %v6722 = vpop.permute.xlu0 %6721
    %6723 = vrot.lane.b32.xlu0 %v6589, 8
    %v6724 = vpop.permute.xlu0 %6723
    %6725 = vrot.lane.b32.xlu0 %v6590, 8
    %v6726 = vpop.permute.xlu0 %6725
    %6727 = vrot.lane.b32.xlu0 %v6591, 8
    %v6728 = vpop.permute.xlu0 %6727
    %6729 = vrot.lane.b32.xlu0 %v6592, 8
    %v6730 = vpop.permute.xlu0 %6729
    %6731 = vrot.lane.b32.xlu0 %v6593, 8
    %v6732 = vpop.permute.xlu0 %6731
    %6733 = vrot.lane.b32.xlu0 %v6594, 8
    %v6734 = vpop.permute.xlu0 %6733
    %6735 = vrot.lane.b32.xlu0 %v6595, 8
    %v6736 = vpop.permute.xlu0 %6735
    %6737 = vrot.lane.b32.xlu0 %v6596, 8
    %v6738 = vpop.permute.xlu0 %6737
    %6739 = vrot.lane.b32.xlu0 %v6597, 8
    %v6740 = vpop.permute.xlu0 %6739
    %6741 = vrot.lane.b32.xlu0 %v6598, 8
    %v6742 = vpop.permute.xlu0 %6741
    %6743 = vrot.lane.b32.xlu0 %v6599, 8
    %v6744 = vpop.permute.xlu0 %6743
    %6745 = vrot.lane.b32.xlu0 %v6600, 8
    %v6746 = vpop.permute.xlu0 %6745
    %6747 = vrot.lane.b32.xlu0 %v6601, 8
    %v6748 = vpop.permute.xlu0 %6747
    %6749 = vrot.lane.b32.xlu0 %v6602, 8
    %v6750 = vpop.permute.xlu0 %6749
    %6751 = vrot.lane.b32.xlu0 %v6603, 8
    %v6752 = vpop.permute.xlu0 %6751
    %6753 = vrot.lane.b32.xlu0 %v6604, 8
    %v6754 = vpop.permute.xlu0 %6753
    %6755 = vrot.lane.b32.xlu0 %v6605, 8
    %v6756 = vpop.permute.xlu0 %6755
    %6757 = vrot.lane.b32.xlu0 %v6606, 8
    %v6758 = vpop.permute.xlu0 %6757
    %6759 = vrot.lane.b32.xlu0 %v6607, 8
    %v6760 = vpop.permute.xlu0 %6759
    %6761 = vrot.lane.b32.xlu0 %v6608, 8
    %v6762 = vpop.permute.xlu0 %6761
    %6763 = vrot.lane.b32.xlu0 %v6609, 8
    %v6764 = vpop.permute.xlu0 %6763
    %6765 = vrot.lane.b32.xlu0 %v6610, 8
    %v6766 = vpop.permute.xlu0 %6765
    %6767 = vrot.lane.b32.xlu0 %v6611, 8
    %v6768 = vpop.permute.xlu0 %6767
    %6769 = vrot.lane.b32.xlu0 %v6612, 8
    %v6770 = vpop.permute.xlu0 %6769
    %6771 = vrot.lane.b32.xlu0 %v6613, 8
    %v6772 = vpop.permute.xlu0 %6771
    %6773 = vrot.lane.b32.xlu0 %v6614, 8
    %v6774 = vpop.permute.xlu0 %6773
    %6775 = vrot.lane.b32.xlu0 %v6615, 8
    %v6776 = vpop.permute.xlu0 %6775
    %6777 = vrot.lane.b32.xlu0 %v6616, 8
    %v6778 = vpop.permute.xlu0 %6777
    %6779 = vrot.lane.b32.xlu0 %v6617, 8
    %v6780 = vpop.permute.xlu0 %6779
    %6781 = vrot.lane.b32.xlu0 %v6618, 8
    %v6782 = vpop.permute.xlu0 %6781
    %6783 = vrot.lane.b32.xlu0 %v6619, 8
    %v6784 = vpop.permute.xlu0 %6783
    %6785 = vrot.lane.b32.xlu0 %v6620, 8
    %v6786 = vpop.permute.xlu0 %6785
    %6787 = vrot.lane.b32.xlu0 %v6621, 8
    %v6788 = vpop.permute.xlu0 %6787
    %6789 = vrot.lane.b32.xlu0 %v6622, 8
    %v6790 = vpop.permute.xlu0 %6789
    %6791 = vrot.lane.b32.xlu0 %v6623, 8
    %v6792 = vpop.permute.xlu0 %6791
    %6793 = vrot.lane.b32.xlu0 %v6624, 8
    %v6794 = vpop.permute.xlu0 %6793
    %6795 = vrot.lane.b32.xlu0 %v6625, 8
    %v6796 = vpop.permute.xlu0 %6795
    %6797 = vrot.lane.b32.xlu0 %v6626, 8
    %v6798 = vpop.permute.xlu0 %6797
    %6799 = vrot.lane.b32.xlu0 %v6627, 8
    %v6800 = vpop.permute.xlu0 %6799
    %6801 = vrot.lane.b32.xlu0 %v6628, 8
    %v6802 = vpop.permute.xlu0 %6801
    %6803 = vrot.lane.b32.xlu0 %v6629, 8
    %v6804 = vpop.permute.xlu0 %6803
    %6805 = vrot.lane.b32.xlu0 %v6630, 8
    %v6806 = vpop.permute.xlu0 %6805
    %6807 = vrot.lane.b32.xlu0 %v6631, 8
    %v6808 = vpop.permute.xlu0 %6807
    %6809 = vrot.lane.b32.xlu0 %v6632, 8
    %v6810 = vpop.permute.xlu0 %6809
    %6811 = vrot.lane.b32.xlu0 %v6633, 8
    %v6812 = vpop.permute.xlu0 %6811
    %6813 = vrot.lane.b32.xlu0 %v6634, 8
    %v6814 = vpop.permute.xlu0 %6813
    %6815 = vrot.lane.b32.xlu0 %v6635, 8
    %v6816 = vpop.permute.xlu0 %6815
    %6817 = vrot.lane.b32.xlu0 %v6636, 8
    %v6818 = vpop.permute.xlu0 %6817
    %6819 = vrot.lane.b32.xlu0 %v6637, 8
    %v6820 = vpop.permute.xlu0 %6819
    %6821 = vrot.lane.b32.xlu0 %v6638, 8
    %v6822 = vpop.permute.xlu0 %6821
    %6823 = vrot.lane.b32.xlu0 %v6639, 8
    %v6824 = vpop.permute.xlu0 %6823
    %6825 = vrot.lane.b32.xlu0 %v6640, 8
    %v6826 = vpop.permute.xlu0 %6825
    %6827 = vrot.lane.b32.xlu0 %v6641, 8
    %v6828 = vpop.permute.xlu0 %6827
    %6829 = vrot.lane.b32.xlu0 %v6642, 8
    %v6830 = vpop.permute.xlu0 %6829
    %6831 = vrot.lane.b32.xlu0 %v6643, 8
    %v6832 = vpop.permute.xlu0 %6831
    %6833 = vrot.lane.b32.xlu0 %v6644, 8
    %v6834 = vpop.permute.xlu0 %6833
    %6835 = vrot.lane.b32.xlu0 %v6645, 8
    %v6836 = vpop.permute.xlu0 %6835
    %6837 = vrot.lane.b32.xlu0 %v6646, 8
    %v6838 = vpop.permute.xlu0 %6837
    %6903 = vst.msk [vmem:[#allocation2] sm:$0xff] %vm849, %v6712
    %6904 = vst.msk [vmem:[#allocation2 + $0x8] sm:$0xff] %vm849, %v6714
    %6905 = vst.msk [vmem:[#allocation2 + $0x10] sm:$0xff] %vm849, %v6716
    %6906 = vst.msk [vmem:[#allocation2 + $0x18] sm:$0xff] %vm849, %v6718
    %6907 = vst.msk [vmem:[#allocation2 + $0x20] sm:$0xff] %vm849, %v6720
    %6908 = vst.msk [vmem:[#allocation2 + $0x28] sm:$0xff] %vm849, %v6722
    %6909 = vst.msk [vmem:[#allocation2 + $0x30] sm:$0xff] %vm849, %v6724
    %6910 = vst.msk [vmem:[#allocation2 + $0x38] sm:$0xff] %vm849, %v6726
    %6911 = vst.msk [vmem:[#allocation2 + $0x40] sm:$0xff] %vm849, %v6728
    %6912 = vst.msk [vmem:[#allocation2 + $0x48] sm:$0xff] %vm849, %v6730
    %6913 = vst.msk [vmem:[#allocation2 + $0x50] sm:$0xff] %vm849, %v6732
    %6914 = vst.msk [vmem:[#allocation2 + $0x58] sm:$0xff] %vm849, %v6734
    %6915 = vst.msk [vmem:[#allocation2 + $0x60] sm:$0xff] %vm849, %v6736
    %6916 = vst.msk [vmem:[#allocation2 + $0x68] sm:$0xff] %vm849, %v6738
    %6917 = vst.msk [vmem:[#allocation2 + $0x70] sm:$0xff] %vm849, %v6740
    %6918 = vst.msk [vmem:[#allocation2 + $0x78] sm:$0xff] %vm849, %v6742
    %6919 = vst.msk [vmem:[#allocation2 + $0x80] sm:$0xff] %vm849, %v6744
    %6920 = vst.msk [vmem:[#allocation2 + $0x88] sm:$0xff] %vm849, %v6746
    %6921 = vst.msk [vmem:[#allocation2 + $0x90] sm:$0xff] %vm849, %v6748
    %6922 = vst.msk [vmem:[#allocation2 + $0x98] sm:$0xff] %vm849, %v6750
    %6923 = vst.msk [vmem:[#allocation2 + $0xa0] sm:$0xff] %vm849, %v6752
    %6924 = vst.msk [vmem:[#allocation2 + $0xa8] sm:$0xff] %vm849, %v6754
    %6925 = vst.msk [vmem:[#allocation2 + $0xb0] sm:$0xff] %vm849, %v6756
    %6926 = vst.msk [vmem:[#allocation2 + $0xb8] sm:$0xff] %vm849, %v6758
    %6927 = vst.msk [vmem:[#allocation2 + $0xc0] sm:$0xff] %vm849, %v6760
    %6928 = vst.msk [vmem:[#allocation2 + $0xc8] sm:$0xff] %vm849, %v6762
    %6929 = vst.msk [vmem:[#allocation2 + $0xd0] sm:$0xff] %vm849, %v6764
    %6930 = vst.msk [vmem:[#allocation2 + $0xd8] sm:$0xff] %vm849, %v6766
    %6931 = vst.msk [vmem:[#allocation2 + $0xe0] sm:$0xff] %vm849, %v6768
    %6932 = vst.msk [vmem:[#allocation2 + $0xe8] sm:$0xff] %vm849, %v6770
    %6933 = vst.msk [vmem:[#allocation2 + $0xf0] sm:$0xff] %vm849, %v6772
    %6934 = vst.msk [vmem:[#allocation2 + $0xf8] sm:$0xff] %vm849, %v6774
    %6935 = vst.msk [vmem:[#allocation2 + $0x100] sm:$0xff] %vm849, %v6776
    %6936 = vst.msk [vmem:[#allocation2 + $0x108] sm:$0xff] %vm849, %v6778
    %6937 = vst.msk [vmem:[#allocation2 + $0x110] sm:$0xff] %vm849, %v6780
    %6938 = vst.msk [vmem:[#allocation2 + $0x118] sm:$0xff] %vm849, %v6782
    %6939 = vst.msk [vmem:[#allocation2 + $0x120] sm:$0xff] %vm849, %v6784
    %6940 = vst.msk [vmem:[#allocation2 + $0x128] sm:$0xff] %vm849, %v6786
    %6941 = vst.msk [vmem:[#allocation2 + $0x130] sm:$0xff] %vm849, %v6788
    %6942 = vst.msk [vmem:[#allocation2 + $0x138] sm:$0xff] %vm849, %v6790
    %6943 = vst.msk [vmem:[#allocation2 + $0x140] sm:$0xff] %vm849, %v6792
    %6944 = vst.msk [vmem:[#allocation2 + $0x148] sm:$0xff] %vm849, %v6794
    %6945 = vst.msk [vmem:[#allocation2 + $0x150] sm:$0xff] %vm849, %v6796
    %6946 = vst.msk [vmem:[#allocation2 + $0x158] sm:$0xff] %vm849, %v6798
    %6947 = vst.msk [vmem:[#allocation2 + $0x160] sm:$0xff] %vm849, %v6800
    %6948 = vst.msk [vmem:[#allocation2 + $0x168] sm:$0xff] %vm849, %v6802
    %6949 = vst.msk [vmem:[#allocation2 + $0x170] sm:$0xff] %vm849, %v6804
    %6950 = vst.msk [vmem:[#allocation2 + $0x178] sm:$0xff] %vm849, %v6806
    %6951 = vst.msk [vmem:[#allocation2 + $0x180] sm:$0xff] %vm849, %v6808
    %6952 = vst.msk [vmem:[#allocation2 + $0x188] sm:$0xff] %vm849, %v6810
    %6953 = vst.msk [vmem:[#allocation2 + $0x190] sm:$0xff] %vm849, %v6812
    %6954 = vst.msk [vmem:[#allocation2 + $0x198] sm:$0xff] %vm849, %v6814
    %6955 = vst.msk [vmem:[#allocation2 + $0x1a0] sm:$0xff] %vm849, %v6816
    %6956 = vst.msk [vmem:[#allocation2 + $0x1a8] sm:$0xff] %vm849, %v6818
    %6957 = vst.msk [vmem:[#allocation2 + $0x1b0] sm:$0xff] %vm849, %v6820
    %6958 = vst.msk [vmem:[#allocation2 + $0x1b8] sm:$0xff] %vm849, %v6822
    %6959 = vst.msk [vmem:[#allocation2 + $0x1c0] sm:$0xff] %vm849, %v6824
    %6960 = vst.msk [vmem:[#allocation2 + $0x1c8] sm:$0xff] %vm849, %v6826
    %6961 = vst.msk [vmem:[#allocation2 + $0x1d0] sm:$0xff] %vm849, %v6828
    %6962 = vst.msk [vmem:[#allocation2 + $0x1d8] sm:$0xff] %vm849, %v6830
    %6963 = vst.msk [vmem:[#allocation2 + $0x1e0] sm:$0xff] %vm849, %v6832
    %6964 = vst.msk [vmem:[#allocation2 + $0x1e8] sm:$0xff] %vm849, %v6834
    %6965 = vst.msk [vmem:[#allocation2 + $0x1f0] sm:$0xff] %vm849, %v6836
    %6966 = vst.msk [vmem:[#allocation2 + $0x1f8] sm:$0xff] %vm849, %v6838
    %v6967 = vld [vmem:[%s4565 + $0x2] sm:$0xff]
    %v6968 = vld [vmem:[%s4565 + $0xa] sm:$0xff]
    %v6969 = vld [vmem:[%s4565 + $0x1a] sm:$0xff]
    %v6970 = vld [vmem:[%s4565 + $0x22] sm:$0xff]
    %v6971 = vld [vmem:[%s4565 + $0x32] sm:$0xff]
    %v6972 = vld [vmem:[%s4565 + $0x3a] sm:$0xff]
    %v6973 = vld [vmem:[%s4565 + $0x4a] sm:$0xff]
    %v6974 = vld [vmem:[%s4565 + $0x52] sm:$0xff]
    %v6975 = vld [vmem:[%s4565 + $0x62] sm:$0xff]
    %v6976 = vld [vmem:[%s4565 + $0x6a] sm:$0xff]
    %v6977 = vld [vmem:[%s4565 + $0x7a] sm:$0xff]
    %v6978 = vld [vmem:[%s4565 + $0x82] sm:$0xff]
    %v6979 = vld [vmem:[%s4565 + $0x92] sm:$0xff]
    %v6980 = vld [vmem:[%s4565 + $0x9a] sm:$0xff]
    %v6981 = vld [vmem:[%s4565 + $0xaa] sm:$0xff]
    %v6982 = vld [vmem:[%s4565 + $0xb2] sm:$0xff]
    %v6983 = vld [vmem:[%s4565 + $0xc2] sm:$0xff]
    %v6984 = vld [vmem:[%s4565 + $0xca] sm:$0xff]
    %v6985 = vld [vmem:[%s4565 + $0xda] sm:$0xff]
    %v6986 = vld [vmem:[%s4565 + $0xe2] sm:$0xff]
    %v6987 = vld [vmem:[%s4565 + $0xf2] sm:$0xff]
    %v6988 = vld [vmem:[%s4565 + $0xfa] sm:$0xff]
    %v6989 = vld [vmem:[%s4565 + $0x10a] sm:$0xff]
    %v6990 = vld [vmem:[%s4565 + $0x112] sm:$0xff]
    %v6991 = vld [vmem:[%s4565 + $0x122] sm:$0xff]
    %v6992 = vld [vmem:[%s4565 + $0x12a] sm:$0xff]
    %v6993 = vld [vmem:[%s4565 + $0x13a] sm:$0xff]
    %v6994 = vld [vmem:[%s4565 + $0x142] sm:$0xff]
    %v6995 = vld [vmem:[%s4565 + $0x152] sm:$0xff]
    %v6996 = vld [vmem:[%s4565 + $0x15a] sm:$0xff]
    %v6997 = vld [vmem:[%s4565 + $0x16a] sm:$0xff]
    %v6998 = vld [vmem:[%s4565 + $0x172] sm:$0xff]
    %v6999 = vld [vmem:[%s4565 + $0x1b2] sm:$0xff]
    %v7000 = vld [vmem:[%s4565 + $0x1ba] sm:$0xff]
    %v7001 = vld [vmem:[%s4565 + $0x1ca] sm:$0xff]
    %v7002 = vld [vmem:[%s4565 + $0x1d2] sm:$0xff]
    %v7003 = vld [vmem:[%s4565 + $0x1e2] sm:$0xff]
    %v7004 = vld [vmem:[%s4565 + $0x1ea] sm:$0xff]
    %v7005 = vld [vmem:[%s4565 + $0x1fa] sm:$0xff]
    %v7006 = vld [vmem:[%s4565 + $0x202] sm:$0xff]
    %v7007 = vld [vmem:[%s4565 + $0x212] sm:$0xff]
    %v7008 = vld [vmem:[%s4565 + $0x21a] sm:$0xff]
    %v7009 = vld [vmem:[%s4565 + $0x22a] sm:$0xff]
    %v7010 = vld [vmem:[%s4565 + $0x232] sm:$0xff]
    %v7011 = vld [vmem:[%s4565 + $0x242] sm:$0xff]
    %v7012 = vld [vmem:[%s4565 + $0x24a] sm:$0xff]
    %v7013 = vld [vmem:[%s4565 + $0x25a] sm:$0xff]
    %v7014 = vld [vmem:[%s4565 + $0x262] sm:$0xff]
    %v7015 = vld [vmem:[%s4565 + $0x272] sm:$0xff]
    %v7016 = vld [vmem:[%s4565 + $0x27a] sm:$0xff]
    %v7017 = vld [vmem:[%s4565 + $0x28a] sm:$0xff]
    %v7018 = vld [vmem:[%s4565 + $0x292] sm:$0xff]
    %v7019 = vld [vmem:[%s4565 + $0x2a2] sm:$0xff]
    %v7020 = vld [vmem:[%s4565 + $0x2aa] sm:$0xff]
    %v7021 = vld [vmem:[%s4565 + $0x2ba] sm:$0xff]
    %v7022 = vld [vmem:[%s4565 + $0x2c2] sm:$0xff]
    %v7023 = vld [vmem:[%s4565 + $0x2d2] sm:$0xff]
    %v7024 = vld [vmem:[%s4565 + $0x2da] sm:$0xff]
    %v7025 = vld [vmem:[%s4565 + $0x2ea] sm:$0xff]
    %v7026 = vld [vmem:[%s4565 + $0x2f2] sm:$0xff]
    %v7027 = vld [vmem:[%s4565 + $0x302] sm:$0xff]
    %v7028 = vld [vmem:[%s4565 + $0x30a] sm:$0xff]
    %v7029 = vld [vmem:[%s4565 + $0x31a] sm:$0xff]
    %v7030 = vld [vmem:[%s4565 + $0x322] sm:$0xff]
    %7095 = vrot.lane.b32.xlu0 %v6967, 12
    %v7096 = vpop.permute.xlu0 %7095
    %7097 = vrot.lane.b32.xlu0 %v6968, 12
    %v7098 = vpop.permute.xlu0 %7097
    %7099 = vrot.lane.b32.xlu0 %v6969, 12
    %v7100 = vpop.permute.xlu0 %7099
    %7101 = vrot.lane.b32.xlu0 %v6970, 12
    %v7102 = vpop.permute.xlu0 %7101
    %7103 = vrot.lane.b32.xlu0 %v6971, 12
    %v7104 = vpop.permute.xlu0 %7103
    %7105 = vrot.lane.b32.xlu0 %v6972, 12
    %v7106 = vpop.permute.xlu0 %7105
    %7107 = vrot.lane.b32.xlu0 %v6973, 12
    %v7108 = vpop.permute.xlu0 %7107
    %7109 = vrot.lane.b32.xlu0 %v6974, 12
    %v7110 = vpop.permute.xlu0 %7109
    %7111 = vrot.lane.b32.xlu0 %v6975, 12
    %v7112 = vpop.permute.xlu0 %7111
    %7113 = vrot.lane.b32.xlu0 %v6976, 12
    %v7114 = vpop.permute.xlu0 %7113
    %7115 = vrot.lane.b32.xlu0 %v6977, 12
    %v7116 = vpop.permute.xlu0 %7115
    %7117 = vrot.lane.b32.xlu0 %v6978, 12
    %v7118 = vpop.permute.xlu0 %7117
    %7119 = vrot.lane.b32.xlu0 %v6979, 12
    %v7120 = vpop.permute.xlu0 %7119
    %7121 = vrot.lane.b32.xlu0 %v6980, 12
    %v7122 = vpop.permute.xlu0 %7121
    %7123 = vrot.lane.b32.xlu0 %v6981, 12
    %v7124 = vpop.permute.xlu0 %7123
    %7125 = vrot.lane.b32.xlu0 %v6982, 12
    %v7126 = vpop.permute.xlu0 %7125
    %7127 = vrot.lane.b32.xlu0 %v6983, 12
    %v7128 = vpop.permute.xlu0 %7127
    %7129 = vrot.lane.b32.xlu0 %v6984, 12
    %v7130 = vpop.permute.xlu0 %7129
    %7131 = vrot.lane.b32.xlu0 %v6985, 12
    %v7132 = vpop.permute.xlu0 %7131
    %7133 = vrot.lane.b32.xlu0 %v6986, 12
    %v7134 = vpop.permute.xlu0 %7133
    %7135 = vrot.lane.b32.xlu0 %v6987, 12
    %v7136 = vpop.permute.xlu0 %7135
    %7137 = vrot.lane.b32.xlu0 %v6988, 12
    %v7138 = vpop.permute.xlu0 %7137
    %7139 = vrot.lane.b32.xlu0 %v6989, 12
    %v7140 = vpop.permute.xlu0 %7139
    %7141 = vrot.lane.b32.xlu0 %v6990, 12
    %v7142 = vpop.permute.xlu0 %7141
    %7143 = vrot.lane.b32.xlu0 %v6991, 12
    %v7144 = vpop.permute.xlu0 %7143
    %7145 = vrot.lane.b32.xlu0 %v6992, 12
    %v7146 = vpop.permute.xlu0 %7145
    %7147 = vrot.lane.b32.xlu0 %v6993, 12
    %v7148 = vpop.permute.xlu0 %7147
    %7149 = vrot.lane.b32.xlu0 %v6994, 12
    %v7150 = vpop.permute.xlu0 %7149
    %7151 = vrot.lane.b32.xlu0 %v6995, 12
    %v7152 = vpop.permute.xlu0 %7151
    %7153 = vrot.lane.b32.xlu0 %v6996, 12
    %v7154 = vpop.permute.xlu0 %7153
    %7155 = vrot.lane.b32.xlu0 %v6997, 12
    %v7156 = vpop.permute.xlu0 %7155
    %7157 = vrot.lane.b32.xlu0 %v6998, 12
    %v7158 = vpop.permute.xlu0 %7157
    %7159 = vrot.lane.b32.xlu0 %v6999, 12
    %v7160 = vpop.permute.xlu0 %7159
    %7161 = vrot.lane.b32.xlu0 %v7000, 12
    %v7162 = vpop.permute.xlu0 %7161
    %7163 = vrot.lane.b32.xlu0 %v7001, 12
    %v7164 = vpop.permute.xlu0 %7163
    %7165 = vrot.lane.b32.xlu0 %v7002, 12
    %v7166 = vpop.permute.xlu0 %7165
    %7167 = vrot.lane.b32.xlu0 %v7003, 12
    %v7168 = vpop.permute.xlu0 %7167
    %7169 = vrot.lane.b32.xlu0 %v7004, 12
    %v7170 = vpop.permute.xlu0 %7169
    %7171 = vrot.lane.b32.xlu0 %v7005, 12
    %v7172 = vpop.permute.xlu0 %7171
    %7173 = vrot.lane.b32.xlu0 %v7006, 12
    %v7174 = vpop.permute.xlu0 %7173
    %7175 = vrot.lane.b32.xlu0 %v7007, 12
    %v7176 = vpop.permute.xlu0 %7175
    %7177 = vrot.lane.b32.xlu0 %v7008, 12
    %v7178 = vpop.permute.xlu0 %7177
    %7179 = vrot.lane.b32.xlu0 %v7009, 12
    %v7180 = vpop.permute.xlu0 %7179
    %7181 = vrot.lane.b32.xlu0 %v7010, 12
    %v7182 = vpop.permute.xlu0 %7181
    %7183 = vrot.lane.b32.xlu0 %v7011, 12
    %v7184 = vpop.permute.xlu0 %7183
    %7185 = vrot.lane.b32.xlu0 %v7012, 12
    %v7186 = vpop.permute.xlu0 %7185
    %7187 = vrot.lane.b32.xlu0 %v7013, 12
    %v7188 = vpop.permute.xlu0 %7187
    %7189 = vrot.lane.b32.xlu0 %v7014, 12
    %v7190 = vpop.permute.xlu0 %7189
    %7191 = vrot.lane.b32.xlu0 %v7015, 12
    %v7192 = vpop.permute.xlu0 %7191
    %7193 = vrot.lane.b32.xlu0 %v7016, 12
    %v7194 = vpop.permute.xlu0 %7193
    %7195 = vrot.lane.b32.xlu0 %v7017, 12
    %v7196 = vpop.permute.xlu0 %7195
    %7197 = vrot.lane.b32.xlu0 %v7018, 12
    %v7198 = vpop.permute.xlu0 %7197
    %7199 = vrot.lane.b32.xlu0 %v7019, 12
    %v7200 = vpop.permute.xlu0 %7199
    %7201 = vrot.lane.b32.xlu0 %v7020, 12
    %v7202 = vpop.permute.xlu0 %7201
    %7203 = vrot.lane.b32.xlu0 %v7021, 12
    %v7204 = vpop.permute.xlu0 %7203
    %7205 = vrot.lane.b32.xlu0 %v7022, 12
    %v7206 = vpop.permute.xlu0 %7205
    %7207 = vrot.lane.b32.xlu0 %v7023, 12
    %v7208 = vpop.permute.xlu0 %7207
    %7209 = vrot.lane.b32.xlu0 %v7024, 12
    %v7210 = vpop.permute.xlu0 %7209
    %7211 = vrot.lane.b32.xlu0 %v7025, 12
    %v7212 = vpop.permute.xlu0 %7211
    %7213 = vrot.lane.b32.xlu0 %v7026, 12
    %v7214 = vpop.permute.xlu0 %7213
    %7215 = vrot.lane.b32.xlu0 %v7027, 12
    %v7216 = vpop.permute.xlu0 %7215
    %7217 = vrot.lane.b32.xlu0 %v7028, 12
    %v7218 = vpop.permute.xlu0 %7217
    %7219 = vrot.lane.b32.xlu0 %v7029, 12
    %v7220 = vpop.permute.xlu0 %7219
    %7221 = vrot.lane.b32.xlu0 %v7030, 12
    %v7222 = vpop.permute.xlu0 %7221
    %7287 = vst.msk [vmem:[#allocation2] sm:$0xff] %vm1234, %v7096
    %7288 = vst.msk [vmem:[#allocation2 + $0x8] sm:$0xff] %vm1234, %v7098
    %7289 = vst.msk [vmem:[#allocation2 + $0x10] sm:$0xff] %vm1234, %v7100
    %7290 = vst.msk [vmem:[#allocation2 + $0x18] sm:$0xff] %vm1234, %v7102
    %7291 = vst.msk [vmem:[#allocation2 + $0x20] sm:$0xff] %vm1234, %v7104
    %7292 = vst.msk [vmem:[#allocation2 + $0x28] sm:$0xff] %vm1234, %v7106
    %7293 = vst.msk [vmem:[#allocation2 + $0x30] sm:$0xff] %vm1234, %v7108
    %7294 = vst.msk [vmem:[#allocation2 + $0x38] sm:$0xff] %vm1234, %v7110
    %7295 = vst.msk [vmem:[#allocation2 + $0x40] sm:$0xff] %vm1234, %v7112
    %7296 = vst.msk [vmem:[#allocation2 + $0x48] sm:$0xff] %vm1234, %v7114
    %7297 = vst.msk [vmem:[#allocation2 + $0x50] sm:$0xff] %vm1234, %v7116
    %7298 = vst.msk [vmem:[#allocation2 + $0x58] sm:$0xff] %vm1234, %v7118
    %7299 = vst.msk [vmem:[#allocation2 + $0x60] sm:$0xff] %vm1234, %v7120
    %7300 = vst.msk [vmem:[#allocation2 + $0x68] sm:$0xff] %vm1234, %v7122
    %7301 = vst.msk [vmem:[#allocation2 + $0x70] sm:$0xff] %vm1234, %v7124
    %7302 = vst.msk [vmem:[#allocation2 + $0x78] sm:$0xff] %vm1234, %v7126
    %7303 = vst.msk [vmem:[#allocation2 + $0x80] sm:$0xff] %vm1234, %v7128
    %7304 = vst.msk [vmem:[#allocation2 + $0x88] sm:$0xff] %vm1234, %v7130
    %7305 = vst.msk [vmem:[#allocation2 + $0x90] sm:$0xff] %vm1234, %v7132
    %7306 = vst.msk [vmem:[#allocation2 + $0x98] sm:$0xff] %vm1234, %v7134
    %7307 = vst.msk [vmem:[#allocation2 + $0xa0] sm:$0xff] %vm1234, %v7136
    %7308 = vst.msk [vmem:[#allocation2 + $0xa8] sm:$0xff] %vm1234, %v7138
    %7309 = vst.msk [vmem:[#allocation2 + $0xb0] sm:$0xff] %vm1234, %v7140
    %7310 = vst.msk [vmem:[#allocation2 + $0xb8] sm:$0xff] %vm1234, %v7142
    %7311 = vst.msk [vmem:[#allocation2 + $0xc0] sm:$0xff] %vm1234, %v7144
    %7312 = vst.msk [vmem:[#allocation2 + $0xc8] sm:$0xff] %vm1234, %v7146
    %7313 = vst.msk [vmem:[#allocation2 + $0xd0] sm:$0xff] %vm1234, %v7148
    %7314 = vst.msk [vmem:[#allocation2 + $0xd8] sm:$0xff] %vm1234, %v7150
    %7315 = vst.msk [vmem:[#allocation2 + $0xe0] sm:$0xff] %vm1234, %v7152
    %7316 = vst.msk [vmem:[#allocation2 + $0xe8] sm:$0xff] %vm1234, %v7154
    %7317 = vst.msk [vmem:[#allocation2 + $0xf0] sm:$0xff] %vm1234, %v7156
    %7318 = vst.msk [vmem:[#allocation2 + $0xf8] sm:$0xff] %vm1234, %v7158
    %7319 = vst.msk [vmem:[#allocation2 + $0x100] sm:$0xff] %vm1234, %v7160
    %7320 = vst.msk [vmem:[#allocation2 + $0x108] sm:$0xff] %vm1234, %v7162
    %7321 = vst.msk [vmem:[#allocation2 + $0x110] sm:$0xff] %vm1234, %v7164
    %7322 = vst.msk [vmem:[#allocation2 + $0x118] sm:$0xff] %vm1234, %v7166
    %7323 = vst.msk [vmem:[#allocation2 + $0x120] sm:$0xff] %vm1234, %v7168
    %7324 = vst.msk [vmem:[#allocation2 + $0x128] sm:$0xff] %vm1234, %v7170
    %7325 = vst.msk [vmem:[#allocation2 + $0x130] sm:$0xff] %vm1234, %v7172
    %7326 = vst.msk [vmem:[#allocation2 + $0x138] sm:$0xff] %vm1234, %v7174
    %7327 = vst.msk [vmem:[#allocation2 + $0x140] sm:$0xff] %vm1234, %v7176
    %7328 = vst.msk [vmem:[#allocation2 + $0x148] sm:$0xff] %vm1234, %v7178
    %7329 = vst.msk [vmem:[#allocation2 + $0x150] sm:$0xff] %vm1234, %v7180
    %7330 = vst.msk [vmem:[#allocation2 + $0x158] sm:$0xff] %vm1234, %v7182
    %7331 = vst.msk [vmem:[#allocation2 + $0x160] sm:$0xff] %vm1234, %v7184
    %7332 = vst.msk [vmem:[#allocation2 + $0x168] sm:$0xff] %vm1234, %v7186
    %7333 = vst.msk [vmem:[#allocation2 + $0x170] sm:$0xff] %vm1234, %v7188
    %7334 = vst.msk [vmem:[#allocation2 + $0x178] sm:$0xff] %vm1234, %v7190
    %7335 = vst.msk [vmem:[#allocation2 + $0x180] sm:$0xff] %vm1234, %v7192
    %7336 = vst.msk [vmem:[#allocation2 + $0x188] sm:$0xff] %vm1234, %v7194
    %7337 = vst.msk [vmem:[#allocation2 + $0x190] sm:$0xff] %vm1234, %v7196
    %7338 = vst.msk [vmem:[#allocation2 + $0x198] sm:$0xff] %vm1234, %v7198
    %7339 = vst.msk [vmem:[#allocation2 + $0x1a0] sm:$0xff] %vm1234, %v7200
    %7340 = vst.msk [vmem:[#allocation2 + $0x1a8] sm:$0xff] %vm1234, %v7202
    %7341 = vst.msk [vmem:[#allocation2 + $0x1b0] sm:$0xff] %vm1234, %v7204
    %7342 = vst.msk [vmem:[#allocation2 + $0x1b8] sm:$0xff] %vm1234, %v7206
    %7343 = vst.msk [vmem:[#allocation2 + $0x1c0] sm:$0xff] %vm1234, %v7208
    %7344 = vst.msk [vmem:[#allocation2 + $0x1c8] sm:$0xff] %vm1234, %v7210
    %7345 = vst.msk [vmem:[#allocation2 + $0x1d0] sm:$0xff] %vm1234, %v7212
    %7346 = vst.msk [vmem:[#allocation2 + $0x1d8] sm:$0xff] %vm1234, %v7214
    %7347 = vst.msk [vmem:[#allocation2 + $0x1e0] sm:$0xff] %vm1234, %v7216
    %7348 = vst.msk [vmem:[#allocation2 + $0x1e8] sm:$0xff] %vm1234, %v7218
    %7349 = vst.msk [vmem:[#allocation2 + $0x1f0] sm:$0xff] %vm1234, %v7220
    %7350 = vst.msk [vmem:[#allocation2 + $0x1f8] sm:$0xff] %vm1234, %v7222
    %v7351 = vld [vmem:[#allocation2] sm:$0xff]
    %v7352 = vld [vmem:[#allocation2 + $0x8] sm:$0xff]
    %v7353 = vld [vmem:[#allocation2 + $0x10] sm:$0xff]
    %v7354 = vld [vmem:[#allocation2 + $0x18] sm:$0xff]
    %v7355 = vld [vmem:[#allocation2 + $0x20] sm:$0xff]
    %v7356 = vld [vmem:[#allocation2 + $0x28] sm:$0xff]
    %v7357 = vld [vmem:[#allocation2 + $0x30] sm:$0xff]
    %v7358 = vld [vmem:[#allocation2 + $0x38] sm:$0xff]
    %v7359 = vld [vmem:[#allocation2 + $0x40] sm:$0xff]
    %v7360 = vld [vmem:[#allocation2 + $0x48] sm:$0xff]
    %v7361 = vld [vmem:[#allocation2 + $0x50] sm:$0xff]
    %v7362 = vld [vmem:[#allocation2 + $0x58] sm:$0xff]
    %v7363 = vld [vmem:[#allocation2 + $0x60] sm:$0xff]
    %v7364 = vld [vmem:[#allocation2 + $0x68] sm:$0xff]
    %v7365 = vld [vmem:[#allocation2 + $0x70] sm:$0xff]
    %v7366 = vld [vmem:[#allocation2 + $0x78] sm:$0xff]
    %v7367 = vld [vmem:[#allocation2 + $0x80] sm:$0xff]
    %v7368 = vld [vmem:[#allocation2 + $0x88] sm:$0xff]
    %v7369 = vld [vmem:[#allocation2 + $0x90] sm:$0xff]
    %v7370 = vld [vmem:[#allocation2 + $0x98] sm:$0xff]
    %v7371 = vld [vmem:[#allocation2 + $0xa0] sm:$0xff]
    %v7372 = vld [vmem:[#allocation2 + $0xa8] sm:$0xff]
    %v7373 = vld [vmem:[#allocation2 + $0xb0] sm:$0xff]
    %v7374 = vld [vmem:[#allocation2 + $0xb8] sm:$0xff]
    %v7375 = vld [vmem:[#allocation2 + $0xc0] sm:$0xff]
    %v7376 = vld [vmem:[#allocation2 + $0xc8] sm:$0xff]
    %v7377 = vld [vmem:[#allocation2 + $0xd0] sm:$0xff]
    %v7378 = vld [vmem:[#allocation2 + $0xd8] sm:$0xff]
    %v7379 = vld [vmem:[#allocation2 + $0xe0] sm:$0xff]
    %v7380 = vld [vmem:[#allocation2 + $0xe8] sm:$0xff]
    %v7381 = vld [vmem:[#allocation2 + $0xf0] sm:$0xff]
    %v7382 = vld [vmem:[#allocation2 + $0xf8] sm:$0xff]
    %v7383 = vld [vmem:[#allocation2 + $0x100] sm:$0xff]
    %v7384 = vld [vmem:[#allocation2 + $0x108] sm:$0xff]
    %v7385 = vld [vmem:[#allocation2 + $0x110] sm:$0xff]
    %v7386 = vld [vmem:[#allocation2 + $0x118] sm:$0xff]
    %v7387 = vld [vmem:[#allocation2 + $0x120] sm:$0xff]
    %v7388 = vld [vmem:[#allocation2 + $0x128] sm:$0xff]
    %v7389 = vld [vmem:[#allocation2 + $0x130] sm:$0xff]
    %v7390 = vld [vmem:[#allocation2 + $0x138] sm:$0xff]
    %v7391 = vld [vmem:[#allocation2 + $0x140] sm:$0xff]
    %v7392 = vld [vmem:[#allocation2 + $0x148] sm:$0xff]
    %v7393 = vld [vmem:[#allocation2 + $0x150] sm:$0xff]
    %v7394 = vld [vmem:[#allocation2 + $0x158] sm:$0xff]
    %v7395 = vld [vmem:[#allocation2 + $0x160] sm:$0xff]
    %v7396 = vld [vmem:[#allocation2 + $0x168] sm:$0xff]
    %v7397 = vld [vmem:[#allocation2 + $0x170] sm:$0xff]
    %v7398 = vld [vmem:[#allocation2 + $0x178] sm:$0xff]
    %v7399 = vld [vmem:[#allocation2 + $0x180] sm:$0xff]
    %v7400 = vld [vmem:[#allocation2 + $0x188] sm:$0xff]
    %v7401 = vld [vmem:[#allocation2 + $0x190] sm:$0xff]
    %v7402 = vld [vmem:[#allocation2 + $0x198] sm:$0xff]
    %v7403 = vld [vmem:[#allocation2 + $0x1a0] sm:$0xff]
    %v7404 = vld [vmem:[#allocation2 + $0x1a8] sm:$0xff]
    %v7405 = vld [vmem:[#allocation2 + $0x1b0] sm:$0xff]
    %v7406 = vld [vmem:[#allocation2 + $0x1b8] sm:$0xff]
    %v7407 = vld [vmem:[#allocation2 + $0x1c0] sm:$0xff]
    %v7408 = vld [vmem:[#allocation2 + $0x1c8] sm:$0xff]
    %v7409 = vld [vmem:[#allocation2 + $0x1d0] sm:$0xff]
    %v7410 = vld [vmem:[#allocation2 + $0x1d8] sm:$0xff]
    %v7411 = vld [vmem:[#allocation2 + $0x1e0] sm:$0xff]
    %v7412 = vld [vmem:[#allocation2 + $0x1e8] sm:$0xff]
    %v7413 = vld [vmem:[#allocation2 + $0x1f0] sm:$0xff]
    %v7414 = vld [vmem:[#allocation2 + $0x1f8] sm:$0xff]
    %s7415 = scalar_lea.vmem %s1, 48
    %v7416 = vld [vmem:[%s7415] sm:$0xff]
    %v7417 = vld [vmem:[%s7415 + $0x8] sm:$0xff]
    %v7419 = vsel %vm1365, %v7351, 0
    %v7422 = vsel %vm1365, %v7352, 0
    %v7425 = vsel %vm1365, %v7353, 0
    %v7428 = vsel %vm1365, %v7354, 0
    %v7431 = vsel %vm1365, %v7355, 0
    %v7434 = vsel %vm1365, %v7356, 0
    %v7437 = vsel %vm1365, %v7357, 0
    %v7440 = vsel %vm1365, %v7358, 0
    %v7443 = vsel %vm1365, %v7359, 0
    %v7446 = vsel %vm1365, %v7360, 0
    %v7449 = vsel %vm1365, %v7361, 0
    %v7452 = vsel %vm1365, %v7362, 0
    %v7455 = vsel %vm1365, %v7363, 0
    %v7458 = vsel %vm1365, %v7364, 0
    %v7461 = vsel %vm1365, %v7365, 0
    %v7464 = vsel %vm1365, %v7366, 0
    %v7467 = vsel %vm1365, %v7367, 0
    %v7470 = vsel %vm1365, %v7368, 0
    %v7473 = vsel %vm1365, %v7369, 0
    %v7476 = vsel %vm1365, %v7370, 0
    %v7479 = vsel %vm1365, %v7371, 0
    %v7482 = vsel %vm1365, %v7372, 0
    %v7485 = vsel %vm1365, %v7373, 0
    %v7488 = vsel %vm1365, %v7374, 0
    %v7491 = vsel %vm1365, %v7375, 0
    %v7494 = vsel %vm1365, %v7376, 0
    %v7497 = vsel %vm1365, %v7377, 0
    %v7500 = vsel %vm1365, %v7378, 0
    %v7503 = vsel %vm1365, %v7379, 0
    %v7506 = vsel %vm1365, %v7380, 0
    %v7509 = vsel %vm1365, %v7381, 0
    %v7512 = vsel %vm1365, %v7382, 0
    %v7515 = vsel %vm1365, %v7383, 0
    %v7518 = vsel %vm1365, %v7384, 0
    %v7521 = vsel %vm1365, %v7385, 0
    %v7524 = vsel %vm1365, %v7386, 0
    %v7527 = vsel %vm1365, %v7387, 0
    %v7530 = vsel %vm1365, %v7388, 0
    %v7533 = vsel %vm1365, %v7389, 0
    %v7536 = vsel %vm1365, %v7390, 0
    %v7539 = vsel %vm1365, %v7391, 0
    %v7542 = vsel %vm1365, %v7392, 0
    %v7545 = vsel %vm1365, %v7393, 0
    %v7548 = vsel %vm1365, %v7394, 0
    %v7551 = vsel %vm1365, %v7395, 0
    %v7554 = vsel %vm1365, %v7396, 0
    %v7557 = vsel %vm1365, %v7397, 0
    %v7560 = vsel %vm1365, %v7398, 0
    %v7563 = vsel %vm1365, %v7399, 0
    %v7566 = vsel %vm1365, %v7400, 0
    %v7569 = vsel %vm1365, %v7401, 0
    %v7572 = vsel %vm1365, %v7402, 0
    %v7575 = vsel %vm1365, %v7403, 0
    %v7578 = vsel %vm1365, %v7404, 0
    %v7581 = vsel %vm1365, %v7405, 0
    %v7584 = vsel %vm1365, %v7406, 0
    %v7587 = vsel %vm1365, %v7407, 0
    %v7590 = vsel %vm1365, %v7408, 0
    %v7593 = vsel %vm1365, %v7409, 0
    %v7596 = vsel %vm1365, %v7410, 0
    %v7599 = vsel %vm1365, %v7411, 0
    %v7602 = vsel %vm1365, %v7412, 0
    %v7605 = vsel %vm1365, %v7413, 0
    %v7608 = vsel %vm1365, %v7414, 0
    %7610 = vmatpush.msra.mxu0 0.0
    %7611 = vmatpush.msra.mxu0 0.0
    %7612 = vmatpush.msra.mxu0 0.0
    %7613 = vmatpush.msra.mxu0 0.0
    %7614 = vmatpush.msra.mxu0 0.0
    %7615 = vmatpush.msra.mxu0 0.0
    %7616 = vmatpush.msra.mxu0 0.0
    %7617 = vmatpush.msra.mxu0 0.0
    %7618 = vmatpush.msra.mxu0 0.0
    %7619 = vmatpush.msra.mxu0 0.0
    %7620 = vmatpush.msra.mxu0 0.0
    %7621 = vmatpush.msra.mxu0 0.0
    %7622 = vmatpush.msra.mxu0 0.0
    %7623 = vmatpush.msra.mxu0 0.0
    %7624 = vmatpush.msra.mxu0 %v7417
    %7625 = vmatpush.msra.mxu0 %v7416
    %7626 = vmatmul.f32.gmra.mxu0 %v7419
    %v7627 = vpop.f32.mrf.mxu0
    %v7628 = vadd.f32 0.0, %v7627
    %7629 = vmatmul.f32.gmra.mxu0 %v7422
    %v7630 = vpop.f32.mrf.mxu0
    %v7631 = vadd.f32 0.0, %v7630
    %7632 = vmatmul.f32.gmra.mxu0 %v7425
    %v7633 = vpop.f32.mrf.mxu0
    %v7634 = vadd.f32 0.0, %v7633
    %7635 = vmatmul.f32.gmra.mxu0 %v7428
    %v7636 = vpop.f32.mrf.mxu0
    %v7637 = vadd.f32 0.0, %v7636
    %7638 = vmatmul.f32.gmra.mxu0 %v7431
    %v7639 = vpop.f32.mrf.mxu0
    %v7640 = vadd.f32 0.0, %v7639
    %7641 = vmatmul.f32.gmra.mxu0 %v7434
    %v7642 = vpop.f32.mrf.mxu0
    %v7643 = vadd.f32 0.0, %v7642
    %7644 = vmatmul.f32.gmra.mxu0 %v7437
    %v7645 = vpop.f32.mrf.mxu0
    %v7646 = vadd.f32 0.0, %v7645
    %7647 = vmatmul.f32.gmra.mxu0 %v7440
    %v7648 = vpop.f32.mrf.mxu0
    %v7649 = vadd.f32 0.0, %v7648
    %7650 = vmatmul.f32.gmra.mxu0 %v7443
    %v7651 = vpop.f32.mrf.mxu0
    %v7652 = vadd.f32 0.0, %v7651
    %7653 = vmatmul.f32.gmra.mxu0 %v7446
    %v7654 = vpop.f32.mrf.mxu0
    %v7655 = vadd.f32 0.0, %v7654
    %7656 = vmatmul.f32.gmra.mxu0 %v7449
    %v7657 = vpop.f32.mrf.mxu0
    %v7658 = vadd.f32 0.0, %v7657
    %7659 = vmatmul.f32.gmra.mxu0 %v7452
    %v7660 = vpop.f32.mrf.mxu0
    %v7661 = vadd.f32 0.0, %v7660
    %7662 = vmatmul.f32.gmra.mxu0 %v7455
    %v7663 = vpop.f32.mrf.mxu0
    %v7664 = vadd.f32 0.0, %v7663
    %7665 = vmatmul.f32.gmra.mxu0 %v7458
    %v7666 = vpop.f32.mrf.mxu0
    %v7667 = vadd.f32 0.0, %v7666
    %7668 = vmatmul.f32.gmra.mxu0 %v7461
    %v7669 = vpop.f32.mrf.mxu0
    %v7670 = vadd.f32 0.0, %v7669
    %7671 = vmatmul.f32.gmra.mxu0 %v7464
    %v7672 = vpop.f32.mrf.mxu0
    %v7673 = vadd.f32 0.0, %v7672
    %7674 = vmatmul.f32.gmra.mxu0 %v7467
    %v7675 = vpop.f32.mrf.mxu0
    %v7676 = vadd.f32 0.0, %v7675
    %7677 = vmatmul.f32.gmra.mxu0 %v7470
    %v7678 = vpop.f32.mrf.mxu0
    %v7679 = vadd.f32 0.0, %v7678
    %7680 = vmatmul.f32.gmra.mxu0 %v7473
    %v7681 = vpop.f32.mrf.mxu0
    %v7682 = vadd.f32 0.0, %v7681
    %7683 = vmatmul.f32.gmra.mxu0 %v7476
    %v7684 = vpop.f32.mrf.mxu0
    %v7685 = vadd.f32 0.0, %v7684
    %7686 = vmatmul.f32.gmra.mxu0 %v7479
    %v7687 = vpop.f32.mrf.mxu0
    %v7688 = vadd.f32 0.0, %v7687
    %7689 = vmatmul.f32.gmra.mxu0 %v7482
    %v7690 = vpop.f32.mrf.mxu0
    %v7691 = vadd.f32 0.0, %v7690
    %7692 = vmatmul.f32.gmra.mxu0 %v7485
    %v7693 = vpop.f32.mrf.mxu0
    %v7694 = vadd.f32 0.0, %v7693
    %7695 = vmatmul.f32.gmra.mxu0 %v7488
    %v7696 = vpop.f32.mrf.mxu0
    %v7697 = vadd.f32 0.0, %v7696
    %7698 = vmatmul.f32.gmra.mxu0 %v7491
    %v7699 = vpop.f32.mrf.mxu0
    %v7700 = vadd.f32 0.0, %v7699
    %7701 = vmatmul.f32.gmra.mxu0 %v7494
    %v7702 = vpop.f32.mrf.mxu0
    %v7703 = vadd.f32 0.0, %v7702
    %7704 = vmatmul.f32.gmra.mxu0 %v7497
    %v7705 = vpop.f32.mrf.mxu0
    %v7706 = vadd.f32 0.0, %v7705
    %7707 = vmatmul.f32.gmra.mxu0 %v7500
    %v7708 = vpop.f32.mrf.mxu0
    %v7709 = vadd.f32 0.0, %v7708
    %7710 = vmatmul.f32.gmra.mxu0 %v7503
    %v7711 = vpop.f32.mrf.mxu0
    %v7712 = vadd.f32 0.0, %v7711
    %7713 = vmatmul.f32.gmra.mxu0 %v7506
    %v7714 = vpop.f32.mrf.mxu0
    %v7715 = vadd.f32 0.0, %v7714
    %7716 = vmatmul.f32.gmra.mxu0 %v7509
    %v7717 = vpop.f32.mrf.mxu0
    %v7718 = vadd.f32 0.0, %v7717
    %7719 = vmatmul.f32.gmra.mxu0 %v7512
    %v7720 = vpop.f32.mrf.mxu0
    %v7721 = vadd.f32 0.0, %v7720
    %7722 = vmatmul.f32.gmra.mxu0 %v7515
    %v7723 = vpop.f32.mrf.mxu0
    %v7724 = vadd.f32 0.0, %v7723
    %7725 = vmatmul.f32.gmra.mxu0 %v7518
    %v7726 = vpop.f32.mrf.mxu0
    %v7727 = vadd.f32 0.0, %v7726
    %7728 = vmatmul.f32.gmra.mxu0 %v7521
    %v7729 = vpop.f32.mrf.mxu0
    %v7730 = vadd.f32 0.0, %v7729
    %7731 = vmatmul.f32.gmra.mxu0 %v7524
    %v7732 = vpop.f32.mrf.mxu0
    %v7733 = vadd.f32 0.0, %v7732
    %7734 = vmatmul.f32.gmra.mxu0 %v7527
    %v7735 = vpop.f32.mrf.mxu0
    %v7736 = vadd.f32 0.0, %v7735
    %7737 = vmatmul.f32.gmra.mxu0 %v7530
    %v7738 = vpop.f32.mrf.mxu0
    %v7739 = vadd.f32 0.0, %v7738
    %7740 = vmatmul.f32.gmra.mxu0 %v7533
    %v7741 = vpop.f32.mrf.mxu0
    %v7742 = vadd.f32 0.0, %v7741
    %7743 = vmatmul.f32.gmra.mxu0 %v7536
    %v7744 = vpop.f32.mrf.mxu0
    %v7745 = vadd.f32 0.0, %v7744
    %7746 = vmatmul.f32.gmra.mxu0 %v7539
    %v7747 = vpop.f32.mrf.mxu0
    %v7748 = vadd.f32 0.0, %v7747
    %7749 = vmatmul.f32.gmra.mxu0 %v7542
    %v7750 = vpop.f32.mrf.mxu0
    %v7751 = vadd.f32 0.0, %v7750
    %7752 = vmatmul.f32.gmra.mxu0 %v7545
    %v7753 = vpop.f32.mrf.mxu0
    %v7754 = vadd.f32 0.0, %v7753
    %7755 = vmatmul.f32.gmra.mxu0 %v7548
    %v7756 = vpop.f32.mrf.mxu0
    %v7757 = vadd.f32 0.0, %v7756
    %7758 = vmatmul.f32.gmra.mxu0 %v7551
    %v7759 = vpop.f32.mrf.mxu0
    %v7760 = vadd.f32 0.0, %v7759
    %7761 = vmatmul.f32.gmra.mxu0 %v7554
    %v7762 = vpop.f32.mrf.mxu0
    %v7763 = vadd.f32 0.0, %v7762
    %7764 = vmatmul.f32.gmra.mxu0 %v7557
    %v7765 = vpop.f32.mrf.mxu0
    %v7766 = vadd.f32 0.0, %v7765
    %7767 = vmatmul.f32.gmra.mxu0 %v7560
    %v7768 = vpop.f32.mrf.mxu0
    %v7769 = vadd.f32 0.0, %v7768
    %7770 = vmatmul.f32.gmra.mxu0 %v7563
    %v7771 = vpop.f32.mrf.mxu0
    %v7772 = vadd.f32 0.0, %v7771
    %7773 = vmatmul.f32.gmra.mxu0 %v7566
    %v7774 = vpop.f32.mrf.mxu0
    %v7775 = vadd.f32 0.0, %v7774
    %7776 = vmatmul.f32.gmra.mxu0 %v7569
    %v7777 = vpop.f32.mrf.mxu0
    %v7778 = vadd.f32 0.0, %v7777
    %7779 = vmatmul.f32.gmra.mxu0 %v7572
    %v7780 = vpop.f32.mrf.mxu0
    %v7781 = vadd.f32 0.0, %v7780
    %7782 = vmatmul.f32.gmra.mxu0 %v7575
    %v7783 = vpop.f32.mrf.mxu0
    %v7784 = vadd.f32 0.0, %v7783
    %7785 = vmatmul.f32.gmra.mxu0 %v7578
    %v7786 = vpop.f32.mrf.mxu0
    %v7787 = vadd.f32 0.0, %v7786
    %7788 = vmatmul.f32.gmra.mxu0 %v7581
    %v7789 = vpop.f32.mrf.mxu0
    %v7790 = vadd.f32 0.0, %v7789
    %7791 = vmatmul.f32.gmra.mxu0 %v7584
    %v7792 = vpop.f32.mrf.mxu0
    %v7793 = vadd.f32 0.0, %v7792
    %7794 = vmatmul.f32.gmra.mxu0 %v7587
    %v7795 = vpop.f32.mrf.mxu0
    %v7796 = vadd.f32 0.0, %v7795
    %7797 = vmatmul.f32.gmra.mxu0 %v7590
    %v7798 = vpop.f32.mrf.mxu0
    %v7799 = vadd.f32 0.0, %v7798
    %7800 = vmatmul.f32.gmra.mxu0 %v7593
    %v7801 = vpop.f32.mrf.mxu0
    %v7802 = vadd.f32 0.0, %v7801
    %7803 = vmatmul.f32.gmra.mxu0 %v7596
    %v7804 = vpop.f32.mrf.mxu0
    %v7805 = vadd.f32 0.0, %v7804
    %7806 = vmatmul.f32.gmra.mxu0 %v7599
    %v7807 = vpop.f32.mrf.mxu0
    %v7808 = vadd.f32 0.0, %v7807
    %7809 = vmatmul.f32.gmra.mxu0 %v7602
    %v7810 = vpop.f32.mrf.mxu0
    %v7811 = vadd.f32 0.0, %v7810
    %7812 = vmatmul.f32.gmra.mxu0 %v7605
    %v7813 = vpop.f32.mrf.mxu0
    %v7814 = vadd.f32 0.0, %v7813
    %7815 = vmatmul.f32.gmra.mxu0 %v7608
    %v7816 = vpop.f32.mrf.mxu0
    %v7817 = vadd.f32 0.0, %v7816
    %7818 = vdwg.mxu0
    %v7819 = vadd.f32 %v7628, %v7631
    %v7820 = vadd.f32 %v7819, %v7634
    %v7821 = vadd.f32 %v7820, %v7637
    %v7822 = vadd.f32 %v7821, %v7640
    %v7823 = vadd.f32 %v7822, %v7643
    %v7824 = vadd.f32 %v7823, %v7646
    %v7825 = vadd.f32 %v7824, %v7649
    %v7826 = vadd.f32 %v7825, %v7652
    %v7827 = vadd.f32 %v7826, %v7655
    %v7828 = vadd.f32 %v7827, %v7658
    %v7829 = vadd.f32 %v7828, %v7661
    %v7830 = vadd.f32 %v7829, %v7664
    %v7831 = vadd.f32 %v7830, %v7667
    %v7832 = vadd.f32 %v7831, %v7670
    %v7833 = vadd.f32 %v7832, %v7673
    %v7834 = vadd.f32 %v7833, %v7676
    %v7835 = vadd.f32 %v7834, %v7679
    %v7836 = vadd.f32 %v7835, %v7682
    %v7837 = vadd.f32 %v7836, %v7685
    %v7838 = vadd.f32 %v7837, %v7688
    %v7839 = vadd.f32 %v7838, %v7691
    %v7840 = vadd.f32 %v7839, %v7694
    %v7841 = vadd.f32 %v7840, %v7697
    %v7842 = vadd.f32 %v7841, %v7700
    %v7843 = vadd.f32 %v7842, %v7703
    %v7844 = vadd.f32 %v7843, %v7706
    %v7845 = vadd.f32 %v7844, %v7709
    %v7846 = vadd.f32 %v7845, %v7712
    %v7847 = vadd.f32 %v7846, %v7715
    %v7848 = vadd.f32 %v7847, %v7718
    %v7849 = vadd.f32 %v7848, %v7721
    %v7850 = vadd.f32 %v7849, %v7724
    %v7851 = vadd.f32 %v7850, %v7727
    %v7852 = vadd.f32 %v7851, %v7730
    %v7853 = vadd.f32 %v7852, %v7733
    %v7854 = vadd.f32 %v7853, %v7736
    %v7855 = vadd.f32 %v7854, %v7739
    %v7856 = vadd.f32 %v7855, %v7742
    %v7857 = vadd.f32 %v7856, %v7745
    %v7858 = vadd.f32 %v7857, %v7748
    %v7859 = vadd.f32 %v7858, %v7751
    %v7860 = vadd.f32 %v7859, %v7754
    %v7861 = vadd.f32 %v7860, %v7757
    %v7862 = vadd.f32 %v7861, %v7760
    %v7863 = vadd.f32 %v7862, %v7763
    %v7864 = vadd.f32 %v7863, %v7766
    %v7865 = vadd.f32 %v7864, %v7769
    %v7866 = vadd.f32 %v7865, %v7772
    %v7867 = vadd.f32 %v7866, %v7775
    %v7868 = vadd.f32 %v7867, %v7778
    %v7869 = vadd.f32 %v7868, %v7781
    %v7870 = vadd.f32 %v7869, %v7784
    %v7871 = vadd.f32 %v7870, %v7787
    %v7872 = vadd.f32 %v7871, %v7790
    %v7873 = vadd.f32 %v7872, %v7793
    %v7874 = vadd.f32 %v7873, %v7796
    %v7875 = vadd.f32 %v7874, %v7799
    %v7876 = vadd.f32 %v7875, %v7802
    %v7877 = vadd.f32 %v7876, %v7805
    %v7878 = vadd.f32 %v7877, %v7808
    %v7879 = vadd.f32 %v7878, %v7811
    %v7880 = vadd.f32 %v7879, %v7814
    %v7881 = vadd.f32 %v7880, %v7817
    %v7882 = vrot.slane %v7881, 4
    %v7883 = vadd.f32 %v7881, %v7882
    %v7884 = vrot.slane %v7883, 2
    %v7885 = vadd.f32 %v7883, %v7884
    %v7886 = vrot.slane %v7885, 1
    %v7887 = vadd.f32 %v7885, %v7886
    %v7888 = vadd.f32 %v5871, %v7887
    %v7889 = vmul.f32 %v7628, %v7628
    %v7890 = vmul.f32 %v7631, %v7631
    %v7891 = vmul.f32 %v7634, %v7634
    %v7892 = vmul.f32 %v7637, %v7637
    %v7893 = vmul.f32 %v7640, %v7640
    %v7894 = vmul.f32 %v7643, %v7643
    %v7895 = vmul.f32 %v7646, %v7646
    %v7896 = vmul.f32 %v7649, %v7649
    %v7897 = vmul.f32 %v7652, %v7652
    %v7898 = vmul.f32 %v7655, %v7655
    %v7899 = vmul.f32 %v7658, %v7658
    %v7900 = vmul.f32 %v7661, %v7661
    %v7901 = vmul.f32 %v7664, %v7664
    %v7902 = vmul.f32 %v7667, %v7667
    %v7903 = vmul.f32 %v7670, %v7670
    %v7904 = vmul.f32 %v7673, %v7673
    %v7905 = vmul.f32 %v7676, %v7676
    %v7906 = vmul.f32 %v7679, %v7679
    %v7907 = vmul.f32 %v7682, %v7682
    %v7908 = vmul.f32 %v7685, %v7685
    %v7909 = vmul.f32 %v7688, %v7688
    %v7910 = vmul.f32 %v7691, %v7691
    %v7911 = vmul.f32 %v7694, %v7694
    %v7912 = vmul.f32 %v7697, %v7697
    %v7913 = vmul.f32 %v7700, %v7700
    %v7914 = vmul.f32 %v7703, %v7703
    %v7915 = vmul.f32 %v7706, %v7706
    %v7916 = vmul.f32 %v7709, %v7709
    %v7917 = vmul.f32 %v7712, %v7712
    %v7918 = vmul.f32 %v7715, %v7715
    %v7919 = vmul.f32 %v7718, %v7718
    %v7920 = vmul.f32 %v7721, %v7721
    %v7921 = vmul.f32 %v7724, %v7724
    %v7922 = vmul.f32 %v7727, %v7727
    %v7923 = vmul.f32 %v7730, %v7730
    %v7924 = vmul.f32 %v7733, %v7733
    %v7925 = vmul.f32 %v7736, %v7736
    %v7926 = vmul.f32 %v7739, %v7739
    %v7927 = vmul.f32 %v7742, %v7742
    %v7928 = vmul.f32 %v7745, %v7745
    %v7929 = vmul.f32 %v7748, %v7748
    %v7930 = vmul.f32 %v7751, %v7751
    %v7931 = vmul.f32 %v7754, %v7754
    %v7932 = vmul.f32 %v7757, %v7757
    %v7933 = vmul.f32 %v7760, %v7760
    %v7934 = vmul.f32 %v7763, %v7763
    %v7935 = vmul.f32 %v7766, %v7766
    %v7936 = vmul.f32 %v7769, %v7769
    %v7937 = vmul.f32 %v7772, %v7772
    %v7938 = vmul.f32 %v7775, %v7775
    %v7939 = vmul.f32 %v7778, %v7778
    %v7940 = vmul.f32 %v7781, %v7781
    %v7941 = vmul.f32 %v7784, %v7784
    %v7942 = vmul.f32 %v7787, %v7787
    %v7943 = vmul.f32 %v7790, %v7790
    %v7944 = vmul.f32 %v7793, %v7793
    %v7945 = vmul.f32 %v7796, %v7796
    %v7946 = vmul.f32 %v7799, %v7799
    %v7947 = vmul.f32 %v7802, %v7802
    %v7948 = vmul.f32 %v7805, %v7805
    %v7949 = vmul.f32 %v7808, %v7808
    %v7950 = vmul.f32 %v7811, %v7811
    %v7951 = vmul.f32 %v7814, %v7814
    %v7952 = vmul.f32 %v7817, %v7817
    %v7953 = vadd.f32 %v7889, %v7890
    %v7954 = vadd.f32 %v7953, %v7891
    %v7955 = vadd.f32 %v7954, %v7892
    %v7956 = vadd.f32 %v7955, %v7893
    %v7957 = vadd.f32 %v7956, %v7894
    %v7958 = vadd.f32 %v7957, %v7895
    %v7959 = vadd.f32 %v7958, %v7896
    %v7960 = vadd.f32 %v7959, %v7897
    %v7961 = vadd.f32 %v7960, %v7898
    %v7962 = vadd.f32 %v7961, %v7899
    %v7963 = vadd.f32 %v7962, %v7900
    %v7964 = vadd.f32 %v7963, %v7901
    %v7965 = vadd.f32 %v7964, %v7902
    %v7966 = vadd.f32 %v7965, %v7903
    %v7967 = vadd.f32 %v7966, %v7904
    %v7968 = vadd.f32 %v7967, %v7905
    %v7969 = vadd.f32 %v7968, %v7906
    %v7970 = vadd.f32 %v7969, %v7907
    %v7971 = vadd.f32 %v7970, %v7908
    %v7972 = vadd.f32 %v7971, %v7909
    %v7973 = vadd.f32 %v7972, %v7910
    %v7974 = vadd.f32 %v7973, %v7911
    %v7975 = vadd.f32 %v7974, %v7912
    %v7976 = vadd.f32 %v7975, %v7913
    %v7977 = vadd.f32 %v7976, %v7914
    %v7978 = vadd.f32 %v7977, %v7915
    %v7979 = vadd.f32 %v7978, %v7916
    %v7980 = vadd.f32 %v7979, %v7917
    %v7981 = vadd.f32 %v7980, %v7918
    %v7982 = vadd.f32 %v7981, %v7919
    %v7983 = vadd.f32 %v7982, %v7920
    %v7984 = vadd.f32 %v7983, %v7921
    %v7985 = vadd.f32 %v7984, %v7922
    %v7986 = vadd.f32 %v7985, %v7923
    %v7987 = vadd.f32 %v7986, %v7924
    %v7988 = vadd.f32 %v7987, %v7925
    %v7989 = vadd.f32 %v7988, %v7926
    %v7990 = vadd.f32 %v7989, %v7927
    %v7991 = vadd.f32 %v7990, %v7928
    %v7992 = vadd.f32 %v7991, %v7929
    %v7993 = vadd.f32 %v7992, %v7930
    %v7994 = vadd.f32 %v7993, %v7931
    %v7995 = vadd.f32 %v7994, %v7932
    %v7996 = vadd.f32 %v7995, %v7933
    %v7997 = vadd.f32 %v7996, %v7934
    %v7998 = vadd.f32 %v7997, %v7935
    %v7999 = vadd.f32 %v7998, %v7936
    %v8000 = vadd.f32 %v7999, %v7937
    %v8001 = vadd.f32 %v8000, %v7938
    %v8002 = vadd.f32 %v8001, %v7939
    %v8003 = vadd.f32 %v8002, %v7940
    %v8004 = vadd.f32 %v8003, %v7941
    %v8005 = vadd.f32 %v8004, %v7942
    %v8006 = vadd.f32 %v8005, %v7943
    %v8007 = vadd.f32 %v8006, %v7944
    %v8008 = vadd.f32 %v8007, %v7945
    %v8009 = vadd.f32 %v8008, %v7946
    %v8010 = vadd.f32 %v8009, %v7947
    %v8011 = vadd.f32 %v8010, %v7948
    %v8012 = vadd.f32 %v8011, %v7949
    %v8013 = vadd.f32 %v8012, %v7950
    %v8014 = vadd.f32 %v8013, %v7951
    %v8015 = vadd.f32 %v8014, %v7952
    %v8016 = vrot.slane %v8015, 4
    %v8017 = vadd.f32 %v8015, %v8016
    %v8018 = vrot.slane %v8017, 2
    %v8019 = vadd.f32 %v8017, %v8018
    %v8020 = vrot.slane %v8019, 1
    %v8021 = vadd.f32 %v8019, %v8020
    %v8022 = vadd.f32 %v6005, %v8021
    %s8023 = scalar_lea.vmem %s2, 1536
    %8024 = vst.msk [vmem:[%s8023] sm:$0xff] %vm1971, %v7628
    %8025 = vst.msk [vmem:[%s8023 + $0x8] sm:$0xff] %vm1971, %v7631
    %8026 = vst.msk [vmem:[%s8023 + $0x10] sm:$0xff] %vm1971, %v7634
    %8027 = vst.msk [vmem:[%s8023 + $0x18] sm:$0xff] %vm1971, %v7637
    %8028 = vst.msk [vmem:[%s8023 + $0x20] sm:$0xff] %vm1971, %v7640
    %8029 = vst.msk [vmem:[%s8023 + $0x28] sm:$0xff] %vm1971, %v7643
    %8030 = vst.msk [vmem:[%s8023 + $0x30] sm:$0xff] %vm1971, %v7646
    %8031 = vst.msk [vmem:[%s8023 + $0x38] sm:$0xff] %vm1971, %v7649
    %8032 = vst.msk [vmem:[%s8023 + $0x40] sm:$0xff] %vm1971, %v7652
    %8033 = vst.msk [vmem:[%s8023 + $0x48] sm:$0xff] %vm1971, %v7655
    %8034 = vst.msk [vmem:[%s8023 + $0x50] sm:$0xff] %vm1971, %v7658
    %8035 = vst.msk [vmem:[%s8023 + $0x58] sm:$0xff] %vm1971, %v7661
    %8036 = vst.msk [vmem:[%s8023 + $0x60] sm:$0xff] %vm1971, %v7664
    %8037 = vst.msk [vmem:[%s8023 + $0x68] sm:$0xff] %vm1971, %v7667
    %8038 = vst.msk [vmem:[%s8023 + $0x70] sm:$0xff] %vm1971, %v7670
    %8039 = vst.msk [vmem:[%s8023 + $0x78] sm:$0xff] %vm1971, %v7673
    %8040 = vst.msk [vmem:[%s8023 + $0x80] sm:$0xff] %vm1971, %v7676
    %8041 = vst.msk [vmem:[%s8023 + $0x88] sm:$0xff] %vm1971, %v7679
    %8042 = vst.msk [vmem:[%s8023 + $0x90] sm:$0xff] %vm1971, %v7682
    %8043 = vst.msk [vmem:[%s8023 + $0x98] sm:$0xff] %vm1971, %v7685
    %8044 = vst.msk [vmem:[%s8023 + $0xa0] sm:$0xff] %vm1971, %v7688
    %8045 = vst.msk [vmem:[%s8023 + $0xa8] sm:$0xff] %vm1971, %v7691
    %8046 = vst.msk [vmem:[%s8023 + $0xb0] sm:$0xff] %vm1971, %v7694
    %8047 = vst.msk [vmem:[%s8023 + $0xb8] sm:$0xff] %vm1971, %v7697
    %8048 = vst.msk [vmem:[%s8023 + $0xc0] sm:$0xff] %vm1971, %v7700
    %8049 = vst.msk [vmem:[%s8023 + $0xc8] sm:$0xff] %vm1971, %v7703
    %8050 = vst.msk [vmem:[%s8023 + $0xd0] sm:$0xff] %vm1971, %v7706
    %8051 = vst.msk [vmem:[%s8023 + $0xd8] sm:$0xff] %vm1971, %v7709
    %8052 = vst.msk [vmem:[%s8023 + $0xe0] sm:$0xff] %vm1971, %v7712
    %8053 = vst.msk [vmem:[%s8023 + $0xe8] sm:$0xff] %vm1971, %v7715
    %8054 = vst.msk [vmem:[%s8023 + $0xf0] sm:$0xff] %vm1971, %v7718
    %8055 = vst.msk [vmem:[%s8023 + $0xf8] sm:$0xff] %vm1971, %v7721
    %8056 = vst.msk [vmem:[%s8023 + $0x100] sm:$0xff] %vm1971, %v7724
    %8057 = vst.msk [vmem:[%s8023 + $0x108] sm:$0xff] %vm1971, %v7727
    %8058 = vst.msk [vmem:[%s8023 + $0x110] sm:$0xff] %vm1971, %v7730
    %8059 = vst.msk [vmem:[%s8023 + $0x118] sm:$0xff] %vm1971, %v7733
    %8060 = vst.msk [vmem:[%s8023 + $0x120] sm:$0xff] %vm1971, %v7736
    %8061 = vst.msk [vmem:[%s8023 + $0x128] sm:$0xff] %vm1971, %v7739
    %8062 = vst.msk [vmem:[%s8023 + $0x130] sm:$0xff] %vm1971, %v7742
    %8063 = vst.msk [vmem:[%s8023 + $0x138] sm:$0xff] %vm1971, %v7745
    %8064 = vst.msk [vmem:[%s8023 + $0x140] sm:$0xff] %vm1971, %v7748
    %8065 = vst.msk [vmem:[%s8023 + $0x148] sm:$0xff] %vm1971, %v7751
    %8066 = vst.msk [vmem:[%s8023 + $0x150] sm:$0xff] %vm1971, %v7754
    %8067 = vst.msk [vmem:[%s8023 + $0x158] sm:$0xff] %vm1971, %v7757
    %8068 = vst.msk [vmem:[%s8023 + $0x160] sm:$0xff] %vm1971, %v7760
    %8069 = vst.msk [vmem:[%s8023 + $0x168] sm:$0xff] %vm1971, %v7763
    %8070 = vst.msk [vmem:[%s8023 + $0x170] sm:$0xff] %vm1971, %v7766
    %8071 = vst.msk [vmem:[%s8023 + $0x178] sm:$0xff] %vm1971, %v7769
    %8072 = vst.msk [vmem:[%s8023 + $0x180] sm:$0xff] %vm1971, %v7772
    %8073 = vst.msk [vmem:[%s8023 + $0x188] sm:$0xff] %vm1971, %v7775
    %8074 = vst.msk [vmem:[%s8023 + $0x190] sm:$0xff] %vm1971, %v7778
    %8075 = vst.msk [vmem:[%s8023 + $0x198] sm:$0xff] %vm1971, %v7781
    %8076 = vst.msk [vmem:[%s8023 + $0x1a0] sm:$0xff] %vm1971, %v7784
    %8077 = vst.msk [vmem:[%s8023 + $0x1a8] sm:$0xff] %vm1971, %v7787
    %8078 = vst.msk [vmem:[%s8023 + $0x1b0] sm:$0xff] %vm1971, %v7790
    %8079 = vst.msk [vmem:[%s8023 + $0x1b8] sm:$0xff] %vm1971, %v7793
    %8080 = vst.msk [vmem:[%s8023 + $0x1c0] sm:$0xff] %vm1971, %v7796
    %8081 = vst.msk [vmem:[%s8023 + $0x1c8] sm:$0xff] %vm1971, %v7799
    %8082 = vst.msk [vmem:[%s8023 + $0x1d0] sm:$0xff] %vm1971, %v7802
    %8083 = vst.msk [vmem:[%s8023 + $0x1d8] sm:$0xff] %vm1971, %v7805
    %8084 = vst.msk [vmem:[%s8023 + $0x1e0] sm:$0xff] %vm1971, %v7808
    %8085 = vst.msk [vmem:[%s8023 + $0x1e8] sm:$0xff] %vm1971, %v7811
    %8086 = vst.msk [vmem:[%s8023 + $0x1f0] sm:$0xff] %vm1971, %v7814
    %8087 = vst.msk [vmem:[%s8023 + $0x1f8] sm:$0xff] %vm1971, %v7817
    %vm8088 = vcmask 1040384
    %v8089 = vsel %vm8088, %v7888, %v8022
    %8090 = vst [vmem:[#allocation3] sm:$0x3] %v8089
    // Predicated region
    $region10: #{tpu_custom_call.1} parent=1 // pred_check
      _
    $region11: #{tpu_custom_call.1} parent=1 // pred_check_branch
      %8092 = sbr.rel (0) target = $region13
    $region12: #{tpu_custom_call.1} parent=1 // pred_region
      _
    $region13: #{tpu_custom_call.1} parent=1 // pred_fallthru
      _
    // Predicated region
    $region14: #{tpu_custom_call.1} parent=1 // pred_check
      _
    $region15: #{tpu_custom_call.1} parent=1 // pred_check_branch
      %8094 = sbr.rel (0) target = $region17
    $region16: #{tpu_custom_call.1} parent=1 // pred_region
      %8096 = vsyncadd [#allocation4], 0
      %s8098 = sshll.u32 [#allocation3], 4
      %s8099 = int_to_ptr.vmem [resolvable:$true] %s8098
      %s8100 = sshll.u32 %s3, 4
      %s8101 = int_to_ptr.hbm [resolvable:$true] %s8100
      %8103 = dma.vmem_to_hbm [thread:$0]  %s8099, 32, %s8101, [#allocation4]
    $region17: #{tpu_custom_call.1} parent=1 // pred_fallthru
      _
    // Predicated region
    $region18: #{tpu_custom_call.1} parent=1 // pred_check
      _
    $region19: #{tpu_custom_call.1} parent=1 // pred_check_branch
      %8105 = sbr.rel (0) target = $region21
    $region20: #{tpu_custom_call.1} parent=1 // pred_region
      _
    $region21: #{tpu_custom_call.1} parent=1 // pred_fallthru
      _
    // Predicated region
    $region22: #{tpu_custom_call.1} parent=1 // pred_check
      _
    $region23: #{tpu_custom_call.1} parent=1 // pred_check_branch
      %8107 = sbr.rel (0) target = $region25
    $region24: #{tpu_custom_call.1} parent=1 // pred_region
      %8109 = dma.done [#allocation4], 32
    $region25: #{tpu_custom_call.1} parent=1 // pred_fallthru
      _
    %8110 = vsyncpa [#allocation4], 1

</llo_original>
